<compile_context>
chip_gen: v7x
topology: tpu7x:2x2x1
jax: 0.10.0
libtpu: 0.0.40
codegen_flags: <defaults>
</compile_context>

<pallas_src>
import functools

import jax
import jax.numpy as jnp
from jax import lax
from jax.experimental import pallas as pl
from jax.experimental.pallas import tpu as pltpu

ODE_UNFOLDS = 6          # ncps LTC default
EPSILON = 1e-8           # ncps LTC default
ELAPSED_TIME = 1.0       # LTC forward() default when no timespans are given
_VEC_ROWS = 16           # per-unit vector block padded to a sublane multiple


def _sigmoid(x):
    # Single-EUP tanh form (avoids a possible exp + reciprocal lowering).
    return 0.5 * jnp.tanh(0.5 * x) + 0.5


def _ltc_kernel(slab_ref, out_ref, *, seq_len, units, latent_dim):
    U, T, M = units, seq_len, latent_dim
    t_pad = (T + 7) // 8 * 8

    # --- unpack the single packed slab (all slices 8-sublane aligned) -------
    sigma = slab_ref[0 * U:1 * U, :]          # (U, U)
    mu    = slab_ref[1 * U:2 * U, :]          # (U, U)
    we    = slab_ref[2 * U:3 * U, :]          # softplus(w) * sparsity * erev
    ws    = slab_ref[3 * U:4 * U, :]          # softplus(w) * sparsity
    eye   = slab_ref[4 * U:5 * U, :]          # identity (relayout mask)

    vecs = slab_ref[5 * U:5 * U + _VEC_ROWS, :]   # (16, U) aligned block
    cm_t   = vecs[0:1, :]                     # softplus(cm) * ode_unfolds / dt
    gv     = vecs[1:2, :]                     # softplus(gleak) * vleak
    cg_eps = vecs[2:3, :]                     # cm_t + softplus(gleak) + EPSILON
    s_a    = vecs[3:4, :]                     # sensory_sigma * input_w
    s_b    = vecs[4:5, :]                     # sensory_sigma * (input_b - sensory_mu)
    s_we   = vecs[5:6, :]                     # softplus(sensory_w) * sspar * serev
    s_ws   = vecs[6:7, :]                     # softplus(sensory_w) * sspar
    ow     = vecs[7:8, :]                     # output_w (padded to U)
    ob     = vecs[8:9, :]                     # output_b (padded to U)

    x_blk = slab_ref[5 * U + _VEC_ROWS:5 * U + _VEC_ROWS + t_pad, :]  # x bcast to U lanes

    # --- sensory path: ODE-loop invariant, vectorized over all timesteps ----
    s_sig = _sigmoid(x_blk * s_a + s_b)       # (t_pad, U)
    gvs_all = gv + s_sig * s_we               # per-timestep numerator constant
    cgs_all = cg_eps + s_sig * s_ws           # per-timestep denominator constant

    def _colsum(m):
        # Exact f32 column sum of a (U, U) product: pairwise vadds across the
        # 8-sublane vreg groups, then a single cross-sublane (XLU) reduce.
        r = m[0:8, :]
        for s in range(8, U, 8):
            r = r + m[s:s + 8, :]
        return jnp.sum(r, axis=0, keepdims=True)          # (1, U)

    v = jnp.zeros((1, U), jnp.float32)

    # TODO(synk): batching independent sequences (v -> (B, U)) / packing the
    # unused 96 lanes is the only real throughput lever; the torch module
    # fixes batch == 1, so this kernel is purely latency-bound.
    for t in range(T):                                     # static unroll over time
        gvs = gvs_all[t:t + 1, :]
        cgs = cgs_all[t:t + 1, :]

        def _unfold(_, v):
            # Lane->sublane relayout of the state done with guaranteed vector
            # ops: row-broadcast, identity mask, lane reduce.  Bit-exact
            # (single non-zero term per row) and avoids small-shape
            # reshape/transpose lowerings on the 48-deep serial chain.
            v_col = jnp.sum(jnp.broadcast_to(v, (U, U)) * eye,
                            axis=1, keepdims=True)         # (U, 1)
            a = _sigmoid(sigma * (v_col - mu))              # (U, U), one EUP tanh
            num = cm_t * v + gvs + _colsum(a * we)
            den = cgs + _colsum(a * ws)
            r = pl.reciprocal(den, approx=True)             # EUP
            r = r * (2.0 - den * r)                         # one Newton step -> ~f32 exact
            return num * r

        v = lax.fori_loop(0, ODE_UNFOLDS, _unfold, v, unroll=True)

    # output mapping ("affine") on the motor neurons (first M neurons)
    out_ref[...] = (v * ow + ob)[:, 0:M]


@functools.partial(jax.jit, static_argnames=("n_features", "seq_len", "latent_dim"))
def lnn_encoder_forward(x, params, *, n_features, seq_len, latent_dim):
    """Equivalent of LNNEncoder.forward: returns (n_features, latent_dim)."""
    assert n_features == 1, "torch module's final reshape requires n_features == 1"
    x = jnp.asarray(x, jnp.float32).reshape(seq_len, n_features)
    p = params
    U = p["w"].shape[0]
    assert U % 8 == 0, "units must be a sublane multiple (default config: 32)"
    M, T = latent_dim, seq_len
    t_pad = (T + 7) // 8 * 8
    softplus = jax.nn.softplus

    # Parameter-only algebra hoisted out of the kernel
    # (implicit ncps constraints: softplus on w, sensory_w, gleak, cm).
    w_pos = softplus(p["w"])
    sw_pos = softplus(p["sensory_w"])
    gleak = softplus(p["gleak"])
    cm_t = softplus(p["cm"]) / (ELAPSED_TIME / ODE_UNFOLDS)

    pad_u = lambda v: jnp.pad(v, ((0, 0), (0, U - v.shape[1])))
    vecs = jnp.concatenate([
        cm_t,                                               # 0
        gleak * p["vleak"],                                 # 1
        cm_t + gleak + EPSILON,                             # 2
        p["sensory_sigma"] * p["input_w"],                  # 3 (input map folded in)
        p["sensory_sigma"] * (p["input_b"] - p["sensory_mu"]),  # 4
        sw_pos * p["sensory_sparsity"] * p["sensory_erev"], # 5
        sw_pos * p["sensory_sparsity"],                     # 6
        pad_u(p["output_w"]),                               # 7
        pad_u(p["output_b"]),                               # 8
    ], axis=0).astype(jnp.float32)
    vecs = jnp.pad(vecs, ((0, _VEC_ROWS - vecs.shape[0]), (0, 0)))

    # Input sequence, broadcast across the U lanes and padded to a sublane multiple.
    x_blk = jnp.zeros((t_pad, U), jnp.float32).at[:T, :].set(
        jnp.broadcast_to(x, (T, U)))

    # One packed VMEM slab -> a single input DMA.
    slab = jnp.concatenate([
        p["sigma"],
        p["mu"],
        w_pos * p["sparsity"] * p["erev"],
        w_pos * p["sparsity"],
        jnp.eye(U, dtype=jnp.float32),
        vecs,
        x_blk,
    ], axis=0).astype(jnp.float32)                          # (5U + 16 + t_pad, U)

    kernel = functools.partial(_ltc_kernel, seq_len=T, units=U, latent_dim=M)
    out = pl.pallas_call(
        kernel,
        out_shape=jax.ShapeDtypeStruct((1, M), jnp.float32),
        in_specs=[pl.BlockSpec(memory_space=pltpu.MemorySpace.VMEM)],
        out_specs=pl.BlockSpec(memory_space=pltpu.MemorySpace.VMEM),
    )(slab)
    return out.reshape(n_features, latent_dim)


def init_params(key, n_features, units, latent_dim):
    """Deterministic parameter init mirroring ncps.torch.LTCCell ranges."""
    # TODO(synk): AutoNCP's library-seeded random wiring graph has no clean
    # equivalent here; a deterministic synthetic {-1,0,+1} adjacency of the
    # same shape/value-domain is used instead.
    F, U, M = n_features, units, latent_dim
    ks = jax.random.split(key, 14)
    uni = lambda k, shape, lo, hi: jax.random.uniform(k, shape, jnp.float32, lo, hi)

    pol = jnp.where(jax.random.bernoulli(ks[0], 0.5, (U, U)), 1.0, -1.0)
    mask = jax.random.bernoulli(ks[1], 0.6, (U, U)).astype(jnp.float32)
    erev = (pol * mask).astype(jnp.float32)
    s_pol = jnp.where(jax.random.bernoulli(ks[2], 0.5, (F, U)), 1.0, -1.0)
    sensory_erev = s_pol.astype(jnp.float32)        # sensory fully connected

    return dict(
        gleak=uni(ks[3], (1, U), 0.001, 1.0),
        vleak=uni(ks[4], (1, U), -0.2, 0.2),
        cm=uni(ks[5], (1, U), 0.4, 0.6),
        sigma=uni(ks[6], (U, U), 3.0, 8.0),
        mu=uni(ks[7], (U, U), 0.3, 0.8),
        w=uni(ks[8], (U, U), 0.001, 1.0),
        erev=erev,
        sparsity=jnp.abs(erev),
        sensory_sigma=uni(ks[9], (F, U), 3.0, 8.0),
        sensory_mu=uni(ks[10], (F, U), 0.3, 0.8),
        sensory_w=uni(ks[11], (F, U), 0.001, 1.0),
        sensory_erev=sensory_erev,
        sensory_sparsity=jnp.abs(sensory_erev),
        input_w=jnp.ones((1, F), jnp.float32),
        input_b=jnp.zeros((1, F), jnp.float32),
        output_w=jnp.ones((1, M), jnp.float32),
        output_b=jnp.zeros((1, M), jnp.float32),
    )


def lnn_encoder_reference(x, p, *, n_features, seq_len, latent_dim):
    """Pure-JAX reference of the same LTC fused-ODE forward pass (unfused form)."""
    x = jnp.asarray(x, jnp.float32).reshape(seq_len, n_features)
    softplus, sigmoid = jax.nn.softplus, jax.nn.sigmoid
    U = p["w"].shape[0]
    w_pos, sw_pos = softplus(p["w"]), softplus(p["sensory_w"])
    gleak = softplus(p["gleak"])
    cm_t = softplus(p["cm"]) / (ELAPSED_TIME / ODE_UNFOLDS)
    v = jnp.zeros((1, U), jnp.float32)
    for t in range(seq_len):
        inp = x[t:t + 1, :] * p["input_w"] + p["input_b"]
        s_sig = sigmoid(p["sensory_sigma"][None] * (inp[:, :, None] - p["sensory_mu"][None]))
        s_act = sw_pos[None] * s_sig * p["sensory_sparsity"][None]
        w_num_s = jnp.sum(s_act * p["sensory_erev"][None], axis=1)
        w_den_s = jnp.sum(s_act, axis=1)
        for _ in range(ODE_UNFOLDS):
            a_sig = sigmoid(p["sigma"][None] * (v[:, :, None] - p["mu"][None]))
            w_act = w_pos[None] * a_sig * p["sparsity"][None]
            w_num = jnp.sum(w_act * p["erev"][None], axis=1) + w_num_s
            w_den = jnp.sum(w_act, axis=1) + w_den_s
            v = (cm_t * v + gleak * p["vleak"] + w_num) / (cm_t + gleak + w_den + EPSILON)
    out = v[:, 0:latent_dim] * p["output_w"] + p["output_b"]
    return out.reshape(n_features, latent_dim)


if __name__ == "__main__":
    # The torch module's final reshape (1, latent_dim) -> (n_features, latent_dim)
    # only works when n_features == 1, so that is the supported configuration.
    n_features = 1
    seq_len = 8
    latent_dim = 20
    units = max(32, latent_dim + 2)   # as in LNNEncoder.__init__

    key = jax.random.PRNGKey(0)
    k_x, k_p = jax.random.split(key)
    x = jax.random.normal(k_x, (seq_len, n_features), jnp.float32)
    params = init_params(k_p, n_features, units, latent_dim)

    out = lnn_encoder_forward(x, params, n_features=n_features,
                              seq_len=seq_len, latent_dim=latent_dim)
    out = jax.block_until_ready(out)
    assert out.shape == (n_features, latent_dim)

    ref = lnn_encoder_reference(x, params, n_features=n_features,
                                seq_len=seq_len, latent_dim=latent_dim)
    assert jnp.allclose(out, ref, rtol=1e-3, atol=1e-3), (out, ref)

    print("KERNEL_OK")
</pallas_src>

<mosaic_0001>
module attributes {stable_mosaic.version = 11 : i64} {
  func.func @_ltc_kernel(%arg0: memref<184x32xf32, #tpu.memory_space<vmem>>, %arg1: memref<1x20xf32, #tpu.memory_space<vmem>>) attributes {dimension_semantics = [], scalar_prefetch = 0 : i64, scratch_operands = 0 : i64, tpu.core_type = #tpu.core_type<tc>} {
    %c0 = arith.constant 0 : index
    %c0_0 = arith.constant 0 : index
    %0 = vector.load %arg0[%c0, %c0_0] : memref<184x32xf32, #tpu.memory_space<vmem>>, vector<32x32xf32>
    %c32 = arith.constant 32 : index
    %c0_1 = arith.constant 0 : index
    %1 = vector.load %arg0[%c32, %c0_1] : memref<184x32xf32, #tpu.memory_space<vmem>>, vector<32x32xf32>
    %c64 = arith.constant 64 : index
    %c0_2 = arith.constant 0 : index
    %2 = vector.load %arg0[%c64, %c0_2] : memref<184x32xf32, #tpu.memory_space<vmem>>, vector<32x32xf32>
    %c96 = arith.constant 96 : index
    %c0_3 = arith.constant 0 : index
    %3 = vector.load %arg0[%c96, %c0_3] : memref<184x32xf32, #tpu.memory_space<vmem>>, vector<32x32xf32>
    %c128 = arith.constant 128 : index
    %c0_4 = arith.constant 0 : index
    %4 = vector.load %arg0[%c128, %c0_4] : memref<184x32xf32, #tpu.memory_space<vmem>>, vector<32x32xf32>
    %c160 = arith.constant 160 : index
    %c0_5 = arith.constant 0 : index
    %5 = vector.load %arg0[%c160, %c0_5] : memref<184x32xf32, #tpu.memory_space<vmem>>, vector<16x32xf32>
    %6 = vector.extract_strided_slice %5 {offsets = [0, 0], sizes = [1, 32], strides = [1, 1]} : vector<16x32xf32> to vector<1x32xf32>
    %7 = vector.extract_strided_slice %5 {offsets = [1, 0], sizes = [1, 32], strides = [1, 1]} : vector<16x32xf32> to vector<1x32xf32>
    %8 = vector.extract_strided_slice %5 {offsets = [2, 0], sizes = [1, 32], strides = [1, 1]} : vector<16x32xf32> to vector<1x32xf32>
    %9 = vector.extract_strided_slice %5 {offsets = [3, 0], sizes = [1, 32], strides = [1, 1]} : vector<16x32xf32> to vector<1x32xf32>
    %10 = vector.extract_strided_slice %5 {offsets = [4, 0], sizes = [1, 32], strides = [1, 1]} : vector<16x32xf32> to vector<1x32xf32>
    %11 = vector.extract_strided_slice %5 {offsets = [5, 0], sizes = [1, 32], strides = [1, 1]} : vector<16x32xf32> to vector<1x32xf32>
    %12 = vector.extract_strided_slice %5 {offsets = [6, 0], sizes = [1, 32], strides = [1, 1]} : vector<16x32xf32> to vector<1x32xf32>
    %13 = vector.extract_strided_slice %5 {offsets = [7, 0], sizes = [1, 32], strides = [1, 1]} : vector<16x32xf32> to vector<1x32xf32>
    %14 = vector.extract_strided_slice %5 {offsets = [8, 0], sizes = [1, 32], strides = [1, 1]} : vector<16x32xf32> to vector<1x32xf32>
    %c176 = arith.constant 176 : index
    %c0_6 = arith.constant 0 : index
    %15 = vector.load %arg0[%c176, %c0_6] : memref<184x32xf32, #tpu.memory_space<vmem>>, vector<8x32xf32>
    %16 = vector.broadcast %9 : vector<1x32xf32> to vector<8x32xf32>
    %17 = arith.mulf %15, %16 : vector<8x32xf32>
    %18 = vector.broadcast %10 : vector<1x32xf32> to vector<8x32xf32>
    %19 = arith.addf %17, %18 : vector<8x32xf32>
    %cst = arith.constant 5.000000e-01 : f32
    %20 = vector.broadcast %cst : f32 to vector<8x32xf32>
    %21 = arith.mulf %20, %19 : vector<8x32xf32>
    %22 = math.tanh %21 : vector<8x32xf32>
    %cst_7 = arith.constant 5.000000e-01 : f32
    %23 = vector.broadcast %cst_7 : f32 to vector<8x32xf32>
    %24 = arith.mulf %23, %22 : vector<8x32xf32>
    %cst_8 = arith.constant 5.000000e-01 : f32
    %25 = vector.broadcast %cst_8 : f32 to vector<8x32xf32>
    %26 = arith.addf %24, %25 : vector<8x32xf32>
    %27 = vector.broadcast %11 : vector<1x32xf32> to vector<8x32xf32>
    %28 = arith.mulf %26, %27 : vector<8x32xf32>
    %29 = vector.broadcast %7 : vector<1x32xf32> to vector<8x32xf32>
    %30 = arith.addf %29, %28 : vector<8x32xf32>
    %31 = vector.broadcast %12 : vector<1x32xf32> to vector<8x32xf32>
    %32 = arith.mulf %26, %31 : vector<8x32xf32>
    %33 = vector.broadcast %8 : vector<1x32xf32> to vector<8x32xf32>
    %34 = arith.addf %33, %32 : vector<8x32xf32>
    %cst_9 = arith.constant 0.000000e+00 : f32
    %35 = vector.broadcast %cst_9 : f32 to vector<1x32xf32>
    %36 = vector.extract_strided_slice %30 {offsets = [0, 0], sizes = [1, 32], strides = [1, 1]} : vector<8x32xf32> to vector<1x32xf32>
    %37 = vector.extract_strided_slice %34 {offsets = [0, 0], sizes = [1, 32], strides = [1, 1]} : vector<8x32xf32> to vector<1x32xf32>
    %c0_i32 = arith.constant 0 : i32
    %38 = vector.shape_cast %35 : vector<1x32xf32> to vector<1x32xf32>
    %39 = vector.broadcast %38 : vector<1x32xf32> to vector<32x32xf32>
    %40 = arith.mulf %39, %4 : vector<32x32xf32>
    %cst_10 = arith.constant dense<0.000000e+00> : vector<32xf32>
    %41 = vector.multi_reduction <add>, %40, %cst_10 [1] : vector<32x32xf32> to vector<32xf32>
    %42 = vector.shape_cast %41 : vector<32xf32> to vector<32x1xf32>
    %43 = vector.broadcast %42 : vector<32x1xf32> to vector<32x32xf32>
    %44 = arith.subf %43, %1 : vector<32x32xf32>
    %45 = arith.mulf %0, %44 : vector<32x32xf32>
    %cst_11 = arith.constant 5.000000e-01 : f32
    %46 = vector.broadcast %cst_11 : f32 to vector<32x32xf32>
    %47 = arith.mulf %46, %45 : vector<32x32xf32>
    %48 = math.tanh %47 : vector<32x32xf32>
    %cst_12 = arith.constant 5.000000e-01 : f32
    %49 = vector.broadcast %cst_12 : f32 to vector<32x32xf32>
    %50 = arith.mulf %49, %48 : vector<32x32xf32>
    %cst_13 = arith.constant 5.000000e-01 : f32
    %51 = vector.broadcast %cst_13 : f32 to vector<32x32xf32>
    %52 = arith.addf %50, %51 : vector<32x32xf32>
    %53 = arith.mulf %6, %35 : vector<1x32xf32>
    %54 = arith.addf %53, %36 : vector<1x32xf32>
    %55 = arith.mulf %52, %2 : vector<32x32xf32>
    %56 = vector.extract_strided_slice %55 {offsets = [0, 0], sizes = [8, 32], strides = [1, 1]} : vector<32x32xf32> to vector<8x32xf32>
    %57 = vector.extract_strided_slice %55 {offsets = [8, 0], sizes = [8, 32], strides = [1, 1]} : vector<32x32xf32> to vector<8x32xf32>
    %58 = arith.addf %56, %57 : vector<8x32xf32>
    %59 = vector.extract_strided_slice %55 {offsets = [16, 0], sizes = [8, 32], strides = [1, 1]} : vector<32x32xf32> to vector<8x32xf32>
    %60 = arith.addf %58, %59 : vector<8x32xf32>
    %61 = vector.extract_strided_slice %55 {offsets = [24, 0], sizes = [8, 32], strides = [1, 1]} : vector<32x32xf32> to vector<8x32xf32>
    %62 = arith.addf %60, %61 : vector<8x32xf32>
    %cst_14 = arith.constant dense<0.000000e+00> : vector<32xf32>
    %63 = vector.multi_reduction <add>, %62, %cst_14 [0] : vector<8x32xf32> to vector<32xf32>
    %64 = vector.shape_cast %63 : vector<32xf32> to vector<1x32xf32>
    %65 = arith.addf %54, %64 : vector<1x32xf32>
    %66 = arith.mulf %52, %3 : vector<32x32xf32>
    %67 = vector.extract_strided_slice %66 {offsets = [0, 0], sizes = [8, 32], strides = [1, 1]} : vector<32x32xf32> to vector<8x32xf32>
    %68 = vector.extract_strided_slice %66 {offsets = [8, 0], sizes = [8, 32], strides = [1, 1]} : vector<32x32xf32> to vector<8x32xf32>
    %69 = arith.addf %67, %68 : vector<8x32xf32>
    %70 = vector.extract_strided_slice %66 {offsets = [16, 0], sizes = [8, 32], strides = [1, 1]} : vector<32x32xf32> to vector<8x32xf32>
    %71 = arith.addf %69, %70 : vector<8x32xf32>
    %72 = vector.extract_strided_slice %66 {offsets = [24, 0], sizes = [8, 32], strides = [1, 1]} : vector<32x32xf32> to vector<8x32xf32>
    %73 = arith.addf %71, %72 : vector<8x32xf32>
    %cst_15 = arith.constant dense<0.000000e+00> : vector<32xf32>
    %74 = vector.multi_reduction <add>, %73, %cst_15 [0] : vector<8x32xf32> to vector<32xf32>
    %75 = vector.shape_cast %74 : vector<32xf32> to vector<1x32xf32>
    %76 = arith.addf %37, %75 : vector<1x32xf32>
    %77 = tpu.reciprocal %76 {approx = true} : vector<1x32xf32> -> vector<1x32xf32>
    %78 = arith.mulf %76, %77 : vector<1x32xf32>
    %cst_16 = arith.constant 2.000000e+00 : f32
    %79 = vector.broadcast %cst_16 : f32 to vector<1x32xf32>
    %80 = arith.subf %79, %78 : vector<1x32xf32>
    %81 = arith.mulf %77, %80 : vector<1x32xf32>
    %82 = arith.mulf %65, %81 : vector<1x32xf32>
    %c1_i32 = arith.constant 1 : i32
    %83 = vector.shape_cast %82 : vector<1x32xf32> to vector<1x32xf32>
    %84 = vector.broadcast %83 : vector<1x32xf32> to vector<32x32xf32>
    %85 = arith.mulf %84, %4 : vector<32x32xf32>
    %cst_17 = arith.constant dense<0.000000e+00> : vector<32xf32>
    %86 = vector.multi_reduction <add>, %85, %cst_17 [1] : vector<32x32xf32> to vector<32xf32>
    %87 = vector.shape_cast %86 : vector<32xf32> to vector<32x1xf32>
    %88 = vector.broadcast %87 : vector<32x1xf32> to vector<32x32xf32>
    %89 = arith.subf %88, %1 : vector<32x32xf32>
    %90 = arith.mulf %0, %89 : vector<32x32xf32>
    %cst_18 = arith.constant 5.000000e-01 : f32
    %91 = vector.broadcast %cst_18 : f32 to vector<32x32xf32>
    %92 = arith.mulf %91, %90 : vector<32x32xf32>
    %93 = math.tanh %92 : vector<32x32xf32>
    %cst_19 = arith.constant 5.000000e-01 : f32
    %94 = vector.broadcast %cst_19 : f32 to vector<32x32xf32>
    %95 = arith.mulf %94, %93 : vector<32x32xf32>
    %cst_20 = arith.constant 5.000000e-01 : f32
    %96 = vector.broadcast %cst_20 : f32 to vector<32x32xf32>
    %97 = arith.addf %95, %96 : vector<32x32xf32>
    %98 = arith.mulf %6, %82 : vector<1x32xf32>
    %99 = arith.addf %98, %36 : vector<1x32xf32>
    %100 = arith.mulf %97, %2 : vector<32x32xf32>
    %101 = vector.extract_strided_slice %100 {offsets = [0, 0], sizes = [8, 32], strides = [1, 1]} : vector<32x32xf32> to vector<8x32xf32>
    %102 = vector.extract_strided_slice %100 {offsets = [8, 0], sizes = [8, 32], strides = [1, 1]} : vector<32x32xf32> to vector<8x32xf32>
    %103 = arith.addf %101, %102 : vector<8x32xf32>
    %104 = vector.extract_strided_slice %100 {offsets = [16, 0], sizes = [8, 32], strides = [1, 1]} : vector<32x32xf32> to vector<8x32xf32>
    %105 = arith.addf %103, %104 : vector<8x32xf32>
    %106 = vector.extract_strided_slice %100 {offsets = [24, 0], sizes = [8, 32], strides = [1, 1]} : vector<32x32xf32> to vector<8x32xf32>
    %107 = arith.addf %105, %106 : vector<8x32xf32>
    %cst_21 = arith.constant dense<0.000000e+00> : vector<32xf32>
    %108 = vector.multi_reduction <add>, %107, %cst_21 [0] : vector<8x32xf32> to vector<32xf32>
    %109 = vector.shape_cast %108 : vector<32xf32> to vector<1x32xf32>
    %110 = arith.addf %99, %109 : vector<1x32xf32>
    %111 = arith.mulf %97, %3 : vector<32x32xf32>
    %112 = vector.extract_strided_slice %111 {offsets = [0, 0], sizes = [8, 32], strides = [1, 1]} : vector<32x32xf32> to vector<8x32xf32>
    %113 = vector.extract_strided_slice %111 {offsets = [8, 0], sizes = [8, 32], strides = [1, 1]} : vector<32x32xf32> to vector<8x32xf32>
    %114 = arith.addf %112, %113 : vector<8x32xf32>
    %115 = vector.extract_strided_slice %111 {offsets = [16, 0], sizes = [8, 32], strides = [1, 1]} : vector<32x32xf32> to vector<8x32xf32>
    %116 = arith.addf %114, %115 : vector<8x32xf32>
    %117 = vector.extract_strided_slice %111 {offsets = [24, 0], sizes = [8, 32], strides = [1, 1]} : vector<32x32xf32> to vector<8x32xf32>
    %118 = arith.addf %116, %117 : vector<8x32xf32>
    %cst_22 = arith.constant dense<0.000000e+00> : vector<32xf32>
    %119 = vector.multi_reduction <add>, %118, %cst_22 [0] : vector<8x32xf32> to vector<32xf32>
    %120 = vector.shape_cast %119 : vector<32xf32> to vector<1x32xf32>
    %121 = arith.addf %37, %120 : vector<1x32xf32>
    %122 = tpu.reciprocal %121 {approx = true} : vector<1x32xf32> -> vector<1x32xf32>
    %123 = arith.mulf %121, %122 : vector<1x32xf32>
    %cst_23 = arith.constant 2.000000e+00 : f32
    %124 = vector.broadcast %cst_23 : f32 to vector<1x32xf32>
    %125 = arith.subf %124, %123 : vector<1x32xf32>
    %126 = arith.mulf %122, %125 : vector<1x32xf32>
    %127 = arith.mulf %110, %126 : vector<1x32xf32>
    %c2_i32 = arith.constant 2 : i32
    %128 = vector.shape_cast %127 : vector<1x32xf32> to vector<1x32xf32>
    %129 = vector.broadcast %128 : vector<1x32xf32> to vector<32x32xf32>
    %130 = arith.mulf %129, %4 : vector<32x32xf32>
    %cst_24 = arith.constant dense<0.000000e+00> : vector<32xf32>
    %131 = vector.multi_reduction <add>, %130, %cst_24 [1] : vector<32x32xf32> to vector<32xf32>
    %132 = vector.shape_cast %131 : vector<32xf32> to vector<32x1xf32>
    %133 = vector.broadcast %132 : vector<32x1xf32> to vector<32x32xf32>
    %134 = arith.subf %133, %1 : vector<32x32xf32>
    %135 = arith.mulf %0, %134 : vector<32x32xf32>
    %cst_25 = arith.constant 5.000000e-01 : f32
    %136 = vector.broadcast %cst_25 : f32 to vector<32x32xf32>
    %137 = arith.mulf %136, %135 : vector<32x32xf32>
    %138 = math.tanh %137 : vector<32x32xf32>
    %cst_26 = arith.constant 5.000000e-01 : f32
    %139 = vector.broadcast %cst_26 : f32 to vector<32x32xf32>
    %140 = arith.mulf %139, %138 : vector<32x32xf32>
    %cst_27 = arith.constant 5.000000e-01 : f32
    %141 = vector.broadcast %cst_27 : f32 to vector<32x32xf32>
    %142 = arith.addf %140, %141 : vector<32x32xf32>
    %143 = arith.mulf %6, %127 : vector<1x32xf32>
    %144 = arith.addf %143, %36 : vector<1x32xf32>
    %145 = arith.mulf %142, %2 : vector<32x32xf32>
    %146 = vector.extract_strided_slice %145 {offsets = [0, 0], sizes = [8, 32], strides = [1, 1]} : vector<32x32xf32> to vector<8x32xf32>
    %147 = vector.extract_strided_slice %145 {offsets = [8, 0], sizes = [8, 32], strides = [1, 1]} : vector<32x32xf32> to vector<8x32xf32>
    %148 = arith.addf %146, %147 : vector<8x32xf32>
    %149 = vector.extract_strided_slice %145 {offsets = [16, 0], sizes = [8, 32], strides = [1, 1]} : vector<32x32xf32> to vector<8x32xf32>
    %150 = arith.addf %148, %149 : vector<8x32xf32>
    %151 = vector.extract_strided_slice %145 {offsets = [24, 0], sizes = [8, 32], strides = [1, 1]} : vector<32x32xf32> to vector<8x32xf32>
    %152 = arith.addf %150, %151 : vector<8x32xf32>
    %cst_28 = arith.constant dense<0.000000e+00> : vector<32xf32>
    %153 = vector.multi_reduction <add>, %152, %cst_28 [0] : vector<8x32xf32> to vector<32xf32>
    %154 = vector.shape_cast %153 : vector<32xf32> to vector<1x32xf32>
    %155 = arith.addf %144, %154 : vector<1x32xf32>
    %156 = arith.mulf %142, %3 : vector<32x32xf32>
    %157 = vector.extract_strided_slice %156 {offsets = [0, 0], sizes = [8, 32], strides = [1, 1]} : vector<32x32xf32> to vector<8x32xf32>
    %158 = vector.extract_strided_slice %156 {offsets = [8, 0], sizes = [8, 32], strides = [1, 1]} : vector<32x32xf32> to vector<8x32xf32>
    %159 = arith.addf %157, %158 : vector<8x32xf32>
    %160 = vector.extract_strided_slice %156 {offsets = [16, 0], sizes = [8, 32], strides = [1, 1]} : vector<32x32xf32> to vector<8x32xf32>
    %161 = arith.addf %159, %160 : vector<8x32xf32>
    %162 = vector.extract_strided_slice %156 {offsets = [24, 0], sizes = [8, 32], strides = [1, 1]} : vector<32x32xf32> to vector<8x32xf32>
    %163 = arith.addf %161, %162 : vector<8x32xf32>
    %cst_29 = arith.constant dense<0.000000e+00> : vector<32xf32>
    %164 = vector.multi_reduction <add>, %163, %cst_29 [0] : vector<8x32xf32> to vector<32xf32>
    %165 = vector.shape_cast %164 : vector<32xf32> to vector<1x32xf32>
    %166 = arith.addf %37, %165 : vector<1x32xf32>
    %167 = tpu.reciprocal %166 {approx = true} : vector<1x32xf32> -> vector<1x32xf32>
    %168 = arith.mulf %166, %167 : vector<1x32xf32>
    %cst_30 = arith.constant 2.000000e+00 : f32
    %169 = vector.broadcast %cst_30 : f32 to vector<1x32xf32>
    %170 = arith.subf %169, %168 : vector<1x32xf32>
    %171 = arith.mulf %167, %170 : vector<1x32xf32>
    %172 = arith.mulf %155, %171 : vector<1x32xf32>
    %c3_i32 = arith.constant 3 : i32
    %173 = vector.shape_cast %172 : vector<1x32xf32> to vector<1x32xf32>
    %174 = vector.broadcast %173 : vector<1x32xf32> to vector<32x32xf32>
    %175 = arith.mulf %174, %4 : vector<32x32xf32>
    %cst_31 = arith.constant dense<0.000000e+00> : vector<32xf32>
    %176 = vector.multi_reduction <add>, %175, %cst_31 [1] : vector<32x32xf32> to vector<32xf32>
    %177 = vector.shape_cast %176 : vector<32xf32> to vector<32x1xf32>
    %178 = vector.broadcast %177 : vector<32x1xf32> to vector<32x32xf32>
    %179 = arith.subf %178, %1 : vector<32x32xf32>
    %180 = arith.mulf %0, %179 : vector<32x32xf32>
    %cst_32 = arith.constant 5.000000e-01 : f32
    %181 = vector.broadcast %cst_32 : f32 to vector<32x32xf32>
    %182 = arith.mulf %181, %180 : vector<32x32xf32>
    %183 = math.tanh %182 : vector<32x32xf32>
    %cst_33 = arith.constant 5.000000e-01 : f32
    %184 = vector.broadcast %cst_33 : f32 to vector<32x32xf32>
    %185 = arith.mulf %184, %183 : vector<32x32xf32>
    %cst_34 = arith.constant 5.000000e-01 : f32
    %186 = vector.broadcast %cst_34 : f32 to vector<32x32xf32>
    %187 = arith.addf %185, %186 : vector<32x32xf32>
    %188 = arith.mulf %6, %172 : vector<1x32xf32>
    %189 = arith.addf %188, %36 : vector<1x32xf32>
    %190 = arith.mulf %187, %2 : vector<32x32xf32>
    %191 = vector.extract_strided_slice %190 {offsets = [0, 0], sizes = [8, 32], strides = [1, 1]} : vector<32x32xf32> to vector<8x32xf32>
    %192 = vector.extract_strided_slice %190 {offsets = [8, 0], sizes = [8, 32], strides = [1, 1]} : vector<32x32xf32> to vector<8x32xf32>
    %193 = arith.addf %191, %192 : vector<8x32xf32>
    %194 = vector.extract_strided_slice %190 {offsets = [16, 0], sizes = [8, 32], strides = [1, 1]} : vector<32x32xf32> to vector<8x32xf32>
    %195 = arith.addf %193, %194 : vector<8x32xf32>
    %196 = vector.extract_strided_slice %190 {offsets = [24, 0], sizes = [8, 32], strides = [1, 1]} : vector<32x32xf32> to vector<8x32xf32>
    %197 = arith.addf %195, %196 : vector<8x32xf32>
    %cst_35 = arith.constant dense<0.000000e+00> : vector<32xf32>
    %198 = vector.multi_reduction <add>, %197, %cst_35 [0] : vector<8x32xf32> to vector<32xf32>
    %199 = vector.shape_cast %198 : vector<32xf32> to vector<1x32xf32>
    %200 = arith.addf %189, %199 : vector<1x32xf32>
    %201 = arith.mulf %187, %3 : vector<32x32xf32>
    %202 = vector.extract_strided_slice %201 {offsets = [0, 0], sizes = [8, 32], strides = [1, 1]} : vector<32x32xf32> to vector<8x32xf32>
    %203 = vector.extract_strided_slice %201 {offsets = [8, 0], sizes = [8, 32], strides = [1, 1]} : vector<32x32xf32> to vector<8x32xf32>
    %204 = arith.addf %202, %203 : vector<8x32xf32>
    %205 = vector.extract_strided_slice %201 {offsets = [16, 0], sizes = [8, 32], strides = [1, 1]} : vector<32x32xf32> to vector<8x32xf32>
    %206 = arith.addf %204, %205 : vector<8x32xf32>
    %207 = vector.extract_strided_slice %201 {offsets = [24, 0], sizes = [8, 32], strides = [1, 1]} : vector<32x32xf32> to vector<8x32xf32>
    %208 = arith.addf %206, %207 : vector<8x32xf32>
    %cst_36 = arith.constant dense<0.000000e+00> : vector<32xf32>
    %209 = vector.multi_reduction <add>, %208, %cst_36 [0] : vector<8x32xf32> to vector<32xf32>
    %210 = vector.shape_cast %209 : vector<32xf32> to vector<1x32xf32>
    %211 = arith.addf %37, %210 : vector<1x32xf32>
    %212 = tpu.reciprocal %211 {approx = true} : vector<1x32xf32> -> vector<1x32xf32>
    %213 = arith.mulf %211, %212 : vector<1x32xf32>
    %cst_37 = arith.constant 2.000000e+00 : f32
    %214 = vector.broadcast %cst_37 : f32 to vector<1x32xf32>
    %215 = arith.subf %214, %213 : vector<1x32xf32>
    %216 = arith.mulf %212, %215 : vector<1x32xf32>
    %217 = arith.mulf %200, %216 : vector<1x32xf32>
    %c4_i32 = arith.constant 4 : i32
    %218 = vector.shape_cast %217 : vector<1x32xf32> to vector<1x32xf32>
    %219 = vector.broadcast %218 : vector<1x32xf32> to vector<32x32xf32>
    %220 = arith.mulf %219, %4 : vector<32x32xf32>
    %cst_38 = arith.constant dense<0.000000e+00> : vector<32xf32>
    %221 = vector.multi_reduction <add>, %220, %cst_38 [1] : vector<32x32xf32> to vector<32xf32>
    %222 = vector.shape_cast %221 : vector<32xf32> to vector<32x1xf32>
    %223 = vector.broadcast %222 : vector<32x1xf32> to vector<32x32xf32>
    %224 = arith.subf %223, %1 : vector<32x32xf32>
    %225 = arith.mulf %0, %224 : vector<32x32xf32>
    %cst_39 = arith.constant 5.000000e-01 : f32
    %226 = vector.broadcast %cst_39 : f32 to vector<32x32xf32>
    %227 = arith.mulf %226, %225 : vector<32x32xf32>
    %228 = math.tanh %227 : vector<32x32xf32>
    %cst_40 = arith.constant 5.000000e-01 : f32
    %229 = vector.broadcast %cst_40 : f32 to vector<32x32xf32>
    %230 = arith.mulf %229, %228 : vector<32x32xf32>
    %cst_41 = arith.constant 5.000000e-01 : f32
    %231 = vector.broadcast %cst_41 : f32 to vector<32x32xf32>
    %232 = arith.addf %230, %231 : vector<32x32xf32>
    %233 = arith.mulf %6, %217 : vector<1x32xf32>
    %234 = arith.addf %233, %36 : vector<1x32xf32>
    %235 = arith.mulf %232, %2 : vector<32x32xf32>
    %236 = vector.extract_strided_slice %235 {offsets = [0, 0], sizes = [8, 32], strides = [1, 1]} : vector<32x32xf32> to vector<8x32xf32>
    %237 = vector.extract_strided_slice %235 {offsets = [8, 0], sizes = [8, 32], strides = [1, 1]} : vector<32x32xf32> to vector<8x32xf32>
    %238 = arith.addf %236, %237 : vector<8x32xf32>
    %239 = vector.extract_strided_slice %235 {offsets = [16, 0], sizes = [8, 32], strides = [1, 1]} : vector<32x32xf32> to vector<8x32xf32>
    %240 = arith.addf %238, %239 : vector<8x32xf32>
    %241 = vector.extract_strided_slice %235 {offsets = [24, 0], sizes = [8, 32], strides = [1, 1]} : vector<32x32xf32> to vector<8x32xf32>
    %242 = arith.addf %240, %241 : vector<8x32xf32>
    %cst_42 = arith.constant dense<0.000000e+00> : vector<32xf32>
    %243 = vector.multi_reduction <add>, %242, %cst_42 [0] : vector<8x32xf32> to vector<32xf32>
    %244 = vector.shape_cast %243 : vector<32xf32> to vector<1x32xf32>
    %245 = arith.addf %234, %244 : vector<1x32xf32>
    %246 = arith.mulf %232, %3 : vector<32x32xf32>
    %247 = vector.extract_strided_slice %246 {offsets = [0, 0], sizes = [8, 32], strides = [1, 1]} : vector<32x32xf32> to vector<8x32xf32>
    %248 = vector.extract_strided_slice %246 {offsets = [8, 0], sizes = [8, 32], strides = [1, 1]} : vector<32x32xf32> to vector<8x32xf32>
    %249 = arith.addf %247, %248 : vector<8x32xf32>
    %250 = vector.extract_strided_slice %246 {offsets = [16, 0], sizes = [8, 32], strides = [1, 1]} : vector<32x32xf32> to vector<8x32xf32>
    %251 = arith.addf %249, %250 : vector<8x32xf32>
    %252 = vector.extract_strided_slice %246 {offsets = [24, 0], sizes = [8, 32], strides = [1, 1]} : vector<32x32xf32> to vector<8x32xf32>
    %253 = arith.addf %251, %252 : vector<8x32xf32>
    %cst_43 = arith.constant dense<0.000000e+00> : vector<32xf32>
    %254 = vector.multi_reduction <add>, %253, %cst_43 [0] : vector<8x32xf32> to vector<32xf32>
    %255 = vector.shape_cast %254 : vector<32xf32> to vector<1x32xf32>
    %256 = arith.addf %37, %255 : vector<1x32xf32>
    %257 = tpu.reciprocal %256 {approx = true} : vector<1x32xf32> -> vector<1x32xf32>
    %258 = arith.mulf %256, %257 : vector<1x32xf32>
    %cst_44 = arith.constant 2.000000e+00 : f32
    %259 = vector.broadcast %cst_44 : f32 to vector<1x32xf32>
    %260 = arith.subf %259, %258 : vector<1x32xf32>
    %261 = arith.mulf %257, %260 : vector<1x32xf32>
    %262 = arith.mulf %245, %261 : vector<1x32xf32>
    %c5_i32 = arith.constant 5 : i32
    %263 = vector.shape_cast %262 : vector<1x32xf32> to vector<1x32xf32>
    %264 = vector.broadcast %263 : vector<1x32xf32> to vector<32x32xf32>
    %265 = arith.mulf %264, %4 : vector<32x32xf32>
    %cst_45 = arith.constant dense<0.000000e+00> : vector<32xf32>
    %266 = vector.multi_reduction <add>, %265, %cst_45 [1] : vector<32x32xf32> to vector<32xf32>
    %267 = vector.shape_cast %266 : vector<32xf32> to vector<32x1xf32>
    %268 = vector.broadcast %267 : vector<32x1xf32> to vector<32x32xf32>
    %269 = arith.subf %268, %1 : vector<32x32xf32>
    %270 = arith.mulf %0, %269 : vector<32x32xf32>
    %cst_46 = arith.constant 5.000000e-01 : f32
    %271 = vector.broadcast %cst_46 : f32 to vector<32x32xf32>
    %272 = arith.mulf %271, %270 : vector<32x32xf32>
    %273 = math.tanh %272 : vector<32x32xf32>
    %cst_47 = arith.constant 5.000000e-01 : f32
    %274 = vector.broadcast %cst_47 : f32 to vector<32x32xf32>
    %275 = arith.mulf %274, %273 : vector<32x32xf32>
    %cst_48 = arith.constant 5.000000e-01 : f32
    %276 = vector.broadcast %cst_48 : f32 to vector<32x32xf32>
    %277 = arith.addf %275, %276 : vector<32x32xf32>
    %278 = arith.mulf %6, %262 : vector<1x32xf32>
    %279 = arith.addf %278, %36 : vector<1x32xf32>
    %280 = arith.mulf %277, %2 : vector<32x32xf32>
    %281 = vector.extract_strided_slice %280 {offsets = [0, 0], sizes = [8, 32], strides = [1, 1]} : vector<32x32xf32> to vector<8x32xf32>
    %282 = vector.extract_strided_slice %280 {offsets = [8, 0], sizes = [8, 32], strides = [1, 1]} : vector<32x32xf32> to vector<8x32xf32>
    %283 = arith.addf %281, %282 : vector<8x32xf32>
    %284 = vector.extract_strided_slice %280 {offsets = [16, 0], sizes = [8, 32], strides = [1, 1]} : vector<32x32xf32> to vector<8x32xf32>
    %285 = arith.addf %283, %284 : vector<8x32xf32>
    %286 = vector.extract_strided_slice %280 {offsets = [24, 0], sizes = [8, 32], strides = [1, 1]} : vector<32x32xf32> to vector<8x32xf32>
    %287 = arith.addf %285, %286 : vector<8x32xf32>
    %cst_49 = arith.constant dense<0.000000e+00> : vector<32xf32>
    %288 = vector.multi_reduction <add>, %287, %cst_49 [0] : vector<8x32xf32> to vector<32xf32>
    %289 = vector.shape_cast %288 : vector<32xf32> to vector<1x32xf32>
    %290 = arith.addf %279, %289 : vector<1x32xf32>
    %291 = arith.mulf %277, %3 : vector<32x32xf32>
    %292 = vector.extract_strided_slice %291 {offsets = [0, 0], sizes = [8, 32], strides = [1, 1]} : vector<32x32xf32> to vector<8x32xf32>
    %293 = vector.extract_strided_slice %291 {offsets = [8, 0], sizes = [8, 32], strides = [1, 1]} : vector<32x32xf32> to vector<8x32xf32>
    %294 = arith.addf %292, %293 : vector<8x32xf32>
    %295 = vector.extract_strided_slice %291 {offsets = [16, 0], sizes = [8, 32], strides = [1, 1]} : vector<32x32xf32> to vector<8x32xf32>
    %296 = arith.addf %294, %295 : vector<8x32xf32>
    %297 = vector.extract_strided_slice %291 {offsets = [24, 0], sizes = [8, 32], strides = [1, 1]} : vector<32x32xf32> to vector<8x32xf32>
    %298 = arith.addf %296, %297 : vector<8x32xf32>
    %cst_50 = arith.constant dense<0.000000e+00> : vector<32xf32>
    %299 = vector.multi_reduction <add>, %298, %cst_50 [0] : vector<8x32xf32> to vector<32xf32>
    %300 = vector.shape_cast %299 : vector<32xf32> to vector<1x32xf32>
    %301 = arith.addf %37, %300 : vector<1x32xf32>
    %302 = tpu.reciprocal %301 {approx = true} : vector<1x32xf32> -> vector<1x32xf32>
    %303 = arith.mulf %301, %302 : vector<1x32xf32>
    %cst_51 = arith.constant 2.000000e+00 : f32
    %304 = vector.broadcast %cst_51 : f32 to vector<1x32xf32>
    %305 = arith.subf %304, %303 : vector<1x32xf32>
    %306 = arith.mulf %302, %305 : vector<1x32xf32>
    %307 = arith.mulf %290, %306 : vector<1x32xf32>
    %308 = vector.extract_strided_slice %30 {offsets = [1, 0], sizes = [1, 32], strides = [1, 1]} : vector<8x32xf32> to vector<1x32xf32>
    %309 = vector.extract_strided_slice %34 {offsets = [1, 0], sizes = [1, 32], strides = [1, 1]} : vector<8x32xf32> to vector<1x32xf32>
    %c0_i32_52 = arith.constant 0 : i32
    %310 = vector.shape_cast %307 : vector<1x32xf32> to vector<1x32xf32>
    %311 = vector.broadcast %310 : vector<1x32xf32> to vector<32x32xf32>
    %312 = arith.mulf %311, %4 : vector<32x32xf32>
    %cst_53 = arith.constant dense<0.000000e+00> : vector<32xf32>
    %313 = vector.multi_reduction <add>, %312, %cst_53 [1] : vector<32x32xf32> to vector<32xf32>
    %314 = vector.shape_cast %313 : vector<32xf32> to vector<32x1xf32>
    %315 = vector.broadcast %314 : vector<32x1xf32> to vector<32x32xf32>
    %316 = arith.subf %315, %1 : vector<32x32xf32>
    %317 = arith.mulf %0, %316 : vector<32x32xf32>
    %cst_54 = arith.constant 5.000000e-01 : f32
    %318 = vector.broadcast %cst_54 : f32 to vector<32x32xf32>
    %319 = arith.mulf %318, %317 : vector<32x32xf32>
    %320 = math.tanh %319 : vector<32x32xf32>
    %cst_55 = arith.constant 5.000000e-01 : f32
    %321 = vector.broadcast %cst_55 : f32 to vector<32x32xf32>
    %322 = arith.mulf %321, %320 : vector<32x32xf32>
    %cst_56 = arith.constant 5.000000e-01 : f32
    %323 = vector.broadcast %cst_56 : f32 to vector<32x32xf32>
    %324 = arith.addf %322, %323 : vector<32x32xf32>
    %325 = arith.mulf %6, %307 : vector<1x32xf32>
    %326 = arith.addf %325, %308 : vector<1x32xf32>
    %327 = arith.mulf %324, %2 : vector<32x32xf32>
    %328 = vector.extract_strided_slice %327 {offsets = [0, 0], sizes = [8, 32], strides = [1, 1]} : vector<32x32xf32> to vector<8x32xf32>
    %329 = vector.extract_strided_slice %327 {offsets = [8, 0], sizes = [8, 32], strides = [1, 1]} : vector<32x32xf32> to vector<8x32xf32>
    %330 = arith.addf %328, %329 : vector<8x32xf32>
    %331 = vector.extract_strided_slice %327 {offsets = [16, 0], sizes = [8, 32], strides = [1, 1]} : vector<32x32xf32> to vector<8x32xf32>
    %332 = arith.addf %330, %331 : vector<8x32xf32>
    %333 = vector.extract_strided_slice %327 {offsets = [24, 0], sizes = [8, 32], strides = [1, 1]} : vector<32x32xf32> to vector<8x32xf32>
    %334 = arith.addf %332, %333 : vector<8x32xf32>
    %cst_57 = arith.constant dense<0.000000e+00> : vector<32xf32>
    %335 = vector.multi_reduction <add>, %334, %cst_57 [0] : vector<8x32xf32> to vector<32xf32>
    %336 = vector.shape_cast %335 : vector<32xf32> to vector<1x32xf32>
    %337 = arith.addf %326, %336 : vector<1x32xf32>
    %338 = arith.mulf %324, %3 : vector<32x32xf32>
    %339 = vector.extract_strided_slice %338 {offsets = [0, 0], sizes = [8, 32], strides = [1, 1]} : vector<32x32xf32> to vector<8x32xf32>
    %340 = vector.extract_strided_slice %338 {offsets = [8, 0], sizes = [8, 32], strides = [1, 1]} : vector<32x32xf32> to vector<8x32xf32>
    %341 = arith.addf %339, %340 : vector<8x32xf32>
    %342 = vector.extract_strided_slice %338 {offsets = [16, 0], sizes = [8, 32], strides = [1, 1]} : vector<32x32xf32> to vector<8x32xf32>
    %343 = arith.addf %341, %342 : vector<8x32xf32>
    %344 = vector.extract_strided_slice %338 {offsets = [24, 0], sizes = [8, 32], strides = [1, 1]} : vector<32x32xf32> to vector<8x32xf32>
    %345 = arith.addf %343, %344 : vector<8x32xf32>
    %cst_58 = arith.constant dense<0.000000e+00> : vector<32xf32>
    %346 = vector.multi_reduction <add>, %345, %cst_58 [0] : vector<8x32xf32> to vector<32xf32>
    %347 = vector.shape_cast %346 : vector<32xf32> to vector<1x32xf32>
    %348 = arith.addf %309, %347 : vector<1x32xf32>
    %349 = tpu.reciprocal %348 {approx = true} : vector<1x32xf32> -> vector<1x32xf32>
    %350 = arith.mulf %348, %349 : vector<1x32xf32>
    %cst_59 = arith.constant 2.000000e+00 : f32
    %351 = vector.broadcast %cst_59 : f32 to vector<1x32xf32>
    %352 = arith.subf %351, %350 : vector<1x32xf32>
    %353 = arith.mulf %349, %352 : vector<1x32xf32>
    %354 = arith.mulf %337, %353 : vector<1x32xf32>
    %c1_i32_60 = arith.constant 1 : i32
    %355 = vector.shape_cast %354 : vector<1x32xf32> to vector<1x32xf32>
    %356 = vector.broadcast %355 : vector<1x32xf32> to vector<32x32xf32>
    %357 = arith.mulf %356, %4 : vector<32x32xf32>
    %cst_61 = arith.constant dense<0.000000e+00> : vector<32xf32>
    %358 = vector.multi_reduction <add>, %357, %cst_61 [1] : vector<32x32xf32> to vector<32xf32>
    %359 = vector.shape_cast %358 : vector<32xf32> to vector<32x1xf32>
    %360 = vector.broadcast %359 : vector<32x1xf32> to vector<32x32xf32>
    %361 = arith.subf %360, %1 : vector<32x32xf32>
    %362 = arith.mulf %0, %361 : vector<32x32xf32>
    %cst_62 = arith.constant 5.000000e-01 : f32
    %363 = vector.broadcast %cst_62 : f32 to vector<32x32xf32>
    %364 = arith.mulf %363, %362 : vector<32x32xf32>
    %365 = math.tanh %364 : vector<32x32xf32>
    %cst_63 = arith.constant 5.000000e-01 : f32
    %366 = vector.broadcast %cst_63 : f32 to vector<32x32xf32>
    %367 = arith.mulf %366, %365 : vector<32x32xf32>
    %cst_64 = arith.constant 5.000000e-01 : f32
    %368 = vector.broadcast %cst_64 : f32 to vector<32x32xf32>
    %369 = arith.addf %367, %368 : vector<32x32xf32>
    %370 = arith.mulf %6, %354 : vector<1x32xf32>
    %371 = arith.addf %370, %308 : vector<1x32xf32>
    %372 = arith.mulf %369, %2 : vector<32x32xf32>
    %373 = vector.extract_strided_slice %372 {offsets = [0, 0], sizes = [8, 32], strides = [1, 1]} : vector<32x32xf32> to vector<8x32xf32>
    %374 = vector.extract_strided_slice %372 {offsets = [8, 0], sizes = [8, 32], strides = [1, 1]} : vector<32x32xf32> to vector<8x32xf32>
    %375 = arith.addf %373, %374 : vector<8x32xf32>
    %376 = vector.extract_strided_slice %372 {offsets = [16, 0], sizes = [8, 32], strides = [1, 1]} : vector<32x32xf32> to vector<8x32xf32>
    %377 = arith.addf %375, %376 : vector<8x32xf32>
    %378 = vector.extract_strided_slice %372 {offsets = [24, 0], sizes = [8, 32], strides = [1, 1]} : vector<32x32xf32> to vector<8x32xf32>
    %379 = arith.addf %377, %378 : vector<8x32xf32>
    %cst_65 = arith.constant dense<0.000000e+00> : vector<32xf32>
    %380 = vector.multi_reduction <add>, %379, %cst_65 [0] : vector<8x32xf32> to vector<32xf32>
    %381 = vector.shape_cast %380 : vector<32xf32> to vector<1x32xf32>
    %382 = arith.addf %371, %381 : vector<1x32xf32>
    %383 = arith.mulf %369, %3 : vector<32x32xf32>
    %384 = vector.extract_strided_slice %383 {offsets = [0, 0], sizes = [8, 32], strides = [1, 1]} : vector<32x32xf32> to vector<8x32xf32>
    %385 = vector.extract_strided_slice %383 {offsets = [8, 0], sizes = [8, 32], strides = [1, 1]} : vector<32x32xf32> to vector<8x32xf32>
    %386 = arith.addf %384, %385 : vector<8x32xf32>
    %387 = vector.extract_strided_slice %383 {offsets = [16, 0], sizes = [8, 32], strides = [1, 1]} : vector<32x32xf32> to vector<8x32xf32>
    %388 = arith.addf %386, %387 : vector<8x32xf32>
    %389 = vector.extract_strided_slice %383 {offsets = [24, 0], sizes = [8, 32], strides = [1, 1]} : vector<32x32xf32> to vector<8x32xf32>
    %390 = arith.addf %388, %389 : vector<8x32xf32>
    %cst_66 = arith.constant dense<0.000000e+00> : vector<32xf32>
    %391 = vector.multi_reduction <add>, %390, %cst_66 [0] : vector<8x32xf32> to vector<32xf32>
    %392 = vector.shape_cast %391 : vector<32xf32> to vector<1x32xf32>
    %393 = arith.addf %309, %392 : vector<1x32xf32>
    %394 = tpu.reciprocal %393 {approx = true} : vector<1x32xf32> -> vector<1x32xf32>
    %395 = arith.mulf %393, %394 : vector<1x32xf32>
    %cst_67 = arith.constant 2.000000e+00 : f32
    %396 = vector.broadcast %cst_67 : f32 to vector<1x32xf32>
    %397 = arith.subf %396, %395 : vector<1x32xf32>
    %398 = arith.mulf %394, %397 : vector<1x32xf32>
    %399 = arith.mulf %382, %398 : vector<1x32xf32>
    %c2_i32_68 = arith.constant 2 : i32
    %400 = vector.shape_cast %399 : vector<1x32xf32> to vector<1x32xf32>
    %401 = vector.broadcast %400 : vector<1x32xf32> to vector<32x32xf32>
    %402 = arith.mulf %401, %4 : vector<32x32xf32>
    %cst_69 = arith.constant dense<0.000000e+00> : vector<32xf32>
    %403 = vector.multi_reduction <add>, %402, %cst_69 [1] : vector<32x32xf32> to vector<32xf32>
    %404 = vector.shape_cast %403 : vector<32xf32> to vector<32x1xf32>
    %405 = vector.broadcast %404 : vector<32x1xf32> to vector<32x32xf32>
    %406 = arith.subf %405, %1 : vector<32x32xf32>
    %407 = arith.mulf %0, %406 : vector<32x32xf32>
    %cst_70 = arith.constant 5.000000e-01 : f32
    %408 = vector.broadcast %cst_70 : f32 to vector<32x32xf32>
    %409 = arith.mulf %408, %407 : vector<32x32xf32>
    %410 = math.tanh %409 : vector<32x32xf32>
    %cst_71 = arith.constant 5.000000e-01 : f32
    %411 = vector.broadcast %cst_71 : f32 to vector<32x32xf32>
    %412 = arith.mulf %411, %410 : vector<32x32xf32>
    %cst_72 = arith.constant 5.000000e-01 : f32
    %413 = vector.broadcast %cst_72 : f32 to vector<32x32xf32>
    %414 = arith.addf %412, %413 : vector<32x32xf32>
    %415 = arith.mulf %6, %399 : vector<1x32xf32>
    %416 = arith.addf %415, %308 : vector<1x32xf32>
    %417 = arith.mulf %414, %2 : vector<32x32xf32>
    %418 = vector.extract_strided_slice %417 {offsets = [0, 0], sizes = [8, 32], strides = [1, 1]} : vector<32x32xf32> to vector<8x32xf32>
    %419 = vector.extract_strided_slice %417 {offsets = [8, 0], sizes = [8, 32], strides = [1, 1]} : vector<32x32xf32> to vector<8x32xf32>
    %420 = arith.addf %418, %419 : vector<8x32xf32>
    %421 = vector.extract_strided_slice %417 {offsets = [16, 0], sizes = [8, 32], strides = [1, 1]} : vector<32x32xf32> to vector<8x32xf32>
    %422 = arith.addf %420, %421 : vector<8x32xf32>
    %423 = vector.extract_strided_slice %417 {offsets = [24, 0], sizes = [8, 32], strides = [1, 1]} : vector<32x32xf32> to vector<8x32xf32>
    %424 = arith.addf %422, %423 : vector<8x32xf32>
    %cst_73 = arith.constant dense<0.000000e+00> : vector<32xf32>
    %425 = vector.multi_reduction <add>, %424, %cst_73 [0] : vector<8x32xf32> to vector<32xf32>
    %426 = vector.shape_cast %425 : vector<32xf32> to vector<1x32xf32>
    %427 = arith.addf %416, %426 : vector<1x32xf32>
    %428 = arith.mulf %414, %3 : vector<32x32xf32>
    %429 = vector.extract_strided_slice %428 {offsets = [0, 0], sizes = [8, 32], strides = [1, 1]} : vector<32x32xf32> to vector<8x32xf32>
    %430 = vector.extract_strided_slice %428 {offsets = [8, 0], sizes = [8, 32], strides = [1, 1]} : vector<32x32xf32> to vector<8x32xf32>
    %431 = arith.addf %429, %430 : vector<8x32xf32>
    %432 = vector.extract_strided_slice %428 {offsets = [16, 0], sizes = [8, 32], strides = [1, 1]} : vector<32x32xf32> to vector<8x32xf32>
    %433 = arith.addf %431, %432 : vector<8x32xf32>
    %434 = vector.extract_strided_slice %428 {offsets = [24, 0], sizes = [8, 32], strides = [1, 1]} : vector<32x32xf32> to vector<8x32xf32>
    %435 = arith.addf %433, %434 : vector<8x32xf32>
    %cst_74 = arith.constant dense<0.000000e+00> : vector<32xf32>
    %436 = vector.multi_reduction <add>, %435, %cst_74 [0] : vector<8x32xf32> to vector<32xf32>
    %437 = vector.shape_cast %436 : vector<32xf32> to vector<1x32xf32>
    %438 = arith.addf %309, %437 : vector<1x32xf32>
    %439 = tpu.reciprocal %438 {approx = true} : vector<1x32xf32> -> vector<1x32xf32>
    %440 = arith.mulf %438, %439 : vector<1x32xf32>
    %cst_75 = arith.constant 2.000000e+00 : f32
    %441 = vector.broadcast %cst_75 : f32 to vector<1x32xf32>
    %442 = arith.subf %441, %440 : vector<1x32xf32>
    %443 = arith.mulf %439, %442 : vector<1x32xf32>
    %444 = arith.mulf %427, %443 : vector<1x32xf32>
    %c3_i32_76 = arith.constant 3 : i32
    %445 = vector.shape_cast %444 : vector<1x32xf32> to vector<1x32xf32>
    %446 = vector.broadcast %445 : vector<1x32xf32> to vector<32x32xf32>
    %447 = arith.mulf %446, %4 : vector<32x32xf32>
    %cst_77 = arith.constant dense<0.000000e+00> : vector<32xf32>
    %448 = vector.multi_reduction <add>, %447, %cst_77 [1] : vector<32x32xf32> to vector<32xf32>
    %449 = vector.shape_cast %448 : vector<32xf32> to vector<32x1xf32>
    %450 = vector.broadcast %449 : vector<32x1xf32> to vector<32x32xf32>
    %451 = arith.subf %450, %1 : vector<32x32xf32>
    %452 = arith.mulf %0, %451 : vector<32x32xf32>
    %cst_78 = arith.constant 5.000000e-01 : f32
    %453 = vector.broadcast %cst_78 : f32 to vector<32x32xf32>
    %454 = arith.mulf %453, %452 : vector<32x32xf32>
    %455 = math.tanh %454 : vector<32x32xf32>
    %cst_79 = arith.constant 5.000000e-01 : f32
    %456 = vector.broadcast %cst_79 : f32 to vector<32x32xf32>
    %457 = arith.mulf %456, %455 : vector<32x32xf32>
    %cst_80 = arith.constant 5.000000e-01 : f32
    %458 = vector.broadcast %cst_80 : f32 to vector<32x32xf32>
    %459 = arith.addf %457, %458 : vector<32x32xf32>
    %460 = arith.mulf %6, %444 : vector<1x32xf32>
    %461 = arith.addf %460, %308 : vector<1x32xf32>
    %462 = arith.mulf %459, %2 : vector<32x32xf32>
    %463 = vector.extract_strided_slice %462 {offsets = [0, 0], sizes = [8, 32], strides = [1, 1]} : vector<32x32xf32> to vector<8x32xf32>
    %464 = vector.extract_strided_slice %462 {offsets = [8, 0], sizes = [8, 32], strides = [1, 1]} : vector<32x32xf32> to vector<8x32xf32>
    %465 = arith.addf %463, %464 : vector<8x32xf32>
    %466 = vector.extract_strided_slice %462 {offsets = [16, 0], sizes = [8, 32], strides = [1, 1]} : vector<32x32xf32> to vector<8x32xf32>
    %467 = arith.addf %465, %466 : vector<8x32xf32>
    %468 = vector.extract_strided_slice %462 {offsets = [24, 0], sizes = [8, 32], strides = [1, 1]} : vector<32x32xf32> to vector<8x32xf32>
    %469 = arith.addf %467, %468 : vector<8x32xf32>
    %cst_81 = arith.constant dense<0.000000e+00> : vector<32xf32>
    %470 = vector.multi_reduction <add>, %469, %cst_81 [0] : vector<8x32xf32> to vector<32xf32>
    %471 = vector.shape_cast %470 : vector<32xf32> to vector<1x32xf32>
    %472 = arith.addf %461, %471 : vector<1x32xf32>
    %473 = arith.mulf %459, %3 : vector<32x32xf32>
    %474 = vector.extract_strided_slice %473 {offsets = [0, 0], sizes = [8, 32], strides = [1, 1]} : vector<32x32xf32> to vector<8x32xf32>
    %475 = vector.extract_strided_slice %473 {offsets = [8, 0], sizes = [8, 32], strides = [1, 1]} : vector<32x32xf32> to vector<8x32xf32>
    %476 = arith.addf %474, %475 : vector<8x32xf32>
    %477 = vector.extract_strided_slice %473 {offsets = [16, 0], sizes = [8, 32], strides = [1, 1]} : vector<32x32xf32> to vector<8x32xf32>
    %478 = arith.addf %476, %477 : vector<8x32xf32>
    %479 = vector.extract_strided_slice %473 {offsets = [24, 0], sizes = [8, 32], strides = [1, 1]} : vector<32x32xf32> to vector<8x32xf32>
    %480 = arith.addf %478, %479 : vector<8x32xf32>
    %cst_82 = arith.constant dense<0.000000e+00> : vector<32xf32>
    %481 = vector.multi_reduction <add>, %480, %cst_82 [0] : vector<8x32xf32> to vector<32xf32>
    %482 = vector.shape_cast %481 : vector<32xf32> to vector<1x32xf32>
    %483 = arith.addf %309, %482 : vector<1x32xf32>
    %484 = tpu.reciprocal %483 {approx = true} : vector<1x32xf32> -> vector<1x32xf32>
    %485 = arith.mulf %483, %484 : vector<1x32xf32>
    %cst_83 = arith.constant 2.000000e+00 : f32
    %486 = vector.broadcast %cst_83 : f32 to vector<1x32xf32>
    %487 = arith.subf %486, %485 : vector<1x32xf32>
    %488 = arith.mulf %484, %487 : vector<1x32xf32>
    %489 = arith.mulf %472, %488 : vector<1x32xf32>
    %c4_i32_84 = arith.constant 4 : i32
    %490 = vector.shape_cast %489 : vector<1x32xf32> to vector<1x32xf32>
    %491 = vector.broadcast %490 : vector<1x32xf32> to vector<32x32xf32>
    %492 = arith.mulf %491, %4 : vector<32x32xf32>
    %cst_85 = arith.constant dense<0.000000e+00> : vector<32xf32>
    %493 = vector.multi_reduction <add>, %492, %cst_85 [1] : vector<32x32xf32> to vector<32xf32>
    %494 = vector.shape_cast %493 : vector<32xf32> to vector<32x1xf32>
    %495 = vector.broadcast %494 : vector<32x1xf32> to vector<32x32xf32>
    %496 = arith.subf %495, %1 : vector<32x32xf32>
    %497 = arith.mulf %0, %496 : vector<32x32xf32>
    %cst_86 = arith.constant 5.000000e-01 : f32
    %498 = vector.broadcast %cst_86 : f32 to vector<32x32xf32>
    %499 = arith.mulf %498, %497 : vector<32x32xf32>
    %500 = math.tanh %499 : vector<32x32xf32>
    %cst_87 = arith.constant 5.000000e-01 : f32
    %501 = vector.broadcast %cst_87 : f32 to vector<32x32xf32>
    %502 = arith.mulf %501, %500 : vector<32x32xf32>
    %cst_88 = arith.constant 5.000000e-01 : f32
    %503 = vector.broadcast %cst_88 : f32 to vector<32x32xf32>
    %504 = arith.addf %502, %503 : vector<32x32xf32>
    %505 = arith.mulf %6, %489 : vector<1x32xf32>
    %506 = arith.addf %505, %308 : vector<1x32xf32>
    %507 = arith.mulf %504, %2 : vector<32x32xf32>
    %508 = vector.extract_strided_slice %507 {offsets = [0, 0], sizes = [8, 32], strides = [1, 1]} : vector<32x32xf32> to vector<8x32xf32>
    %509 = vector.extract_strided_slice %507 {offsets = [8, 0], sizes = [8, 32], strides = [1, 1]} : vector<32x32xf32> to vector<8x32xf32>
    %510 = arith.addf %508, %509 : vector<8x32xf32>
    %511 = vector.extract_strided_slice %507 {offsets = [16, 0], sizes = [8, 32], strides = [1, 1]} : vector<32x32xf32> to vector<8x32xf32>
    %512 = arith.addf %510, %511 : vector<8x32xf32>
    %513 = vector.extract_strided_slice %507 {offsets = [24, 0], sizes = [8, 32], strides = [1, 1]} : vector<32x32xf32> to vector<8x32xf32>
    %514 = arith.addf %512, %513 : vector<8x32xf32>
    %cst_89 = arith.constant dense<0.000000e+00> : vector<32xf32>
    %515 = vector.multi_reduction <add>, %514, %cst_89 [0] : vector<8x32xf32> to vector<32xf32>
    %516 = vector.shape_cast %515 : vector<32xf32> to vector<1x32xf32>
    %517 = arith.addf %506, %516 : vector<1x32xf32>
    %518 = arith.mulf %504, %3 : vector<32x32xf32>
    %519 = vector.extract_strided_slice %518 {offsets = [0, 0], sizes = [8, 32], strides = [1, 1]} : vector<32x32xf32> to vector<8x32xf32>
    %520 = vector.extract_strided_slice %518 {offsets = [8, 0], sizes = [8, 32], strides = [1, 1]} : vector<32x32xf32> to vector<8x32xf32>
    %521 = arith.addf %519, %520 : vector<8x32xf32>
    %522 = vector.extract_strided_slice %518 {offsets = [16, 0], sizes = [8, 32], strides = [1, 1]} : vector<32x32xf32> to vector<8x32xf32>
    %523 = arith.addf %521, %522 : vector<8x32xf32>
    %524 = vector.extract_strided_slice %518 {offsets = [24, 0], sizes = [8, 32], strides = [1, 1]} : vector<32x32xf32> to vector<8x32xf32>
    %525 = arith.addf %523, %524 : vector<8x32xf32>
    %cst_90 = arith.constant dense<0.000000e+00> : vector<32xf32>
    %526 = vector.multi_reduction <add>, %525, %cst_90 [0] : vector<8x32xf32> to vector<32xf32>
    %527 = vector.shape_cast %526 : vector<32xf32> to vector<1x32xf32>
    %528 = arith.addf %309, %527 : vector<1x32xf32>
    %529 = tpu.reciprocal %528 {approx = true} : vector<1x32xf32> -> vector<1x32xf32>
    %530 = arith.mulf %528, %529 : vector<1x32xf32>
    %cst_91 = arith.constant 2.000000e+00 : f32
    %531 = vector.broadcast %cst_91 : f32 to vector<1x32xf32>
    %532 = arith.subf %531, %530 : vector<1x32xf32>
    %533 = arith.mulf %529, %532 : vector<1x32xf32>
    %534 = arith.mulf %517, %533 : vector<1x32xf32>
    %c5_i32_92 = arith.constant 5 : i32
    %535 = vector.shape_cast %534 : vector<1x32xf32> to vector<1x32xf32>
    %536 = vector.broadcast %535 : vector<1x32xf32> to vector<32x32xf32>
    %537 = arith.mulf %536, %4 : vector<32x32xf32>
    %cst_93 = arith.constant dense<0.000000e+00> : vector<32xf32>
    %538 = vector.multi_reduction <add>, %537, %cst_93 [1] : vector<32x32xf32> to vector<32xf32>
    %539 = vector.shape_cast %538 : vector<32xf32> to vector<32x1xf32>
    %540 = vector.broadcast %539 : vector<32x1xf32> to vector<32x32xf32>
    %541 = arith.subf %540, %1 : vector<32x32xf32>
    %542 = arith.mulf %0, %541 : vector<32x32xf32>
    %cst_94 = arith.constant 5.000000e-01 : f32
    %543 = vector.broadcast %cst_94 : f32 to vector<32x32xf32>
    %544 = arith.mulf %543, %542 : vector<32x32xf32>
    %545 = math.tanh %544 : vector<32x32xf32>
    %cst_95 = arith.constant 5.000000e-01 : f32
    %546 = vector.broadcast %cst_95 : f32 to vector<32x32xf32>
    %547 = arith.mulf %546, %545 : vector<32x32xf32>
    %cst_96 = arith.constant 5.000000e-01 : f32
    %548 = vector.broadcast %cst_96 : f32 to vector<32x32xf32>
    %549 = arith.addf %547, %548 : vector<32x32xf32>
    %550 = arith.mulf %6, %534 : vector<1x32xf32>
    %551 = arith.addf %550, %308 : vector<1x32xf32>
    %552 = arith.mulf %549, %2 : vector<32x32xf32>
    %553 = vector.extract_strided_slice %552 {offsets = [0, 0], sizes = [8, 32], strides = [1, 1]} : vector<32x32xf32> to vector<8x32xf32>
    %554 = vector.extract_strided_slice %552 {offsets = [8, 0], sizes = [8, 32], strides = [1, 1]} : vector<32x32xf32> to vector<8x32xf32>
    %555 = arith.addf %553, %554 : vector<8x32xf32>
    %556 = vector.extract_strided_slice %552 {offsets = [16, 0], sizes = [8, 32], strides = [1, 1]} : vector<32x32xf32> to vector<8x32xf32>
    %557 = arith.addf %555, %556 : vector<8x32xf32>
    %558 = vector.extract_strided_slice %552 {offsets = [24, 0], sizes = [8, 32], strides = [1, 1]} : vector<32x32xf32> to vector<8x32xf32>
    %559 = arith.addf %557, %558 : vector<8x32xf32>
    %cst_97 = arith.constant dense<0.000000e+00> : vector<32xf32>
    %560 = vector.multi_reduction <add>, %559, %cst_97 [0] : vector<8x32xf32> to vector<32xf32>
    %561 = vector.shape_cast %560 : vector<32xf32> to vector<1x32xf32>
    %562 = arith.addf %551, %561 : vector<1x32xf32>
    %563 = arith.mulf %549, %3 : vector<32x32xf32>
    %564 = vector.extract_strided_slice %563 {offsets = [0, 0], sizes = [8, 32], strides = [1, 1]} : vector<32x32xf32> to vector<8x32xf32>
    %565 = vector.extract_strided_slice %563 {offsets = [8, 0], sizes = [8, 32], strides = [1, 1]} : vector<32x32xf32> to vector<8x32xf32>
    %566 = arith.addf %564, %565 : vector<8x32xf32>
    %567 = vector.extract_strided_slice %563 {offsets = [16, 0], sizes = [8, 32], strides = [1, 1]} : vector<32x32xf32> to vector<8x32xf32>
    %568 = arith.addf %566, %567 : vector<8x32xf32>
    %569 = vector.extract_strided_slice %563 {offsets = [24, 0], sizes = [8, 32], strides = [1, 1]} : vector<32x32xf32> to vector<8x32xf32>
    %570 = arith.addf %568, %569 : vector<8x32xf32>
    %cst_98 = arith.constant dense<0.000000e+00> : vector<32xf32>
    %571 = vector.multi_reduction <add>, %570, %cst_98 [0] : vector<8x32xf32> to vector<32xf32>
    %572 = vector.shape_cast %571 : vector<32xf32> to vector<1x32xf32>
    %573 = arith.addf %309, %572 : vector<1x32xf32>
    %574 = tpu.reciprocal %573 {approx = true} : vector<1x32xf32> -> vector<1x32xf32>
    %575 = arith.mulf %573, %574 : vector<1x32xf32>
    %cst_99 = arith.constant 2.000000e+00 : f32
    %576 = vector.broadcast %cst_99 : f32 to vector<1x32xf32>
    %577 = arith.subf %576, %575 : vector<1x32xf32>
    %578 = arith.mulf %574, %577 : vector<1x32xf32>
    %579 = arith.mulf %562, %578 : vector<1x32xf32>
    %580 = vector.extract_strided_slice %30 {offsets = [2, 0], sizes = [1, 32], strides = [1, 1]} : vector<8x32xf32> to vector<1x32xf32>
    %581 = vector.extract_strided_slice %34 {offsets = [2, 0], sizes = [1, 32], strides = [1, 1]} : vector<8x32xf32> to vector<1x32xf32>
    %c0_i32_100 = arith.constant 0 : i32
    %582 = vector.shape_cast %579 : vector<1x32xf32> to vector<1x32xf32>
    %583 = vector.broadcast %582 : vector<1x32xf32> to vector<32x32xf32>
    %584 = arith.mulf %583, %4 : vector<32x32xf32>
    %cst_101 = arith.constant dense<0.000000e+00> : vector<32xf32>
    %585 = vector.multi_reduction <add>, %584, %cst_101 [1] : vector<32x32xf32> to vector<32xf32>
    %586 = vector.shape_cast %585 : vector<32xf32> to vector<32x1xf32>
    %587 = vector.broadcast %586 : vector<32x1xf32> to vector<32x32xf32>
    %588 = arith.subf %587, %1 : vector<32x32xf32>
    %589 = arith.mulf %0, %588 : vector<32x32xf32>
    %cst_102 = arith.constant 5.000000e-01 : f32
    %590 = vector.broadcast %cst_102 : f32 to vector<32x32xf32>
    %591 = arith.mulf %590, %589 : vector<32x32xf32>
    %592 = math.tanh %591 : vector<32x32xf32>
    %cst_103 = arith.constant 5.000000e-01 : f32
    %593 = vector.broadcast %cst_103 : f32 to vector<32x32xf32>
    %594 = arith.mulf %593, %592 : vector<32x32xf32>
    %cst_104 = arith.constant 5.000000e-01 : f32
    %595 = vector.broadcast %cst_104 : f32 to vector<32x32xf32>
    %596 = arith.addf %594, %595 : vector<32x32xf32>
    %597 = arith.mulf %6, %579 : vector<1x32xf32>
    %598 = arith.addf %597, %580 : vector<1x32xf32>
    %599 = arith.mulf %596, %2 : vector<32x32xf32>
    %600 = vector.extract_strided_slice %599 {offsets = [0, 0], sizes = [8, 32], strides = [1, 1]} : vector<32x32xf32> to vector<8x32xf32>
    %601 = vector.extract_strided_slice %599 {offsets = [8, 0], sizes = [8, 32], strides = [1, 1]} : vector<32x32xf32> to vector<8x32xf32>
    %602 = arith.addf %600, %601 : vector<8x32xf32>
    %603 = vector.extract_strided_slice %599 {offsets = [16, 0], sizes = [8, 32], strides = [1, 1]} : vector<32x32xf32> to vector<8x32xf32>
    %604 = arith.addf %602, %603 : vector<8x32xf32>
    %605 = vector.extract_strided_slice %599 {offsets = [24, 0], sizes = [8, 32], strides = [1, 1]} : vector<32x32xf32> to vector<8x32xf32>
    %606 = arith.addf %604, %605 : vector<8x32xf32>
    %cst_105 = arith.constant dense<0.000000e+00> : vector<32xf32>
    %607 = vector.multi_reduction <add>, %606, %cst_105 [0] : vector<8x32xf32> to vector<32xf32>
    %608 = vector.shape_cast %607 : vector<32xf32> to vector<1x32xf32>
    %609 = arith.addf %598, %608 : vector<1x32xf32>
    %610 = arith.mulf %596, %3 : vector<32x32xf32>
    %611 = vector.extract_strided_slice %610 {offsets = [0, 0], sizes = [8, 32], strides = [1, 1]} : vector<32x32xf32> to vector<8x32xf32>
    %612 = vector.extract_strided_slice %610 {offsets = [8, 0], sizes = [8, 32], strides = [1, 1]} : vector<32x32xf32> to vector<8x32xf32>
    %613 = arith.addf %611, %612 : vector<8x32xf32>
    %614 = vector.extract_strided_slice %610 {offsets = [16, 0], sizes = [8, 32], strides = [1, 1]} : vector<32x32xf32> to vector<8x32xf32>
    %615 = arith.addf %613, %614 : vector<8x32xf32>
    %616 = vector.extract_strided_slice %610 {offsets = [24, 0], sizes = [8, 32], strides = [1, 1]} : vector<32x32xf32> to vector<8x32xf32>
    %617 = arith.addf %615, %616 : vector<8x32xf32>
    %cst_106 = arith.constant dense<0.000000e+00> : vector<32xf32>
    %618 = vector.multi_reduction <add>, %617, %cst_106 [0] : vector<8x32xf32> to vector<32xf32>
    %619 = vector.shape_cast %618 : vector<32xf32> to vector<1x32xf32>
    %620 = arith.addf %581, %619 : vector<1x32xf32>
    %621 = tpu.reciprocal %620 {approx = true} : vector<1x32xf32> -> vector<1x32xf32>
    %622 = arith.mulf %620, %621 : vector<1x32xf32>
    %cst_107 = arith.constant 2.000000e+00 : f32
    %623 = vector.broadcast %cst_107 : f32 to vector<1x32xf32>
    %624 = arith.subf %623, %622 : vector<1x32xf32>
    %625 = arith.mulf %621, %624 : vector<1x32xf32>
    %626 = arith.mulf %609, %625 : vector<1x32xf32>
    %c1_i32_108 = arith.constant 1 : i32
    %627 = vector.shape_cast %626 : vector<1x32xf32> to vector<1x32xf32>
    %628 = vector.broadcast %627 : vector<1x32xf32> to vector<32x32xf32>
    %629 = arith.mulf %628, %4 : vector<32x32xf32>
    %cst_109 = arith.constant dense<0.000000e+00> : vector<32xf32>
    %630 = vector.multi_reduction <add>, %629, %cst_109 [1] : vector<32x32xf32> to vector<32xf32>
    %631 = vector.shape_cast %630 : vector<32xf32> to vector<32x1xf32>
    %632 = vector.broadcast %631 : vector<32x1xf32> to vector<32x32xf32>
    %633 = arith.subf %632, %1 : vector<32x32xf32>
    %634 = arith.mulf %0, %633 : vector<32x32xf32>
    %cst_110 = arith.constant 5.000000e-01 : f32
    %635 = vector.broadcast %cst_110 : f32 to vector<32x32xf32>
    %636 = arith.mulf %635, %634 : vector<32x32xf32>
    %637 = math.tanh %636 : vector<32x32xf32>
    %cst_111 = arith.constant 5.000000e-01 : f32
    %638 = vector.broadcast %cst_111 : f32 to vector<32x32xf32>
    %639 = arith.mulf %638, %637 : vector<32x32xf32>
    %cst_112 = arith.constant 5.000000e-01 : f32
    %640 = vector.broadcast %cst_112 : f32 to vector<32x32xf32>
    %641 = arith.addf %639, %640 : vector<32x32xf32>
    %642 = arith.mulf %6, %626 : vector<1x32xf32>
    %643 = arith.addf %642, %580 : vector<1x32xf32>
    %644 = arith.mulf %641, %2 : vector<32x32xf32>
    %645 = vector.extract_strided_slice %644 {offsets = [0, 0], sizes = [8, 32], strides = [1, 1]} : vector<32x32xf32> to vector<8x32xf32>
    %646 = vector.extract_strided_slice %644 {offsets = [8, 0], sizes = [8, 32], strides = [1, 1]} : vector<32x32xf32> to vector<8x32xf32>
    %647 = arith.addf %645, %646 : vector<8x32xf32>
    %648 = vector.extract_strided_slice %644 {offsets = [16, 0], sizes = [8, 32], strides = [1, 1]} : vector<32x32xf32> to vector<8x32xf32>
    %649 = arith.addf %647, %648 : vector<8x32xf32>
    %650 = vector.extract_strided_slice %644 {offsets = [24, 0], sizes = [8, 32], strides = [1, 1]} : vector<32x32xf32> to vector<8x32xf32>
    %651 = arith.addf %649, %650 : vector<8x32xf32>
    %cst_113 = arith.constant dense<0.000000e+00> : vector<32xf32>
    %652 = vector.multi_reduction <add>, %651, %cst_113 [0] : vector<8x32xf32> to vector<32xf32>
    %653 = vector.shape_cast %652 : vector<32xf32> to vector<1x32xf32>
    %654 = arith.addf %643, %653 : vector<1x32xf32>
    %655 = arith.mulf %641, %3 : vector<32x32xf32>
    %656 = vector.extract_strided_slice %655 {offsets = [0, 0], sizes = [8, 32], strides = [1, 1]} : vector<32x32xf32> to vector<8x32xf32>
    %657 = vector.extract_strided_slice %655 {offsets = [8, 0], sizes = [8, 32], strides = [1, 1]} : vector<32x32xf32> to vector<8x32xf32>
    %658 = arith.addf %656, %657 : vector<8x32xf32>
    %659 = vector.extract_strided_slice %655 {offsets = [16, 0], sizes = [8, 32], strides = [1, 1]} : vector<32x32xf32> to vector<8x32xf32>
    %660 = arith.addf %658, %659 : vector<8x32xf32>
    %661 = vector.extract_strided_slice %655 {offsets = [24, 0], sizes = [8, 32], strides = [1, 1]} : vector<32x32xf32> to vector<8x32xf32>
    %662 = arith.addf %660, %661 : vector<8x32xf32>
    %cst_114 = arith.constant dense<0.000000e+00> : vector<32xf32>
    %663 = vector.multi_reduction <add>, %662, %cst_114 [0] : vector<8x32xf32> to vector<32xf32>
    %664 = vector.shape_cast %663 : vector<32xf32> to vector<1x32xf32>
    %665 = arith.addf %581, %664 : vector<1x32xf32>
    %666 = tpu.reciprocal %665 {approx = true} : vector<1x32xf32> -> vector<1x32xf32>
    %667 = arith.mulf %665, %666 : vector<1x32xf32>
    %cst_115 = arith.constant 2.000000e+00 : f32
    %668 = vector.broadcast %cst_115 : f32 to vector<1x32xf32>
    %669 = arith.subf %668, %667 : vector<1x32xf32>
    %670 = arith.mulf %666, %669 : vector<1x32xf32>
    %671 = arith.mulf %654, %670 : vector<1x32xf32>
    %c2_i32_116 = arith.constant 2 : i32
    %672 = vector.shape_cast %671 : vector<1x32xf32> to vector<1x32xf32>
    %673 = vector.broadcast %672 : vector<1x32xf32> to vector<32x32xf32>
    %674 = arith.mulf %673, %4 : vector<32x32xf32>
    %cst_117 = arith.constant dense<0.000000e+00> : vector<32xf32>
    %675 = vector.multi_reduction <add>, %674, %cst_117 [1] : vector<32x32xf32> to vector<32xf32>
    %676 = vector.shape_cast %675 : vector<32xf32> to vector<32x1xf32>
    %677 = vector.broadcast %676 : vector<32x1xf32> to vector<32x32xf32>
    %678 = arith.subf %677, %1 : vector<32x32xf32>
    %679 = arith.mulf %0, %678 : vector<32x32xf32>
    %cst_118 = arith.constant 5.000000e-01 : f32
    %680 = vector.broadcast %cst_118 : f32 to vector<32x32xf32>
    %681 = arith.mulf %680, %679 : vector<32x32xf32>
    %682 = math.tanh %681 : vector<32x32xf32>
    %cst_119 = arith.constant 5.000000e-01 : f32
    %683 = vector.broadcast %cst_119 : f32 to vector<32x32xf32>
    %684 = arith.mulf %683, %682 : vector<32x32xf32>
    %cst_120 = arith.constant 5.000000e-01 : f32
    %685 = vector.broadcast %cst_120 : f32 to vector<32x32xf32>
    %686 = arith.addf %684, %685 : vector<32x32xf32>
    %687 = arith.mulf %6, %671 : vector<1x32xf32>
    %688 = arith.addf %687, %580 : vector<1x32xf32>
    %689 = arith.mulf %686, %2 : vector<32x32xf32>
    %690 = vector.extract_strided_slice %689 {offsets = [0, 0], sizes = [8, 32], strides = [1, 1]} : vector<32x32xf32> to vector<8x32xf32>
    %691 = vector.extract_strided_slice %689 {offsets = [8, 0], sizes = [8, 32], strides = [1, 1]} : vector<32x32xf32> to vector<8x32xf32>
    %692 = arith.addf %690, %691 : vector<8x32xf32>
    %693 = vector.extract_strided_slice %689 {offsets = [16, 0], sizes = [8, 32], strides = [1, 1]} : vector<32x32xf32> to vector<8x32xf32>
    %694 = arith.addf %692, %693 : vector<8x32xf32>
    %695 = vector.extract_strided_slice %689 {offsets = [24, 0], sizes = [8, 32], strides = [1, 1]} : vector<32x32xf32> to vector<8x32xf32>
    %696 = arith.addf %694, %695 : vector<8x32xf32>
    %cst_121 = arith.constant dense<0.000000e+00> : vector<32xf32>
    %697 = vector.multi_reduction <add>, %696, %cst_121 [0] : vector<8x32xf32> to vector<32xf32>
    %698 = vector.shape_cast %697 : vector<32xf32> to vector<1x32xf32>
    %699 = arith.addf %688, %698 : vector<1x32xf32>
    %700 = arith.mulf %686, %3 : vector<32x32xf32>
    %701 = vector.extract_strided_slice %700 {offsets = [0, 0], sizes = [8, 32], strides = [1, 1]} : vector<32x32xf32> to vector<8x32xf32>
    %702 = vector.extract_strided_slice %700 {offsets = [8, 0], sizes = [8, 32], strides = [1, 1]} : vector<32x32xf32> to vector<8x32xf32>
    %703 = arith.addf %701, %702 : vector<8x32xf32>
    %704 = vector.extract_strided_slice %700 {offsets = [16, 0], sizes = [8, 32], strides = [1, 1]} : vector<32x32xf32> to vector<8x32xf32>
    %705 = arith.addf %703, %704 : vector<8x32xf32>
    %706 = vector.extract_strided_slice %700 {offsets = [24, 0], sizes = [8, 32], strides = [1, 1]} : vector<32x32xf32> to vector<8x32xf32>
    %707 = arith.addf %705, %706 : vector<8x32xf32>
    %cst_122 = arith.constant dense<0.000000e+00> : vector<32xf32>
    %708 = vector.multi_reduction <add>, %707, %cst_122 [0] : vector<8x32xf32> to vector<32xf32>
    %709 = vector.shape_cast %708 : vector<32xf32> to vector<1x32xf32>
    %710 = arith.addf %581, %709 : vector<1x32xf32>
    %711 = tpu.reciprocal %710 {approx = true} : vector<1x32xf32> -> vector<1x32xf32>
    %712 = arith.mulf %710, %711 : vector<1x32xf32>
    %cst_123 = arith.constant 2.000000e+00 : f32
    %713 = vector.broadcast %cst_123 : f32 to vector<1x32xf32>
    %714 = arith.subf %713, %712 : vector<1x32xf32>
    %715 = arith.mulf %711, %714 : vector<1x32xf32>
    %716 = arith.mulf %699, %715 : vector<1x32xf32>
    %c3_i32_124 = arith.constant 3 : i32
    %717 = vector.shape_cast %716 : vector<1x32xf32> to vector<1x32xf32>
    %718 = vector.broadcast %717 : vector<1x32xf32> to vector<32x32xf32>
    %719 = arith.mulf %718, %4 : vector<32x32xf32>
    %cst_125 = arith.constant dense<0.000000e+00> : vector<32xf32>
    %720 = vector.multi_reduction <add>, %719, %cst_125 [1] : vector<32x32xf32> to vector<32xf32>
    %721 = vector.shape_cast %720 : vector<32xf32> to vector<32x1xf32>
    %722 = vector.broadcast %721 : vector<32x1xf32> to vector<32x32xf32>
    %723 = arith.subf %722, %1 : vector<32x32xf32>
    %724 = arith.mulf %0, %723 : vector<32x32xf32>
    %cst_126 = arith.constant 5.000000e-01 : f32
    %725 = vector.broadcast %cst_126 : f32 to vector<32x32xf32>
    %726 = arith.mulf %725, %724 : vector<32x32xf32>
    %727 = math.tanh %726 : vector<32x32xf32>
    %cst_127 = arith.constant 5.000000e-01 : f32
    %728 = vector.broadcast %cst_127 : f32 to vector<32x32xf32>
    %729 = arith.mulf %728, %727 : vector<32x32xf32>
    %cst_128 = arith.constant 5.000000e-01 : f32
    %730 = vector.broadcast %cst_128 : f32 to vector<32x32xf32>
    %731 = arith.addf %729, %730 : vector<32x32xf32>
    %732 = arith.mulf %6, %716 : vector<1x32xf32>
    %733 = arith.addf %732, %580 : vector<1x32xf32>
    %734 = arith.mulf %731, %2 : vector<32x32xf32>
    %735 = vector.extract_strided_slice %734 {offsets = [0, 0], sizes = [8, 32], strides = [1, 1]} : vector<32x32xf32> to vector<8x32xf32>
    %736 = vector.extract_strided_slice %734 {offsets = [8, 0], sizes = [8, 32], strides = [1, 1]} : vector<32x32xf32> to vector<8x32xf32>
    %737 = arith.addf %735, %736 : vector<8x32xf32>
    %738 = vector.extract_strided_slice %734 {offsets = [16, 0], sizes = [8, 32], strides = [1, 1]} : vector<32x32xf32> to vector<8x32xf32>
    %739 = arith.addf %737, %738 : vector<8x32xf32>
    %740 = vector.extract_strided_slice %734 {offsets = [24, 0], sizes = [8, 32], strides = [1, 1]} : vector<32x32xf32> to vector<8x32xf32>
    %741 = arith.addf %739, %740 : vector<8x32xf32>
    %cst_129 = arith.constant dense<0.000000e+00> : vector<32xf32>
    %742 = vector.multi_reduction <add>, %741, %cst_129 [0] : vector<8x32xf32> to vector<32xf32>
    %743 = vector.shape_cast %742 : vector<32xf32> to vector<1x32xf32>
    %744 = arith.addf %733, %743 : vector<1x32xf32>
    %745 = arith.mulf %731, %3 : vector<32x32xf32>
    %746 = vector.extract_strided_slice %745 {offsets = [0, 0], sizes = [8, 32], strides = [1, 1]} : vector<32x32xf32> to vector<8x32xf32>
    %747 = vector.extract_strided_slice %745 {offsets = [8, 0], sizes = [8, 32], strides = [1, 1]} : vector<32x32xf32> to vector<8x32xf32>
    %748 = arith.addf %746, %747 : vector<8x32xf32>
    %749 = vector.extract_strided_slice %745 {offsets = [16, 0], sizes = [8, 32], strides = [1, 1]} : vector<32x32xf32> to vector<8x32xf32>
    %750 = arith.addf %748, %749 : vector<8x32xf32>
    %751 = vector.extract_strided_slice %745 {offsets = [24, 0], sizes = [8, 32], strides = [1, 1]} : vector<32x32xf32> to vector<8x32xf32>
    %752 = arith.addf %750, %751 : vector<8x32xf32>
    %cst_130 = arith.constant dense<0.000000e+00> : vector<32xf32>
    %753 = vector.multi_reduction <add>, %752, %cst_130 [0] : vector<8x32xf32> to vector<32xf32>
    %754 = vector.shape_cast %753 : vector<32xf32> to vector<1x32xf32>
    %755 = arith.addf %581, %754 : vector<1x32xf32>
    %756 = tpu.reciprocal %755 {approx = true} : vector<1x32xf32> -> vector<1x32xf32>
    %757 = arith.mulf %755, %756 : vector<1x32xf32>
    %cst_131 = arith.constant 2.000000e+00 : f32
    %758 = vector.broadcast %cst_131 : f32 to vector<1x32xf32>
    %759 = arith.subf %758, %757 : vector<1x32xf32>
    %760 = arith.mulf %756, %759 : vector<1x32xf32>
    %761 = arith.mulf %744, %760 : vector<1x32xf32>
    %c4_i32_132 = arith.constant 4 : i32
    %762 = vector.shape_cast %761 : vector<1x32xf32> to vector<1x32xf32>
    %763 = vector.broadcast %762 : vector<1x32xf32> to vector<32x32xf32>
    %764 = arith.mulf %763, %4 : vector<32x32xf32>
    %cst_133 = arith.constant dense<0.000000e+00> : vector<32xf32>
    %765 = vector.multi_reduction <add>, %764, %cst_133 [1] : vector<32x32xf32> to vector<32xf32>
    %766 = vector.shape_cast %765 : vector<32xf32> to vector<32x1xf32>
    %767 = vector.broadcast %766 : vector<32x1xf32> to vector<32x32xf32>
    %768 = arith.subf %767, %1 : vector<32x32xf32>
    %769 = arith.mulf %0, %768 : vector<32x32xf32>
    %cst_134 = arith.constant 5.000000e-01 : f32
    %770 = vector.broadcast %cst_134 : f32 to vector<32x32xf32>
    %771 = arith.mulf %770, %769 : vector<32x32xf32>
    %772 = math.tanh %771 : vector<32x32xf32>
    %cst_135 = arith.constant 5.000000e-01 : f32
    %773 = vector.broadcast %cst_135 : f32 to vector<32x32xf32>
    %774 = arith.mulf %773, %772 : vector<32x32xf32>
    %cst_136 = arith.constant 5.000000e-01 : f32
    %775 = vector.broadcast %cst_136 : f32 to vector<32x32xf32>
    %776 = arith.addf %774, %775 : vector<32x32xf32>
    %777 = arith.mulf %6, %761 : vector<1x32xf32>
    %778 = arith.addf %777, %580 : vector<1x32xf32>
    %779 = arith.mulf %776, %2 : vector<32x32xf32>
    %780 = vector.extract_strided_slice %779 {offsets = [0, 0], sizes = [8, 32], strides = [1, 1]} : vector<32x32xf32> to vector<8x32xf32>
    %781 = vector.extract_strided_slice %779 {offsets = [8, 0], sizes = [8, 32], strides = [1, 1]} : vector<32x32xf32> to vector<8x32xf32>
    %782 = arith.addf %780, %781 : vector<8x32xf32>
    %783 = vector.extract_strided_slice %779 {offsets = [16, 0], sizes = [8, 32], strides = [1, 1]} : vector<32x32xf32> to vector<8x32xf32>
    %784 = arith.addf %782, %783 : vector<8x32xf32>
    %785 = vector.extract_strided_slice %779 {offsets = [24, 0], sizes = [8, 32], strides = [1, 1]} : vector<32x32xf32> to vector<8x32xf32>
    %786 = arith.addf %784, %785 : vector<8x32xf32>
    %cst_137 = arith.constant dense<0.000000e+00> : vector<32xf32>
    %787 = vector.multi_reduction <add>, %786, %cst_137 [0] : vector<8x32xf32> to vector<32xf32>
    %788 = vector.shape_cast %787 : vector<32xf32> to vector<1x32xf32>
    %789 = arith.addf %778, %788 : vector<1x32xf32>
    %790 = arith.mulf %776, %3 : vector<32x32xf32>
    %791 = vector.extract_strided_slice %790 {offsets = [0, 0], sizes = [8, 32], strides = [1, 1]} : vector<32x32xf32> to vector<8x32xf32>
    %792 = vector.extract_strided_slice %790 {offsets = [8, 0], sizes = [8, 32], strides = [1, 1]} : vector<32x32xf32> to vector<8x32xf32>
    %793 = arith.addf %791, %792 : vector<8x32xf32>
    %794 = vector.extract_strided_slice %790 {offsets = [16, 0], sizes = [8, 32], strides = [1, 1]} : vector<32x32xf32> to vector<8x32xf32>
    %795 = arith.addf %793, %794 : vector<8x32xf32>
    %796 = vector.extract_strided_slice %790 {offsets = [24, 0], sizes = [8, 32], strides = [1, 1]} : vector<32x32xf32> to vector<8x32xf32>
    %797 = arith.addf %795, %796 : vector<8x32xf32>
    %cst_138 = arith.constant dense<0.000000e+00> : vector<32xf32>
    %798 = vector.multi_reduction <add>, %797, %cst_138 [0] : vector<8x32xf32> to vector<32xf32>
    %799 = vector.shape_cast %798 : vector<32xf32> to vector<1x32xf32>
    %800 = arith.addf %581, %799 : vector<1x32xf32>
    %801 = tpu.reciprocal %800 {approx = true} : vector<1x32xf32> -> vector<1x32xf32>
    %802 = arith.mulf %800, %801 : vector<1x32xf32>
    %cst_139 = arith.constant 2.000000e+00 : f32
    %803 = vector.broadcast %cst_139 : f32 to vector<1x32xf32>
    %804 = arith.subf %803, %802 : vector<1x32xf32>
    %805 = arith.mulf %801, %804 : vector<1x32xf32>
    %806 = arith.mulf %789, %805 : vector<1x32xf32>
    %c5_i32_140 = arith.constant 5 : i32
    %807 = vector.shape_cast %806 : vector<1x32xf32> to vector<1x32xf32>
    %808 = vector.broadcast %807 : vector<1x32xf32> to vector<32x32xf32>
    %809 = arith.mulf %808, %4 : vector<32x32xf32>
    %cst_141 = arith.constant dense<0.000000e+00> : vector<32xf32>
    %810 = vector.multi_reduction <add>, %809, %cst_141 [1] : vector<32x32xf32> to vector<32xf32>
    %811 = vector.shape_cast %810 : vector<32xf32> to vector<32x1xf32>
    %812 = vector.broadcast %811 : vector<32x1xf32> to vector<32x32xf32>
    %813 = arith.subf %812, %1 : vector<32x32xf32>
    %814 = arith.mulf %0, %813 : vector<32x32xf32>
    %cst_142 = arith.constant 5.000000e-01 : f32
    %815 = vector.broadcast %cst_142 : f32 to vector<32x32xf32>
    %816 = arith.mulf %815, %814 : vector<32x32xf32>
    %817 = math.tanh %816 : vector<32x32xf32>
    %cst_143 = arith.constant 5.000000e-01 : f32
    %818 = vector.broadcast %cst_143 : f32 to vector<32x32xf32>
    %819 = arith.mulf %818, %817 : vector<32x32xf32>
    %cst_144 = arith.constant 5.000000e-01 : f32
    %820 = vector.broadcast %cst_144 : f32 to vector<32x32xf32>
    %821 = arith.addf %819, %820 : vector<32x32xf32>
    %822 = arith.mulf %6, %806 : vector<1x32xf32>
    %823 = arith.addf %822, %580 : vector<1x32xf32>
    %824 = arith.mulf %821, %2 : vector<32x32xf32>
    %825 = vector.extract_strided_slice %824 {offsets = [0, 0], sizes = [8, 32], strides = [1, 1]} : vector<32x32xf32> to vector<8x32xf32>
    %826 = vector.extract_strided_slice %824 {offsets = [8, 0], sizes = [8, 32], strides = [1, 1]} : vector<32x32xf32> to vector<8x32xf32>
    %827 = arith.addf %825, %826 : vector<8x32xf32>
    %828 = vector.extract_strided_slice %824 {offsets = [16, 0], sizes = [8, 32], strides = [1, 1]} : vector<32x32xf32> to vector<8x32xf32>
    %829 = arith.addf %827, %828 : vector<8x32xf32>
    %830 = vector.extract_strided_slice %824 {offsets = [24, 0], sizes = [8, 32], strides = [1, 1]} : vector<32x32xf32> to vector<8x32xf32>
    %831 = arith.addf %829, %830 : vector<8x32xf32>
    %cst_145 = arith.constant dense<0.000000e+00> : vector<32xf32>
    %832 = vector.multi_reduction <add>, %831, %cst_145 [0] : vector<8x32xf32> to vector<32xf32>
    %833 = vector.shape_cast %832 : vector<32xf32> to vector<1x32xf32>
    %834 = arith.addf %823, %833 : vector<1x32xf32>
    %835 = arith.mulf %821, %3 : vector<32x32xf32>
    %836 = vector.extract_strided_slice %835 {offsets = [0, 0], sizes = [8, 32], strides = [1, 1]} : vector<32x32xf32> to vector<8x32xf32>
    %837 = vector.extract_strided_slice %835 {offsets = [8, 0], sizes = [8, 32], strides = [1, 1]} : vector<32x32xf32> to vector<8x32xf32>
    %838 = arith.addf %836, %837 : vector<8x32xf32>
    %839 = vector.extract_strided_slice %835 {offsets = [16, 0], sizes = [8, 32], strides = [1, 1]} : vector<32x32xf32> to vector<8x32xf32>
    %840 = arith.addf %838, %839 : vector<8x32xf32>
    %841 = vector.extract_strided_slice %835 {offsets = [24, 0], sizes = [8, 32], strides = [1, 1]} : vector<32x32xf32> to vector<8x32xf32>
    %842 = arith.addf %840, %841 : vector<8x32xf32>
    %cst_146 = arith.constant dense<0.000000e+00> : vector<32xf32>
    %843 = vector.multi_reduction <add>, %842, %cst_146 [0] : vector<8x32xf32> to vector<32xf32>
    %844 = vector.shape_cast %843 : vector<32xf32> to vector<1x32xf32>
    %845 = arith.addf %581, %844 : vector<1x32xf32>
    %846 = tpu.reciprocal %845 {approx = true} : vector<1x32xf32> -> vector<1x32xf32>
    %847 = arith.mulf %845, %846 : vector<1x32xf32>
    %cst_147 = arith.constant 2.000000e+00 : f32
    %848 = vector.broadcast %cst_147 : f32 to vector<1x32xf32>
    %849 = arith.subf %848, %847 : vector<1x32xf32>
    %850 = arith.mulf %846, %849 : vector<1x32xf32>
    %851 = arith.mulf %834, %850 : vector<1x32xf32>
    %852 = vector.extract_strided_slice %30 {offsets = [3, 0], sizes = [1, 32], strides = [1, 1]} : vector<8x32xf32> to vector<1x32xf32>
    %853 = vector.extract_strided_slice %34 {offsets = [3, 0], sizes = [1, 32], strides = [1, 1]} : vector<8x32xf32> to vector<1x32xf32>
    %c0_i32_148 = arith.constant 0 : i32
    %854 = vector.shape_cast %851 : vector<1x32xf32> to vector<1x32xf32>
    %855 = vector.broadcast %854 : vector<1x32xf32> to vector<32x32xf32>
    %856 = arith.mulf %855, %4 : vector<32x32xf32>
    %cst_149 = arith.constant dense<0.000000e+00> : vector<32xf32>
    %857 = vector.multi_reduction <add>, %856, %cst_149 [1] : vector<32x32xf32> to vector<32xf32>
    %858 = vector.shape_cast %857 : vector<32xf32> to vector<32x1xf32>
    %859 = vector.broadcast %858 : vector<32x1xf32> to vector<32x32xf32>
    %860 = arith.subf %859, %1 : vector<32x32xf32>
    %861 = arith.mulf %0, %860 : vector<32x32xf32>
    %cst_150 = arith.constant 5.000000e-01 : f32
    %862 = vector.broadcast %cst_150 : f32 to vector<32x32xf32>
    %863 = arith.mulf %862, %861 : vector<32x32xf32>
    %864 = math.tanh %863 : vector<32x32xf32>
    %cst_151 = arith.constant 5.000000e-01 : f32
    %865 = vector.broadcast %cst_151 : f32 to vector<32x32xf32>
    %866 = arith.mulf %865, %864 : vector<32x32xf32>
    %cst_152 = arith.constant 5.000000e-01 : f32
    %867 = vector.broadcast %cst_152 : f32 to vector<32x32xf32>
    %868 = arith.addf %866, %867 : vector<32x32xf32>
    %869 = arith.mulf %6, %851 : vector<1x32xf32>
    %870 = arith.addf %869, %852 : vector<1x32xf32>
    %871 = arith.mulf %868, %2 : vector<32x32xf32>
    %872 = vector.extract_strided_slice %871 {offsets = [0, 0], sizes = [8, 32], strides = [1, 1]} : vector<32x32xf32> to vector<8x32xf32>
    %873 = vector.extract_strided_slice %871 {offsets = [8, 0], sizes = [8, 32], strides = [1, 1]} : vector<32x32xf32> to vector<8x32xf32>
    %874 = arith.addf %872, %873 : vector<8x32xf32>
    %875 = vector.extract_strided_slice %871 {offsets = [16, 0], sizes = [8, 32], strides = [1, 1]} : vector<32x32xf32> to vector<8x32xf32>
    %876 = arith.addf %874, %875 : vector<8x32xf32>
    %877 = vector.extract_strided_slice %871 {offsets = [24, 0], sizes = [8, 32], strides = [1, 1]} : vector<32x32xf32> to vector<8x32xf32>
    %878 = arith.addf %876, %877 : vector<8x32xf32>
    %cst_153 = arith.constant dense<0.000000e+00> : vector<32xf32>
    %879 = vector.multi_reduction <add>, %878, %cst_153 [0] : vector<8x32xf32> to vector<32xf32>
    %880 = vector.shape_cast %879 : vector<32xf32> to vector<1x32xf32>
    %881 = arith.addf %870, %880 : vector<1x32xf32>
    %882 = arith.mulf %868, %3 : vector<32x32xf32>
    %883 = vector.extract_strided_slice %882 {offsets = [0, 0], sizes = [8, 32], strides = [1, 1]} : vector<32x32xf32> to vector<8x32xf32>
    %884 = vector.extract_strided_slice %882 {offsets = [8, 0], sizes = [8, 32], strides = [1, 1]} : vector<32x32xf32> to vector<8x32xf32>
    %885 = arith.addf %883, %884 : vector<8x32xf32>
    %886 = vector.extract_strided_slice %882 {offsets = [16, 0], sizes = [8, 32], strides = [1, 1]} : vector<32x32xf32> to vector<8x32xf32>
    %887 = arith.addf %885, %886 : vector<8x32xf32>
    %888 = vector.extract_strided_slice %882 {offsets = [24, 0], sizes = [8, 32], strides = [1, 1]} : vector<32x32xf32> to vector<8x32xf32>
    %889 = arith.addf %887, %888 : vector<8x32xf32>
    %cst_154 = arith.constant dense<0.000000e+00> : vector<32xf32>
    %890 = vector.multi_reduction <add>, %889, %cst_154 [0] : vector<8x32xf32> to vector<32xf32>
    %891 = vector.shape_cast %890 : vector<32xf32> to vector<1x32xf32>
    %892 = arith.addf %853, %891 : vector<1x32xf32>
    %893 = tpu.reciprocal %892 {approx = true} : vector<1x32xf32> -> vector<1x32xf32>
    %894 = arith.mulf %892, %893 : vector<1x32xf32>
    %cst_155 = arith.constant 2.000000e+00 : f32
    %895 = vector.broadcast %cst_155 : f32 to vector<1x32xf32>
    %896 = arith.subf %895, %894 : vector<1x32xf32>
    %897 = arith.mulf %893, %896 : vector<1x32xf32>
    %898 = arith.mulf %881, %897 : vector<1x32xf32>
    %c1_i32_156 = arith.constant 1 : i32
    %899 = vector.shape_cast %898 : vector<1x32xf32> to vector<1x32xf32>
    %900 = vector.broadcast %899 : vector<1x32xf32> to vector<32x32xf32>
    %901 = arith.mulf %900, %4 : vector<32x32xf32>
    %cst_157 = arith.constant dense<0.000000e+00> : vector<32xf32>
    %902 = vector.multi_reduction <add>, %901, %cst_157 [1] : vector<32x32xf32> to vector<32xf32>
    %903 = vector.shape_cast %902 : vector<32xf32> to vector<32x1xf32>
    %904 = vector.broadcast %903 : vector<32x1xf32> to vector<32x32xf32>
    %905 = arith.subf %904, %1 : vector<32x32xf32>
    %906 = arith.mulf %0, %905 : vector<32x32xf32>
    %cst_158 = arith.constant 5.000000e-01 : f32
    %907 = vector.broadcast %cst_158 : f32 to vector<32x32xf32>
    %908 = arith.mulf %907, %906 : vector<32x32xf32>
    %909 = math.tanh %908 : vector<32x32xf32>
    %cst_159 = arith.constant 5.000000e-01 : f32
    %910 = vector.broadcast %cst_159 : f32 to vector<32x32xf32>
    %911 = arith.mulf %910, %909 : vector<32x32xf32>
    %cst_160 = arith.constant 5.000000e-01 : f32
    %912 = vector.broadcast %cst_160 : f32 to vector<32x32xf32>
    %913 = arith.addf %911, %912 : vector<32x32xf32>
    %914 = arith.mulf %6, %898 : vector<1x32xf32>
    %915 = arith.addf %914, %852 : vector<1x32xf32>
    %916 = arith.mulf %913, %2 : vector<32x32xf32>
    %917 = vector.extract_strided_slice %916 {offsets = [0, 0], sizes = [8, 32], strides = [1, 1]} : vector<32x32xf32> to vector<8x32xf32>
    %918 = vector.extract_strided_slice %916 {offsets = [8, 0], sizes = [8, 32], strides = [1, 1]} : vector<32x32xf32> to vector<8x32xf32>
    %919 = arith.addf %917, %918 : vector<8x32xf32>
    %920 = vector.extract_strided_slice %916 {offsets = [16, 0], sizes = [8, 32], strides = [1, 1]} : vector<32x32xf32> to vector<8x32xf32>
    %921 = arith.addf %919, %920 : vector<8x32xf32>
    %922 = vector.extract_strided_slice %916 {offsets = [24, 0], sizes = [8, 32], strides = [1, 1]} : vector<32x32xf32> to vector<8x32xf32>
    %923 = arith.addf %921, %922 : vector<8x32xf32>
    %cst_161 = arith.constant dense<0.000000e+00> : vector<32xf32>
    %924 = vector.multi_reduction <add>, %923, %cst_161 [0] : vector<8x32xf32> to vector<32xf32>
    %925 = vector.shape_cast %924 : vector<32xf32> to vector<1x32xf32>
    %926 = arith.addf %915, %925 : vector<1x32xf32>
    %927 = arith.mulf %913, %3 : vector<32x32xf32>
    %928 = vector.extract_strided_slice %927 {offsets = [0, 0], sizes = [8, 32], strides = [1, 1]} : vector<32x32xf32> to vector<8x32xf32>
    %929 = vector.extract_strided_slice %927 {offsets = [8, 0], sizes = [8, 32], strides = [1, 1]} : vector<32x32xf32> to vector<8x32xf32>
    %930 = arith.addf %928, %929 : vector<8x32xf32>
    %931 = vector.extract_strided_slice %927 {offsets = [16, 0], sizes = [8, 32], strides = [1, 1]} : vector<32x32xf32> to vector<8x32xf32>
    %932 = arith.addf %930, %931 : vector<8x32xf32>
    %933 = vector.extract_strided_slice %927 {offsets = [24, 0], sizes = [8, 32], strides = [1, 1]} : vector<32x32xf32> to vector<8x32xf32>
    %934 = arith.addf %932, %933 : vector<8x32xf32>
    %cst_162 = arith.constant dense<0.000000e+00> : vector<32xf32>
    %935 = vector.multi_reduction <add>, %934, %cst_162 [0] : vector<8x32xf32> to vector<32xf32>
    %936 = vector.shape_cast %935 : vector<32xf32> to vector<1x32xf32>
    %937 = arith.addf %853, %936 : vector<1x32xf32>
    %938 = tpu.reciprocal %937 {approx = true} : vector<1x32xf32> -> vector<1x32xf32>
    %939 = arith.mulf %937, %938 : vector<1x32xf32>
    %cst_163 = arith.constant 2.000000e+00 : f32
    %940 = vector.broadcast %cst_163 : f32 to vector<1x32xf32>
    %941 = arith.subf %940, %939 : vector<1x32xf32>
    %942 = arith.mulf %938, %941 : vector<1x32xf32>
    %943 = arith.mulf %926, %942 : vector<1x32xf32>
    %c2_i32_164 = arith.constant 2 : i32
    %944 = vector.shape_cast %943 : vector<1x32xf32> to vector<1x32xf32>
    %945 = vector.broadcast %944 : vector<1x32xf32> to vector<32x32xf32>
    %946 = arith.mulf %945, %4 : vector<32x32xf32>
    %cst_165 = arith.constant dense<0.000000e+00> : vector<32xf32>
    %947 = vector.multi_reduction <add>, %946, %cst_165 [1] : vector<32x32xf32> to vector<32xf32>
    %948 = vector.shape_cast %947 : vector<32xf32> to vector<32x1xf32>
    %949 = vector.broadcast %948 : vector<32x1xf32> to vector<32x32xf32>
    %950 = arith.subf %949, %1 : vector<32x32xf32>
    %951 = arith.mulf %0, %950 : vector<32x32xf32>
    %cst_166 = arith.constant 5.000000e-01 : f32
    %952 = vector.broadcast %cst_166 : f32 to vector<32x32xf32>
    %953 = arith.mulf %952, %951 : vector<32x32xf32>
    %954 = math.tanh %953 : vector<32x32xf32>
    %cst_167 = arith.constant 5.000000e-01 : f32
    %955 = vector.broadcast %cst_167 : f32 to vector<32x32xf32>
    %956 = arith.mulf %955, %954 : vector<32x32xf32>
    %cst_168 = arith.constant 5.000000e-01 : f32
    %957 = vector.broadcast %cst_168 : f32 to vector<32x32xf32>
    %958 = arith.addf %956, %957 : vector<32x32xf32>
    %959 = arith.mulf %6, %943 : vector<1x32xf32>
    %960 = arith.addf %959, %852 : vector<1x32xf32>
    %961 = arith.mulf %958, %2 : vector<32x32xf32>
    %962 = vector.extract_strided_slice %961 {offsets = [0, 0], sizes = [8, 32], strides = [1, 1]} : vector<32x32xf32> to vector<8x32xf32>
    %963 = vector.extract_strided_slice %961 {offsets = [8, 0], sizes = [8, 32], strides = [1, 1]} : vector<32x32xf32> to vector<8x32xf32>
    %964 = arith.addf %962, %963 : vector<8x32xf32>
    %965 = vector.extract_strided_slice %961 {offsets = [16, 0], sizes = [8, 32], strides = [1, 1]} : vector<32x32xf32> to vector<8x32xf32>
    %966 = arith.addf %964, %965 : vector<8x32xf32>
    %967 = vector.extract_strided_slice %961 {offsets = [24, 0], sizes = [8, 32], strides = [1, 1]} : vector<32x32xf32> to vector<8x32xf32>
    %968 = arith.addf %966, %967 : vector<8x32xf32>
    %cst_169 = arith.constant dense<0.000000e+00> : vector<32xf32>
    %969 = vector.multi_reduction <add>, %968, %cst_169 [0] : vector<8x32xf32> to vector<32xf32>
    %970 = vector.shape_cast %969 : vector<32xf32> to vector<1x32xf32>
    %971 = arith.addf %960, %970 : vector<1x32xf32>
    %972 = arith.mulf %958, %3 : vector<32x32xf32>
    %973 = vector.extract_strided_slice %972 {offsets = [0, 0], sizes = [8, 32], strides = [1, 1]} : vector<32x32xf32> to vector<8x32xf32>
    %974 = vector.extract_strided_slice %972 {offsets = [8, 0], sizes = [8, 32], strides = [1, 1]} : vector<32x32xf32> to vector<8x32xf32>
    %975 = arith.addf %973, %974 : vector<8x32xf32>
    %976 = vector.extract_strided_slice %972 {offsets = [16, 0], sizes = [8, 32], strides = [1, 1]} : vector<32x32xf32> to vector<8x32xf32>
    %977 = arith.addf %975, %976 : vector<8x32xf32>
    %978 = vector.extract_strided_slice %972 {offsets = [24, 0], sizes = [8, 32], strides = [1, 1]} : vector<32x32xf32> to vector<8x32xf32>
    %979 = arith.addf %977, %978 : vector<8x32xf32>
    %cst_170 = arith.constant dense<0.000000e+00> : vector<32xf32>
    %980 = vector.multi_reduction <add>, %979, %cst_170 [0] : vector<8x32xf32> to vector<32xf32>
    %981 = vector.shape_cast %980 : vector<32xf32> to vector<1x32xf32>
    %982 = arith.addf %853, %981 : vector<1x32xf32>
    %983 = tpu.reciprocal %982 {approx = true} : vector<1x32xf32> -> vector<1x32xf32>
    %984 = arith.mulf %982, %983 : vector<1x32xf32>
    %cst_171 = arith.constant 2.000000e+00 : f32
    %985 = vector.broadcast %cst_171 : f32 to vector<1x32xf32>
    %986 = arith.subf %985, %984 : vector<1x32xf32>
    %987 = arith.mulf %983, %986 : vector<1x32xf32>
    %988 = arith.mulf %971, %987 : vector<1x32xf32>
    %c3_i32_172 = arith.constant 3 : i32
    %989 = vector.shape_cast %988 : vector<1x32xf32> to vector<1x32xf32>
    %990 = vector.broadcast %989 : vector<1x32xf32> to vector<32x32xf32>
    %991 = arith.mulf %990, %4 : vector<32x32xf32>
    %cst_173 = arith.constant dense<0.000000e+00> : vector<32xf32>
    %992 = vector.multi_reduction <add>, %991, %cst_173 [1] : vector<32x32xf32> to vector<32xf32>
    %993 = vector.shape_cast %992 : vector<32xf32> to vector<32x1xf32>
    %994 = vector.broadcast %993 : vector<32x1xf32> to vector<32x32xf32>
    %995 = arith.subf %994, %1 : vector<32x32xf32>
    %996 = arith.mulf %0, %995 : vector<32x32xf32>
    %cst_174 = arith.constant 5.000000e-01 : f32
    %997 = vector.broadcast %cst_174 : f32 to vector<32x32xf32>
    %998 = arith.mulf %997, %996 : vector<32x32xf32>
    %999 = math.tanh %998 : vector<32x32xf32>
    %cst_175 = arith.constant 5.000000e-01 : f32
    %1000 = vector.broadcast %cst_175 : f32 to vector<32x32xf32>
    %1001 = arith.mulf %1000, %999 : vector<32x32xf32>
    %cst_176 = arith.constant 5.000000e-01 : f32
    %1002 = vector.broadcast %cst_176 : f32 to vector<32x32xf32>
    %1003 = arith.addf %1001, %1002 : vector<32x32xf32>
    %1004 = arith.mulf %6, %988 : vector<1x32xf32>
    %1005 = arith.addf %1004, %852 : vector<1x32xf32>
    %1006 = arith.mulf %1003, %2 : vector<32x32xf32>
    %1007 = vector.extract_strided_slice %1006 {offsets = [0, 0], sizes = [8, 32], strides = [1, 1]} : vector<32x32xf32> to vector<8x32xf32>
    %1008 = vector.extract_strided_slice %1006 {offsets = [8, 0], sizes = [8, 32], strides = [1, 1]} : vector<32x32xf32> to vector<8x32xf32>
    %1009 = arith.addf %1007, %1008 : vector<8x32xf32>
    %1010 = vector.extract_strided_slice %1006 {offsets = [16, 0], sizes = [8, 32], strides = [1, 1]} : vector<32x32xf32> to vector<8x32xf32>
    %1011 = arith.addf %1009, %1010 : vector<8x32xf32>
    %1012 = vector.extract_strided_slice %1006 {offsets = [24, 0], sizes = [8, 32], strides = [1, 1]} : vector<32x32xf32> to vector<8x32xf32>
    %1013 = arith.addf %1011, %1012 : vector<8x32xf32>
    %cst_177 = arith.constant dense<0.000000e+00> : vector<32xf32>
    %1014 = vector.multi_reduction <add>, %1013, %cst_177 [0] : vector<8x32xf32> to vector<32xf32>
    %1015 = vector.shape_cast %1014 : vector<32xf32> to vector<1x32xf32>
    %1016 = arith.addf %1005, %1015 : vector<1x32xf32>
    %1017 = arith.mulf %1003, %3 : vector<32x32xf32>
    %1018 = vector.extract_strided_slice %1017 {offsets = [0, 0], sizes = [8, 32], strides = [1, 1]} : vector<32x32xf32> to vector<8x32xf32>
    %1019 = vector.extract_strided_slice %1017 {offsets = [8, 0], sizes = [8, 32], strides = [1, 1]} : vector<32x32xf32> to vector<8x32xf32>
    %1020 = arith.addf %1018, %1019 : vector<8x32xf32>
    %1021 = vector.extract_strided_slice %1017 {offsets = [16, 0], sizes = [8, 32], strides = [1, 1]} : vector<32x32xf32> to vector<8x32xf32>
    %1022 = arith.addf %1020, %1021 : vector<8x32xf32>
    %1023 = vector.extract_strided_slice %1017 {offsets = [24, 0], sizes = [8, 32], strides = [1, 1]} : vector<32x32xf32> to vector<8x32xf32>
    %1024 = arith.addf %1022, %1023 : vector<8x32xf32>
    %cst_178 = arith.constant dense<0.000000e+00> : vector<32xf32>
    %1025 = vector.multi_reduction <add>, %1024, %cst_178 [0] : vector<8x32xf32> to vector<32xf32>
    %1026 = vector.shape_cast %1025 : vector<32xf32> to vector<1x32xf32>
    %1027 = arith.addf %853, %1026 : vector<1x32xf32>
    %1028 = tpu.reciprocal %1027 {approx = true} : vector<1x32xf32> -> vector<1x32xf32>
    %1029 = arith.mulf %1027, %1028 : vector<1x32xf32>
    %cst_179 = arith.constant 2.000000e+00 : f32
    %1030 = vector.broadcast %cst_179 : f32 to vector<1x32xf32>
    %1031 = arith.subf %1030, %1029 : vector<1x32xf32>
    %1032 = arith.mulf %1028, %1031 : vector<1x32xf32>
    %1033 = arith.mulf %1016, %1032 : vector<1x32xf32>
    %c4_i32_180 = arith.constant 4 : i32
    %1034 = vector.shape_cast %1033 : vector<1x32xf32> to vector<1x32xf32>
    %1035 = vector.broadcast %1034 : vector<1x32xf32> to vector<32x32xf32>
    %1036 = arith.mulf %1035, %4 : vector<32x32xf32>
    %cst_181 = arith.constant dense<0.000000e+00> : vector<32xf32>
    %1037 = vector.multi_reduction <add>, %1036, %cst_181 [1] : vector<32x32xf32> to vector<32xf32>
    %1038 = vector.shape_cast %1037 : vector<32xf32> to vector<32x1xf32>
    %1039 = vector.broadcast %1038 : vector<32x1xf32> to vector<32x32xf32>
    %1040 = arith.subf %1039, %1 : vector<32x32xf32>
    %1041 = arith.mulf %0, %1040 : vector<32x32xf32>
    %cst_182 = arith.constant 5.000000e-01 : f32
    %1042 = vector.broadcast %cst_182 : f32 to vector<32x32xf32>
    %1043 = arith.mulf %1042, %1041 : vector<32x32xf32>
    %1044 = math.tanh %1043 : vector<32x32xf32>
    %cst_183 = arith.constant 5.000000e-01 : f32
    %1045 = vector.broadcast %cst_183 : f32 to vector<32x32xf32>
    %1046 = arith.mulf %1045, %1044 : vector<32x32xf32>
    %cst_184 = arith.constant 5.000000e-01 : f32
    %1047 = vector.broadcast %cst_184 : f32 to vector<32x32xf32>
    %1048 = arith.addf %1046, %1047 : vector<32x32xf32>
    %1049 = arith.mulf %6, %1033 : vector<1x32xf32>
    %1050 = arith.addf %1049, %852 : vector<1x32xf32>
    %1051 = arith.mulf %1048, %2 : vector<32x32xf32>
    %1052 = vector.extract_strided_slice %1051 {offsets = [0, 0], sizes = [8, 32], strides = [1, 1]} : vector<32x32xf32> to vector<8x32xf32>
    %1053 = vector.extract_strided_slice %1051 {offsets = [8, 0], sizes = [8, 32], strides = [1, 1]} : vector<32x32xf32> to vector<8x32xf32>
    %1054 = arith.addf %1052, %1053 : vector<8x32xf32>
    %1055 = vector.extract_strided_slice %1051 {offsets = [16, 0], sizes = [8, 32], strides = [1, 1]} : vector<32x32xf32> to vector<8x32xf32>
    %1056 = arith.addf %1054, %1055 : vector<8x32xf32>
    %1057 = vector.extract_strided_slice %1051 {offsets = [24, 0], sizes = [8, 32], strides = [1, 1]} : vector<32x32xf32> to vector<8x32xf32>
    %1058 = arith.addf %1056, %1057 : vector<8x32xf32>
    %cst_185 = arith.constant dense<0.000000e+00> : vector<32xf32>
    %1059 = vector.multi_reduction <add>, %1058, %cst_185 [0] : vector<8x32xf32> to vector<32xf32>
    %1060 = vector.shape_cast %1059 : vector<32xf32> to vector<1x32xf32>
    %1061 = arith.addf %1050, %1060 : vector<1x32xf32>
    %1062 = arith.mulf %1048, %3 : vector<32x32xf32>
    %1063 = vector.extract_strided_slice %1062 {offsets = [0, 0], sizes = [8, 32], strides = [1, 1]} : vector<32x32xf32> to vector<8x32xf32>
    %1064 = vector.extract_strided_slice %1062 {offsets = [8, 0], sizes = [8, 32], strides = [1, 1]} : vector<32x32xf32> to vector<8x32xf32>
    %1065 = arith.addf %1063, %1064 : vector<8x32xf32>
    %1066 = vector.extract_strided_slice %1062 {offsets = [16, 0], sizes = [8, 32], strides = [1, 1]} : vector<32x32xf32> to vector<8x32xf32>
    %1067 = arith.addf %1065, %1066 : vector<8x32xf32>
    %1068 = vector.extract_strided_slice %1062 {offsets = [24, 0], sizes = [8, 32], strides = [1, 1]} : vector<32x32xf32> to vector<8x32xf32>
    %1069 = arith.addf %1067, %1068 : vector<8x32xf32>
    %cst_186 = arith.constant dense<0.000000e+00> : vector<32xf32>
    %1070 = vector.multi_reduction <add>, %1069, %cst_186 [0] : vector<8x32xf32> to vector<32xf32>
    %1071 = vector.shape_cast %1070 : vector<32xf32> to vector<1x32xf32>
    %1072 = arith.addf %853, %1071 : vector<1x32xf32>
    %1073 = tpu.reciprocal %1072 {approx = true} : vector<1x32xf32> -> vector<1x32xf32>
    %1074 = arith.mulf %1072, %1073 : vector<1x32xf32>
    %cst_187 = arith.constant 2.000000e+00 : f32
    %1075 = vector.broadcast %cst_187 : f32 to vector<1x32xf32>
    %1076 = arith.subf %1075, %1074 : vector<1x32xf32>
    %1077 = arith.mulf %1073, %1076 : vector<1x32xf32>
    %1078 = arith.mulf %1061, %1077 : vector<1x32xf32>
    %c5_i32_188 = arith.constant 5 : i32
    %1079 = vector.shape_cast %1078 : vector<1x32xf32> to vector<1x32xf32>
    %1080 = vector.broadcast %1079 : vector<1x32xf32> to vector<32x32xf32>
    %1081 = arith.mulf %1080, %4 : vector<32x32xf32>
    %cst_189 = arith.constant dense<0.000000e+00> : vector<32xf32>
    %1082 = vector.multi_reduction <add>, %1081, %cst_189 [1] : vector<32x32xf32> to vector<32xf32>
    %1083 = vector.shape_cast %1082 : vector<32xf32> to vector<32x1xf32>
    %1084 = vector.broadcast %1083 : vector<32x1xf32> to vector<32x32xf32>
    %1085 = arith.subf %1084, %1 : vector<32x32xf32>
    %1086 = arith.mulf %0, %1085 : vector<32x32xf32>
    %cst_190 = arith.constant 5.000000e-01 : f32
    %1087 = vector.broadcast %cst_190 : f32 to vector<32x32xf32>
    %1088 = arith.mulf %1087, %1086 : vector<32x32xf32>
    %1089 = math.tanh %1088 : vector<32x32xf32>
    %cst_191 = arith.constant 5.000000e-01 : f32
    %1090 = vector.broadcast %cst_191 : f32 to vector<32x32xf32>
    %1091 = arith.mulf %1090, %1089 : vector<32x32xf32>
    %cst_192 = arith.constant 5.000000e-01 : f32
    %1092 = vector.broadcast %cst_192 : f32 to vector<32x32xf32>
    %1093 = arith.addf %1091, %1092 : vector<32x32xf32>
    %1094 = arith.mulf %6, %1078 : vector<1x32xf32>
    %1095 = arith.addf %1094, %852 : vector<1x32xf32>
    %1096 = arith.mulf %1093, %2 : vector<32x32xf32>
    %1097 = vector.extract_strided_slice %1096 {offsets = [0, 0], sizes = [8, 32], strides = [1, 1]} : vector<32x32xf32> to vector<8x32xf32>
    %1098 = vector.extract_strided_slice %1096 {offsets = [8, 0], sizes = [8, 32], strides = [1, 1]} : vector<32x32xf32> to vector<8x32xf32>
    %1099 = arith.addf %1097, %1098 : vector<8x32xf32>
    %1100 = vector.extract_strided_slice %1096 {offsets = [16, 0], sizes = [8, 32], strides = [1, 1]} : vector<32x32xf32> to vector<8x32xf32>
    %1101 = arith.addf %1099, %1100 : vector<8x32xf32>
    %1102 = vector.extract_strided_slice %1096 {offsets = [24, 0], sizes = [8, 32], strides = [1, 1]} : vector<32x32xf32> to vector<8x32xf32>
    %1103 = arith.addf %1101, %1102 : vector<8x32xf32>
    %cst_193 = arith.constant dense<0.000000e+00> : vector<32xf32>
    %1104 = vector.multi_reduction <add>, %1103, %cst_193 [0] : vector<8x32xf32> to vector<32xf32>
    %1105 = vector.shape_cast %1104 : vector<32xf32> to vector<1x32xf32>
    %1106 = arith.addf %1095, %1105 : vector<1x32xf32>
    %1107 = arith.mulf %1093, %3 : vector<32x32xf32>
    %1108 = vector.extract_strided_slice %1107 {offsets = [0, 0], sizes = [8, 32], strides = [1, 1]} : vector<32x32xf32> to vector<8x32xf32>
    %1109 = vector.extract_strided_slice %1107 {offsets = [8, 0], sizes = [8, 32], strides = [1, 1]} : vector<32x32xf32> to vector<8x32xf32>
    %1110 = arith.addf %1108, %1109 : vector<8x32xf32>
    %1111 = vector.extract_strided_slice %1107 {offsets = [16, 0], sizes = [8, 32], strides = [1, 1]} : vector<32x32xf32> to vector<8x32xf32>
    %1112 = arith.addf %1110, %1111 : vector<8x32xf32>
    %1113 = vector.extract_strided_slice %1107 {offsets = [24, 0], sizes = [8, 32], strides = [1, 1]} : vector<32x32xf32> to vector<8x32xf32>
    %1114 = arith.addf %1112, %1113 : vector<8x32xf32>
    %cst_194 = arith.constant dense<0.000000e+00> : vector<32xf32>
    %1115 = vector.multi_reduction <add>, %1114, %cst_194 [0] : vector<8x32xf32> to vector<32xf32>
    %1116 = vector.shape_cast %1115 : vector<32xf32> to vector<1x32xf32>
    %1117 = arith.addf %853, %1116 : vector<1x32xf32>
    %1118 = tpu.reciprocal %1117 {approx = true} : vector<1x32xf32> -> vector<1x32xf32>
    %1119 = arith.mulf %1117, %1118 : vector<1x32xf32>
    %cst_195 = arith.constant 2.000000e+00 : f32
    %1120 = vector.broadcast %cst_195 : f32 to vector<1x32xf32>
    %1121 = arith.subf %1120, %1119 : vector<1x32xf32>
    %1122 = arith.mulf %1118, %1121 : vector<1x32xf32>
    %1123 = arith.mulf %1106, %1122 : vector<1x32xf32>
    %1124 = vector.extract_strided_slice %30 {offsets = [4, 0], sizes = [1, 32], strides = [1, 1]} : vector<8x32xf32> to vector<1x32xf32>
    %1125 = vector.extract_strided_slice %34 {offsets = [4, 0], sizes = [1, 32], strides = [1, 1]} : vector<8x32xf32> to vector<1x32xf32>
    %c0_i32_196 = arith.constant 0 : i32
    %1126 = vector.shape_cast %1123 : vector<1x32xf32> to vector<1x32xf32>
    %1127 = vector.broadcast %1126 : vector<1x32xf32> to vector<32x32xf32>
    %1128 = arith.mulf %1127, %4 : vector<32x32xf32>
    %cst_197 = arith.constant dense<0.000000e+00> : vector<32xf32>
    %1129 = vector.multi_reduction <add>, %1128, %cst_197 [1] : vector<32x32xf32> to vector<32xf32>
    %1130 = vector.shape_cast %1129 : vector<32xf32> to vector<32x1xf32>
    %1131 = vector.broadcast %1130 : vector<32x1xf32> to vector<32x32xf32>
    %1132 = arith.subf %1131, %1 : vector<32x32xf32>
    %1133 = arith.mulf %0, %1132 : vector<32x32xf32>
    %cst_198 = arith.constant 5.000000e-01 : f32
    %1134 = vector.broadcast %cst_198 : f32 to vector<32x32xf32>
    %1135 = arith.mulf %1134, %1133 : vector<32x32xf32>
    %1136 = math.tanh %1135 : vector<32x32xf32>
    %cst_199 = arith.constant 5.000000e-01 : f32
    %1137 = vector.broadcast %cst_199 : f32 to vector<32x32xf32>
    %1138 = arith.mulf %1137, %1136 : vector<32x32xf32>
    %cst_200 = arith.constant 5.000000e-01 : f32
    %1139 = vector.broadcast %cst_200 : f32 to vector<32x32xf32>
    %1140 = arith.addf %1138, %1139 : vector<32x32xf32>
    %1141 = arith.mulf %6, %1123 : vector<1x32xf32>
    %1142 = arith.addf %1141, %1124 : vector<1x32xf32>
    %1143 = arith.mulf %1140, %2 : vector<32x32xf32>
    %1144 = vector.extract_strided_slice %1143 {offsets = [0, 0], sizes = [8, 32], strides = [1, 1]} : vector<32x32xf32> to vector<8x32xf32>
    %1145 = vector.extract_strided_slice %1143 {offsets = [8, 0], sizes = [8, 32], strides = [1, 1]} : vector<32x32xf32> to vector<8x32xf32>
    %1146 = arith.addf %1144, %1145 : vector<8x32xf32>
    %1147 = vector.extract_strided_slice %1143 {offsets = [16, 0], sizes = [8, 32], strides = [1, 1]} : vector<32x32xf32> to vector<8x32xf32>
    %1148 = arith.addf %1146, %1147 : vector<8x32xf32>
    %1149 = vector.extract_strided_slice %1143 {offsets = [24, 0], sizes = [8, 32], strides = [1, 1]} : vector<32x32xf32> to vector<8x32xf32>
    %1150 = arith.addf %1148, %1149 : vector<8x32xf32>
    %cst_201 = arith.constant dense<0.000000e+00> : vector<32xf32>
    %1151 = vector.multi_reduction <add>, %1150, %cst_201 [0] : vector<8x32xf32> to vector<32xf32>
    %1152 = vector.shape_cast %1151 : vector<32xf32> to vector<1x32xf32>
    %1153 = arith.addf %1142, %1152 : vector<1x32xf32>
    %1154 = arith.mulf %1140, %3 : vector<32x32xf32>
    %1155 = vector.extract_strided_slice %1154 {offsets = [0, 0], sizes = [8, 32], strides = [1, 1]} : vector<32x32xf32> to vector<8x32xf32>
    %1156 = vector.extract_strided_slice %1154 {offsets = [8, 0], sizes = [8, 32], strides = [1, 1]} : vector<32x32xf32> to vector<8x32xf32>
    %1157 = arith.addf %1155, %1156 : vector<8x32xf32>
    %1158 = vector.extract_strided_slice %1154 {offsets = [16, 0], sizes = [8, 32], strides = [1, 1]} : vector<32x32xf32> to vector<8x32xf32>
    %1159 = arith.addf %1157, %1158 : vector<8x32xf32>
    %1160 = vector.extract_strided_slice %1154 {offsets = [24, 0], sizes = [8, 32], strides = [1, 1]} : vector<32x32xf32> to vector<8x32xf32>
    %1161 = arith.addf %1159, %1160 : vector<8x32xf32>
    %cst_202 = arith.constant dense<0.000000e+00> : vector<32xf32>
    %1162 = vector.multi_reduction <add>, %1161, %cst_202 [0] : vector<8x32xf32> to vector<32xf32>
    %1163 = vector.shape_cast %1162 : vector<32xf32> to vector<1x32xf32>
    %1164 = arith.addf %1125, %1163 : vector<1x32xf32>
    %1165 = tpu.reciprocal %1164 {approx = true} : vector<1x32xf32> -> vector<1x32xf32>
    %1166 = arith.mulf %1164, %1165 : vector<1x32xf32>
    %cst_203 = arith.constant 2.000000e+00 : f32
    %1167 = vector.broadcast %cst_203 : f32 to vector<1x32xf32>
    %1168 = arith.subf %1167, %1166 : vector<1x32xf32>
    %1169 = arith.mulf %1165, %1168 : vector<1x32xf32>
    %1170 = arith.mulf %1153, %1169 : vector<1x32xf32>
    %c1_i32_204 = arith.constant 1 : i32
    %1171 = vector.shape_cast %1170 : vector<1x32xf32> to vector<1x32xf32>
    %1172 = vector.broadcast %1171 : vector<1x32xf32> to vector<32x32xf32>
    %1173 = arith.mulf %1172, %4 : vector<32x32xf32>
    %cst_205 = arith.constant dense<0.000000e+00> : vector<32xf32>
    %1174 = vector.multi_reduction <add>, %1173, %cst_205 [1] : vector<32x32xf32> to vector<32xf32>
    %1175 = vector.shape_cast %1174 : vector<32xf32> to vector<32x1xf32>
    %1176 = vector.broadcast %1175 : vector<32x1xf32> to vector<32x32xf32>
    %1177 = arith.subf %1176, %1 : vector<32x32xf32>
    %1178 = arith.mulf %0, %1177 : vector<32x32xf32>
    %cst_206 = arith.constant 5.000000e-01 : f32
    %1179 = vector.broadcast %cst_206 : f32 to vector<32x32xf32>
    %1180 = arith.mulf %1179, %1178 : vector<32x32xf32>
    %1181 = math.tanh %1180 : vector<32x32xf32>
    %cst_207 = arith.constant 5.000000e-01 : f32
    %1182 = vector.broadcast %cst_207 : f32 to vector<32x32xf32>
    %1183 = arith.mulf %1182, %1181 : vector<32x32xf32>
    %cst_208 = arith.constant 5.000000e-01 : f32
    %1184 = vector.broadcast %cst_208 : f32 to vector<32x32xf32>
    %1185 = arith.addf %1183, %1184 : vector<32x32xf32>
    %1186 = arith.mulf %6, %1170 : vector<1x32xf32>
    %1187 = arith.addf %1186, %1124 : vector<1x32xf32>
    %1188 = arith.mulf %1185, %2 : vector<32x32xf32>
    %1189 = vector.extract_strided_slice %1188 {offsets = [0, 0], sizes = [8, 32], strides = [1, 1]} : vector<32x32xf32> to vector<8x32xf32>
    %1190 = vector.extract_strided_slice %1188 {offsets = [8, 0], sizes = [8, 32], strides = [1, 1]} : vector<32x32xf32> to vector<8x32xf32>
    %1191 = arith.addf %1189, %1190 : vector<8x32xf32>
    %1192 = vector.extract_strided_slice %1188 {offsets = [16, 0], sizes = [8, 32], strides = [1, 1]} : vector<32x32xf32> to vector<8x32xf32>
    %1193 = arith.addf %1191, %1192 : vector<8x32xf32>
    %1194 = vector.extract_strided_slice %1188 {offsets = [24, 0], sizes = [8, 32], strides = [1, 1]} : vector<32x32xf32> to vector<8x32xf32>
    %1195 = arith.addf %1193, %1194 : vector<8x32xf32>
    %cst_209 = arith.constant dense<0.000000e+00> : vector<32xf32>
    %1196 = vector.multi_reduction <add>, %1195, %cst_209 [0] : vector<8x32xf32> to vector<32xf32>
    %1197 = vector.shape_cast %1196 : vector<32xf32> to vector<1x32xf32>
    %1198 = arith.addf %1187, %1197 : vector<1x32xf32>
    %1199 = arith.mulf %1185, %3 : vector<32x32xf32>
    %1200 = vector.extract_strided_slice %1199 {offsets = [0, 0], sizes = [8, 32], strides = [1, 1]} : vector<32x32xf32> to vector<8x32xf32>
    %1201 = vector.extract_strided_slice %1199 {offsets = [8, 0], sizes = [8, 32], strides = [1, 1]} : vector<32x32xf32> to vector<8x32xf32>
    %1202 = arith.addf %1200, %1201 : vector<8x32xf32>
    %1203 = vector.extract_strided_slice %1199 {offsets = [16, 0], sizes = [8, 32], strides = [1, 1]} : vector<32x32xf32> to vector<8x32xf32>
    %1204 = arith.addf %1202, %1203 : vector<8x32xf32>
    %1205 = vector.extract_strided_slice %1199 {offsets = [24, 0], sizes = [8, 32], strides = [1, 1]} : vector<32x32xf32> to vector<8x32xf32>
    %1206 = arith.addf %1204, %1205 : vector<8x32xf32>
    %cst_210 = arith.constant dense<0.000000e+00> : vector<32xf32>
    %1207 = vector.multi_reduction <add>, %1206, %cst_210 [0] : vector<8x32xf32> to vector<32xf32>
    %1208 = vector.shape_cast %1207 : vector<32xf32> to vector<1x32xf32>
    %1209 = arith.addf %1125, %1208 : vector<1x32xf32>
    %1210 = tpu.reciprocal %1209 {approx = true} : vector<1x32xf32> -> vector<1x32xf32>
    %1211 = arith.mulf %1209, %1210 : vector<1x32xf32>
    %cst_211 = arith.constant 2.000000e+00 : f32
    %1212 = vector.broadcast %cst_211 : f32 to vector<1x32xf32>
    %1213 = arith.subf %1212, %1211 : vector<1x32xf32>
    %1214 = arith.mulf %1210, %1213 : vector<1x32xf32>
    %1215 = arith.mulf %1198, %1214 : vector<1x32xf32>
    %c2_i32_212 = arith.constant 2 : i32
    %1216 = vector.shape_cast %1215 : vector<1x32xf32> to vector<1x32xf32>
    %1217 = vector.broadcast %1216 : vector<1x32xf32> to vector<32x32xf32>
    %1218 = arith.mulf %1217, %4 : vector<32x32xf32>
    %cst_213 = arith.constant dense<0.000000e+00> : vector<32xf32>
    %1219 = vector.multi_reduction <add>, %1218, %cst_213 [1] : vector<32x32xf32> to vector<32xf32>
    %1220 = vector.shape_cast %1219 : vector<32xf32> to vector<32x1xf32>
    %1221 = vector.broadcast %1220 : vector<32x1xf32> to vector<32x32xf32>
    %1222 = arith.subf %1221, %1 : vector<32x32xf32>
    %1223 = arith.mulf %0, %1222 : vector<32x32xf32>
    %cst_214 = arith.constant 5.000000e-01 : f32
    %1224 = vector.broadcast %cst_214 : f32 to vector<32x32xf32>
    %1225 = arith.mulf %1224, %1223 : vector<32x32xf32>
    %1226 = math.tanh %1225 : vector<32x32xf32>
    %cst_215 = arith.constant 5.000000e-01 : f32
    %1227 = vector.broadcast %cst_215 : f32 to vector<32x32xf32>
    %1228 = arith.mulf %1227, %1226 : vector<32x32xf32>
    %cst_216 = arith.constant 5.000000e-01 : f32
    %1229 = vector.broadcast %cst_216 : f32 to vector<32x32xf32>
    %1230 = arith.addf %1228, %1229 : vector<32x32xf32>
    %1231 = arith.mulf %6, %1215 : vector<1x32xf32>
    %1232 = arith.addf %1231, %1124 : vector<1x32xf32>
    %1233 = arith.mulf %1230, %2 : vector<32x32xf32>
    %1234 = vector.extract_strided_slice %1233 {offsets = [0, 0], sizes = [8, 32], strides = [1, 1]} : vector<32x32xf32> to vector<8x32xf32>
    %1235 = vector.extract_strided_slice %1233 {offsets = [8, 0], sizes = [8, 32], strides = [1, 1]} : vector<32x32xf32> to vector<8x32xf32>
    %1236 = arith.addf %1234, %1235 : vector<8x32xf32>
    %1237 = vector.extract_strided_slice %1233 {offsets = [16, 0], sizes = [8, 32], strides = [1, 1]} : vector<32x32xf32> to vector<8x32xf32>
    %1238 = arith.addf %1236, %1237 : vector<8x32xf32>
    %1239 = vector.extract_strided_slice %1233 {offsets = [24, 0], sizes = [8, 32], strides = [1, 1]} : vector<32x32xf32> to vector<8x32xf32>
    %1240 = arith.addf %1238, %1239 : vector<8x32xf32>
    %cst_217 = arith.constant dense<0.000000e+00> : vector<32xf32>
    %1241 = vector.multi_reduction <add>, %1240, %cst_217 [0] : vector<8x32xf32> to vector<32xf32>
    %1242 = vector.shape_cast %1241 : vector<32xf32> to vector<1x32xf32>
    %1243 = arith.addf %1232, %1242 : vector<1x32xf32>
    %1244 = arith.mulf %1230, %3 : vector<32x32xf32>
    %1245 = vector.extract_strided_slice %1244 {offsets = [0, 0], sizes = [8, 32], strides = [1, 1]} : vector<32x32xf32> to vector<8x32xf32>
    %1246 = vector.extract_strided_slice %1244 {offsets = [8, 0], sizes = [8, 32], strides = [1, 1]} : vector<32x32xf32> to vector<8x32xf32>
    %1247 = arith.addf %1245, %1246 : vector<8x32xf32>
    %1248 = vector.extract_strided_slice %1244 {offsets = [16, 0], sizes = [8, 32], strides = [1, 1]} : vector<32x32xf32> to vector<8x32xf32>
    %1249 = arith.addf %1247, %1248 : vector<8x32xf32>
    %1250 = vector.extract_strided_slice %1244 {offsets = [24, 0], sizes = [8, 32], strides = [1, 1]} : vector<32x32xf32> to vector<8x32xf32>
    %1251 = arith.addf %1249, %1250 : vector<8x32xf32>
    %cst_218 = arith.constant dense<0.000000e+00> : vector<32xf32>
    %1252 = vector.multi_reduction <add>, %1251, %cst_218 [0] : vector<8x32xf32> to vector<32xf32>
    %1253 = vector.shape_cast %1252 : vector<32xf32> to vector<1x32xf32>
    %1254 = arith.addf %1125, %1253 : vector<1x32xf32>
    %1255 = tpu.reciprocal %1254 {approx = true} : vector<1x32xf32> -> vector<1x32xf32>
    %1256 = arith.mulf %1254, %1255 : vector<1x32xf32>
    %cst_219 = arith.constant 2.000000e+00 : f32
    %1257 = vector.broadcast %cst_219 : f32 to vector<1x32xf32>
    %1258 = arith.subf %1257, %1256 : vector<1x32xf32>
    %1259 = arith.mulf %1255, %1258 : vector<1x32xf32>
    %1260 = arith.mulf %1243, %1259 : vector<1x32xf32>
    %c3_i32_220 = arith.constant 3 : i32
    %1261 = vector.shape_cast %1260 : vector<1x32xf32> to vector<1x32xf32>
    %1262 = vector.broadcast %1261 : vector<1x32xf32> to vector<32x32xf32>
    %1263 = arith.mulf %1262, %4 : vector<32x32xf32>
    %cst_221 = arith.constant dense<0.000000e+00> : vector<32xf32>
    %1264 = vector.multi_reduction <add>, %1263, %cst_221 [1] : vector<32x32xf32> to vector<32xf32>
    %1265 = vector.shape_cast %1264 : vector<32xf32> to vector<32x1xf32>
    %1266 = vector.broadcast %1265 : vector<32x1xf32> to vector<32x32xf32>
    %1267 = arith.subf %1266, %1 : vector<32x32xf32>
    %1268 = arith.mulf %0, %1267 : vector<32x32xf32>
    %cst_222 = arith.constant 5.000000e-01 : f32
    %1269 = vector.broadcast %cst_222 : f32 to vector<32x32xf32>
    %1270 = arith.mulf %1269, %1268 : vector<32x32xf32>
    %1271 = math.tanh %1270 : vector<32x32xf32>
    %cst_223 = arith.constant 5.000000e-01 : f32
    %1272 = vector.broadcast %cst_223 : f32 to vector<32x32xf32>
    %1273 = arith.mulf %1272, %1271 : vector<32x32xf32>
    %cst_224 = arith.constant 5.000000e-01 : f32
    %1274 = vector.broadcast %cst_224 : f32 to vector<32x32xf32>
    %1275 = arith.addf %1273, %1274 : vector<32x32xf32>
    %1276 = arith.mulf %6, %1260 : vector<1x32xf32>
    %1277 = arith.addf %1276, %1124 : vector<1x32xf32>
    %1278 = arith.mulf %1275, %2 : vector<32x32xf32>
    %1279 = vector.extract_strided_slice %1278 {offsets = [0, 0], sizes = [8, 32], strides = [1, 1]} : vector<32x32xf32> to vector<8x32xf32>
    %1280 = vector.extract_strided_slice %1278 {offsets = [8, 0], sizes = [8, 32], strides = [1, 1]} : vector<32x32xf32> to vector<8x32xf32>
    %1281 = arith.addf %1279, %1280 : vector<8x32xf32>
    %1282 = vector.extract_strided_slice %1278 {offsets = [16, 0], sizes = [8, 32], strides = [1, 1]} : vector<32x32xf32> to vector<8x32xf32>
    %1283 = arith.addf %1281, %1282 : vector<8x32xf32>
    %1284 = vector.extract_strided_slice %1278 {offsets = [24, 0], sizes = [8, 32], strides = [1, 1]} : vector<32x32xf32> to vector<8x32xf32>
    %1285 = arith.addf %1283, %1284 : vector<8x32xf32>
    %cst_225 = arith.constant dense<0.000000e+00> : vector<32xf32>
    %1286 = vector.multi_reduction <add>, %1285, %cst_225 [0] : vector<8x32xf32> to vector<32xf32>
    %1287 = vector.shape_cast %1286 : vector<32xf32> to vector<1x32xf32>
    %1288 = arith.addf %1277, %1287 : vector<1x32xf32>
    %1289 = arith.mulf %1275, %3 : vector<32x32xf32>
    %1290 = vector.extract_strided_slice %1289 {offsets = [0, 0], sizes = [8, 32], strides = [1, 1]} : vector<32x32xf32> to vector<8x32xf32>
    %1291 = vector.extract_strided_slice %1289 {offsets = [8, 0], sizes = [8, 32], strides = [1, 1]} : vector<32x32xf32> to vector<8x32xf32>
    %1292 = arith.addf %1290, %1291 : vector<8x32xf32>
    %1293 = vector.extract_strided_slice %1289 {offsets = [16, 0], sizes = [8, 32], strides = [1, 1]} : vector<32x32xf32> to vector<8x32xf32>
    %1294 = arith.addf %1292, %1293 : vector<8x32xf32>
    %1295 = vector.extract_strided_slice %1289 {offsets = [24, 0], sizes = [8, 32], strides = [1, 1]} : vector<32x32xf32> to vector<8x32xf32>
    %1296 = arith.addf %1294, %1295 : vector<8x32xf32>
    %cst_226 = arith.constant dense<0.000000e+00> : vector<32xf32>
    %1297 = vector.multi_reduction <add>, %1296, %cst_226 [0] : vector<8x32xf32> to vector<32xf32>
    %1298 = vector.shape_cast %1297 : vector<32xf32> to vector<1x32xf32>
    %1299 = arith.addf %1125, %1298 : vector<1x32xf32>
    %1300 = tpu.reciprocal %1299 {approx = true} : vector<1x32xf32> -> vector<1x32xf32>
    %1301 = arith.mulf %1299, %1300 : vector<1x32xf32>
    %cst_227 = arith.constant 2.000000e+00 : f32
    %1302 = vector.broadcast %cst_227 : f32 to vector<1x32xf32>
    %1303 = arith.subf %1302, %1301 : vector<1x32xf32>
    %1304 = arith.mulf %1300, %1303 : vector<1x32xf32>
    %1305 = arith.mulf %1288, %1304 : vector<1x32xf32>
    %c4_i32_228 = arith.constant 4 : i32
    %1306 = vector.shape_cast %1305 : vector<1x32xf32> to vector<1x32xf32>
    %1307 = vector.broadcast %1306 : vector<1x32xf32> to vector<32x32xf32>
    %1308 = arith.mulf %1307, %4 : vector<32x32xf32>
    %cst_229 = arith.constant dense<0.000000e+00> : vector<32xf32>
    %1309 = vector.multi_reduction <add>, %1308, %cst_229 [1] : vector<32x32xf32> to vector<32xf32>
    %1310 = vector.shape_cast %1309 : vector<32xf32> to vector<32x1xf32>
    %1311 = vector.broadcast %1310 : vector<32x1xf32> to vector<32x32xf32>
    %1312 = arith.subf %1311, %1 : vector<32x32xf32>
    %1313 = arith.mulf %0, %1312 : vector<32x32xf32>
    %cst_230 = arith.constant 5.000000e-01 : f32
    %1314 = vector.broadcast %cst_230 : f32 to vector<32x32xf32>
    %1315 = arith.mulf %1314, %1313 : vector<32x32xf32>
    %1316 = math.tanh %1315 : vector<32x32xf32>
    %cst_231 = arith.constant 5.000000e-01 : f32
    %1317 = vector.broadcast %cst_231 : f32 to vector<32x32xf32>
    %1318 = arith.mulf %1317, %1316 : vector<32x32xf32>
    %cst_232 = arith.constant 5.000000e-01 : f32
    %1319 = vector.broadcast %cst_232 : f32 to vector<32x32xf32>
    %1320 = arith.addf %1318, %1319 : vector<32x32xf32>
    %1321 = arith.mulf %6, %1305 : vector<1x32xf32>
    %1322 = arith.addf %1321, %1124 : vector<1x32xf32>
    %1323 = arith.mulf %1320, %2 : vector<32x32xf32>
    %1324 = vector.extract_strided_slice %1323 {offsets = [0, 0], sizes = [8, 32], strides = [1, 1]} : vector<32x32xf32> to vector<8x32xf32>
    %1325 = vector.extract_strided_slice %1323 {offsets = [8, 0], sizes = [8, 32], strides = [1, 1]} : vector<32x32xf32> to vector<8x32xf32>
    %1326 = arith.addf %1324, %1325 : vector<8x32xf32>
    %1327 = vector.extract_strided_slice %1323 {offsets = [16, 0], sizes = [8, 32], strides = [1, 1]} : vector<32x32xf32> to vector<8x32xf32>
    %1328 = arith.addf %1326, %1327 : vector<8x32xf32>
    %1329 = vector.extract_strided_slice %1323 {offsets = [24, 0], sizes = [8, 32], strides = [1, 1]} : vector<32x32xf32> to vector<8x32xf32>
    %1330 = arith.addf %1328, %1329 : vector<8x32xf32>
    %cst_233 = arith.constant dense<0.000000e+00> : vector<32xf32>
    %1331 = vector.multi_reduction <add>, %1330, %cst_233 [0] : vector<8x32xf32> to vector<32xf32>
    %1332 = vector.shape_cast %1331 : vector<32xf32> to vector<1x32xf32>
    %1333 = arith.addf %1322, %1332 : vector<1x32xf32>
    %1334 = arith.mulf %1320, %3 : vector<32x32xf32>
    %1335 = vector.extract_strided_slice %1334 {offsets = [0, 0], sizes = [8, 32], strides = [1, 1]} : vector<32x32xf32> to vector<8x32xf32>
    %1336 = vector.extract_strided_slice %1334 {offsets = [8, 0], sizes = [8, 32], strides = [1, 1]} : vector<32x32xf32> to vector<8x32xf32>
    %1337 = arith.addf %1335, %1336 : vector<8x32xf32>
    %1338 = vector.extract_strided_slice %1334 {offsets = [16, 0], sizes = [8, 32], strides = [1, 1]} : vector<32x32xf32> to vector<8x32xf32>
    %1339 = arith.addf %1337, %1338 : vector<8x32xf32>
    %1340 = vector.extract_strided_slice %1334 {offsets = [24, 0], sizes = [8, 32], strides = [1, 1]} : vector<32x32xf32> to vector<8x32xf32>
    %1341 = arith.addf %1339, %1340 : vector<8x32xf32>
    %cst_234 = arith.constant dense<0.000000e+00> : vector<32xf32>
    %1342 = vector.multi_reduction <add>, %1341, %cst_234 [0] : vector<8x32xf32> to vector<32xf32>
    %1343 = vector.shape_cast %1342 : vector<32xf32> to vector<1x32xf32>
    %1344 = arith.addf %1125, %1343 : vector<1x32xf32>
    %1345 = tpu.reciprocal %1344 {approx = true} : vector<1x32xf32> -> vector<1x32xf32>
    %1346 = arith.mulf %1344, %1345 : vector<1x32xf32>
    %cst_235 = arith.constant 2.000000e+00 : f32
    %1347 = vector.broadcast %cst_235 : f32 to vector<1x32xf32>
    %1348 = arith.subf %1347, %1346 : vector<1x32xf32>
    %1349 = arith.mulf %1345, %1348 : vector<1x32xf32>
    %1350 = arith.mulf %1333, %1349 : vector<1x32xf32>
    %c5_i32_236 = arith.constant 5 : i32
    %1351 = vector.shape_cast %1350 : vector<1x32xf32> to vector<1x32xf32>
    %1352 = vector.broadcast %1351 : vector<1x32xf32> to vector<32x32xf32>
    %1353 = arith.mulf %1352, %4 : vector<32x32xf32>
    %cst_237 = arith.constant dense<0.000000e+00> : vector<32xf32>
    %1354 = vector.multi_reduction <add>, %1353, %cst_237 [1] : vector<32x32xf32> to vector<32xf32>
    %1355 = vector.shape_cast %1354 : vector<32xf32> to vector<32x1xf32>
    %1356 = vector.broadcast %1355 : vector<32x1xf32> to vector<32x32xf32>
    %1357 = arith.subf %1356, %1 : vector<32x32xf32>
    %1358 = arith.mulf %0, %1357 : vector<32x32xf32>
    %cst_238 = arith.constant 5.000000e-01 : f32
    %1359 = vector.broadcast %cst_238 : f32 to vector<32x32xf32>
    %1360 = arith.mulf %1359, %1358 : vector<32x32xf32>
    %1361 = math.tanh %1360 : vector<32x32xf32>
    %cst_239 = arith.constant 5.000000e-01 : f32
    %1362 = vector.broadcast %cst_239 : f32 to vector<32x32xf32>
    %1363 = arith.mulf %1362, %1361 : vector<32x32xf32>
    %cst_240 = arith.constant 5.000000e-01 : f32
    %1364 = vector.broadcast %cst_240 : f32 to vector<32x32xf32>
    %1365 = arith.addf %1363, %1364 : vector<32x32xf32>
    %1366 = arith.mulf %6, %1350 : vector<1x32xf32>
    %1367 = arith.addf %1366, %1124 : vector<1x32xf32>
    %1368 = arith.mulf %1365, %2 : vector<32x32xf32>
    %1369 = vector.extract_strided_slice %1368 {offsets = [0, 0], sizes = [8, 32], strides = [1, 1]} : vector<32x32xf32> to vector<8x32xf32>
    %1370 = vector.extract_strided_slice %1368 {offsets = [8, 0], sizes = [8, 32], strides = [1, 1]} : vector<32x32xf32> to vector<8x32xf32>
    %1371 = arith.addf %1369, %1370 : vector<8x32xf32>
    %1372 = vector.extract_strided_slice %1368 {offsets = [16, 0], sizes = [8, 32], strides = [1, 1]} : vector<32x32xf32> to vector<8x32xf32>
    %1373 = arith.addf %1371, %1372 : vector<8x32xf32>
    %1374 = vector.extract_strided_slice %1368 {offsets = [24, 0], sizes = [8, 32], strides = [1, 1]} : vector<32x32xf32> to vector<8x32xf32>
    %1375 = arith.addf %1373, %1374 : vector<8x32xf32>
    %cst_241 = arith.constant dense<0.000000e+00> : vector<32xf32>
    %1376 = vector.multi_reduction <add>, %1375, %cst_241 [0] : vector<8x32xf32> to vector<32xf32>
    %1377 = vector.shape_cast %1376 : vector<32xf32> to vector<1x32xf32>
    %1378 = arith.addf %1367, %1377 : vector<1x32xf32>
    %1379 = arith.mulf %1365, %3 : vector<32x32xf32>
    %1380 = vector.extract_strided_slice %1379 {offsets = [0, 0], sizes = [8, 32], strides = [1, 1]} : vector<32x32xf32> to vector<8x32xf32>
    %1381 = vector.extract_strided_slice %1379 {offsets = [8, 0], sizes = [8, 32], strides = [1, 1]} : vector<32x32xf32> to vector<8x32xf32>
    %1382 = arith.addf %1380, %1381 : vector<8x32xf32>
    %1383 = vector.extract_strided_slice %1379 {offsets = [16, 0], sizes = [8, 32], strides = [1, 1]} : vector<32x32xf32> to vector<8x32xf32>
    %1384 = arith.addf %1382, %1383 : vector<8x32xf32>
    %1385 = vector.extract_strided_slice %1379 {offsets = [24, 0], sizes = [8, 32], strides = [1, 1]} : vector<32x32xf32> to vector<8x32xf32>
    %1386 = arith.addf %1384, %1385 : vector<8x32xf32>
    %cst_242 = arith.constant dense<0.000000e+00> : vector<32xf32>
    %1387 = vector.multi_reduction <add>, %1386, %cst_242 [0] : vector<8x32xf32> to vector<32xf32>
    %1388 = vector.shape_cast %1387 : vector<32xf32> to vector<1x32xf32>
    %1389 = arith.addf %1125, %1388 : vector<1x32xf32>
    %1390 = tpu.reciprocal %1389 {approx = true} : vector<1x32xf32> -> vector<1x32xf32>
    %1391 = arith.mulf %1389, %1390 : vector<1x32xf32>
    %cst_243 = arith.constant 2.000000e+00 : f32
    %1392 = vector.broadcast %cst_243 : f32 to vector<1x32xf32>
    %1393 = arith.subf %1392, %1391 : vector<1x32xf32>
    %1394 = arith.mulf %1390, %1393 : vector<1x32xf32>
    %1395 = arith.mulf %1378, %1394 : vector<1x32xf32>
    %1396 = vector.extract_strided_slice %30 {offsets = [5, 0], sizes = [1, 32], strides = [1, 1]} : vector<8x32xf32> to vector<1x32xf32>
    %1397 = vector.extract_strided_slice %34 {offsets = [5, 0], sizes = [1, 32], strides = [1, 1]} : vector<8x32xf32> to vector<1x32xf32>
    %c0_i32_244 = arith.constant 0 : i32
    %1398 = vector.shape_cast %1395 : vector<1x32xf32> to vector<1x32xf32>
    %1399 = vector.broadcast %1398 : vector<1x32xf32> to vector<32x32xf32>
    %1400 = arith.mulf %1399, %4 : vector<32x32xf32>
    %cst_245 = arith.constant dense<0.000000e+00> : vector<32xf32>
    %1401 = vector.multi_reduction <add>, %1400, %cst_245 [1] : vector<32x32xf32> to vector<32xf32>
    %1402 = vector.shape_cast %1401 : vector<32xf32> to vector<32x1xf32>
    %1403 = vector.broadcast %1402 : vector<32x1xf32> to vector<32x32xf32>
    %1404 = arith.subf %1403, %1 : vector<32x32xf32>
    %1405 = arith.mulf %0, %1404 : vector<32x32xf32>
    %cst_246 = arith.constant 5.000000e-01 : f32
    %1406 = vector.broadcast %cst_246 : f32 to vector<32x32xf32>
    %1407 = arith.mulf %1406, %1405 : vector<32x32xf32>
    %1408 = math.tanh %1407 : vector<32x32xf32>
    %cst_247 = arith.constant 5.000000e-01 : f32
    %1409 = vector.broadcast %cst_247 : f32 to vector<32x32xf32>
    %1410 = arith.mulf %1409, %1408 : vector<32x32xf32>
    %cst_248 = arith.constant 5.000000e-01 : f32
    %1411 = vector.broadcast %cst_248 : f32 to vector<32x32xf32>
    %1412 = arith.addf %1410, %1411 : vector<32x32xf32>
    %1413 = arith.mulf %6, %1395 : vector<1x32xf32>
    %1414 = arith.addf %1413, %1396 : vector<1x32xf32>
    %1415 = arith.mulf %1412, %2 : vector<32x32xf32>
    %1416 = vector.extract_strided_slice %1415 {offsets = [0, 0], sizes = [8, 32], strides = [1, 1]} : vector<32x32xf32> to vector<8x32xf32>
    %1417 = vector.extract_strided_slice %1415 {offsets = [8, 0], sizes = [8, 32], strides = [1, 1]} : vector<32x32xf32> to vector<8x32xf32>
    %1418 = arith.addf %1416, %1417 : vector<8x32xf32>
    %1419 = vector.extract_strided_slice %1415 {offsets = [16, 0], sizes = [8, 32], strides = [1, 1]} : vector<32x32xf32> to vector<8x32xf32>
    %1420 = arith.addf %1418, %1419 : vector<8x32xf32>
    %1421 = vector.extract_strided_slice %1415 {offsets = [24, 0], sizes = [8, 32], strides = [1, 1]} : vector<32x32xf32> to vector<8x32xf32>
    %1422 = arith.addf %1420, %1421 : vector<8x32xf32>
    %cst_249 = arith.constant dense<0.000000e+00> : vector<32xf32>
    %1423 = vector.multi_reduction <add>, %1422, %cst_249 [0] : vector<8x32xf32> to vector<32xf32>
    %1424 = vector.shape_cast %1423 : vector<32xf32> to vector<1x32xf32>
    %1425 = arith.addf %1414, %1424 : vector<1x32xf32>
    %1426 = arith.mulf %1412, %3 : vector<32x32xf32>
    %1427 = vector.extract_strided_slice %1426 {offsets = [0, 0], sizes = [8, 32], strides = [1, 1]} : vector<32x32xf32> to vector<8x32xf32>
    %1428 = vector.extract_strided_slice %1426 {offsets = [8, 0], sizes = [8, 32], strides = [1, 1]} : vector<32x32xf32> to vector<8x32xf32>
    %1429 = arith.addf %1427, %1428 : vector<8x32xf32>
    %1430 = vector.extract_strided_slice %1426 {offsets = [16, 0], sizes = [8, 32], strides = [1, 1]} : vector<32x32xf32> to vector<8x32xf32>
    %1431 = arith.addf %1429, %1430 : vector<8x32xf32>
    %1432 = vector.extract_strided_slice %1426 {offsets = [24, 0], sizes = [8, 32], strides = [1, 1]} : vector<32x32xf32> to vector<8x32xf32>
    %1433 = arith.addf %1431, %1432 : vector<8x32xf32>
    %cst_250 = arith.constant dense<0.000000e+00> : vector<32xf32>
    %1434 = vector.multi_reduction <add>, %1433, %cst_250 [0] : vector<8x32xf32> to vector<32xf32>
    %1435 = vector.shape_cast %1434 : vector<32xf32> to vector<1x32xf32>
    %1436 = arith.addf %1397, %1435 : vector<1x32xf32>
    %1437 = tpu.reciprocal %1436 {approx = true} : vector<1x32xf32> -> vector<1x32xf32>
    %1438 = arith.mulf %1436, %1437 : vector<1x32xf32>
    %cst_251 = arith.constant 2.000000e+00 : f32
    %1439 = vector.broadcast %cst_251 : f32 to vector<1x32xf32>
    %1440 = arith.subf %1439, %1438 : vector<1x32xf32>
    %1441 = arith.mulf %1437, %1440 : vector<1x32xf32>
    %1442 = arith.mulf %1425, %1441 : vector<1x32xf32>
    %c1_i32_252 = arith.constant 1 : i32
    %1443 = vector.shape_cast %1442 : vector<1x32xf32> to vector<1x32xf32>
    %1444 = vector.broadcast %1443 : vector<1x32xf32> to vector<32x32xf32>
    %1445 = arith.mulf %1444, %4 : vector<32x32xf32>
    %cst_253 = arith.constant dense<0.000000e+00> : vector<32xf32>
    %1446 = vector.multi_reduction <add>, %1445, %cst_253 [1] : vector<32x32xf32> to vector<32xf32>
    %1447 = vector.shape_cast %1446 : vector<32xf32> to vector<32x1xf32>
    %1448 = vector.broadcast %1447 : vector<32x1xf32> to vector<32x32xf32>
    %1449 = arith.subf %1448, %1 : vector<32x32xf32>
    %1450 = arith.mulf %0, %1449 : vector<32x32xf32>
    %cst_254 = arith.constant 5.000000e-01 : f32
    %1451 = vector.broadcast %cst_254 : f32 to vector<32x32xf32>
    %1452 = arith.mulf %1451, %1450 : vector<32x32xf32>
    %1453 = math.tanh %1452 : vector<32x32xf32>
    %cst_255 = arith.constant 5.000000e-01 : f32
    %1454 = vector.broadcast %cst_255 : f32 to vector<32x32xf32>
    %1455 = arith.mulf %1454, %1453 : vector<32x32xf32>
    %cst_256 = arith.constant 5.000000e-01 : f32
    %1456 = vector.broadcast %cst_256 : f32 to vector<32x32xf32>
    %1457 = arith.addf %1455, %1456 : vector<32x32xf32>
    %1458 = arith.mulf %6, %1442 : vector<1x32xf32>
    %1459 = arith.addf %1458, %1396 : vector<1x32xf32>
    %1460 = arith.mulf %1457, %2 : vector<32x32xf32>
    %1461 = vector.extract_strided_slice %1460 {offsets = [0, 0], sizes = [8, 32], strides = [1, 1]} : vector<32x32xf32> to vector<8x32xf32>
    %1462 = vector.extract_strided_slice %1460 {offsets = [8, 0], sizes = [8, 32], strides = [1, 1]} : vector<32x32xf32> to vector<8x32xf32>
    %1463 = arith.addf %1461, %1462 : vector<8x32xf32>
    %1464 = vector.extract_strided_slice %1460 {offsets = [16, 0], sizes = [8, 32], strides = [1, 1]} : vector<32x32xf32> to vector<8x32xf32>
    %1465 = arith.addf %1463, %1464 : vector<8x32xf32>
    %1466 = vector.extract_strided_slice %1460 {offsets = [24, 0], sizes = [8, 32], strides = [1, 1]} : vector<32x32xf32> to vector<8x32xf32>
    %1467 = arith.addf %1465, %1466 : vector<8x32xf32>
    %cst_257 = arith.constant dense<0.000000e+00> : vector<32xf32>
    %1468 = vector.multi_reduction <add>, %1467, %cst_257 [0] : vector<8x32xf32> to vector<32xf32>
    %1469 = vector.shape_cast %1468 : vector<32xf32> to vector<1x32xf32>
    %1470 = arith.addf %1459, %1469 : vector<1x32xf32>
    %1471 = arith.mulf %1457, %3 : vector<32x32xf32>
    %1472 = vector.extract_strided_slice %1471 {offsets = [0, 0], sizes = [8, 32], strides = [1, 1]} : vector<32x32xf32> to vector<8x32xf32>
    %1473 = vector.extract_strided_slice %1471 {offsets = [8, 0], sizes = [8, 32], strides = [1, 1]} : vector<32x32xf32> to vector<8x32xf32>
    %1474 = arith.addf %1472, %1473 : vector<8x32xf32>
    %1475 = vector.extract_strided_slice %1471 {offsets = [16, 0], sizes = [8, 32], strides = [1, 1]} : vector<32x32xf32> to vector<8x32xf32>
    %1476 = arith.addf %1474, %1475 : vector<8x32xf32>
    %1477 = vector.extract_strided_slice %1471 {offsets = [24, 0], sizes = [8, 32], strides = [1, 1]} : vector<32x32xf32> to vector<8x32xf32>
    %1478 = arith.addf %1476, %1477 : vector<8x32xf32>
    %cst_258 = arith.constant dense<0.000000e+00> : vector<32xf32>
    %1479 = vector.multi_reduction <add>, %1478, %cst_258 [0] : vector<8x32xf32> to vector<32xf32>
    %1480 = vector.shape_cast %1479 : vector<32xf32> to vector<1x32xf32>
    %1481 = arith.addf %1397, %1480 : vector<1x32xf32>
    %1482 = tpu.reciprocal %1481 {approx = true} : vector<1x32xf32> -> vector<1x32xf32>
    %1483 = arith.mulf %1481, %1482 : vector<1x32xf32>
    %cst_259 = arith.constant 2.000000e+00 : f32
    %1484 = vector.broadcast %cst_259 : f32 to vector<1x32xf32>
    %1485 = arith.subf %1484, %1483 : vector<1x32xf32>
    %1486 = arith.mulf %1482, %1485 : vector<1x32xf32>
    %1487 = arith.mulf %1470, %1486 : vector<1x32xf32>
    %c2_i32_260 = arith.constant 2 : i32
    %1488 = vector.shape_cast %1487 : vector<1x32xf32> to vector<1x32xf32>
    %1489 = vector.broadcast %1488 : vector<1x32xf32> to vector<32x32xf32>
    %1490 = arith.mulf %1489, %4 : vector<32x32xf32>
    %cst_261 = arith.constant dense<0.000000e+00> : vector<32xf32>
    %1491 = vector.multi_reduction <add>, %1490, %cst_261 [1] : vector<32x32xf32> to vector<32xf32>
    %1492 = vector.shape_cast %1491 : vector<32xf32> to vector<32x1xf32>
    %1493 = vector.broadcast %1492 : vector<32x1xf32> to vector<32x32xf32>
    %1494 = arith.subf %1493, %1 : vector<32x32xf32>
    %1495 = arith.mulf %0, %1494 : vector<32x32xf32>
    %cst_262 = arith.constant 5.000000e-01 : f32
    %1496 = vector.broadcast %cst_262 : f32 to vector<32x32xf32>
    %1497 = arith.mulf %1496, %1495 : vector<32x32xf32>
    %1498 = math.tanh %1497 : vector<32x32xf32>
    %cst_263 = arith.constant 5.000000e-01 : f32
    %1499 = vector.broadcast %cst_263 : f32 to vector<32x32xf32>
    %1500 = arith.mulf %1499, %1498 : vector<32x32xf32>
    %cst_264 = arith.constant 5.000000e-01 : f32
    %1501 = vector.broadcast %cst_264 : f32 to vector<32x32xf32>
    %1502 = arith.addf %1500, %1501 : vector<32x32xf32>
    %1503 = arith.mulf %6, %1487 : vector<1x32xf32>
    %1504 = arith.addf %1503, %1396 : vector<1x32xf32>
    %1505 = arith.mulf %1502, %2 : vector<32x32xf32>
    %1506 = vector.extract_strided_slice %1505 {offsets = [0, 0], sizes = [8, 32], strides = [1, 1]} : vector<32x32xf32> to vector<8x32xf32>
    %1507 = vector.extract_strided_slice %1505 {offsets = [8, 0], sizes = [8, 32], strides = [1, 1]} : vector<32x32xf32> to vector<8x32xf32>
    %1508 = arith.addf %1506, %1507 : vector<8x32xf32>
    %1509 = vector.extract_strided_slice %1505 {offsets = [16, 0], sizes = [8, 32], strides = [1, 1]} : vector<32x32xf32> to vector<8x32xf32>
    %1510 = arith.addf %1508, %1509 : vector<8x32xf32>
    %1511 = vector.extract_strided_slice %1505 {offsets = [24, 0], sizes = [8, 32], strides = [1, 1]} : vector<32x32xf32> to vector<8x32xf32>
    %1512 = arith.addf %1510, %1511 : vector<8x32xf32>
    %cst_265 = arith.constant dense<0.000000e+00> : vector<32xf32>
    %1513 = vector.multi_reduction <add>, %1512, %cst_265 [0] : vector<8x32xf32> to vector<32xf32>
    %1514 = vector.shape_cast %1513 : vector<32xf32> to vector<1x32xf32>
    %1515 = arith.addf %1504, %1514 : vector<1x32xf32>
    %1516 = arith.mulf %1502, %3 : vector<32x32xf32>
    %1517 = vector.extract_strided_slice %1516 {offsets = [0, 0], sizes = [8, 32], strides = [1, 1]} : vector<32x32xf32> to vector<8x32xf32>
    %1518 = vector.extract_strided_slice %1516 {offsets = [8, 0], sizes = [8, 32], strides = [1, 1]} : vector<32x32xf32> to vector<8x32xf32>
    %1519 = arith.addf %1517, %1518 : vector<8x32xf32>
    %1520 = vector.extract_strided_slice %1516 {offsets = [16, 0], sizes = [8, 32], strides = [1, 1]} : vector<32x32xf32> to vector<8x32xf32>
    %1521 = arith.addf %1519, %1520 : vector<8x32xf32>
    %1522 = vector.extract_strided_slice %1516 {offsets = [24, 0], sizes = [8, 32], strides = [1, 1]} : vector<32x32xf32> to vector<8x32xf32>
    %1523 = arith.addf %1521, %1522 : vector<8x32xf32>
    %cst_266 = arith.constant dense<0.000000e+00> : vector<32xf32>
    %1524 = vector.multi_reduction <add>, %1523, %cst_266 [0] : vector<8x32xf32> to vector<32xf32>
    %1525 = vector.shape_cast %1524 : vector<32xf32> to vector<1x32xf32>
    %1526 = arith.addf %1397, %1525 : vector<1x32xf32>
    %1527 = tpu.reciprocal %1526 {approx = true} : vector<1x32xf32> -> vector<1x32xf32>
    %1528 = arith.mulf %1526, %1527 : vector<1x32xf32>
    %cst_267 = arith.constant 2.000000e+00 : f32
    %1529 = vector.broadcast %cst_267 : f32 to vector<1x32xf32>
    %1530 = arith.subf %1529, %1528 : vector<1x32xf32>
    %1531 = arith.mulf %1527, %1530 : vector<1x32xf32>
    %1532 = arith.mulf %1515, %1531 : vector<1x32xf32>
    %c3_i32_268 = arith.constant 3 : i32
    %1533 = vector.shape_cast %1532 : vector<1x32xf32> to vector<1x32xf32>
    %1534 = vector.broadcast %1533 : vector<1x32xf32> to vector<32x32xf32>
    %1535 = arith.mulf %1534, %4 : vector<32x32xf32>
    %cst_269 = arith.constant dense<0.000000e+00> : vector<32xf32>
    %1536 = vector.multi_reduction <add>, %1535, %cst_269 [1] : vector<32x32xf32> to vector<32xf32>
    %1537 = vector.shape_cast %1536 : vector<32xf32> to vector<32x1xf32>
    %1538 = vector.broadcast %1537 : vector<32x1xf32> to vector<32x32xf32>
    %1539 = arith.subf %1538, %1 : vector<32x32xf32>
    %1540 = arith.mulf %0, %1539 : vector<32x32xf32>
    %cst_270 = arith.constant 5.000000e-01 : f32
    %1541 = vector.broadcast %cst_270 : f32 to vector<32x32xf32>
    %1542 = arith.mulf %1541, %1540 : vector<32x32xf32>
    %1543 = math.tanh %1542 : vector<32x32xf32>
    %cst_271 = arith.constant 5.000000e-01 : f32
    %1544 = vector.broadcast %cst_271 : f32 to vector<32x32xf32>
    %1545 = arith.mulf %1544, %1543 : vector<32x32xf32>
    %cst_272 = arith.constant 5.000000e-01 : f32
    %1546 = vector.broadcast %cst_272 : f32 to vector<32x32xf32>
    %1547 = arith.addf %1545, %1546 : vector<32x32xf32>
    %1548 = arith.mulf %6, %1532 : vector<1x32xf32>
    %1549 = arith.addf %1548, %1396 : vector<1x32xf32>
    %1550 = arith.mulf %1547, %2 : vector<32x32xf32>
    %1551 = vector.extract_strided_slice %1550 {offsets = [0, 0], sizes = [8, 32], strides = [1, 1]} : vector<32x32xf32> to vector<8x32xf32>
    %1552 = vector.extract_strided_slice %1550 {offsets = [8, 0], sizes = [8, 32], strides = [1, 1]} : vector<32x32xf32> to vector<8x32xf32>
    %1553 = arith.addf %1551, %1552 : vector<8x32xf32>
    %1554 = vector.extract_strided_slice %1550 {offsets = [16, 0], sizes = [8, 32], strides = [1, 1]} : vector<32x32xf32> to vector<8x32xf32>
    %1555 = arith.addf %1553, %1554 : vector<8x32xf32>
    %1556 = vector.extract_strided_slice %1550 {offsets = [24, 0], sizes = [8, 32], strides = [1, 1]} : vector<32x32xf32> to vector<8x32xf32>
    %1557 = arith.addf %1555, %1556 : vector<8x32xf32>
    %cst_273 = arith.constant dense<0.000000e+00> : vector<32xf32>
    %1558 = vector.multi_reduction <add>, %1557, %cst_273 [0] : vector<8x32xf32> to vector<32xf32>
    %1559 = vector.shape_cast %1558 : vector<32xf32> to vector<1x32xf32>
    %1560 = arith.addf %1549, %1559 : vector<1x32xf32>
    %1561 = arith.mulf %1547, %3 : vector<32x32xf32>
    %1562 = vector.extract_strided_slice %1561 {offsets = [0, 0], sizes = [8, 32], strides = [1, 1]} : vector<32x32xf32> to vector<8x32xf32>
    %1563 = vector.extract_strided_slice %1561 {offsets = [8, 0], sizes = [8, 32], strides = [1, 1]} : vector<32x32xf32> to vector<8x32xf32>
    %1564 = arith.addf %1562, %1563 : vector<8x32xf32>
    %1565 = vector.extract_strided_slice %1561 {offsets = [16, 0], sizes = [8, 32], strides = [1, 1]} : vector<32x32xf32> to vector<8x32xf32>
    %1566 = arith.addf %1564, %1565 : vector<8x32xf32>
    %1567 = vector.extract_strided_slice %1561 {offsets = [24, 0], sizes = [8, 32], strides = [1, 1]} : vector<32x32xf32> to vector<8x32xf32>
    %1568 = arith.addf %1566, %1567 : vector<8x32xf32>
    %cst_274 = arith.constant dense<0.000000e+00> : vector<32xf32>
    %1569 = vector.multi_reduction <add>, %1568, %cst_274 [0] : vector<8x32xf32> to vector<32xf32>
    %1570 = vector.shape_cast %1569 : vector<32xf32> to vector<1x32xf32>
    %1571 = arith.addf %1397, %1570 : vector<1x32xf32>
    %1572 = tpu.reciprocal %1571 {approx = true} : vector<1x32xf32> -> vector<1x32xf32>
    %1573 = arith.mulf %1571, %1572 : vector<1x32xf32>
    %cst_275 = arith.constant 2.000000e+00 : f32
    %1574 = vector.broadcast %cst_275 : f32 to vector<1x32xf32>
    %1575 = arith.subf %1574, %1573 : vector<1x32xf32>
    %1576 = arith.mulf %1572, %1575 : vector<1x32xf32>
    %1577 = arith.mulf %1560, %1576 : vector<1x32xf32>
    %c4_i32_276 = arith.constant 4 : i32
    %1578 = vector.shape_cast %1577 : vector<1x32xf32> to vector<1x32xf32>
    %1579 = vector.broadcast %1578 : vector<1x32xf32> to vector<32x32xf32>
    %1580 = arith.mulf %1579, %4 : vector<32x32xf32>
    %cst_277 = arith.constant dense<0.000000e+00> : vector<32xf32>
    %1581 = vector.multi_reduction <add>, %1580, %cst_277 [1] : vector<32x32xf32> to vector<32xf32>
    %1582 = vector.shape_cast %1581 : vector<32xf32> to vector<32x1xf32>
    %1583 = vector.broadcast %1582 : vector<32x1xf32> to vector<32x32xf32>
    %1584 = arith.subf %1583, %1 : vector<32x32xf32>
    %1585 = arith.mulf %0, %1584 : vector<32x32xf32>
    %cst_278 = arith.constant 5.000000e-01 : f32
    %1586 = vector.broadcast %cst_278 : f32 to vector<32x32xf32>
    %1587 = arith.mulf %1586, %1585 : vector<32x32xf32>
    %1588 = math.tanh %1587 : vector<32x32xf32>
    %cst_279 = arith.constant 5.000000e-01 : f32
    %1589 = vector.broadcast %cst_279 : f32 to vector<32x32xf32>
    %1590 = arith.mulf %1589, %1588 : vector<32x32xf32>
    %cst_280 = arith.constant 5.000000e-01 : f32
    %1591 = vector.broadcast %cst_280 : f32 to vector<32x32xf32>
    %1592 = arith.addf %1590, %1591 : vector<32x32xf32>
    %1593 = arith.mulf %6, %1577 : vector<1x32xf32>
    %1594 = arith.addf %1593, %1396 : vector<1x32xf32>
    %1595 = arith.mulf %1592, %2 : vector<32x32xf32>
    %1596 = vector.extract_strided_slice %1595 {offsets = [0, 0], sizes = [8, 32], strides = [1, 1]} : vector<32x32xf32> to vector<8x32xf32>
    %1597 = vector.extract_strided_slice %1595 {offsets = [8, 0], sizes = [8, 32], strides = [1, 1]} : vector<32x32xf32> to vector<8x32xf32>
    %1598 = arith.addf %1596, %1597 : vector<8x32xf32>
    %1599 = vector.extract_strided_slice %1595 {offsets = [16, 0], sizes = [8, 32], strides = [1, 1]} : vector<32x32xf32> to vector<8x32xf32>
    %1600 = arith.addf %1598, %1599 : vector<8x32xf32>
    %1601 = vector.extract_strided_slice %1595 {offsets = [24, 0], sizes = [8, 32], strides = [1, 1]} : vector<32x32xf32> to vector<8x32xf32>
    %1602 = arith.addf %1600, %1601 : vector<8x32xf32>
    %cst_281 = arith.constant dense<0.000000e+00> : vector<32xf32>
    %1603 = vector.multi_reduction <add>, %1602, %cst_281 [0] : vector<8x32xf32> to vector<32xf32>
    %1604 = vector.shape_cast %1603 : vector<32xf32> to vector<1x32xf32>
    %1605 = arith.addf %1594, %1604 : vector<1x32xf32>
    %1606 = arith.mulf %1592, %3 : vector<32x32xf32>
    %1607 = vector.extract_strided_slice %1606 {offsets = [0, 0], sizes = [8, 32], strides = [1, 1]} : vector<32x32xf32> to vector<8x32xf32>
    %1608 = vector.extract_strided_slice %1606 {offsets = [8, 0], sizes = [8, 32], strides = [1, 1]} : vector<32x32xf32> to vector<8x32xf32>
    %1609 = arith.addf %1607, %1608 : vector<8x32xf32>
    %1610 = vector.extract_strided_slice %1606 {offsets = [16, 0], sizes = [8, 32], strides = [1, 1]} : vector<32x32xf32> to vector<8x32xf32>
    %1611 = arith.addf %1609, %1610 : vector<8x32xf32>
    %1612 = vector.extract_strided_slice %1606 {offsets = [24, 0], sizes = [8, 32], strides = [1, 1]} : vector<32x32xf32> to vector<8x32xf32>
    %1613 = arith.addf %1611, %1612 : vector<8x32xf32>
    %cst_282 = arith.constant dense<0.000000e+00> : vector<32xf32>
    %1614 = vector.multi_reduction <add>, %1613, %cst_282 [0] : vector<8x32xf32> to vector<32xf32>
    %1615 = vector.shape_cast %1614 : vector<32xf32> to vector<1x32xf32>
    %1616 = arith.addf %1397, %1615 : vector<1x32xf32>
    %1617 = tpu.reciprocal %1616 {approx = true} : vector<1x32xf32> -> vector<1x32xf32>
    %1618 = arith.mulf %1616, %1617 : vector<1x32xf32>
    %cst_283 = arith.constant 2.000000e+00 : f32
    %1619 = vector.broadcast %cst_283 : f32 to vector<1x32xf32>
    %1620 = arith.subf %1619, %1618 : vector<1x32xf32>
    %1621 = arith.mulf %1617, %1620 : vector<1x32xf32>
    %1622 = arith.mulf %1605, %1621 : vector<1x32xf32>
    %c5_i32_284 = arith.constant 5 : i32
    %1623 = vector.shape_cast %1622 : vector<1x32xf32> to vector<1x32xf32>
    %1624 = vector.broadcast %1623 : vector<1x32xf32> to vector<32x32xf32>
    %1625 = arith.mulf %1624, %4 : vector<32x32xf32>
    %cst_285 = arith.constant dense<0.000000e+00> : vector<32xf32>
    %1626 = vector.multi_reduction <add>, %1625, %cst_285 [1] : vector<32x32xf32> to vector<32xf32>
    %1627 = vector.shape_cast %1626 : vector<32xf32> to vector<32x1xf32>
    %1628 = vector.broadcast %1627 : vector<32x1xf32> to vector<32x32xf32>
    %1629 = arith.subf %1628, %1 : vector<32x32xf32>
    %1630 = arith.mulf %0, %1629 : vector<32x32xf32>
    %cst_286 = arith.constant 5.000000e-01 : f32
    %1631 = vector.broadcast %cst_286 : f32 to vector<32x32xf32>
    %1632 = arith.mulf %1631, %1630 : vector<32x32xf32>
    %1633 = math.tanh %1632 : vector<32x32xf32>
    %cst_287 = arith.constant 5.000000e-01 : f32
    %1634 = vector.broadcast %cst_287 : f32 to vector<32x32xf32>
    %1635 = arith.mulf %1634, %1633 : vector<32x32xf32>
    %cst_288 = arith.constant 5.000000e-01 : f32
    %1636 = vector.broadcast %cst_288 : f32 to vector<32x32xf32>
    %1637 = arith.addf %1635, %1636 : vector<32x32xf32>
    %1638 = arith.mulf %6, %1622 : vector<1x32xf32>
    %1639 = arith.addf %1638, %1396 : vector<1x32xf32>
    %1640 = arith.mulf %1637, %2 : vector<32x32xf32>
    %1641 = vector.extract_strided_slice %1640 {offsets = [0, 0], sizes = [8, 32], strides = [1, 1]} : vector<32x32xf32> to vector<8x32xf32>
    %1642 = vector.extract_strided_slice %1640 {offsets = [8, 0], sizes = [8, 32], strides = [1, 1]} : vector<32x32xf32> to vector<8x32xf32>
    %1643 = arith.addf %1641, %1642 : vector<8x32xf32>
    %1644 = vector.extract_strided_slice %1640 {offsets = [16, 0], sizes = [8, 32], strides = [1, 1]} : vector<32x32xf32> to vector<8x32xf32>
    %1645 = arith.addf %1643, %1644 : vector<8x32xf32>
    %1646 = vector.extract_strided_slice %1640 {offsets = [24, 0], sizes = [8, 32], strides = [1, 1]} : vector<32x32xf32> to vector<8x32xf32>
    %1647 = arith.addf %1645, %1646 : vector<8x32xf32>
    %cst_289 = arith.constant dense<0.000000e+00> : vector<32xf32>
    %1648 = vector.multi_reduction <add>, %1647, %cst_289 [0] : vector<8x32xf32> to vector<32xf32>
    %1649 = vector.shape_cast %1648 : vector<32xf32> to vector<1x32xf32>
    %1650 = arith.addf %1639, %1649 : vector<1x32xf32>
    %1651 = arith.mulf %1637, %3 : vector<32x32xf32>
    %1652 = vector.extract_strided_slice %1651 {offsets = [0, 0], sizes = [8, 32], strides = [1, 1]} : vector<32x32xf32> to vector<8x32xf32>
    %1653 = vector.extract_strided_slice %1651 {offsets = [8, 0], sizes = [8, 32], strides = [1, 1]} : vector<32x32xf32> to vector<8x32xf32>
    %1654 = arith.addf %1652, %1653 : vector<8x32xf32>
    %1655 = vector.extract_strided_slice %1651 {offsets = [16, 0], sizes = [8, 32], strides = [1, 1]} : vector<32x32xf32> to vector<8x32xf32>
    %1656 = arith.addf %1654, %1655 : vector<8x32xf32>
    %1657 = vector.extract_strided_slice %1651 {offsets = [24, 0], sizes = [8, 32], strides = [1, 1]} : vector<32x32xf32> to vector<8x32xf32>
    %1658 = arith.addf %1656, %1657 : vector<8x32xf32>
    %cst_290 = arith.constant dense<0.000000e+00> : vector<32xf32>
    %1659 = vector.multi_reduction <add>, %1658, %cst_290 [0] : vector<8x32xf32> to vector<32xf32>
    %1660 = vector.shape_cast %1659 : vector<32xf32> to vector<1x32xf32>
    %1661 = arith.addf %1397, %1660 : vector<1x32xf32>
    %1662 = tpu.reciprocal %1661 {approx = true} : vector<1x32xf32> -> vector<1x32xf32>
    %1663 = arith.mulf %1661, %1662 : vector<1x32xf32>
    %cst_291 = arith.constant 2.000000e+00 : f32
    %1664 = vector.broadcast %cst_291 : f32 to vector<1x32xf32>
    %1665 = arith.subf %1664, %1663 : vector<1x32xf32>
    %1666 = arith.mulf %1662, %1665 : vector<1x32xf32>
    %1667 = arith.mulf %1650, %1666 : vector<1x32xf32>
    %1668 = vector.extract_strided_slice %30 {offsets = [6, 0], sizes = [1, 32], strides = [1, 1]} : vector<8x32xf32> to vector<1x32xf32>
    %1669 = vector.extract_strided_slice %34 {offsets = [6, 0], sizes = [1, 32], strides = [1, 1]} : vector<8x32xf32> to vector<1x32xf32>
    %c0_i32_292 = arith.constant 0 : i32
    %1670 = vector.shape_cast %1667 : vector<1x32xf32> to vector<1x32xf32>
    %1671 = vector.broadcast %1670 : vector<1x32xf32> to vector<32x32xf32>
    %1672 = arith.mulf %1671, %4 : vector<32x32xf32>
    %cst_293 = arith.constant dense<0.000000e+00> : vector<32xf32>
    %1673 = vector.multi_reduction <add>, %1672, %cst_293 [1] : vector<32x32xf32> to vector<32xf32>
    %1674 = vector.shape_cast %1673 : vector<32xf32> to vector<32x1xf32>
    %1675 = vector.broadcast %1674 : vector<32x1xf32> to vector<32x32xf32>
    %1676 = arith.subf %1675, %1 : vector<32x32xf32>
    %1677 = arith.mulf %0, %1676 : vector<32x32xf32>
    %cst_294 = arith.constant 5.000000e-01 : f32
    %1678 = vector.broadcast %cst_294 : f32 to vector<32x32xf32>
    %1679 = arith.mulf %1678, %1677 : vector<32x32xf32>
    %1680 = math.tanh %1679 : vector<32x32xf32>
    %cst_295 = arith.constant 5.000000e-01 : f32
    %1681 = vector.broadcast %cst_295 : f32 to vector<32x32xf32>
    %1682 = arith.mulf %1681, %1680 : vector<32x32xf32>
    %cst_296 = arith.constant 5.000000e-01 : f32
    %1683 = vector.broadcast %cst_296 : f32 to vector<32x32xf32>
    %1684 = arith.addf %1682, %1683 : vector<32x32xf32>
    %1685 = arith.mulf %6, %1667 : vector<1x32xf32>
    %1686 = arith.addf %1685, %1668 : vector<1x32xf32>
    %1687 = arith.mulf %1684, %2 : vector<32x32xf32>
    %1688 = vector.extract_strided_slice %1687 {offsets = [0, 0], sizes = [8, 32], strides = [1, 1]} : vector<32x32xf32> to vector<8x32xf32>
    %1689 = vector.extract_strided_slice %1687 {offsets = [8, 0], sizes = [8, 32], strides = [1, 1]} : vector<32x32xf32> to vector<8x32xf32>
    %1690 = arith.addf %1688, %1689 : vector<8x32xf32>
    %1691 = vector.extract_strided_slice %1687 {offsets = [16, 0], sizes = [8, 32], strides = [1, 1]} : vector<32x32xf32> to vector<8x32xf32>
    %1692 = arith.addf %1690, %1691 : vector<8x32xf32>
    %1693 = vector.extract_strided_slice %1687 {offsets = [24, 0], sizes = [8, 32], strides = [1, 1]} : vector<32x32xf32> to vector<8x32xf32>
    %1694 = arith.addf %1692, %1693 : vector<8x32xf32>
    %cst_297 = arith.constant dense<0.000000e+00> : vector<32xf32>
    %1695 = vector.multi_reduction <add>, %1694, %cst_297 [0] : vector<8x32xf32> to vector<32xf32>
    %1696 = vector.shape_cast %1695 : vector<32xf32> to vector<1x32xf32>
    %1697 = arith.addf %1686, %1696 : vector<1x32xf32>
    %1698 = arith.mulf %1684, %3 : vector<32x32xf32>
    %1699 = vector.extract_strided_slice %1698 {offsets = [0, 0], sizes = [8, 32], strides = [1, 1]} : vector<32x32xf32> to vector<8x32xf32>
    %1700 = vector.extract_strided_slice %1698 {offsets = [8, 0], sizes = [8, 32], strides = [1, 1]} : vector<32x32xf32> to vector<8x32xf32>
    %1701 = arith.addf %1699, %1700 : vector<8x32xf32>
    %1702 = vector.extract_strided_slice %1698 {offsets = [16, 0], sizes = [8, 32], strides = [1, 1]} : vector<32x32xf32> to vector<8x32xf32>
    %1703 = arith.addf %1701, %1702 : vector<8x32xf32>
    %1704 = vector.extract_strided_slice %1698 {offsets = [24, 0], sizes = [8, 32], strides = [1, 1]} : vector<32x32xf32> to vector<8x32xf32>
    %1705 = arith.addf %1703, %1704 : vector<8x32xf32>
    %cst_298 = arith.constant dense<0.000000e+00> : vector<32xf32>
    %1706 = vector.multi_reduction <add>, %1705, %cst_298 [0] : vector<8x32xf32> to vector<32xf32>
    %1707 = vector.shape_cast %1706 : vector<32xf32> to vector<1x32xf32>
    %1708 = arith.addf %1669, %1707 : vector<1x32xf32>
    %1709 = tpu.reciprocal %1708 {approx = true} : vector<1x32xf32> -> vector<1x32xf32>
    %1710 = arith.mulf %1708, %1709 : vector<1x32xf32>
    %cst_299 = arith.constant 2.000000e+00 : f32
    %1711 = vector.broadcast %cst_299 : f32 to vector<1x32xf32>
    %1712 = arith.subf %1711, %1710 : vector<1x32xf32>
    %1713 = arith.mulf %1709, %1712 : vector<1x32xf32>
    %1714 = arith.mulf %1697, %1713 : vector<1x32xf32>
    %c1_i32_300 = arith.constant 1 : i32
    %1715 = vector.shape_cast %1714 : vector<1x32xf32> to vector<1x32xf32>
    %1716 = vector.broadcast %1715 : vector<1x32xf32> to vector<32x32xf32>
    %1717 = arith.mulf %1716, %4 : vector<32x32xf32>
    %cst_301 = arith.constant dense<0.000000e+00> : vector<32xf32>
    %1718 = vector.multi_reduction <add>, %1717, %cst_301 [1] : vector<32x32xf32> to vector<32xf32>
    %1719 = vector.shape_cast %1718 : vector<32xf32> to vector<32x1xf32>
    %1720 = vector.broadcast %1719 : vector<32x1xf32> to vector<32x32xf32>
    %1721 = arith.subf %1720, %1 : vector<32x32xf32>
    %1722 = arith.mulf %0, %1721 : vector<32x32xf32>
    %cst_302 = arith.constant 5.000000e-01 : f32
    %1723 = vector.broadcast %cst_302 : f32 to vector<32x32xf32>
    %1724 = arith.mulf %1723, %1722 : vector<32x32xf32>
    %1725 = math.tanh %1724 : vector<32x32xf32>
    %cst_303 = arith.constant 5.000000e-01 : f32
    %1726 = vector.broadcast %cst_303 : f32 to vector<32x32xf32>
    %1727 = arith.mulf %1726, %1725 : vector<32x32xf32>
    %cst_304 = arith.constant 5.000000e-01 : f32
    %1728 = vector.broadcast %cst_304 : f32 to vector<32x32xf32>
    %1729 = arith.addf %1727, %1728 : vector<32x32xf32>
    %1730 = arith.mulf %6, %1714 : vector<1x32xf32>
    %1731 = arith.addf %1730, %1668 : vector<1x32xf32>
    %1732 = arith.mulf %1729, %2 : vector<32x32xf32>
    %1733 = vector.extract_strided_slice %1732 {offsets = [0, 0], sizes = [8, 32], strides = [1, 1]} : vector<32x32xf32> to vector<8x32xf32>
    %1734 = vector.extract_strided_slice %1732 {offsets = [8, 0], sizes = [8, 32], strides = [1, 1]} : vector<32x32xf32> to vector<8x32xf32>
    %1735 = arith.addf %1733, %1734 : vector<8x32xf32>
    %1736 = vector.extract_strided_slice %1732 {offsets = [16, 0], sizes = [8, 32], strides = [1, 1]} : vector<32x32xf32> to vector<8x32xf32>
    %1737 = arith.addf %1735, %1736 : vector<8x32xf32>
    %1738 = vector.extract_strided_slice %1732 {offsets = [24, 0], sizes = [8, 32], strides = [1, 1]} : vector<32x32xf32> to vector<8x32xf32>
    %1739 = arith.addf %1737, %1738 : vector<8x32xf32>
    %cst_305 = arith.constant dense<0.000000e+00> : vector<32xf32>
    %1740 = vector.multi_reduction <add>, %1739, %cst_305 [0] : vector<8x32xf32> to vector<32xf32>
    %1741 = vector.shape_cast %1740 : vector<32xf32> to vector<1x32xf32>
    %1742 = arith.addf %1731, %1741 : vector<1x32xf32>
    %1743 = arith.mulf %1729, %3 : vector<32x32xf32>
    %1744 = vector.extract_strided_slice %1743 {offsets = [0, 0], sizes = [8, 32], strides = [1, 1]} : vector<32x32xf32> to vector<8x32xf32>
    %1745 = vector.extract_strided_slice %1743 {offsets = [8, 0], sizes = [8, 32], strides = [1, 1]} : vector<32x32xf32> to vector<8x32xf32>
    %1746 = arith.addf %1744, %1745 : vector<8x32xf32>
    %1747 = vector.extract_strided_slice %1743 {offsets = [16, 0], sizes = [8, 32], strides = [1, 1]} : vector<32x32xf32> to vector<8x32xf32>
    %1748 = arith.addf %1746, %1747 : vector<8x32xf32>
    %1749 = vector.extract_strided_slice %1743 {offsets = [24, 0], sizes = [8, 32], strides = [1, 1]} : vector<32x32xf32> to vector<8x32xf32>
    %1750 = arith.addf %1748, %1749 : vector<8x32xf32>
    %cst_306 = arith.constant dense<0.000000e+00> : vector<32xf32>
    %1751 = vector.multi_reduction <add>, %1750, %cst_306 [0] : vector<8x32xf32> to vector<32xf32>
    %1752 = vector.shape_cast %1751 : vector<32xf32> to vector<1x32xf32>
    %1753 = arith.addf %1669, %1752 : vector<1x32xf32>
    %1754 = tpu.reciprocal %1753 {approx = true} : vector<1x32xf32> -> vector<1x32xf32>
    %1755 = arith.mulf %1753, %1754 : vector<1x32xf32>
    %cst_307 = arith.constant 2.000000e+00 : f32
    %1756 = vector.broadcast %cst_307 : f32 to vector<1x32xf32>
    %1757 = arith.subf %1756, %1755 : vector<1x32xf32>
    %1758 = arith.mulf %1754, %1757 : vector<1x32xf32>
    %1759 = arith.mulf %1742, %1758 : vector<1x32xf32>
    %c2_i32_308 = arith.constant 2 : i32
    %1760 = vector.shape_cast %1759 : vector<1x32xf32> to vector<1x32xf32>
    %1761 = vector.broadcast %1760 : vector<1x32xf32> to vector<32x32xf32>
    %1762 = arith.mulf %1761, %4 : vector<32x32xf32>
    %cst_309 = arith.constant dense<0.000000e+00> : vector<32xf32>
    %1763 = vector.multi_reduction <add>, %1762, %cst_309 [1] : vector<32x32xf32> to vector<32xf32>
    %1764 = vector.shape_cast %1763 : vector<32xf32> to vector<32x1xf32>
    %1765 = vector.broadcast %1764 : vector<32x1xf32> to vector<32x32xf32>
    %1766 = arith.subf %1765, %1 : vector<32x32xf32>
    %1767 = arith.mulf %0, %1766 : vector<32x32xf32>
    %cst_310 = arith.constant 5.000000e-01 : f32
    %1768 = vector.broadcast %cst_310 : f32 to vector<32x32xf32>
    %1769 = arith.mulf %1768, %1767 : vector<32x32xf32>
    %1770 = math.tanh %1769 : vector<32x32xf32>
    %cst_311 = arith.constant 5.000000e-01 : f32
    %1771 = vector.broadcast %cst_311 : f32 to vector<32x32xf32>
    %1772 = arith.mulf %1771, %1770 : vector<32x32xf32>
    %cst_312 = arith.constant 5.000000e-01 : f32
    %1773 = vector.broadcast %cst_312 : f32 to vector<32x32xf32>
    %1774 = arith.addf %1772, %1773 : vector<32x32xf32>
    %1775 = arith.mulf %6, %1759 : vector<1x32xf32>
    %1776 = arith.addf %1775, %1668 : vector<1x32xf32>
    %1777 = arith.mulf %1774, %2 : vector<32x32xf32>
    %1778 = vector.extract_strided_slice %1777 {offsets = [0, 0], sizes = [8, 32], strides = [1, 1]} : vector<32x32xf32> to vector<8x32xf32>
    %1779 = vector.extract_strided_slice %1777 {offsets = [8, 0], sizes = [8, 32], strides = [1, 1]} : vector<32x32xf32> to vector<8x32xf32>
    %1780 = arith.addf %1778, %1779 : vector<8x32xf32>
    %1781 = vector.extract_strided_slice %1777 {offsets = [16, 0], sizes = [8, 32], strides = [1, 1]} : vector<32x32xf32> to vector<8x32xf32>
    %1782 = arith.addf %1780, %1781 : vector<8x32xf32>
    %1783 = vector.extract_strided_slice %1777 {offsets = [24, 0], sizes = [8, 32], strides = [1, 1]} : vector<32x32xf32> to vector<8x32xf32>
    %1784 = arith.addf %1782, %1783 : vector<8x32xf32>
    %cst_313 = arith.constant dense<0.000000e+00> : vector<32xf32>
    %1785 = vector.multi_reduction <add>, %1784, %cst_313 [0] : vector<8x32xf32> to vector<32xf32>
    %1786 = vector.shape_cast %1785 : vector<32xf32> to vector<1x32xf32>
    %1787 = arith.addf %1776, %1786 : vector<1x32xf32>
    %1788 = arith.mulf %1774, %3 : vector<32x32xf32>
    %1789 = vector.extract_strided_slice %1788 {offsets = [0, 0], sizes = [8, 32], strides = [1, 1]} : vector<32x32xf32> to vector<8x32xf32>
    %1790 = vector.extract_strided_slice %1788 {offsets = [8, 0], sizes = [8, 32], strides = [1, 1]} : vector<32x32xf32> to vector<8x32xf32>
    %1791 = arith.addf %1789, %1790 : vector<8x32xf32>
    %1792 = vector.extract_strided_slice %1788 {offsets = [16, 0], sizes = [8, 32], strides = [1, 1]} : vector<32x32xf32> to vector<8x32xf32>
    %1793 = arith.addf %1791, %1792 : vector<8x32xf32>
    %1794 = vector.extract_strided_slice %1788 {offsets = [24, 0], sizes = [8, 32], strides = [1, 1]} : vector<32x32xf32> to vector<8x32xf32>
    %1795 = arith.addf %1793, %1794 : vector<8x32xf32>
    %cst_314 = arith.constant dense<0.000000e+00> : vector<32xf32>
    %1796 = vector.multi_reduction <add>, %1795, %cst_314 [0] : vector<8x32xf32> to vector<32xf32>
    %1797 = vector.shape_cast %1796 : vector<32xf32> to vector<1x32xf32>
    %1798 = arith.addf %1669, %1797 : vector<1x32xf32>
    %1799 = tpu.reciprocal %1798 {approx = true} : vector<1x32xf32> -> vector<1x32xf32>
    %1800 = arith.mulf %1798, %1799 : vector<1x32xf32>
    %cst_315 = arith.constant 2.000000e+00 : f32
    %1801 = vector.broadcast %cst_315 : f32 to vector<1x32xf32>
    %1802 = arith.subf %1801, %1800 : vector<1x32xf32>
    %1803 = arith.mulf %1799, %1802 : vector<1x32xf32>
    %1804 = arith.mulf %1787, %1803 : vector<1x32xf32>
    %c3_i32_316 = arith.constant 3 : i32
    %1805 = vector.shape_cast %1804 : vector<1x32xf32> to vector<1x32xf32>
    %1806 = vector.broadcast %1805 : vector<1x32xf32> to vector<32x32xf32>
    %1807 = arith.mulf %1806, %4 : vector<32x32xf32>
    %cst_317 = arith.constant dense<0.000000e+00> : vector<32xf32>
    %1808 = vector.multi_reduction <add>, %1807, %cst_317 [1] : vector<32x32xf32> to vector<32xf32>
    %1809 = vector.shape_cast %1808 : vector<32xf32> to vector<32x1xf32>
    %1810 = vector.broadcast %1809 : vector<32x1xf32> to vector<32x32xf32>
    %1811 = arith.subf %1810, %1 : vector<32x32xf32>
    %1812 = arith.mulf %0, %1811 : vector<32x32xf32>
    %cst_318 = arith.constant 5.000000e-01 : f32
    %1813 = vector.broadcast %cst_318 : f32 to vector<32x32xf32>
    %1814 = arith.mulf %1813, %1812 : vector<32x32xf32>
    %1815 = math.tanh %1814 : vector<32x32xf32>
    %cst_319 = arith.constant 5.000000e-01 : f32
    %1816 = vector.broadcast %cst_319 : f32 to vector<32x32xf32>
    %1817 = arith.mulf %1816, %1815 : vector<32x32xf32>
    %cst_320 = arith.constant 5.000000e-01 : f32
    %1818 = vector.broadcast %cst_320 : f32 to vector<32x32xf32>
    %1819 = arith.addf %1817, %1818 : vector<32x32xf32>
    %1820 = arith.mulf %6, %1804 : vector<1x32xf32>
    %1821 = arith.addf %1820, %1668 : vector<1x32xf32>
    %1822 = arith.mulf %1819, %2 : vector<32x32xf32>
    %1823 = vector.extract_strided_slice %1822 {offsets = [0, 0], sizes = [8, 32], strides = [1, 1]} : vector<32x32xf32> to vector<8x32xf32>
    %1824 = vector.extract_strided_slice %1822 {offsets = [8, 0], sizes = [8, 32], strides = [1, 1]} : vector<32x32xf32> to vector<8x32xf32>
    %1825 = arith.addf %1823, %1824 : vector<8x32xf32>
    %1826 = vector.extract_strided_slice %1822 {offsets = [16, 0], sizes = [8, 32], strides = [1, 1]} : vector<32x32xf32> to vector<8x32xf32>
    %1827 = arith.addf %1825, %1826 : vector<8x32xf32>
    %1828 = vector.extract_strided_slice %1822 {offsets = [24, 0], sizes = [8, 32], strides = [1, 1]} : vector<32x32xf32> to vector<8x32xf32>
    %1829 = arith.addf %1827, %1828 : vector<8x32xf32>
    %cst_321 = arith.constant dense<0.000000e+00> : vector<32xf32>
    %1830 = vector.multi_reduction <add>, %1829, %cst_321 [0] : vector<8x32xf32> to vector<32xf32>
    %1831 = vector.shape_cast %1830 : vector<32xf32> to vector<1x32xf32>
    %1832 = arith.addf %1821, %1831 : vector<1x32xf32>
    %1833 = arith.mulf %1819, %3 : vector<32x32xf32>
    %1834 = vector.extract_strided_slice %1833 {offsets = [0, 0], sizes = [8, 32], strides = [1, 1]} : vector<32x32xf32> to vector<8x32xf32>
    %1835 = vector.extract_strided_slice %1833 {offsets = [8, 0], sizes = [8, 32], strides = [1, 1]} : vector<32x32xf32> to vector<8x32xf32>
    %1836 = arith.addf %1834, %1835 : vector<8x32xf32>
    %1837 = vector.extract_strided_slice %1833 {offsets = [16, 0], sizes = [8, 32], strides = [1, 1]} : vector<32x32xf32> to vector<8x32xf32>
    %1838 = arith.addf %1836, %1837 : vector<8x32xf32>
    %1839 = vector.extract_strided_slice %1833 {offsets = [24, 0], sizes = [8, 32], strides = [1, 1]} : vector<32x32xf32> to vector<8x32xf32>
    %1840 = arith.addf %1838, %1839 : vector<8x32xf32>
    %cst_322 = arith.constant dense<0.000000e+00> : vector<32xf32>
    %1841 = vector.multi_reduction <add>, %1840, %cst_322 [0] : vector<8x32xf32> to vector<32xf32>
    %1842 = vector.shape_cast %1841 : vector<32xf32> to vector<1x32xf32>
    %1843 = arith.addf %1669, %1842 : vector<1x32xf32>
    %1844 = tpu.reciprocal %1843 {approx = true} : vector<1x32xf32> -> vector<1x32xf32>
    %1845 = arith.mulf %1843, %1844 : vector<1x32xf32>
    %cst_323 = arith.constant 2.000000e+00 : f32
    %1846 = vector.broadcast %cst_323 : f32 to vector<1x32xf32>
    %1847 = arith.subf %1846, %1845 : vector<1x32xf32>
    %1848 = arith.mulf %1844, %1847 : vector<1x32xf32>
    %1849 = arith.mulf %1832, %1848 : vector<1x32xf32>
    %c4_i32_324 = arith.constant 4 : i32
    %1850 = vector.shape_cast %1849 : vector<1x32xf32> to vector<1x32xf32>
    %1851 = vector.broadcast %1850 : vector<1x32xf32> to vector<32x32xf32>
    %1852 = arith.mulf %1851, %4 : vector<32x32xf32>
    %cst_325 = arith.constant dense<0.000000e+00> : vector<32xf32>
    %1853 = vector.multi_reduction <add>, %1852, %cst_325 [1] : vector<32x32xf32> to vector<32xf32>
    %1854 = vector.shape_cast %1853 : vector<32xf32> to vector<32x1xf32>
    %1855 = vector.broadcast %1854 : vector<32x1xf32> to vector<32x32xf32>
    %1856 = arith.subf %1855, %1 : vector<32x32xf32>
    %1857 = arith.mulf %0, %1856 : vector<32x32xf32>
    %cst_326 = arith.constant 5.000000e-01 : f32
    %1858 = vector.broadcast %cst_326 : f32 to vector<32x32xf32>
    %1859 = arith.mulf %1858, %1857 : vector<32x32xf32>
    %1860 = math.tanh %1859 : vector<32x32xf32>
    %cst_327 = arith.constant 5.000000e-01 : f32
    %1861 = vector.broadcast %cst_327 : f32 to vector<32x32xf32>
    %1862 = arith.mulf %1861, %1860 : vector<32x32xf32>
    %cst_328 = arith.constant 5.000000e-01 : f32
    %1863 = vector.broadcast %cst_328 : f32 to vector<32x32xf32>
    %1864 = arith.addf %1862, %1863 : vector<32x32xf32>
    %1865 = arith.mulf %6, %1849 : vector<1x32xf32>
    %1866 = arith.addf %1865, %1668 : vector<1x32xf32>
    %1867 = arith.mulf %1864, %2 : vector<32x32xf32>
    %1868 = vector.extract_strided_slice %1867 {offsets = [0, 0], sizes = [8, 32], strides = [1, 1]} : vector<32x32xf32> to vector<8x32xf32>
    %1869 = vector.extract_strided_slice %1867 {offsets = [8, 0], sizes = [8, 32], strides = [1, 1]} : vector<32x32xf32> to vector<8x32xf32>
    %1870 = arith.addf %1868, %1869 : vector<8x32xf32>
    %1871 = vector.extract_strided_slice %1867 {offsets = [16, 0], sizes = [8, 32], strides = [1, 1]} : vector<32x32xf32> to vector<8x32xf32>
    %1872 = arith.addf %1870, %1871 : vector<8x32xf32>
    %1873 = vector.extract_strided_slice %1867 {offsets = [24, 0], sizes = [8, 32], strides = [1, 1]} : vector<32x32xf32> to vector<8x32xf32>
    %1874 = arith.addf %1872, %1873 : vector<8x32xf32>
    %cst_329 = arith.constant dense<0.000000e+00> : vector<32xf32>
    %1875 = vector.multi_reduction <add>, %1874, %cst_329 [0] : vector<8x32xf32> to vector<32xf32>
    %1876 = vector.shape_cast %1875 : vector<32xf32> to vector<1x32xf32>
    %1877 = arith.addf %1866, %1876 : vector<1x32xf32>
    %1878 = arith.mulf %1864, %3 : vector<32x32xf32>
    %1879 = vector.extract_strided_slice %1878 {offsets = [0, 0], sizes = [8, 32], strides = [1, 1]} : vector<32x32xf32> to vector<8x32xf32>
    %1880 = vector.extract_strided_slice %1878 {offsets = [8, 0], sizes = [8, 32], strides = [1, 1]} : vector<32x32xf32> to vector<8x32xf32>
    %1881 = arith.addf %1879, %1880 : vector<8x32xf32>
    %1882 = vector.extract_strided_slice %1878 {offsets = [16, 0], sizes = [8, 32], strides = [1, 1]} : vector<32x32xf32> to vector<8x32xf32>
    %1883 = arith.addf %1881, %1882 : vector<8x32xf32>
    %1884 = vector.extract_strided_slice %1878 {offsets = [24, 0], sizes = [8, 32], strides = [1, 1]} : vector<32x32xf32> to vector<8x32xf32>
    %1885 = arith.addf %1883, %1884 : vector<8x32xf32>
    %cst_330 = arith.constant dense<0.000000e+00> : vector<32xf32>
    %1886 = vector.multi_reduction <add>, %1885, %cst_330 [0] : vector<8x32xf32> to vector<32xf32>
    %1887 = vector.shape_cast %1886 : vector<32xf32> to vector<1x32xf32>
    %1888 = arith.addf %1669, %1887 : vector<1x32xf32>
    %1889 = tpu.reciprocal %1888 {approx = true} : vector<1x32xf32> -> vector<1x32xf32>
    %1890 = arith.mulf %1888, %1889 : vector<1x32xf32>
    %cst_331 = arith.constant 2.000000e+00 : f32
    %1891 = vector.broadcast %cst_331 : f32 to vector<1x32xf32>
    %1892 = arith.subf %1891, %1890 : vector<1x32xf32>
    %1893 = arith.mulf %1889, %1892 : vector<1x32xf32>
    %1894 = arith.mulf %1877, %1893 : vector<1x32xf32>
    %c5_i32_332 = arith.constant 5 : i32
    %1895 = vector.shape_cast %1894 : vector<1x32xf32> to vector<1x32xf32>
    %1896 = vector.broadcast %1895 : vector<1x32xf32> to vector<32x32xf32>
    %1897 = arith.mulf %1896, %4 : vector<32x32xf32>
    %cst_333 = arith.constant dense<0.000000e+00> : vector<32xf32>
    %1898 = vector.multi_reduction <add>, %1897, %cst_333 [1] : vector<32x32xf32> to vector<32xf32>
    %1899 = vector.shape_cast %1898 : vector<32xf32> to vector<32x1xf32>
    %1900 = vector.broadcast %1899 : vector<32x1xf32> to vector<32x32xf32>
    %1901 = arith.subf %1900, %1 : vector<32x32xf32>
    %1902 = arith.mulf %0, %1901 : vector<32x32xf32>
    %cst_334 = arith.constant 5.000000e-01 : f32
    %1903 = vector.broadcast %cst_334 : f32 to vector<32x32xf32>
    %1904 = arith.mulf %1903, %1902 : vector<32x32xf32>
    %1905 = math.tanh %1904 : vector<32x32xf32>
    %cst_335 = arith.constant 5.000000e-01 : f32
    %1906 = vector.broadcast %cst_335 : f32 to vector<32x32xf32>
    %1907 = arith.mulf %1906, %1905 : vector<32x32xf32>
    %cst_336 = arith.constant 5.000000e-01 : f32
    %1908 = vector.broadcast %cst_336 : f32 to vector<32x32xf32>
    %1909 = arith.addf %1907, %1908 : vector<32x32xf32>
    %1910 = arith.mulf %6, %1894 : vector<1x32xf32>
    %1911 = arith.addf %1910, %1668 : vector<1x32xf32>
    %1912 = arith.mulf %1909, %2 : vector<32x32xf32>
    %1913 = vector.extract_strided_slice %1912 {offsets = [0, 0], sizes = [8, 32], strides = [1, 1]} : vector<32x32xf32> to vector<8x32xf32>
    %1914 = vector.extract_strided_slice %1912 {offsets = [8, 0], sizes = [8, 32], strides = [1, 1]} : vector<32x32xf32> to vector<8x32xf32>
    %1915 = arith.addf %1913, %1914 : vector<8x32xf32>
    %1916 = vector.extract_strided_slice %1912 {offsets = [16, 0], sizes = [8, 32], strides = [1, 1]} : vector<32x32xf32> to vector<8x32xf32>
    %1917 = arith.addf %1915, %1916 : vector<8x32xf32>
    %1918 = vector.extract_strided_slice %1912 {offsets = [24, 0], sizes = [8, 32], strides = [1, 1]} : vector<32x32xf32> to vector<8x32xf32>
    %1919 = arith.addf %1917, %1918 : vector<8x32xf32>
    %cst_337 = arith.constant dense<0.000000e+00> : vector<32xf32>
    %1920 = vector.multi_reduction <add>, %1919, %cst_337 [0] : vector<8x32xf32> to vector<32xf32>
    %1921 = vector.shape_cast %1920 : vector<32xf32> to vector<1x32xf32>
    %1922 = arith.addf %1911, %1921 : vector<1x32xf32>
    %1923 = arith.mulf %1909, %3 : vector<32x32xf32>
    %1924 = vector.extract_strided_slice %1923 {offsets = [0, 0], sizes = [8, 32], strides = [1, 1]} : vector<32x32xf32> to vector<8x32xf32>
    %1925 = vector.extract_strided_slice %1923 {offsets = [8, 0], sizes = [8, 32], strides = [1, 1]} : vector<32x32xf32> to vector<8x32xf32>
    %1926 = arith.addf %1924, %1925 : vector<8x32xf32>
    %1927 = vector.extract_strided_slice %1923 {offsets = [16, 0], sizes = [8, 32], strides = [1, 1]} : vector<32x32xf32> to vector<8x32xf32>
    %1928 = arith.addf %1926, %1927 : vector<8x32xf32>
    %1929 = vector.extract_strided_slice %1923 {offsets = [24, 0], sizes = [8, 32], strides = [1, 1]} : vector<32x32xf32> to vector<8x32xf32>
    %1930 = arith.addf %1928, %1929 : vector<8x32xf32>
    %cst_338 = arith.constant dense<0.000000e+00> : vector<32xf32>
    %1931 = vector.multi_reduction <add>, %1930, %cst_338 [0] : vector<8x32xf32> to vector<32xf32>
    %1932 = vector.shape_cast %1931 : vector<32xf32> to vector<1x32xf32>
    %1933 = arith.addf %1669, %1932 : vector<1x32xf32>
    %1934 = tpu.reciprocal %1933 {approx = true} : vector<1x32xf32> -> vector<1x32xf32>
    %1935 = arith.mulf %1933, %1934 : vector<1x32xf32>
    %cst_339 = arith.constant 2.000000e+00 : f32
    %1936 = vector.broadcast %cst_339 : f32 to vector<1x32xf32>
    %1937 = arith.subf %1936, %1935 : vector<1x32xf32>
    %1938 = arith.mulf %1934, %1937 : vector<1x32xf32>
    %1939 = arith.mulf %1922, %1938 : vector<1x32xf32>
    %1940 = vector.extract_strided_slice %30 {offsets = [7, 0], sizes = [1, 32], strides = [1, 1]} : vector<8x32xf32> to vector<1x32xf32>
    %1941 = vector.extract_strided_slice %34 {offsets = [7, 0], sizes = [1, 32], strides = [1, 1]} : vector<8x32xf32> to vector<1x32xf32>
    %c0_i32_340 = arith.constant 0 : i32
    %1942 = vector.shape_cast %1939 : vector<1x32xf32> to vector<1x32xf32>
    %1943 = vector.broadcast %1942 : vector<1x32xf32> to vector<32x32xf32>
    %1944 = arith.mulf %1943, %4 : vector<32x32xf32>
    %cst_341 = arith.constant dense<0.000000e+00> : vector<32xf32>
    %1945 = vector.multi_reduction <add>, %1944, %cst_341 [1] : vector<32x32xf32> to vector<32xf32>
    %1946 = vector.shape_cast %1945 : vector<32xf32> to vector<32x1xf32>
    %1947 = vector.broadcast %1946 : vector<32x1xf32> to vector<32x32xf32>
    %1948 = arith.subf %1947, %1 : vector<32x32xf32>
    %1949 = arith.mulf %0, %1948 : vector<32x32xf32>
    %cst_342 = arith.constant 5.000000e-01 : f32
    %1950 = vector.broadcast %cst_342 : f32 to vector<32x32xf32>
    %1951 = arith.mulf %1950, %1949 : vector<32x32xf32>
    %1952 = math.tanh %1951 : vector<32x32xf32>
    %cst_343 = arith.constant 5.000000e-01 : f32
    %1953 = vector.broadcast %cst_343 : f32 to vector<32x32xf32>
    %1954 = arith.mulf %1953, %1952 : vector<32x32xf32>
    %cst_344 = arith.constant 5.000000e-01 : f32
    %1955 = vector.broadcast %cst_344 : f32 to vector<32x32xf32>
    %1956 = arith.addf %1954, %1955 : vector<32x32xf32>
    %1957 = arith.mulf %6, %1939 : vector<1x32xf32>
    %1958 = arith.addf %1957, %1940 : vector<1x32xf32>
    %1959 = arith.mulf %1956, %2 : vector<32x32xf32>
    %1960 = vector.extract_strided_slice %1959 {offsets = [0, 0], sizes = [8, 32], strides = [1, 1]} : vector<32x32xf32> to vector<8x32xf32>
    %1961 = vector.extract_strided_slice %1959 {offsets = [8, 0], sizes = [8, 32], strides = [1, 1]} : vector<32x32xf32> to vector<8x32xf32>
    %1962 = arith.addf %1960, %1961 : vector<8x32xf32>
    %1963 = vector.extract_strided_slice %1959 {offsets = [16, 0], sizes = [8, 32], strides = [1, 1]} : vector<32x32xf32> to vector<8x32xf32>
    %1964 = arith.addf %1962, %1963 : vector<8x32xf32>
    %1965 = vector.extract_strided_slice %1959 {offsets = [24, 0], sizes = [8, 32], strides = [1, 1]} : vector<32x32xf32> to vector<8x32xf32>
    %1966 = arith.addf %1964, %1965 : vector<8x32xf32>
    %cst_345 = arith.constant dense<0.000000e+00> : vector<32xf32>
    %1967 = vector.multi_reduction <add>, %1966, %cst_345 [0] : vector<8x32xf32> to vector<32xf32>
    %1968 = vector.shape_cast %1967 : vector<32xf32> to vector<1x32xf32>
    %1969 = arith.addf %1958, %1968 : vector<1x32xf32>
    %1970 = arith.mulf %1956, %3 : vector<32x32xf32>
    %1971 = vector.extract_strided_slice %1970 {offsets = [0, 0], sizes = [8, 32], strides = [1, 1]} : vector<32x32xf32> to vector<8x32xf32>
    %1972 = vector.extract_strided_slice %1970 {offsets = [8, 0], sizes = [8, 32], strides = [1, 1]} : vector<32x32xf32> to vector<8x32xf32>
    %1973 = arith.addf %1971, %1972 : vector<8x32xf32>
    %1974 = vector.extract_strided_slice %1970 {offsets = [16, 0], sizes = [8, 32], strides = [1, 1]} : vector<32x32xf32> to vector<8x32xf32>
    %1975 = arith.addf %1973, %1974 : vector<8x32xf32>
    %1976 = vector.extract_strided_slice %1970 {offsets = [24, 0], sizes = [8, 32], strides = [1, 1]} : vector<32x32xf32> to vector<8x32xf32>
    %1977 = arith.addf %1975, %1976 : vector<8x32xf32>
    %cst_346 = arith.constant dense<0.000000e+00> : vector<32xf32>
    %1978 = vector.multi_reduction <add>, %1977, %cst_346 [0] : vector<8x32xf32> to vector<32xf32>
    %1979 = vector.shape_cast %1978 : vector<32xf32> to vector<1x32xf32>
    %1980 = arith.addf %1941, %1979 : vector<1x32xf32>
    %1981 = tpu.reciprocal %1980 {approx = true} : vector<1x32xf32> -> vector<1x32xf32>
    %1982 = arith.mulf %1980, %1981 : vector<1x32xf32>
    %cst_347 = arith.constant 2.000000e+00 : f32
    %1983 = vector.broadcast %cst_347 : f32 to vector<1x32xf32>
    %1984 = arith.subf %1983, %1982 : vector<1x32xf32>
    %1985 = arith.mulf %1981, %1984 : vector<1x32xf32>
    %1986 = arith.mulf %1969, %1985 : vector<1x32xf32>
    %c1_i32_348 = arith.constant 1 : i32
    %1987 = vector.shape_cast %1986 : vector<1x32xf32> to vector<1x32xf32>
    %1988 = vector.broadcast %1987 : vector<1x32xf32> to vector<32x32xf32>
    %1989 = arith.mulf %1988, %4 : vector<32x32xf32>
    %cst_349 = arith.constant dense<0.000000e+00> : vector<32xf32>
    %1990 = vector.multi_reduction <add>, %1989, %cst_349 [1] : vector<32x32xf32> to vector<32xf32>
    %1991 = vector.shape_cast %1990 : vector<32xf32> to vector<32x1xf32>
    %1992 = vector.broadcast %1991 : vector<32x1xf32> to vector<32x32xf32>
    %1993 = arith.subf %1992, %1 : vector<32x32xf32>
    %1994 = arith.mulf %0, %1993 : vector<32x32xf32>
    %cst_350 = arith.constant 5.000000e-01 : f32
    %1995 = vector.broadcast %cst_350 : f32 to vector<32x32xf32>
    %1996 = arith.mulf %1995, %1994 : vector<32x32xf32>
    %1997 = math.tanh %1996 : vector<32x32xf32>
    %cst_351 = arith.constant 5.000000e-01 : f32
    %1998 = vector.broadcast %cst_351 : f32 to vector<32x32xf32>
    %1999 = arith.mulf %1998, %1997 : vector<32x32xf32>
    %cst_352 = arith.constant 5.000000e-01 : f32
    %2000 = vector.broadcast %cst_352 : f32 to vector<32x32xf32>
    %2001 = arith.addf %1999, %2000 : vector<32x32xf32>
    %2002 = arith.mulf %6, %1986 : vector<1x32xf32>
    %2003 = arith.addf %2002, %1940 : vector<1x32xf32>
    %2004 = arith.mulf %2001, %2 : vector<32x32xf32>
    %2005 = vector.extract_strided_slice %2004 {offsets = [0, 0], sizes = [8, 32], strides = [1, 1]} : vector<32x32xf32> to vector<8x32xf32>
    %2006 = vector.extract_strided_slice %2004 {offsets = [8, 0], sizes = [8, 32], strides = [1, 1]} : vector<32x32xf32> to vector<8x32xf32>
    %2007 = arith.addf %2005, %2006 : vector<8x32xf32>
    %2008 = vector.extract_strided_slice %2004 {offsets = [16, 0], sizes = [8, 32], strides = [1, 1]} : vector<32x32xf32> to vector<8x32xf32>
    %2009 = arith.addf %2007, %2008 : vector<8x32xf32>
    %2010 = vector.extract_strided_slice %2004 {offsets = [24, 0], sizes = [8, 32], strides = [1, 1]} : vector<32x32xf32> to vector<8x32xf32>
    %2011 = arith.addf %2009, %2010 : vector<8x32xf32>
    %cst_353 = arith.constant dense<0.000000e+00> : vector<32xf32>
    %2012 = vector.multi_reduction <add>, %2011, %cst_353 [0] : vector<8x32xf32> to vector<32xf32>
    %2013 = vector.shape_cast %2012 : vector<32xf32> to vector<1x32xf32>
    %2014 = arith.addf %2003, %2013 : vector<1x32xf32>
    %2015 = arith.mulf %2001, %3 : vector<32x32xf32>
    %2016 = vector.extract_strided_slice %2015 {offsets = [0, 0], sizes = [8, 32], strides = [1, 1]} : vector<32x32xf32> to vector<8x32xf32>
    %2017 = vector.extract_strided_slice %2015 {offsets = [8, 0], sizes = [8, 32], strides = [1, 1]} : vector<32x32xf32> to vector<8x32xf32>
    %2018 = arith.addf %2016, %2017 : vector<8x32xf32>
    %2019 = vector.extract_strided_slice %2015 {offsets = [16, 0], sizes = [8, 32], strides = [1, 1]} : vector<32x32xf32> to vector<8x32xf32>
    %2020 = arith.addf %2018, %2019 : vector<8x32xf32>
    %2021 = vector.extract_strided_slice %2015 {offsets = [24, 0], sizes = [8, 32], strides = [1, 1]} : vector<32x32xf32> to vector<8x32xf32>
    %2022 = arith.addf %2020, %2021 : vector<8x32xf32>
    %cst_354 = arith.constant dense<0.000000e+00> : vector<32xf32>
    %2023 = vector.multi_reduction <add>, %2022, %cst_354 [0] : vector<8x32xf32> to vector<32xf32>
    %2024 = vector.shape_cast %2023 : vector<32xf32> to vector<1x32xf32>
    %2025 = arith.addf %1941, %2024 : vector<1x32xf32>
    %2026 = tpu.reciprocal %2025 {approx = true} : vector<1x32xf32> -> vector<1x32xf32>
    %2027 = arith.mulf %2025, %2026 : vector<1x32xf32>
    %cst_355 = arith.constant 2.000000e+00 : f32
    %2028 = vector.broadcast %cst_355 : f32 to vector<1x32xf32>
    %2029 = arith.subf %2028, %2027 : vector<1x32xf32>
    %2030 = arith.mulf %2026, %2029 : vector<1x32xf32>
    %2031 = arith.mulf %2014, %2030 : vector<1x32xf32>
    %c2_i32_356 = arith.constant 2 : i32
    %2032 = vector.shape_cast %2031 : vector<1x32xf32> to vector<1x32xf32>
    %2033 = vector.broadcast %2032 : vector<1x32xf32> to vector<32x32xf32>
    %2034 = arith.mulf %2033, %4 : vector<32x32xf32>
    %cst_357 = arith.constant dense<0.000000e+00> : vector<32xf32>
    %2035 = vector.multi_reduction <add>, %2034, %cst_357 [1] : vector<32x32xf32> to vector<32xf32>
    %2036 = vector.shape_cast %2035 : vector<32xf32> to vector<32x1xf32>
    %2037 = vector.broadcast %2036 : vector<32x1xf32> to vector<32x32xf32>
    %2038 = arith.subf %2037, %1 : vector<32x32xf32>
    %2039 = arith.mulf %0, %2038 : vector<32x32xf32>
    %cst_358 = arith.constant 5.000000e-01 : f32
    %2040 = vector.broadcast %cst_358 : f32 to vector<32x32xf32>
    %2041 = arith.mulf %2040, %2039 : vector<32x32xf32>
    %2042 = math.tanh %2041 : vector<32x32xf32>
    %cst_359 = arith.constant 5.000000e-01 : f32
    %2043 = vector.broadcast %cst_359 : f32 to vector<32x32xf32>
    %2044 = arith.mulf %2043, %2042 : vector<32x32xf32>
    %cst_360 = arith.constant 5.000000e-01 : f32
    %2045 = vector.broadcast %cst_360 : f32 to vector<32x32xf32>
    %2046 = arith.addf %2044, %2045 : vector<32x32xf32>
    %2047 = arith.mulf %6, %2031 : vector<1x32xf32>
    %2048 = arith.addf %2047, %1940 : vector<1x32xf32>
    %2049 = arith.mulf %2046, %2 : vector<32x32xf32>
    %2050 = vector.extract_strided_slice %2049 {offsets = [0, 0], sizes = [8, 32], strides = [1, 1]} : vector<32x32xf32> to vector<8x32xf32>
    %2051 = vector.extract_strided_slice %2049 {offsets = [8, 0], sizes = [8, 32], strides = [1, 1]} : vector<32x32xf32> to vector<8x32xf32>
    %2052 = arith.addf %2050, %2051 : vector<8x32xf32>
    %2053 = vector.extract_strided_slice %2049 {offsets = [16, 0], sizes = [8, 32], strides = [1, 1]} : vector<32x32xf32> to vector<8x32xf32>
    %2054 = arith.addf %2052, %2053 : vector<8x32xf32>
    %2055 = vector.extract_strided_slice %2049 {offsets = [24, 0], sizes = [8, 32], strides = [1, 1]} : vector<32x32xf32> to vector<8x32xf32>
    %2056 = arith.addf %2054, %2055 : vector<8x32xf32>
    %cst_361 = arith.constant dense<0.000000e+00> : vector<32xf32>
    %2057 = vector.multi_reduction <add>, %2056, %cst_361 [0] : vector<8x32xf32> to vector<32xf32>
    %2058 = vector.shape_cast %2057 : vector<32xf32> to vector<1x32xf32>
    %2059 = arith.addf %2048, %2058 : vector<1x32xf32>
    %2060 = arith.mulf %2046, %3 : vector<32x32xf32>
    %2061 = vector.extract_strided_slice %2060 {offsets = [0, 0], sizes = [8, 32], strides = [1, 1]} : vector<32x32xf32> to vector<8x32xf32>
    %2062 = vector.extract_strided_slice %2060 {offsets = [8, 0], sizes = [8, 32], strides = [1, 1]} : vector<32x32xf32> to vector<8x32xf32>
    %2063 = arith.addf %2061, %2062 : vector<8x32xf32>
    %2064 = vector.extract_strided_slice %2060 {offsets = [16, 0], sizes = [8, 32], strides = [1, 1]} : vector<32x32xf32> to vector<8x32xf32>
    %2065 = arith.addf %2063, %2064 : vector<8x32xf32>
    %2066 = vector.extract_strided_slice %2060 {offsets = [24, 0], sizes = [8, 32], strides = [1, 1]} : vector<32x32xf32> to vector<8x32xf32>
    %2067 = arith.addf %2065, %2066 : vector<8x32xf32>
    %cst_362 = arith.constant dense<0.000000e+00> : vector<32xf32>
    %2068 = vector.multi_reduction <add>, %2067, %cst_362 [0] : vector<8x32xf32> to vector<32xf32>
    %2069 = vector.shape_cast %2068 : vector<32xf32> to vector<1x32xf32>
    %2070 = arith.addf %1941, %2069 : vector<1x32xf32>
    %2071 = tpu.reciprocal %2070 {approx = true} : vector<1x32xf32> -> vector<1x32xf32>
    %2072 = arith.mulf %2070, %2071 : vector<1x32xf32>
    %cst_363 = arith.constant 2.000000e+00 : f32
    %2073 = vector.broadcast %cst_363 : f32 to vector<1x32xf32>
    %2074 = arith.subf %2073, %2072 : vector<1x32xf32>
    %2075 = arith.mulf %2071, %2074 : vector<1x32xf32>
    %2076 = arith.mulf %2059, %2075 : vector<1x32xf32>
    %c3_i32_364 = arith.constant 3 : i32
    %2077 = vector.shape_cast %2076 : vector<1x32xf32> to vector<1x32xf32>
    %2078 = vector.broadcast %2077 : vector<1x32xf32> to vector<32x32xf32>
    %2079 = arith.mulf %2078, %4 : vector<32x32xf32>
    %cst_365 = arith.constant dense<0.000000e+00> : vector<32xf32>
    %2080 = vector.multi_reduction <add>, %2079, %cst_365 [1] : vector<32x32xf32> to vector<32xf32>
    %2081 = vector.shape_cast %2080 : vector<32xf32> to vector<32x1xf32>
    %2082 = vector.broadcast %2081 : vector<32x1xf32> to vector<32x32xf32>
    %2083 = arith.subf %2082, %1 : vector<32x32xf32>
    %2084 = arith.mulf %0, %2083 : vector<32x32xf32>
    %cst_366 = arith.constant 5.000000e-01 : f32
    %2085 = vector.broadcast %cst_366 : f32 to vector<32x32xf32>
    %2086 = arith.mulf %2085, %2084 : vector<32x32xf32>
    %2087 = math.tanh %2086 : vector<32x32xf32>
    %cst_367 = arith.constant 5.000000e-01 : f32
    %2088 = vector.broadcast %cst_367 : f32 to vector<32x32xf32>
    %2089 = arith.mulf %2088, %2087 : vector<32x32xf32>
    %cst_368 = arith.constant 5.000000e-01 : f32
    %2090 = vector.broadcast %cst_368 : f32 to vector<32x32xf32>
    %2091 = arith.addf %2089, %2090 : vector<32x32xf32>
    %2092 = arith.mulf %6, %2076 : vector<1x32xf32>
    %2093 = arith.addf %2092, %1940 : vector<1x32xf32>
    %2094 = arith.mulf %2091, %2 : vector<32x32xf32>
    %2095 = vector.extract_strided_slice %2094 {offsets = [0, 0], sizes = [8, 32], strides = [1, 1]} : vector<32x32xf32> to vector<8x32xf32>
    %2096 = vector.extract_strided_slice %2094 {offsets = [8, 0], sizes = [8, 32], strides = [1, 1]} : vector<32x32xf32> to vector<8x32xf32>
    %2097 = arith.addf %2095, %2096 : vector<8x32xf32>
    %2098 = vector.extract_strided_slice %2094 {offsets = [16, 0], sizes = [8, 32], strides = [1, 1]} : vector<32x32xf32> to vector<8x32xf32>
    %2099 = arith.addf %2097, %2098 : vector<8x32xf32>
    %2100 = vector.extract_strided_slice %2094 {offsets = [24, 0], sizes = [8, 32], strides = [1, 1]} : vector<32x32xf32> to vector<8x32xf32>
    %2101 = arith.addf %2099, %2100 : vector<8x32xf32>
    %cst_369 = arith.constant dense<0.000000e+00> : vector<32xf32>
    %2102 = vector.multi_reduction <add>, %2101, %cst_369 [0] : vector<8x32xf32> to vector<32xf32>
    %2103 = vector.shape_cast %2102 : vector<32xf32> to vector<1x32xf32>
    %2104 = arith.addf %2093, %2103 : vector<1x32xf32>
    %2105 = arith.mulf %2091, %3 : vector<32x32xf32>
    %2106 = vector.extract_strided_slice %2105 {offsets = [0, 0], sizes = [8, 32], strides = [1, 1]} : vector<32x32xf32> to vector<8x32xf32>
    %2107 = vector.extract_strided_slice %2105 {offsets = [8, 0], sizes = [8, 32], strides = [1, 1]} : vector<32x32xf32> to vector<8x32xf32>
    %2108 = arith.addf %2106, %2107 : vector<8x32xf32>
    %2109 = vector.extract_strided_slice %2105 {offsets = [16, 0], sizes = [8, 32], strides = [1, 1]} : vector<32x32xf32> to vector<8x32xf32>
    %2110 = arith.addf %2108, %2109 : vector<8x32xf32>
    %2111 = vector.extract_strided_slice %2105 {offsets = [24, 0], sizes = [8, 32], strides = [1, 1]} : vector<32x32xf32> to vector<8x32xf32>
    %2112 = arith.addf %2110, %2111 : vector<8x32xf32>
    %cst_370 = arith.constant dense<0.000000e+00> : vector<32xf32>
    %2113 = vector.multi_reduction <add>, %2112, %cst_370 [0] : vector<8x32xf32> to vector<32xf32>
    %2114 = vector.shape_cast %2113 : vector<32xf32> to vector<1x32xf32>
    %2115 = arith.addf %1941, %2114 : vector<1x32xf32>
    %2116 = tpu.reciprocal %2115 {approx = true} : vector<1x32xf32> -> vector<1x32xf32>
    %2117 = arith.mulf %2115, %2116 : vector<1x32xf32>
    %cst_371 = arith.constant 2.000000e+00 : f32
    %2118 = vector.broadcast %cst_371 : f32 to vector<1x32xf32>
    %2119 = arith.subf %2118, %2117 : vector<1x32xf32>
    %2120 = arith.mulf %2116, %2119 : vector<1x32xf32>
    %2121 = arith.mulf %2104, %2120 : vector<1x32xf32>
    %c4_i32_372 = arith.constant 4 : i32
    %2122 = vector.shape_cast %2121 : vector<1x32xf32> to vector<1x32xf32>
    %2123 = vector.broadcast %2122 : vector<1x32xf32> to vector<32x32xf32>
    %2124 = arith.mulf %2123, %4 : vector<32x32xf32>
    %cst_373 = arith.constant dense<0.000000e+00> : vector<32xf32>
    %2125 = vector.multi_reduction <add>, %2124, %cst_373 [1] : vector<32x32xf32> to vector<32xf32>
    %2126 = vector.shape_cast %2125 : vector<32xf32> to vector<32x1xf32>
    %2127 = vector.broadcast %2126 : vector<32x1xf32> to vector<32x32xf32>
    %2128 = arith.subf %2127, %1 : vector<32x32xf32>
    %2129 = arith.mulf %0, %2128 : vector<32x32xf32>
    %cst_374 = arith.constant 5.000000e-01 : f32
    %2130 = vector.broadcast %cst_374 : f32 to vector<32x32xf32>
    %2131 = arith.mulf %2130, %2129 : vector<32x32xf32>
    %2132 = math.tanh %2131 : vector<32x32xf32>
    %cst_375 = arith.constant 5.000000e-01 : f32
    %2133 = vector.broadcast %cst_375 : f32 to vector<32x32xf32>
    %2134 = arith.mulf %2133, %2132 : vector<32x32xf32>
    %cst_376 = arith.constant 5.000000e-01 : f32
    %2135 = vector.broadcast %cst_376 : f32 to vector<32x32xf32>
    %2136 = arith.addf %2134, %2135 : vector<32x32xf32>
    %2137 = arith.mulf %6, %2121 : vector<1x32xf32>
    %2138 = arith.addf %2137, %1940 : vector<1x32xf32>
    %2139 = arith.mulf %2136, %2 : vector<32x32xf32>
    %2140 = vector.extract_strided_slice %2139 {offsets = [0, 0], sizes = [8, 32], strides = [1, 1]} : vector<32x32xf32> to vector<8x32xf32>
    %2141 = vector.extract_strided_slice %2139 {offsets = [8, 0], sizes = [8, 32], strides = [1, 1]} : vector<32x32xf32> to vector<8x32xf32>
    %2142 = arith.addf %2140, %2141 : vector<8x32xf32>
    %2143 = vector.extract_strided_slice %2139 {offsets = [16, 0], sizes = [8, 32], strides = [1, 1]} : vector<32x32xf32> to vector<8x32xf32>
    %2144 = arith.addf %2142, %2143 : vector<8x32xf32>
    %2145 = vector.extract_strided_slice %2139 {offsets = [24, 0], sizes = [8, 32], strides = [1, 1]} : vector<32x32xf32> to vector<8x32xf32>
    %2146 = arith.addf %2144, %2145 : vector<8x32xf32>
    %cst_377 = arith.constant dense<0.000000e+00> : vector<32xf32>
    %2147 = vector.multi_reduction <add>, %2146, %cst_377 [0] : vector<8x32xf32> to vector<32xf32>
    %2148 = vector.shape_cast %2147 : vector<32xf32> to vector<1x32xf32>
    %2149 = arith.addf %2138, %2148 : vector<1x32xf32>
    %2150 = arith.mulf %2136, %3 : vector<32x32xf32>
    %2151 = vector.extract_strided_slice %2150 {offsets = [0, 0], sizes = [8, 32], strides = [1, 1]} : vector<32x32xf32> to vector<8x32xf32>
    %2152 = vector.extract_strided_slice %2150 {offsets = [8, 0], sizes = [8, 32], strides = [1, 1]} : vector<32x32xf32> to vector<8x32xf32>
    %2153 = arith.addf %2151, %2152 : vector<8x32xf32>
    %2154 = vector.extract_strided_slice %2150 {offsets = [16, 0], sizes = [8, 32], strides = [1, 1]} : vector<32x32xf32> to vector<8x32xf32>
    %2155 = arith.addf %2153, %2154 : vector<8x32xf32>
    %2156 = vector.extract_strided_slice %2150 {offsets = [24, 0], sizes = [8, 32], strides = [1, 1]} : vector<32x32xf32> to vector<8x32xf32>
    %2157 = arith.addf %2155, %2156 : vector<8x32xf32>
    %cst_378 = arith.constant dense<0.000000e+00> : vector<32xf32>
    %2158 = vector.multi_reduction <add>, %2157, %cst_378 [0] : vector<8x32xf32> to vector<32xf32>
    %2159 = vector.shape_cast %2158 : vector<32xf32> to vector<1x32xf32>
    %2160 = arith.addf %1941, %2159 : vector<1x32xf32>
    %2161 = tpu.reciprocal %2160 {approx = true} : vector<1x32xf32> -> vector<1x32xf32>
    %2162 = arith.mulf %2160, %2161 : vector<1x32xf32>
    %cst_379 = arith.constant 2.000000e+00 : f32
    %2163 = vector.broadcast %cst_379 : f32 to vector<1x32xf32>
    %2164 = arith.subf %2163, %2162 : vector<1x32xf32>
    %2165 = arith.mulf %2161, %2164 : vector<1x32xf32>
    %2166 = arith.mulf %2149, %2165 : vector<1x32xf32>
    %c5_i32_380 = arith.constant 5 : i32
    %2167 = vector.shape_cast %2166 : vector<1x32xf32> to vector<1x32xf32>
    %2168 = vector.broadcast %2167 : vector<1x32xf32> to vector<32x32xf32>
    %2169 = arith.mulf %2168, %4 : vector<32x32xf32>
    %cst_381 = arith.constant dense<0.000000e+00> : vector<32xf32>
    %2170 = vector.multi_reduction <add>, %2169, %cst_381 [1] : vector<32x32xf32> to vector<32xf32>
    %2171 = vector.shape_cast %2170 : vector<32xf32> to vector<32x1xf32>
    %2172 = vector.broadcast %2171 : vector<32x1xf32> to vector<32x32xf32>
    %2173 = arith.subf %2172, %1 : vector<32x32xf32>
    %2174 = arith.mulf %0, %2173 : vector<32x32xf32>
    %cst_382 = arith.constant 5.000000e-01 : f32
    %2175 = vector.broadcast %cst_382 : f32 to vector<32x32xf32>
    %2176 = arith.mulf %2175, %2174 : vector<32x32xf32>
    %2177 = math.tanh %2176 : vector<32x32xf32>
    %cst_383 = arith.constant 5.000000e-01 : f32
    %2178 = vector.broadcast %cst_383 : f32 to vector<32x32xf32>
    %2179 = arith.mulf %2178, %2177 : vector<32x32xf32>
    %cst_384 = arith.constant 5.000000e-01 : f32
    %2180 = vector.broadcast %cst_384 : f32 to vector<32x32xf32>
    %2181 = arith.addf %2179, %2180 : vector<32x32xf32>
    %2182 = arith.mulf %6, %2166 : vector<1x32xf32>
    %2183 = arith.addf %2182, %1940 : vector<1x32xf32>
    %2184 = arith.mulf %2181, %2 : vector<32x32xf32>
    %2185 = vector.extract_strided_slice %2184 {offsets = [0, 0], sizes = [8, 32], strides = [1, 1]} : vector<32x32xf32> to vector<8x32xf32>
    %2186 = vector.extract_strided_slice %2184 {offsets = [8, 0], sizes = [8, 32], strides = [1, 1]} : vector<32x32xf32> to vector<8x32xf32>
    %2187 = arith.addf %2185, %2186 : vector<8x32xf32>
    %2188 = vector.extract_strided_slice %2184 {offsets = [16, 0], sizes = [8, 32], strides = [1, 1]} : vector<32x32xf32> to vector<8x32xf32>
    %2189 = arith.addf %2187, %2188 : vector<8x32xf32>
    %2190 = vector.extract_strided_slice %2184 {offsets = [24, 0], sizes = [8, 32], strides = [1, 1]} : vector<32x32xf32> to vector<8x32xf32>
    %2191 = arith.addf %2189, %2190 : vector<8x32xf32>
    %cst_385 = arith.constant dense<0.000000e+00> : vector<32xf32>
    %2192 = vector.multi_reduction <add>, %2191, %cst_385 [0] : vector<8x32xf32> to vector<32xf32>
    %2193 = vector.shape_cast %2192 : vector<32xf32> to vector<1x32xf32>
    %2194 = arith.addf %2183, %2193 : vector<1x32xf32>
    %2195 = arith.mulf %2181, %3 : vector<32x32xf32>
    %2196 = vector.extract_strided_slice %2195 {offsets = [0, 0], sizes = [8, 32], strides = [1, 1]} : vector<32x32xf32> to vector<8x32xf32>
    %2197 = vector.extract_strided_slice %2195 {offsets = [8, 0], sizes = [8, 32], strides = [1, 1]} : vector<32x32xf32> to vector<8x32xf32>
    %2198 = arith.addf %2196, %2197 : vector<8x32xf32>
    %2199 = vector.extract_strided_slice %2195 {offsets = [16, 0], sizes = [8, 32], strides = [1, 1]} : vector<32x32xf32> to vector<8x32xf32>
    %2200 = arith.addf %2198, %2199 : vector<8x32xf32>
    %2201 = vector.extract_strided_slice %2195 {offsets = [24, 0], sizes = [8, 32], strides = [1, 1]} : vector<32x32xf32> to vector<8x32xf32>
    %2202 = arith.addf %2200, %2201 : vector<8x32xf32>
    %cst_386 = arith.constant dense<0.000000e+00> : vector<32xf32>
    %2203 = vector.multi_reduction <add>, %2202, %cst_386 [0] : vector<8x32xf32> to vector<32xf32>
    %2204 = vector.shape_cast %2203 : vector<32xf32> to vector<1x32xf32>
    %2205 = arith.addf %1941, %2204 : vector<1x32xf32>
    %2206 = tpu.reciprocal %2205 {approx = true} : vector<1x32xf32> -> vector<1x32xf32>
    %2207 = arith.mulf %2205, %2206 : vector<1x32xf32>
    %cst_387 = arith.constant 2.000000e+00 : f32
    %2208 = vector.broadcast %cst_387 : f32 to vector<1x32xf32>
    %2209 = arith.subf %2208, %2207 : vector<1x32xf32>
    %2210 = arith.mulf %2206, %2209 : vector<1x32xf32>
    %2211 = arith.mulf %2194, %2210 : vector<1x32xf32>
    %2212 = arith.mulf %2211, %13 : vector<1x32xf32>
    %2213 = arith.addf %2212, %14 : vector<1x32xf32>
    %2214 = vector.extract_strided_slice %2213 {offsets = [0, 0], sizes = [1, 20], strides = [1, 1]} : vector<1x32xf32> to vector<1x20xf32>
    %c0_388 = arith.constant 0 : index
    %c0_389 = arith.constant 0 : index
    %2215 = vector.load %arg1[%c0_388, %c0_389] : memref<1x20xf32, #tpu.memory_space<vmem>>, vector<1x20xf32>
    tpu.vector_store %arg1[%c0_388, %c0_389], %2214 {strides = array<i32>} : memref<1x20xf32, #tpu.memory_space<vmem>>, vector<1x20xf32>,
    return
  }
}

</mosaic_0001>

<llo_original>
// kernel: mul.12
$region0: #{mul.12}
  #allocation0 [shape = 's32[1]{0}', space=sflag, size = 0x4, scoped, tag = 'scoped memory for mul.12']
  %s0 = inlined_call_operand.vmem [shape: f32[1,32], index: 0, kind: input, shape index: {}]
  %s1 = inlined_call_operand.vmem [shape: f32[1,32], index: 1, kind: input, shape index: {}]
  %s2 = inlined_call_operand.vmem [shape: f32[1,32], index: 2, kind: output, shape index: {}]
  %v3 = vld [vmem:[%s0] sm:$0x1]
  %v4 = vld [vmem:[%s1] sm:$0x1]
  %5 = xla_tuple %v3, %v4
  %6 = xla_tuple %5
  %v7 = vmul.f32 %v3, %v4
  %8 = xla_tuple %v7
  %9 = vst [vmem:[%s2] sm:$0x1] %v7

// kernel: lnn_encoder_forward.1
$region0: #{lnn_encoder_forward.1}
  #allocation0 [shape = 'u32[]', space=smem, size = 0x4, offset = 0x4, fixed_abs, tag = 'smem constant byte address 0x4 - core index']
  #allocation1 [shape = 'u32[144,128]{1,0:T(1,128)}', space=vmem, size = 0x12000, scoped, tag = 'internal scratch']
  %s0 = inlined_call_operand.vmem [shape: f32[184,32], index: 0, kind: input, shape index: {}]
  %s1 = inlined_call_operand.hbm [shape: f32[1,20], index: 1, kind: output, shape index: {}]
  %s2 = sld [smem:[#allocation0]]
  $region14: #{lnn_encoder_forward.1} parent=0
    _
  %s4 = ssub.s32 1, %s2
  %s5 = scalar_select 0, %s4, %s2
  $region1: #{lnn_encoder_forward.1} parent=0
    #allocation2 [shape = 'u8[512]{0}', space=vmem, size = 0x400, scoped, tag = 'output window, operand 0, single buffered']
    #allocation3 [shape = 's32[1]{0}', space=sflag, size = 0x4, scoped, tag = 'scoped memory for lnn_encoder_forward.1']
    %6 = vsyncpa [#allocation3], 0
    // Predicated region
    $region2: #{lnn_encoder_forward.1} parent=1 // pred_check
      _
    $region3: #{lnn_encoder_forward.1} parent=1 // pred_check_branch
      %8 = sbr.rel (0) target = $region5
    $region4: #{lnn_encoder_forward.1} parent=1 // pred_region
      _
    $region5: #{lnn_encoder_forward.1} parent=1 // pred_fallthru
      _
    %v9 = vld [vmem:[%s0] sm:$0xff]
    %v10 = vld [vmem:[%s0 + $0x8] sm:$0xff]
    %v11 = vld [vmem:[%s0 + $0x10] sm:$0xff]
    %v12 = vld [vmem:[%s0 + $0x18] sm:$0xff]
    %v13 = vld [vmem:[%s0 + $0x20] sm:$0xff]
    %v14 = vld [vmem:[%s0 + $0x28] sm:$0xff]
    %v15 = vld [vmem:[%s0 + $0x30] sm:$0xff]
    %v16 = vld [vmem:[%s0 + $0x38] sm:$0xff]
    %v17 = vld [vmem:[%s0 + $0x40] sm:$0xff]
    %v18 = vld [vmem:[%s0 + $0x48] sm:$0xff]
    %v19 = vld [vmem:[%s0 + $0x50] sm:$0xff]
    %v20 = vld [vmem:[%s0 + $0x58] sm:$0xff]
    %v21 = vld [vmem:[%s0 + $0x60] sm:$0xff]
    %v22 = vld [vmem:[%s0 + $0x68] sm:$0xff]
    %v23 = vld [vmem:[%s0 + $0x70] sm:$0xff]
    %v24 = vld [vmem:[%s0 + $0x78] sm:$0xff]
    %v25 = vld [vmem:[%s0 + $0x80] sm:$0xff]
    %v26 = vld [vmem:[%s0 + $0x88] sm:$0xff]
    %v27 = vld [vmem:[%s0 + $0x90] sm:$0xff]
    %v28 = vld [vmem:[%s0 + $0x98] sm:$0xff]
    %v29 = vld [vmem:[%s0 + $0xa0] sm:$0xff]
    %v30 = vld [vmem:[%s0 + $0xa8] sm:$0xff]
    %v31 = vld [vmem:[%s0 + $0xb0] sm:$0xff]
    %v32 = vlaneseq
    %v33 = vshrl.u32 %v32, 7
    %v34 = vsub.s32 3, %v33
    %v35 = vrot.slane %v29, %v34
    %v36 = vmul.f32 %v31, %v35
    %v37 = vlaneseq
    %v38 = vshrl.u32 %v37, 7
    %v39 = vsub.s32 4, %v38
    %v40 = vrot.slane %v29, %v39
    %v41 = vadd.f32 %v36, %v40
    %v42 = vmul.f32 %v41, 0.5
    %v43 = vtanh.pop %v42
    %v44 = vmul.f32 %v43, 0.5
    %v45 = vadd.f32 %v44, 0.5
    %v46 = vlaneseq
    %v47 = vshrl.u32 %v46, 7
    %v48 = vsub.s32 5, %v47
    %v49 = vrot.slane %v29, %v48
    %v50 = vmul.f32 %v45, %v49
    %v51 = vlaneseq
    %v52 = vshrl.u32 %v51, 7
    %v53 = vsub.s32 1, %v52
    %v54 = vrot.slane %v29, %v53
    %v55 = vadd.f32 %v54, %v50
    %v56 = vlaneseq
    %v57 = vshrl.u32 %v56, 7
    %v58 = vsub.s32 6, %v57
    %v59 = vrot.slane %v29, %v58
    %v60 = vmul.f32 %v45, %v59
    %v61 = vlaneseq
    %v62 = vshrl.u32 %v61, 7
    %v63 = vsub.s32 2, %v62
    %v64 = vrot.slane %v29, %v63
    %v65 = vadd.f32 %v64, %v60
    %v66 = vmul.f32 %v25, 0.0
    %v67 = vmul.f32 %v26, 0.0
    %v68 = vmul.f32 %v27, 0.0
    %v69 = vmul.f32 %v28, 0.0
    %vm70 = vcmask 261120
    %v71 = vsel %vm70, %v66, 0.0
    %72 = vadd.xlane.f32.xlu0 %v71
    %v73 = vpop.xlane.xlu0 %72
    %v74 = vsel %vm70, %v67, 0.0
    %75 = vadd.xlane.f32.xlu0 %v74
    %v76 = vpop.xlane.xlu0 %75
    %v77 = vsel %vm70, %v68, 0.0
    %78 = vadd.xlane.f32.xlu0 %v77
    %v79 = vpop.xlane.xlu0 %78
    %v80 = vsel %vm70, %v69, 0.0
    %81 = vadd.xlane.f32.xlu0 %v80
    %v82 = vpop.xlane.xlu0 %81
    %v83 = vsub.f32 %v73, %v13
    %v84 = vsub.f32 %v76, %v14
    %v85 = vsub.f32 %v79, %v15
    %v86 = vsub.f32 %v82, %v16
    %v87 = vmul.f32 %v9, %v83
    %v88 = vmul.f32 %v10, %v84
    %v89 = vmul.f32 %v11, %v85
    %v90 = vmul.f32 %v12, %v86
    %v91 = vmul.f32 %v87, 0.5
    %v92 = vmul.f32 %v88, 0.5
    %v93 = vmul.f32 %v89, 0.5
    %v94 = vmul.f32 %v90, 0.5
    %v95 = vtanh.pop %v91
    %v96 = vtanh.pop %v92
    %v97 = vtanh.pop %v93
    %v98 = vtanh.pop %v94
    %v99 = vmul.f32 %v95, 0.5
    %v100 = vmul.f32 %v96, 0.5
    %v101 = vmul.f32 %v97, 0.5
    %v102 = vmul.f32 %v98, 0.5
    %v103 = vadd.f32 %v99, 0.5
    %v104 = vadd.f32 %v100, 0.5
    %v105 = vadd.f32 %v101, 0.5
    %v106 = vadd.f32 %v102, 0.5
    %v107 = vmul.f32 %v29, 0.0
    %v108 = vadd.f32 %v107, %v55
    %v109 = vmul.f32 %v103, %v17
    %v110 = vmul.f32 %v104, %v18
    %v111 = vmul.f32 %v105, %v19
    %v112 = vmul.f32 %v106, %v20
    %v113 = vadd.f32 %v109, %v110
    %v114 = vadd.f32 %v113, %v111
    %v115 = vadd.f32 %v114, %v112
    %v116 = vsel %vm70, %v115, 0.0
    %v117 = vrot.slane %v116, 4
    %v118 = vadd.f32 %v116, %v117
    %v119 = vrot.slane %v118, 2
    %v120 = vadd.f32 %v118, %v119
    %v121 = vrot.slane %v120, 1
    %v122 = vadd.f32 %v120, %v121
    %v123 = vadd.f32 %v108, %v122
    %v124 = vmul.f32 %v103, %v21
    %v125 = vmul.f32 %v104, %v22
    %v126 = vmul.f32 %v105, %v23
    %v127 = vmul.f32 %v106, %v24
    %v128 = vadd.f32 %v124, %v125
    %v129 = vadd.f32 %v128, %v126
    %v130 = vadd.f32 %v129, %v127
    %v131 = vsel %vm70, %v130, 0.0
    %v132 = vrot.slane %v131, 4
    %v133 = vadd.f32 %v131, %v132
    %v134 = vrot.slane %v133, 2
    %v135 = vadd.f32 %v133, %v134
    %v136 = vrot.slane %v135, 1
    %v137 = vadd.f32 %v135, %v136
    %v138 = vadd.f32 %v65, %v137
    %v139 = vrcp.pop %v138
    %v140 = vmul.f32 %v138, %v139
    %v141 = vsub.f32 2.0, %v140
    %v142 = vmul.f32 %v139, %v141
    %v143 = vmul.f32 %v123, %v142
    %v144 = vlaneseq
    %v145 = vshrl.u32 %v144, 7
    %v146 = vsub.s32 0, %v145
    %v147 = vrot.slane %v143, %v146
    %v148 = vmul.f32 %v147, %v25
    %v149 = vmul.f32 %v147, %v26
    %v150 = vmul.f32 %v147, %v27
    %v151 = vmul.f32 %v147, %v28
    %v152 = vsel %vm70, %v148, 0.0
    %153 = vadd.xlane.f32.xlu0 %v152
    %v154 = vpop.xlane.xlu0 %153
    %v155 = vsel %vm70, %v149, 0.0
    %156 = vadd.xlane.f32.xlu0 %v155
    %v157 = vpop.xlane.xlu0 %156
    %v158 = vsel %vm70, %v150, 0.0
    %159 = vadd.xlane.f32.xlu0 %v158
    %v160 = vpop.xlane.xlu0 %159
    %v161 = vsel %vm70, %v151, 0.0
    %162 = vadd.xlane.f32.xlu0 %v161
    %v163 = vpop.xlane.xlu0 %162
    %v164 = vsub.f32 %v154, %v13
    %v165 = vsub.f32 %v157, %v14
    %v166 = vsub.f32 %v160, %v15
    %v167 = vsub.f32 %v163, %v16
    %v168 = vmul.f32 %v9, %v164
    %v169 = vmul.f32 %v10, %v165
    %v170 = vmul.f32 %v11, %v166
    %v171 = vmul.f32 %v12, %v167
    %v172 = vmul.f32 %v168, 0.5
    %v173 = vmul.f32 %v169, 0.5
    %v174 = vmul.f32 %v170, 0.5
    %v175 = vmul.f32 %v171, 0.5
    %v176 = vtanh.pop %v172
    %v177 = vtanh.pop %v173
    %v178 = vtanh.pop %v174
    %v179 = vtanh.pop %v175
    %v180 = vmul.f32 %v176, 0.5
    %v181 = vmul.f32 %v177, 0.5
    %v182 = vmul.f32 %v178, 0.5
    %v183 = vmul.f32 %v179, 0.5
    %v184 = vadd.f32 %v180, 0.5
    %v185 = vadd.f32 %v181, 0.5
    %v186 = vadd.f32 %v182, 0.5
    %v187 = vadd.f32 %v183, 0.5
    %v188 = vmul.f32 %v29, %v143
    %v189 = vadd.f32 %v188, %v55
    %v190 = vmul.f32 %v184, %v17
    %v191 = vmul.f32 %v185, %v18
    %v192 = vmul.f32 %v186, %v19
    %v193 = vmul.f32 %v187, %v20
    %v194 = vadd.f32 %v190, %v191
    %v195 = vadd.f32 %v194, %v192
    %v196 = vadd.f32 %v195, %v193
    %v197 = vsel %vm70, %v196, 0.0
    %v198 = vrot.slane %v197, 4
    %v199 = vadd.f32 %v197, %v198
    %v200 = vrot.slane %v199, 2
    %v201 = vadd.f32 %v199, %v200
    %v202 = vrot.slane %v201, 1
    %v203 = vadd.f32 %v201, %v202
    %v204 = vadd.f32 %v189, %v203
    %v205 = vmul.f32 %v184, %v21
    %v206 = vmul.f32 %v185, %v22
    %v207 = vmul.f32 %v186, %v23
    %v208 = vmul.f32 %v187, %v24
    %v209 = vadd.f32 %v205, %v206
    %v210 = vadd.f32 %v209, %v207
    %v211 = vadd.f32 %v210, %v208
    %v212 = vsel %vm70, %v211, 0.0
    %v213 = vrot.slane %v212, 4
    %v214 = vadd.f32 %v212, %v213
    %v215 = vrot.slane %v214, 2
    %v216 = vadd.f32 %v214, %v215
    %v217 = vrot.slane %v216, 1
    %v218 = vadd.f32 %v216, %v217
    %v219 = vadd.f32 %v65, %v218
    %v220 = vrcp.pop %v219
    %v221 = vmul.f32 %v219, %v220
    %v222 = vsub.f32 2.0, %v221
    %v223 = vmul.f32 %v220, %v222
    %v224 = vmul.f32 %v204, %v223
    %v225 = vlaneseq
    %v226 = vshrl.u32 %v225, 7
    %v227 = vsub.s32 0, %v226
    %v228 = vrot.slane %v224, %v227
    %v229 = vmul.f32 %v228, %v25
    %v230 = vmul.f32 %v228, %v26
    %v231 = vmul.f32 %v228, %v27
    %v232 = vmul.f32 %v228, %v28
    %v233 = vsel %vm70, %v229, 0.0
    %234 = vadd.xlane.f32.xlu0 %v233
    %v235 = vpop.xlane.xlu0 %234
    %v236 = vsel %vm70, %v230, 0.0
    %237 = vadd.xlane.f32.xlu0 %v236
    %v238 = vpop.xlane.xlu0 %237
    %v239 = vsel %vm70, %v231, 0.0
    %240 = vadd.xlane.f32.xlu0 %v239
    %v241 = vpop.xlane.xlu0 %240
    %v242 = vsel %vm70, %v232, 0.0
    %243 = vadd.xlane.f32.xlu0 %v242
    %v244 = vpop.xlane.xlu0 %243
    %v245 = vsub.f32 %v235, %v13
    %v246 = vsub.f32 %v238, %v14
    %v247 = vsub.f32 %v241, %v15
    %v248 = vsub.f32 %v244, %v16
    %v249 = vmul.f32 %v9, %v245
    %v250 = vmul.f32 %v10, %v246
    %v251 = vmul.f32 %v11, %v247
    %v252 = vmul.f32 %v12, %v248
    %v253 = vmul.f32 %v249, 0.5
    %v254 = vmul.f32 %v250, 0.5
    %v255 = vmul.f32 %v251, 0.5
    %v256 = vmul.f32 %v252, 0.5
    %v257 = vtanh.pop %v253
    %v258 = vtanh.pop %v254
    %v259 = vtanh.pop %v255
    %v260 = vtanh.pop %v256
    %v261 = vmul.f32 %v257, 0.5
    %v262 = vmul.f32 %v258, 0.5
    %v263 = vmul.f32 %v259, 0.5
    %v264 = vmul.f32 %v260, 0.5
    %v265 = vadd.f32 %v261, 0.5
    %v266 = vadd.f32 %v262, 0.5
    %v267 = vadd.f32 %v263, 0.5
    %v268 = vadd.f32 %v264, 0.5
    %v269 = vmul.f32 %v29, %v224
    %v270 = vadd.f32 %v269, %v55
    %v271 = vmul.f32 %v265, %v17
    %v272 = vmul.f32 %v266, %v18
    %v273 = vmul.f32 %v267, %v19
    %v274 = vmul.f32 %v268, %v20
    %v275 = vadd.f32 %v271, %v272
    %v276 = vadd.f32 %v275, %v273
    %v277 = vadd.f32 %v276, %v274
    %v278 = vsel %vm70, %v277, 0.0
    %v279 = vrot.slane %v278, 4
    %v280 = vadd.f32 %v278, %v279
    %v281 = vrot.slane %v280, 2
    %v282 = vadd.f32 %v280, %v281
    %v283 = vrot.slane %v282, 1
    %v284 = vadd.f32 %v282, %v283
    %v285 = vadd.f32 %v270, %v284
    %v286 = vmul.f32 %v265, %v21
    %v287 = vmul.f32 %v266, %v22
    %v288 = vmul.f32 %v267, %v23
    %v289 = vmul.f32 %v268, %v24
    %v290 = vadd.f32 %v286, %v287
    %v291 = vadd.f32 %v290, %v288
    %v292 = vadd.f32 %v291, %v289
    %v293 = vsel %vm70, %v292, 0.0
    %v294 = vrot.slane %v293, 4
    %v295 = vadd.f32 %v293, %v294
    %v296 = vrot.slane %v295, 2
    %v297 = vadd.f32 %v295, %v296
    %v298 = vrot.slane %v297, 1
    %v299 = vadd.f32 %v297, %v298
    %v300 = vadd.f32 %v65, %v299
    %v301 = vrcp.pop %v300
    %v302 = vmul.f32 %v300, %v301
    %v303 = vsub.f32 2.0, %v302
    %v304 = vmul.f32 %v301, %v303
    %v305 = vmul.f32 %v285, %v304
    %v306 = vlaneseq
    %v307 = vshrl.u32 %v306, 7
    %v308 = vsub.s32 0, %v307
    %v309 = vrot.slane %v305, %v308
    %v310 = vmul.f32 %v309, %v25
    %v311 = vmul.f32 %v309, %v26
    %v312 = vmul.f32 %v309, %v27
    %v313 = vmul.f32 %v309, %v28
    %v314 = vsel %vm70, %v310, 0.0
    %315 = vadd.xlane.f32.xlu0 %v314
    %v316 = vpop.xlane.xlu0 %315
    %v317 = vsel %vm70, %v311, 0.0
    %318 = vadd.xlane.f32.xlu0 %v317
    %v319 = vpop.xlane.xlu0 %318
    %v320 = vsel %vm70, %v312, 0.0
    %321 = vadd.xlane.f32.xlu0 %v320
    %v322 = vpop.xlane.xlu0 %321
    %v323 = vsel %vm70, %v313, 0.0
    %324 = vadd.xlane.f32.xlu0 %v323
    %v325 = vpop.xlane.xlu0 %324
    %v326 = vsub.f32 %v316, %v13
    %v327 = vsub.f32 %v319, %v14
    %v328 = vsub.f32 %v322, %v15
    %v329 = vsub.f32 %v325, %v16
    %v330 = vmul.f32 %v9, %v326
    %v331 = vmul.f32 %v10, %v327
    %v332 = vmul.f32 %v11, %v328
    %v333 = vmul.f32 %v12, %v329
    %v334 = vmul.f32 %v330, 0.5
    %v335 = vmul.f32 %v331, 0.5
    %v336 = vmul.f32 %v332, 0.5
    %v337 = vmul.f32 %v333, 0.5
    %v338 = vtanh.pop %v334
    %v339 = vtanh.pop %v335
    %v340 = vtanh.pop %v336
    %v341 = vtanh.pop %v337
    %v342 = vmul.f32 %v338, 0.5
    %v343 = vmul.f32 %v339, 0.5
    %v344 = vmul.f32 %v340, 0.5
    %v345 = vmul.f32 %v341, 0.5
    %v346 = vadd.f32 %v342, 0.5
    %v347 = vadd.f32 %v343, 0.5
    %v348 = vadd.f32 %v344, 0.5
    %v349 = vadd.f32 %v345, 0.5
    %v350 = vmul.f32 %v29, %v305
    %v351 = vadd.f32 %v350, %v55
    %v352 = vmul.f32 %v346, %v17
    %v353 = vmul.f32 %v347, %v18
    %v354 = vmul.f32 %v348, %v19
    %v355 = vmul.f32 %v349, %v20
    %v356 = vadd.f32 %v352, %v353
    %v357 = vadd.f32 %v356, %v354
    %v358 = vadd.f32 %v357, %v355
    %v359 = vsel %vm70, %v358, 0.0
    %v360 = vrot.slane %v359, 4
    %v361 = vadd.f32 %v359, %v360
    %v362 = vrot.slane %v361, 2
    %v363 = vadd.f32 %v361, %v362
    %v364 = vrot.slane %v363, 1
    %v365 = vadd.f32 %v363, %v364
    %v366 = vadd.f32 %v351, %v365
    %v367 = vmul.f32 %v346, %v21
    %v368 = vmul.f32 %v347, %v22
    %v369 = vmul.f32 %v348, %v23
    %v370 = vmul.f32 %v349, %v24
    %v371 = vadd.f32 %v367, %v368
    %v372 = vadd.f32 %v371, %v369
    %v373 = vadd.f32 %v372, %v370
    %v374 = vsel %vm70, %v373, 0.0
    %v375 = vrot.slane %v374, 4
    %v376 = vadd.f32 %v374, %v375
    %v377 = vrot.slane %v376, 2
    %v378 = vadd.f32 %v376, %v377
    %v379 = vrot.slane %v378, 1
    %v380 = vadd.f32 %v378, %v379
    %v381 = vadd.f32 %v65, %v380
    %v382 = vrcp.pop %v381
    %v383 = vmul.f32 %v381, %v382
    %v384 = vsub.f32 2.0, %v383
    %v385 = vmul.f32 %v382, %v384
    %v386 = vmul.f32 %v366, %v385
    %v387 = vlaneseq
    %v388 = vshrl.u32 %v387, 7
    %v389 = vsub.s32 0, %v388
    %v390 = vrot.slane %v386, %v389
    %v391 = vmul.f32 %v390, %v25
    %v392 = vmul.f32 %v390, %v26
    %v393 = vmul.f32 %v390, %v27
    %v394 = vmul.f32 %v390, %v28
    %v395 = vsel %vm70, %v391, 0.0
    %396 = vadd.xlane.f32.xlu0 %v395
    %v397 = vpop.xlane.xlu0 %396
    %v398 = vsel %vm70, %v392, 0.0
    %399 = vadd.xlane.f32.xlu0 %v398
    %v400 = vpop.xlane.xlu0 %399
    %v401 = vsel %vm70, %v393, 0.0
    %402 = vadd.xlane.f32.xlu0 %v401
    %v403 = vpop.xlane.xlu0 %402
    %v404 = vsel %vm70, %v394, 0.0
    %405 = vadd.xlane.f32.xlu0 %v404
    %v406 = vpop.xlane.xlu0 %405
    %v407 = vsub.f32 %v397, %v13
    %v408 = vsub.f32 %v400, %v14
    %v409 = vsub.f32 %v403, %v15
    %v410 = vsub.f32 %v406, %v16
    %v411 = vmul.f32 %v9, %v407
    %v412 = vmul.f32 %v10, %v408
    %v413 = vmul.f32 %v11, %v409
    %v414 = vmul.f32 %v12, %v410
    %v415 = vmul.f32 %v411, 0.5
    %v416 = vmul.f32 %v412, 0.5
    %v417 = vmul.f32 %v413, 0.5
    %v418 = vmul.f32 %v414, 0.5
    %v419 = vtanh.pop %v415
    %v420 = vtanh.pop %v416
    %v421 = vtanh.pop %v417
    %v422 = vtanh.pop %v418
    %v423 = vmul.f32 %v419, 0.5
    %v424 = vmul.f32 %v420, 0.5
    %v425 = vmul.f32 %v421, 0.5
    %v426 = vmul.f32 %v422, 0.5
    %v427 = vadd.f32 %v423, 0.5
    %v428 = vadd.f32 %v424, 0.5
    %v429 = vadd.f32 %v425, 0.5
    %v430 = vadd.f32 %v426, 0.5
    %v431 = vmul.f32 %v29, %v386
    %v432 = vadd.f32 %v431, %v55
    %v433 = vmul.f32 %v427, %v17
    %v434 = vmul.f32 %v428, %v18
    %v435 = vmul.f32 %v429, %v19
    %v436 = vmul.f32 %v430, %v20
    %v437 = vadd.f32 %v433, %v434
    %v438 = vadd.f32 %v437, %v435
    %v439 = vadd.f32 %v438, %v436
    %v440 = vsel %vm70, %v439, 0.0
    %v441 = vrot.slane %v440, 4
    %v442 = vadd.f32 %v440, %v441
    %v443 = vrot.slane %v442, 2
    %v444 = vadd.f32 %v442, %v443
    %v445 = vrot.slane %v444, 1
    %v446 = vadd.f32 %v444, %v445
    %v447 = vadd.f32 %v432, %v446
    %v448 = vmul.f32 %v427, %v21
    %v449 = vmul.f32 %v428, %v22
    %v450 = vmul.f32 %v429, %v23
    %v451 = vmul.f32 %v430, %v24
    %v452 = vadd.f32 %v448, %v449
    %v453 = vadd.f32 %v452, %v450
    %v454 = vadd.f32 %v453, %v451
    %v455 = vsel %vm70, %v454, 0.0
    %v456 = vrot.slane %v455, 4
    %v457 = vadd.f32 %v455, %v456
    %v458 = vrot.slane %v457, 2
    %v459 = vadd.f32 %v457, %v458
    %v460 = vrot.slane %v459, 1
    %v461 = vadd.f32 %v459, %v460
    %v462 = vadd.f32 %v65, %v461
    %v463 = vrcp.pop %v462
    %v464 = vmul.f32 %v462, %v463
    %v465 = vsub.f32 2.0, %v464
    %v466 = vmul.f32 %v463, %v465
    %v467 = vmul.f32 %v447, %v466
    %v468 = vlaneseq
    %v469 = vshrl.u32 %v468, 7
    %v470 = vsub.s32 0, %v469
    %v471 = vrot.slane %v467, %v470
    %v472 = vmul.f32 %v471, %v25
    %v473 = vmul.f32 %v471, %v26
    %v474 = vmul.f32 %v471, %v27
    %v475 = vmul.f32 %v471, %v28
    %v476 = vsel %vm70, %v472, 0.0
    %477 = vadd.xlane.f32.xlu0 %v476
    %v478 = vpop.xlane.xlu0 %477
    %v479 = vsel %vm70, %v473, 0.0
    %480 = vadd.xlane.f32.xlu0 %v479
    %v481 = vpop.xlane.xlu0 %480
    %v482 = vsel %vm70, %v474, 0.0
    %483 = vadd.xlane.f32.xlu0 %v482
    %v484 = vpop.xlane.xlu0 %483
    %v485 = vsel %vm70, %v475, 0.0
    %486 = vadd.xlane.f32.xlu0 %v485
    %v487 = vpop.xlane.xlu0 %486
    %v488 = vsub.f32 %v478, %v13
    %v489 = vsub.f32 %v481, %v14
    %v490 = vsub.f32 %v484, %v15
    %v491 = vsub.f32 %v487, %v16
    %v492 = vmul.f32 %v9, %v488
    %v493 = vmul.f32 %v10, %v489
    %v494 = vmul.f32 %v11, %v490
    %v495 = vmul.f32 %v12, %v491
    %v496 = vmul.f32 %v492, 0.5
    %v497 = vmul.f32 %v493, 0.5
    %v498 = vmul.f32 %v494, 0.5
    %v499 = vmul.f32 %v495, 0.5
    %v500 = vtanh.pop %v496
    %v501 = vtanh.pop %v497
    %v502 = vtanh.pop %v498
    %v503 = vtanh.pop %v499
    %v504 = vmul.f32 %v500, 0.5
    %v505 = vmul.f32 %v501, 0.5
    %v506 = vmul.f32 %v502, 0.5
    %v507 = vmul.f32 %v503, 0.5
    %v508 = vadd.f32 %v504, 0.5
    %v509 = vadd.f32 %v505, 0.5
    %v510 = vadd.f32 %v506, 0.5
    %v511 = vadd.f32 %v507, 0.5
    %v512 = vmul.f32 %v29, %v467
    %v513 = vadd.f32 %v512, %v55
    %v514 = vmul.f32 %v508, %v17
    %v515 = vmul.f32 %v509, %v18
    %v516 = vmul.f32 %v510, %v19
    %v517 = vmul.f32 %v511, %v20
    %v518 = vadd.f32 %v514, %v515
    %v519 = vadd.f32 %v518, %v516
    %v520 = vadd.f32 %v519, %v517
    %v521 = vsel %vm70, %v520, 0.0
    %v522 = vrot.slane %v521, 4
    %v523 = vadd.f32 %v521, %v522
    %v524 = vrot.slane %v523, 2
    %v525 = vadd.f32 %v523, %v524
    %v526 = vrot.slane %v525, 1
    %v527 = vadd.f32 %v525, %v526
    %v528 = vadd.f32 %v513, %v527
    %v529 = vmul.f32 %v508, %v21
    %v530 = vmul.f32 %v509, %v22
    %v531 = vmul.f32 %v510, %v23
    %v532 = vmul.f32 %v511, %v24
    %v533 = vadd.f32 %v529, %v530
    %v534 = vadd.f32 %v533, %v531
    %v535 = vadd.f32 %v534, %v532
    %v536 = vsel %vm70, %v535, 0.0
    %v537 = vrot.slane %v536, 4
    %v538 = vadd.f32 %v536, %v537
    %v539 = vrot.slane %v538, 2
    %v540 = vadd.f32 %v538, %v539
    %v541 = vrot.slane %v540, 1
    %v542 = vadd.f32 %v540, %v541
    %v543 = vadd.f32 %v65, %v542
    %v544 = vrcp.pop %v543
    %v545 = vmul.f32 %v543, %v544
    %v546 = vsub.f32 2.0, %v545
    %v547 = vmul.f32 %v544, %v546
    %v548 = vmul.f32 %v528, %v547
    %v549 = vlaneseq
    %v550 = vshrl.u32 %v549, 7
    %v551 = vsub.s32 0, %v550
    %v552 = vrot.slane %v548, %v551
    %v553 = vmul.f32 %v552, %v25
    %v554 = vmul.f32 %v552, %v26
    %v555 = vmul.f32 %v552, %v27
    %v556 = vmul.f32 %v552, %v28
    %v557 = vsel %vm70, %v553, 0.0
    %558 = vadd.xlane.f32.xlu0 %v557
    %v559 = vpop.xlane.xlu0 %558
    %v560 = vsel %vm70, %v554, 0.0
    %561 = vadd.xlane.f32.xlu0 %v560
    %v562 = vpop.xlane.xlu0 %561
    %v563 = vsel %vm70, %v555, 0.0
    %564 = vadd.xlane.f32.xlu0 %v563
    %v565 = vpop.xlane.xlu0 %564
    %v566 = vsel %vm70, %v556, 0.0
    %567 = vadd.xlane.f32.xlu0 %v566
    %v568 = vpop.xlane.xlu0 %567
    %v569 = vsub.f32 %v559, %v13
    %v570 = vsub.f32 %v562, %v14
    %v571 = vsub.f32 %v565, %v15
    %v572 = vsub.f32 %v568, %v16
    %v573 = vmul.f32 %v9, %v569
    %v574 = vmul.f32 %v10, %v570
    %v575 = vmul.f32 %v11, %v571
    %v576 = vmul.f32 %v12, %v572
    %v577 = vmul.f32 %v573, 0.5
    %v578 = vmul.f32 %v574, 0.5
    %v579 = vmul.f32 %v575, 0.5
    %v580 = vmul.f32 %v576, 0.5
    %v581 = vtanh.pop %v577
    %v582 = vtanh.pop %v578
    %v583 = vtanh.pop %v579
    %v584 = vtanh.pop %v580
    %v585 = vmul.f32 %v581, 0.5
    %v586 = vmul.f32 %v582, 0.5
    %v587 = vmul.f32 %v583, 0.5
    %v588 = vmul.f32 %v584, 0.5
    %v589 = vadd.f32 %v585, 0.5
    %v590 = vadd.f32 %v586, 0.5
    %v591 = vadd.f32 %v587, 0.5
    %v592 = vadd.f32 %v588, 0.5
    %v593 = vmul.f32 %v29, %v548
    %v595 = vrot.slane %v55, 1
    %v597 = vadd.f32 %v593, %v595
    %v598 = vmul.f32 %v589, %v17
    %v599 = vmul.f32 %v590, %v18
    %v600 = vmul.f32 %v591, %v19
    %v601 = vmul.f32 %v592, %v20
    %v602 = vadd.f32 %v598, %v599
    %v603 = vadd.f32 %v602, %v600
    %v604 = vadd.f32 %v603, %v601
    %v605 = vsel %vm70, %v604, 0.0
    %v606 = vrot.slane %v605, 4
    %v607 = vadd.f32 %v605, %v606
    %v608 = vrot.slane %v607, 2
    %v609 = vadd.f32 %v607, %v608
    %v610 = vrot.slane %v609, 1
    %v611 = vadd.f32 %v609, %v610
    %v612 = vadd.f32 %v597, %v611
    %v613 = vmul.f32 %v589, %v21
    %v614 = vmul.f32 %v590, %v22
    %v615 = vmul.f32 %v591, %v23
    %v616 = vmul.f32 %v592, %v24
    %v617 = vadd.f32 %v613, %v614
    %v618 = vadd.f32 %v617, %v615
    %v619 = vadd.f32 %v618, %v616
    %v620 = vsel %vm70, %v619, 0.0
    %v621 = vrot.slane %v620, 4
    %v622 = vadd.f32 %v620, %v621
    %v623 = vrot.slane %v622, 2
    %v624 = vadd.f32 %v622, %v623
    %v625 = vrot.slane %v624, 1
    %v626 = vadd.f32 %v624, %v625
    %v627 = vadd.f32 %v65, %v626
    %v628 = vrcp.pop %v627
    %v629 = vmul.f32 %v627, %v628
    %v630 = vsub.f32 2.0, %v629
    %v631 = vmul.f32 %v628, %v630
    %v633 = vrot.slane %v631, 1
    %v635 = vmul.f32 %v612, %v633
    %v636 = vlaneseq
    %v637 = vshrl.u32 %v636, 7
    %v638 = vsub.s32 0, %v637
    %v639 = vrot.slane %v635, %v638
    %v640 = vmul.f32 %v639, %v25
    %v641 = vmul.f32 %v639, %v26
    %v642 = vmul.f32 %v639, %v27
    %v643 = vmul.f32 %v639, %v28
    %v644 = vsel %vm70, %v640, 0.0
    %645 = vadd.xlane.f32.xlu0 %v644
    %v646 = vpop.xlane.xlu0 %645
    %v647 = vsel %vm70, %v641, 0.0
    %648 = vadd.xlane.f32.xlu0 %v647
    %v649 = vpop.xlane.xlu0 %648
    %v650 = vsel %vm70, %v642, 0.0
    %651 = vadd.xlane.f32.xlu0 %v650
    %v652 = vpop.xlane.xlu0 %651
    %v653 = vsel %vm70, %v643, 0.0
    %654 = vadd.xlane.f32.xlu0 %v653
    %v655 = vpop.xlane.xlu0 %654
    %v656 = vsub.f32 %v646, %v13
    %v657 = vsub.f32 %v649, %v14
    %v658 = vsub.f32 %v652, %v15
    %v659 = vsub.f32 %v655, %v16
    %v660 = vmul.f32 %v9, %v656
    %v661 = vmul.f32 %v10, %v657
    %v662 = vmul.f32 %v11, %v658
    %v663 = vmul.f32 %v12, %v659
    %v664 = vmul.f32 %v660, 0.5
    %v665 = vmul.f32 %v661, 0.5
    %v666 = vmul.f32 %v662, 0.5
    %v667 = vmul.f32 %v663, 0.5
    %v668 = vtanh.pop %v664
    %v669 = vtanh.pop %v665
    %v670 = vtanh.pop %v666
    %v671 = vtanh.pop %v667
    %v672 = vmul.f32 %v668, 0.5
    %v673 = vmul.f32 %v669, 0.5
    %v674 = vmul.f32 %v670, 0.5
    %v675 = vmul.f32 %v671, 0.5
    %v676 = vadd.f32 %v672, 0.5
    %v677 = vadd.f32 %v673, 0.5
    %v678 = vadd.f32 %v674, 0.5
    %v679 = vadd.f32 %v675, 0.5
    %v680 = vmul.f32 %v29, %v635
    %v681 = vadd.f32 %v680, %v595
    %v682 = vmul.f32 %v676, %v17
    %v683 = vmul.f32 %v677, %v18
    %v684 = vmul.f32 %v678, %v19
    %v685 = vmul.f32 %v679, %v20
    %v686 = vadd.f32 %v682, %v683
    %v687 = vadd.f32 %v686, %v684
    %v688 = vadd.f32 %v687, %v685
    %v689 = vsel %vm70, %v688, 0.0
    %v690 = vrot.slane %v689, 4
    %v691 = vadd.f32 %v689, %v690
    %v692 = vrot.slane %v691, 2
    %v693 = vadd.f32 %v691, %v692
    %v694 = vrot.slane %v693, 1
    %v695 = vadd.f32 %v693, %v694
    %v696 = vadd.f32 %v681, %v695
    %v697 = vmul.f32 %v676, %v21
    %v698 = vmul.f32 %v677, %v22
    %v699 = vmul.f32 %v678, %v23
    %v700 = vmul.f32 %v679, %v24
    %v701 = vadd.f32 %v697, %v698
    %v702 = vadd.f32 %v701, %v699
    %v703 = vadd.f32 %v702, %v700
    %v704 = vsel %vm70, %v703, 0.0
    %v705 = vrot.slane %v704, 4
    %v706 = vadd.f32 %v704, %v705
    %v707 = vrot.slane %v706, 2
    %v708 = vadd.f32 %v706, %v707
    %v709 = vrot.slane %v708, 1
    %v710 = vadd.f32 %v708, %v709
    %v711 = vadd.f32 %v65, %v710
    %v712 = vrcp.pop %v711
    %v713 = vmul.f32 %v711, %v712
    %v714 = vsub.f32 2.0, %v713
    %v715 = vmul.f32 %v712, %v714
    %v717 = vrot.slane %v715, 1
    %v719 = vmul.f32 %v696, %v717
    %v720 = vlaneseq
    %v721 = vshrl.u32 %v720, 7
    %v722 = vsub.s32 0, %v721
    %v723 = vrot.slane %v719, %v722
    %v724 = vmul.f32 %v723, %v25
    %v725 = vmul.f32 %v723, %v26
    %v726 = vmul.f32 %v723, %v27
    %v727 = vmul.f32 %v723, %v28
    %v728 = vsel %vm70, %v724, 0.0
    %729 = vadd.xlane.f32.xlu0 %v728
    %v730 = vpop.xlane.xlu0 %729
    %v731 = vsel %vm70, %v725, 0.0
    %732 = vadd.xlane.f32.xlu0 %v731
    %v733 = vpop.xlane.xlu0 %732
    %v734 = vsel %vm70, %v726, 0.0
    %735 = vadd.xlane.f32.xlu0 %v734
    %v736 = vpop.xlane.xlu0 %735
    %v737 = vsel %vm70, %v727, 0.0
    %738 = vadd.xlane.f32.xlu0 %v737
    %v739 = vpop.xlane.xlu0 %738
    %v740 = vsub.f32 %v730, %v13
    %v741 = vsub.f32 %v733, %v14
    %v742 = vsub.f32 %v736, %v15
    %v743 = vsub.f32 %v739, %v16
    %v744 = vmul.f32 %v9, %v740
    %v745 = vmul.f32 %v10, %v741
    %v746 = vmul.f32 %v11, %v742
    %v747 = vmul.f32 %v12, %v743
    %v748 = vmul.f32 %v744, 0.5
    %v749 = vmul.f32 %v745, 0.5
    %v750 = vmul.f32 %v746, 0.5
    %v751 = vmul.f32 %v747, 0.5
    %v752 = vtanh.pop %v748
    %v753 = vtanh.pop %v749
    %v754 = vtanh.pop %v750
    %v755 = vtanh.pop %v751
    %v756 = vmul.f32 %v752, 0.5
    %v757 = vmul.f32 %v753, 0.5
    %v758 = vmul.f32 %v754, 0.5
    %v759 = vmul.f32 %v755, 0.5
    %v760 = vadd.f32 %v756, 0.5
    %v761 = vadd.f32 %v757, 0.5
    %v762 = vadd.f32 %v758, 0.5
    %v763 = vadd.f32 %v759, 0.5
    %v764 = vmul.f32 %v29, %v719
    %v765 = vadd.f32 %v764, %v595
    %v766 = vmul.f32 %v760, %v17
    %v767 = vmul.f32 %v761, %v18
    %v768 = vmul.f32 %v762, %v19
    %v769 = vmul.f32 %v763, %v20
    %v770 = vadd.f32 %v766, %v767
    %v771 = vadd.f32 %v770, %v768
    %v772 = vadd.f32 %v771, %v769
    %v773 = vsel %vm70, %v772, 0.0
    %v774 = vrot.slane %v773, 4
    %v775 = vadd.f32 %v773, %v774
    %v776 = vrot.slane %v775, 2
    %v777 = vadd.f32 %v775, %v776
    %v778 = vrot.slane %v777, 1
    %v779 = vadd.f32 %v777, %v778
    %v780 = vadd.f32 %v765, %v779
    %v781 = vmul.f32 %v760, %v21
    %v782 = vmul.f32 %v761, %v22
    %v783 = vmul.f32 %v762, %v23
    %v784 = vmul.f32 %v763, %v24
    %v785 = vadd.f32 %v781, %v782
    %v786 = vadd.f32 %v785, %v783
    %v787 = vadd.f32 %v786, %v784
    %v788 = vsel %vm70, %v787, 0.0
    %v789 = vrot.slane %v788, 4
    %v790 = vadd.f32 %v788, %v789
    %v791 = vrot.slane %v790, 2
    %v792 = vadd.f32 %v790, %v791
    %v793 = vrot.slane %v792, 1
    %v794 = vadd.f32 %v792, %v793
    %v795 = vadd.f32 %v65, %v794
    %v796 = vrcp.pop %v795
    %v797 = vmul.f32 %v795, %v796
    %v798 = vsub.f32 2.0, %v797
    %v799 = vmul.f32 %v796, %v798
    %v801 = vrot.slane %v799, 1
    %v803 = vmul.f32 %v780, %v801
    %v804 = vlaneseq
    %v805 = vshrl.u32 %v804, 7
    %v806 = vsub.s32 0, %v805
    %v807 = vrot.slane %v803, %v806
    %v808 = vmul.f32 %v807, %v25
    %v809 = vmul.f32 %v807, %v26
    %v810 = vmul.f32 %v807, %v27
    %v811 = vmul.f32 %v807, %v28
    %v812 = vsel %vm70, %v808, 0.0
    %813 = vadd.xlane.f32.xlu0 %v812
    %v814 = vpop.xlane.xlu0 %813
    %v815 = vsel %vm70, %v809, 0.0
    %816 = vadd.xlane.f32.xlu0 %v815
    %v817 = vpop.xlane.xlu0 %816
    %v818 = vsel %vm70, %v810, 0.0
    %819 = vadd.xlane.f32.xlu0 %v818
    %v820 = vpop.xlane.xlu0 %819
    %v821 = vsel %vm70, %v811, 0.0
    %822 = vadd.xlane.f32.xlu0 %v821
    %v823 = vpop.xlane.xlu0 %822
    %v824 = vsub.f32 %v814, %v13
    %v825 = vsub.f32 %v817, %v14
    %v826 = vsub.f32 %v820, %v15
    %v827 = vsub.f32 %v823, %v16
    %v828 = vmul.f32 %v9, %v824
    %v829 = vmul.f32 %v10, %v825
    %v830 = vmul.f32 %v11, %v826
    %v831 = vmul.f32 %v12, %v827
    %v832 = vmul.f32 %v828, 0.5
    %v833 = vmul.f32 %v829, 0.5
    %v834 = vmul.f32 %v830, 0.5
    %v835 = vmul.f32 %v831, 0.5
    %v836 = vtanh.pop %v832
    %v837 = vtanh.pop %v833
    %v838 = vtanh.pop %v834
    %v839 = vtanh.pop %v835
    %v840 = vmul.f32 %v836, 0.5
    %v841 = vmul.f32 %v837, 0.5
    %v842 = vmul.f32 %v838, 0.5
    %v843 = vmul.f32 %v839, 0.5
    %v844 = vadd.f32 %v840, 0.5
    %v845 = vadd.f32 %v841, 0.5
    %v846 = vadd.f32 %v842, 0.5
    %v847 = vadd.f32 %v843, 0.5
    %v848 = vmul.f32 %v29, %v803
    %v849 = vadd.f32 %v848, %v595
    %v850 = vmul.f32 %v844, %v17
    %v851 = vmul.f32 %v845, %v18
    %v852 = vmul.f32 %v846, %v19
    %v853 = vmul.f32 %v847, %v20
    %v854 = vadd.f32 %v850, %v851
    %v855 = vadd.f32 %v854, %v852
    %v856 = vadd.f32 %v855, %v853
    %v857 = vsel %vm70, %v856, 0.0
    %v858 = vrot.slane %v857, 4
    %v859 = vadd.f32 %v857, %v858
    %v860 = vrot.slane %v859, 2
    %v861 = vadd.f32 %v859, %v860
    %v862 = vrot.slane %v861, 1
    %v863 = vadd.f32 %v861, %v862
    %v864 = vadd.f32 %v849, %v863
    %v865 = vmul.f32 %v844, %v21
    %v866 = vmul.f32 %v845, %v22
    %v867 = vmul.f32 %v846, %v23
    %v868 = vmul.f32 %v847, %v24
    %v869 = vadd.f32 %v865, %v866
    %v870 = vadd.f32 %v869, %v867
    %v871 = vadd.f32 %v870, %v868
    %v872 = vsel %vm70, %v871, 0.0
    %v873 = vrot.slane %v872, 4
    %v874 = vadd.f32 %v872, %v873
    %v875 = vrot.slane %v874, 2
    %v876 = vadd.f32 %v874, %v875
    %v877 = vrot.slane %v876, 1
    %v878 = vadd.f32 %v876, %v877
    %v879 = vadd.f32 %v65, %v878
    %v880 = vrcp.pop %v879
    %v881 = vmul.f32 %v879, %v880
    %v882 = vsub.f32 2.0, %v881
    %v883 = vmul.f32 %v880, %v882
    %v885 = vrot.slane %v883, 1
    %v887 = vmul.f32 %v864, %v885
    %v888 = vlaneseq
    %v889 = vshrl.u32 %v888, 7
    %v890 = vsub.s32 0, %v889
    %v891 = vrot.slane %v887, %v890
    %v892 = vmul.f32 %v891, %v25
    %v893 = vmul.f32 %v891, %v26
    %v894 = vmul.f32 %v891, %v27
    %v895 = vmul.f32 %v891, %v28
    %v896 = vsel %vm70, %v892, 0.0
    %897 = vadd.xlane.f32.xlu0 %v896
    %v898 = vpop.xlane.xlu0 %897
    %v899 = vsel %vm70, %v893, 0.0
    %900 = vadd.xlane.f32.xlu0 %v899
    %v901 = vpop.xlane.xlu0 %900
    %v902 = vsel %vm70, %v894, 0.0
    %903 = vadd.xlane.f32.xlu0 %v902
    %v904 = vpop.xlane.xlu0 %903
    %v905 = vsel %vm70, %v895, 0.0
    %906 = vadd.xlane.f32.xlu0 %v905
    %v907 = vpop.xlane.xlu0 %906
    %v908 = vsub.f32 %v898, %v13
    %v909 = vsub.f32 %v901, %v14
    %v910 = vsub.f32 %v904, %v15
    %v911 = vsub.f32 %v907, %v16
    %v912 = vmul.f32 %v9, %v908
    %v913 = vmul.f32 %v10, %v909
    %v914 = vmul.f32 %v11, %v910
    %v915 = vmul.f32 %v12, %v911
    %v916 = vmul.f32 %v912, 0.5
    %v917 = vmul.f32 %v913, 0.5
    %v918 = vmul.f32 %v914, 0.5
    %v919 = vmul.f32 %v915, 0.5
    %v920 = vtanh.pop %v916
    %v921 = vtanh.pop %v917
    %v922 = vtanh.pop %v918
    %v923 = vtanh.pop %v919
    %v924 = vmul.f32 %v920, 0.5
    %v925 = vmul.f32 %v921, 0.5
    %v926 = vmul.f32 %v922, 0.5
    %v927 = vmul.f32 %v923, 0.5
    %v928 = vadd.f32 %v924, 0.5
    %v929 = vadd.f32 %v925, 0.5
    %v930 = vadd.f32 %v926, 0.5
    %v931 = vadd.f32 %v927, 0.5
    %v932 = vmul.f32 %v29, %v887
    %v933 = vadd.f32 %v932, %v595
    %v934 = vmul.f32 %v928, %v17
    %v935 = vmul.f32 %v929, %v18
    %v936 = vmul.f32 %v930, %v19
    %v937 = vmul.f32 %v931, %v20
    %v938 = vadd.f32 %v934, %v935
    %v939 = vadd.f32 %v938, %v936
    %v940 = vadd.f32 %v939, %v937
    %v941 = vsel %vm70, %v940, 0.0
    %v942 = vrot.slane %v941, 4
    %v943 = vadd.f32 %v941, %v942
    %v944 = vrot.slane %v943, 2
    %v945 = vadd.f32 %v943, %v944
    %v946 = vrot.slane %v945, 1
    %v947 = vadd.f32 %v945, %v946
    %v948 = vadd.f32 %v933, %v947
    %v949 = vmul.f32 %v928, %v21
    %v950 = vmul.f32 %v929, %v22
    %v951 = vmul.f32 %v930, %v23
    %v952 = vmul.f32 %v931, %v24
    %v953 = vadd.f32 %v949, %v950
    %v954 = vadd.f32 %v953, %v951
    %v955 = vadd.f32 %v954, %v952
    %v956 = vsel %vm70, %v955, 0.0
    %v957 = vrot.slane %v956, 4
    %v958 = vadd.f32 %v956, %v957
    %v959 = vrot.slane %v958, 2
    %v960 = vadd.f32 %v958, %v959
    %v961 = vrot.slane %v960, 1
    %v962 = vadd.f32 %v960, %v961
    %v963 = vadd.f32 %v65, %v962
    %v964 = vrcp.pop %v963
    %v965 = vmul.f32 %v963, %v964
    %v966 = vsub.f32 2.0, %v965
    %v967 = vmul.f32 %v964, %v966
    %v969 = vrot.slane %v967, 1
    %v971 = vmul.f32 %v948, %v969
    %v972 = vlaneseq
    %v973 = vshrl.u32 %v972, 7
    %v974 = vsub.s32 0, %v973
    %v975 = vrot.slane %v971, %v974
    %v976 = vmul.f32 %v975, %v25
    %v977 = vmul.f32 %v975, %v26
    %v978 = vmul.f32 %v975, %v27
    %v979 = vmul.f32 %v975, %v28
    %v980 = vsel %vm70, %v976, 0.0
    %981 = vadd.xlane.f32.xlu0 %v980
    %v982 = vpop.xlane.xlu0 %981
    %v983 = vsel %vm70, %v977, 0.0
    %984 = vadd.xlane.f32.xlu0 %v983
    %v985 = vpop.xlane.xlu0 %984
    %v986 = vsel %vm70, %v978, 0.0
    %987 = vadd.xlane.f32.xlu0 %v986
    %v988 = vpop.xlane.xlu0 %987
    %v989 = vsel %vm70, %v979, 0.0
    %990 = vadd.xlane.f32.xlu0 %v989
    %v991 = vpop.xlane.xlu0 %990
    %v992 = vsub.f32 %v982, %v13
    %v993 = vsub.f32 %v985, %v14
    %v994 = vsub.f32 %v988, %v15
    %v995 = vsub.f32 %v991, %v16
    %v996 = vmul.f32 %v9, %v992
    %v997 = vmul.f32 %v10, %v993
    %v998 = vmul.f32 %v11, %v994
    %v999 = vmul.f32 %v12, %v995
    %v1000 = vmul.f32 %v996, 0.5
    %v1001 = vmul.f32 %v997, 0.5
    %v1002 = vmul.f32 %v998, 0.5
    %v1003 = vmul.f32 %v999, 0.5
    %v1004 = vtanh.pop %v1000
    %v1005 = vtanh.pop %v1001
    %v1006 = vtanh.pop %v1002
    %v1007 = vtanh.pop %v1003
    %v1008 = vmul.f32 %v1004, 0.5
    %v1009 = vmul.f32 %v1005, 0.5
    %v1010 = vmul.f32 %v1006, 0.5
    %v1011 = vmul.f32 %v1007, 0.5
    %v1012 = vadd.f32 %v1008, 0.5
    %v1013 = vadd.f32 %v1009, 0.5
    %v1014 = vadd.f32 %v1010, 0.5
    %v1015 = vadd.f32 %v1011, 0.5
    %v1016 = vmul.f32 %v29, %v971
    %v1017 = vadd.f32 %v1016, %v595
    %v1018 = vmul.f32 %v1012, %v17
    %v1019 = vmul.f32 %v1013, %v18
    %v1020 = vmul.f32 %v1014, %v19
    %v1021 = vmul.f32 %v1015, %v20
    %v1022 = vadd.f32 %v1018, %v1019
    %v1023 = vadd.f32 %v1022, %v1020
    %v1024 = vadd.f32 %v1023, %v1021
    %v1025 = vsel %vm70, %v1024, 0.0
    %v1026 = vrot.slane %v1025, 4
    %v1027 = vadd.f32 %v1025, %v1026
    %v1028 = vrot.slane %v1027, 2
    %v1029 = vadd.f32 %v1027, %v1028
    %v1030 = vrot.slane %v1029, 1
    %v1031 = vadd.f32 %v1029, %v1030
    %v1032 = vadd.f32 %v1017, %v1031
    %v1033 = vmul.f32 %v1012, %v21
    %v1034 = vmul.f32 %v1013, %v22
    %v1035 = vmul.f32 %v1014, %v23
    %v1036 = vmul.f32 %v1015, %v24
    %v1037 = vadd.f32 %v1033, %v1034
    %v1038 = vadd.f32 %v1037, %v1035
    %v1039 = vadd.f32 %v1038, %v1036
    %v1040 = vsel %vm70, %v1039, 0.0
    %v1041 = vrot.slane %v1040, 4
    %v1042 = vadd.f32 %v1040, %v1041
    %v1043 = vrot.slane %v1042, 2
    %v1044 = vadd.f32 %v1042, %v1043
    %v1045 = vrot.slane %v1044, 1
    %v1046 = vadd.f32 %v1044, %v1045
    %v1047 = vadd.f32 %v65, %v1046
    %v1048 = vrcp.pop %v1047
    %v1049 = vmul.f32 %v1047, %v1048
    %v1050 = vsub.f32 2.0, %v1049
    %v1051 = vmul.f32 %v1048, %v1050
    %v1053 = vrot.slane %v1051, 1
    %v1055 = vmul.f32 %v1032, %v1053
    %v1056 = vlaneseq
    %v1057 = vshrl.u32 %v1056, 7
    %v1058 = vsub.s32 0, %v1057
    %v1059 = vrot.slane %v1055, %v1058
    %v1060 = vmul.f32 %v1059, %v25
    %v1061 = vmul.f32 %v1059, %v26
    %v1062 = vmul.f32 %v1059, %v27
    %v1063 = vmul.f32 %v1059, %v28
    %v1064 = vsel %vm70, %v1060, 0.0
    %1065 = vadd.xlane.f32.xlu0 %v1064
    %v1066 = vpop.xlane.xlu0 %1065
    %v1067 = vsel %vm70, %v1061, 0.0
    %1068 = vadd.xlane.f32.xlu0 %v1067
    %v1069 = vpop.xlane.xlu0 %1068
    %v1070 = vsel %vm70, %v1062, 0.0
    %1071 = vadd.xlane.f32.xlu0 %v1070
    %v1072 = vpop.xlane.xlu0 %1071
    %v1073 = vsel %vm70, %v1063, 0.0
    %1074 = vadd.xlane.f32.xlu0 %v1073
    %v1075 = vpop.xlane.xlu0 %1074
    %v1076 = vsub.f32 %v1066, %v13
    %v1077 = vsub.f32 %v1069, %v14
    %v1078 = vsub.f32 %v1072, %v15
    %v1079 = vsub.f32 %v1075, %v16
    %v1080 = vmul.f32 %v9, %v1076
    %v1081 = vmul.f32 %v10, %v1077
    %v1082 = vmul.f32 %v11, %v1078
    %v1083 = vmul.f32 %v12, %v1079
    %v1084 = vmul.f32 %v1080, 0.5
    %v1085 = vmul.f32 %v1081, 0.5
    %v1086 = vmul.f32 %v1082, 0.5
    %v1087 = vmul.f32 %v1083, 0.5
    %v1088 = vtanh.pop %v1084
    %v1089 = vtanh.pop %v1085
    %v1090 = vtanh.pop %v1086
    %v1091 = vtanh.pop %v1087
    %v1092 = vmul.f32 %v1088, 0.5
    %v1093 = vmul.f32 %v1089, 0.5
    %v1094 = vmul.f32 %v1090, 0.5
    %v1095 = vmul.f32 %v1091, 0.5
    %v1096 = vadd.f32 %v1092, 0.5
    %v1097 = vadd.f32 %v1093, 0.5
    %v1098 = vadd.f32 %v1094, 0.5
    %v1099 = vadd.f32 %v1095, 0.5
    %v1100 = vmul.f32 %v29, %v1055
    %v1101 = vrot.slane %v55, 2
    %v1103 = vadd.f32 %v1100, %v1101
    %v1104 = vmul.f32 %v1096, %v17
    %v1105 = vmul.f32 %v1097, %v18
    %v1106 = vmul.f32 %v1098, %v19
    %v1107 = vmul.f32 %v1099, %v20
    %v1108 = vadd.f32 %v1104, %v1105
    %v1109 = vadd.f32 %v1108, %v1106
    %v1110 = vadd.f32 %v1109, %v1107
    %v1111 = vsel %vm70, %v1110, 0.0
    %v1112 = vrot.slane %v1111, 4
    %v1113 = vadd.f32 %v1111, %v1112
    %v1114 = vrot.slane %v1113, 2
    %v1115 = vadd.f32 %v1113, %v1114
    %v1116 = vrot.slane %v1115, 1
    %v1117 = vadd.f32 %v1115, %v1116
    %v1118 = vadd.f32 %v1103, %v1117
    %v1119 = vmul.f32 %v1096, %v21
    %v1120 = vmul.f32 %v1097, %v22
    %v1121 = vmul.f32 %v1098, %v23
    %v1122 = vmul.f32 %v1099, %v24
    %v1123 = vadd.f32 %v1119, %v1120
    %v1124 = vadd.f32 %v1123, %v1121
    %v1125 = vadd.f32 %v1124, %v1122
    %v1126 = vsel %vm70, %v1125, 0.0
    %v1127 = vrot.slane %v1126, 4
    %v1128 = vadd.f32 %v1126, %v1127
    %v1129 = vrot.slane %v1128, 2
    %v1130 = vadd.f32 %v1128, %v1129
    %v1131 = vrot.slane %v1130, 1
    %v1132 = vadd.f32 %v1130, %v1131
    %v1133 = vadd.f32 %v65, %v1132
    %v1134 = vrcp.pop %v1133
    %v1135 = vmul.f32 %v1133, %v1134
    %v1136 = vsub.f32 2.0, %v1135
    %v1137 = vmul.f32 %v1134, %v1136
    %v1139 = vrot.slane %v1137, 2
    %v1141 = vmul.f32 %v1118, %v1139
    %v1142 = vlaneseq
    %v1143 = vshrl.u32 %v1142, 7
    %v1144 = vsub.s32 0, %v1143
    %v1145 = vrot.slane %v1141, %v1144
    %v1146 = vmul.f32 %v1145, %v25
    %v1147 = vmul.f32 %v1145, %v26
    %v1148 = vmul.f32 %v1145, %v27
    %v1149 = vmul.f32 %v1145, %v28
    %v1150 = vsel %vm70, %v1146, 0.0
    %1151 = vadd.xlane.f32.xlu0 %v1150
    %v1152 = vpop.xlane.xlu0 %1151
    %v1153 = vsel %vm70, %v1147, 0.0
    %1154 = vadd.xlane.f32.xlu0 %v1153
    %v1155 = vpop.xlane.xlu0 %1154
    %v1156 = vsel %vm70, %v1148, 0.0
    %1157 = vadd.xlane.f32.xlu0 %v1156
    %v1158 = vpop.xlane.xlu0 %1157
    %v1159 = vsel %vm70, %v1149, 0.0
    %1160 = vadd.xlane.f32.xlu0 %v1159
    %v1161 = vpop.xlane.xlu0 %1160
    %v1162 = vsub.f32 %v1152, %v13
    %v1163 = vsub.f32 %v1155, %v14
    %v1164 = vsub.f32 %v1158, %v15
    %v1165 = vsub.f32 %v1161, %v16
    %v1166 = vmul.f32 %v9, %v1162
    %v1167 = vmul.f32 %v10, %v1163
    %v1168 = vmul.f32 %v11, %v1164
    %v1169 = vmul.f32 %v12, %v1165
    %v1170 = vmul.f32 %v1166, 0.5
    %v1171 = vmul.f32 %v1167, 0.5
    %v1172 = vmul.f32 %v1168, 0.5
    %v1173 = vmul.f32 %v1169, 0.5
    %v1174 = vtanh.pop %v1170
    %v1175 = vtanh.pop %v1171
    %v1176 = vtanh.pop %v1172
    %v1177 = vtanh.pop %v1173
    %v1178 = vmul.f32 %v1174, 0.5
    %v1179 = vmul.f32 %v1175, 0.5
    %v1180 = vmul.f32 %v1176, 0.5
    %v1181 = vmul.f32 %v1177, 0.5
    %v1182 = vadd.f32 %v1178, 0.5
    %v1183 = vadd.f32 %v1179, 0.5
    %v1184 = vadd.f32 %v1180, 0.5
    %v1185 = vadd.f32 %v1181, 0.5
    %v1186 = vmul.f32 %v29, %v1141
    %v1187 = vadd.f32 %v1186, %v1101
    %v1188 = vmul.f32 %v1182, %v17
    %v1189 = vmul.f32 %v1183, %v18
    %v1190 = vmul.f32 %v1184, %v19
    %v1191 = vmul.f32 %v1185, %v20
    %v1192 = vadd.f32 %v1188, %v1189
    %v1193 = vadd.f32 %v1192, %v1190
    %v1194 = vadd.f32 %v1193, %v1191
    %v1195 = vsel %vm70, %v1194, 0.0
    %v1196 = vrot.slane %v1195, 4
    %v1197 = vadd.f32 %v1195, %v1196
    %v1198 = vrot.slane %v1197, 2
    %v1199 = vadd.f32 %v1197, %v1198
    %v1200 = vrot.slane %v1199, 1
    %v1201 = vadd.f32 %v1199, %v1200
    %v1202 = vadd.f32 %v1187, %v1201
    %v1203 = vmul.f32 %v1182, %v21
    %v1204 = vmul.f32 %v1183, %v22
    %v1205 = vmul.f32 %v1184, %v23
    %v1206 = vmul.f32 %v1185, %v24
    %v1207 = vadd.f32 %v1203, %v1204
    %v1208 = vadd.f32 %v1207, %v1205
    %v1209 = vadd.f32 %v1208, %v1206
    %v1210 = vsel %vm70, %v1209, 0.0
    %v1211 = vrot.slane %v1210, 4
    %v1212 = vadd.f32 %v1210, %v1211
    %v1213 = vrot.slane %v1212, 2
    %v1214 = vadd.f32 %v1212, %v1213
    %v1215 = vrot.slane %v1214, 1
    %v1216 = vadd.f32 %v1214, %v1215
    %v1217 = vadd.f32 %v65, %v1216
    %v1218 = vrcp.pop %v1217
    %v1219 = vmul.f32 %v1217, %v1218
    %v1220 = vsub.f32 2.0, %v1219
    %v1221 = vmul.f32 %v1218, %v1220
    %v1223 = vrot.slane %v1221, 2
    %v1225 = vmul.f32 %v1202, %v1223
    %v1226 = vlaneseq
    %v1227 = vshrl.u32 %v1226, 7
    %v1228 = vsub.s32 0, %v1227
    %v1229 = vrot.slane %v1225, %v1228
    %v1230 = vmul.f32 %v1229, %v25
    %v1231 = vmul.f32 %v1229, %v26
    %v1232 = vmul.f32 %v1229, %v27
    %v1233 = vmul.f32 %v1229, %v28
    %v1234 = vsel %vm70, %v1230, 0.0
    %1235 = vadd.xlane.f32.xlu0 %v1234
    %v1236 = vpop.xlane.xlu0 %1235
    %v1237 = vsel %vm70, %v1231, 0.0
    %1238 = vadd.xlane.f32.xlu0 %v1237
    %v1239 = vpop.xlane.xlu0 %1238
    %v1240 = vsel %vm70, %v1232, 0.0
    %1241 = vadd.xlane.f32.xlu0 %v1240
    %v1242 = vpop.xlane.xlu0 %1241
    %v1243 = vsel %vm70, %v1233, 0.0
    %1244 = vadd.xlane.f32.xlu0 %v1243
    %v1245 = vpop.xlane.xlu0 %1244
    %v1246 = vsub.f32 %v1236, %v13
    %v1247 = vsub.f32 %v1239, %v14
    %v1248 = vsub.f32 %v1242, %v15
    %v1249 = vsub.f32 %v1245, %v16
    %v1250 = vmul.f32 %v9, %v1246
    %v1251 = vmul.f32 %v10, %v1247
    %v1252 = vmul.f32 %v11, %v1248
    %v1253 = vmul.f32 %v12, %v1249
    %v1254 = vmul.f32 %v1250, 0.5
    %v1255 = vmul.f32 %v1251, 0.5
    %v1256 = vmul.f32 %v1252, 0.5
    %v1257 = vmul.f32 %v1253, 0.5
    %v1258 = vtanh.pop %v1254
    %v1259 = vtanh.pop %v1255
    %v1260 = vtanh.pop %v1256
    %v1261 = vtanh.pop %v1257
    %v1262 = vmul.f32 %v1258, 0.5
    %v1263 = vmul.f32 %v1259, 0.5
    %v1264 = vmul.f32 %v1260, 0.5
    %v1265 = vmul.f32 %v1261, 0.5
    %v1266 = vadd.f32 %v1262, 0.5
    %v1267 = vadd.f32 %v1263, 0.5
    %v1268 = vadd.f32 %v1264, 0.5
    %v1269 = vadd.f32 %v1265, 0.5
    %v1270 = vmul.f32 %v29, %v1225
    %v1271 = vadd.f32 %v1270, %v1101
    %v1272 = vmul.f32 %v1266, %v17
    %v1273 = vmul.f32 %v1267, %v18
    %v1274 = vmul.f32 %v1268, %v19
    %v1275 = vmul.f32 %v1269, %v20
    %v1276 = vadd.f32 %v1272, %v1273
    %v1277 = vadd.f32 %v1276, %v1274
    %v1278 = vadd.f32 %v1277, %v1275
    %v1279 = vsel %vm70, %v1278, 0.0
    %v1280 = vrot.slane %v1279, 4
    %v1281 = vadd.f32 %v1279, %v1280
    %v1282 = vrot.slane %v1281, 2
    %v1283 = vadd.f32 %v1281, %v1282
    %v1284 = vrot.slane %v1283, 1
    %v1285 = vadd.f32 %v1283, %v1284
    %v1286 = vadd.f32 %v1271, %v1285
    %v1287 = vmul.f32 %v1266, %v21
    %v1288 = vmul.f32 %v1267, %v22
    %v1289 = vmul.f32 %v1268, %v23
    %v1290 = vmul.f32 %v1269, %v24
    %v1291 = vadd.f32 %v1287, %v1288
    %v1292 = vadd.f32 %v1291, %v1289
    %v1293 = vadd.f32 %v1292, %v1290
    %v1294 = vsel %vm70, %v1293, 0.0
    %v1295 = vrot.slane %v1294, 4
    %v1296 = vadd.f32 %v1294, %v1295
    %v1297 = vrot.slane %v1296, 2
    %v1298 = vadd.f32 %v1296, %v1297
    %v1299 = vrot.slane %v1298, 1
    %v1300 = vadd.f32 %v1298, %v1299
    %v1301 = vadd.f32 %v65, %v1300
    %v1302 = vrcp.pop %v1301
    %v1303 = vmul.f32 %v1301, %v1302
    %v1304 = vsub.f32 2.0, %v1303
    %v1305 = vmul.f32 %v1302, %v1304
    %v1307 = vrot.slane %v1305, 2
    %v1309 = vmul.f32 %v1286, %v1307
    %v1310 = vlaneseq
    %v1311 = vshrl.u32 %v1310, 7
    %v1312 = vsub.s32 0, %v1311
    %v1313 = vrot.slane %v1309, %v1312
    %v1314 = vmul.f32 %v1313, %v25
    %v1315 = vmul.f32 %v1313, %v26
    %v1316 = vmul.f32 %v1313, %v27
    %v1317 = vmul.f32 %v1313, %v28
    %v1318 = vsel %vm70, %v1314, 0.0
    %1319 = vadd.xlane.f32.xlu0 %v1318
    %v1320 = vpop.xlane.xlu0 %1319
    %v1321 = vsel %vm70, %v1315, 0.0
    %1322 = vadd.xlane.f32.xlu0 %v1321
    %v1323 = vpop.xlane.xlu0 %1322
    %v1324 = vsel %vm70, %v1316, 0.0
    %1325 = vadd.xlane.f32.xlu0 %v1324
    %v1326 = vpop.xlane.xlu0 %1325
    %v1327 = vsel %vm70, %v1317, 0.0
    %1328 = vadd.xlane.f32.xlu0 %v1327
    %v1329 = vpop.xlane.xlu0 %1328
    %v1330 = vsub.f32 %v1320, %v13
    %v1331 = vsub.f32 %v1323, %v14
    %v1332 = vsub.f32 %v1326, %v15
    %v1333 = vsub.f32 %v1329, %v16
    %v1334 = vmul.f32 %v9, %v1330
    %v1335 = vmul.f32 %v10, %v1331
    %v1336 = vmul.f32 %v11, %v1332
    %v1337 = vmul.f32 %v12, %v1333
    %v1338 = vmul.f32 %v1334, 0.5
    %v1339 = vmul.f32 %v1335, 0.5
    %v1340 = vmul.f32 %v1336, 0.5
    %v1341 = vmul.f32 %v1337, 0.5
    %v1342 = vtanh.pop %v1338
    %v1343 = vtanh.pop %v1339
    %v1344 = vtanh.pop %v1340
    %v1345 = vtanh.pop %v1341
    %v1346 = vmul.f32 %v1342, 0.5
    %v1347 = vmul.f32 %v1343, 0.5
    %v1348 = vmul.f32 %v1344, 0.5
    %v1349 = vmul.f32 %v1345, 0.5
    %v1350 = vadd.f32 %v1346, 0.5
    %v1351 = vadd.f32 %v1347, 0.5
    %v1352 = vadd.f32 %v1348, 0.5
    %v1353 = vadd.f32 %v1349, 0.5
    %v1354 = vmul.f32 %v29, %v1309
    %v1355 = vadd.f32 %v1354, %v1101
    %v1356 = vmul.f32 %v1350, %v17
    %v1357 = vmul.f32 %v1351, %v18
    %v1358 = vmul.f32 %v1352, %v19
    %v1359 = vmul.f32 %v1353, %v20
    %v1360 = vadd.f32 %v1356, %v1357
    %v1361 = vadd.f32 %v1360, %v1358
    %v1362 = vadd.f32 %v1361, %v1359
    %v1363 = vsel %vm70, %v1362, 0.0
    %v1364 = vrot.slane %v1363, 4
    %v1365 = vadd.f32 %v1363, %v1364
    %v1366 = vrot.slane %v1365, 2
    %v1367 = vadd.f32 %v1365, %v1366
    %v1368 = vrot.slane %v1367, 1
    %v1369 = vadd.f32 %v1367, %v1368
    %v1370 = vadd.f32 %v1355, %v1369
    %v1371 = vmul.f32 %v1350, %v21
    %v1372 = vmul.f32 %v1351, %v22
    %v1373 = vmul.f32 %v1352, %v23
    %v1374 = vmul.f32 %v1353, %v24
    %v1375 = vadd.f32 %v1371, %v1372
    %v1376 = vadd.f32 %v1375, %v1373
    %v1377 = vadd.f32 %v1376, %v1374
    %v1378 = vsel %vm70, %v1377, 0.0
    %v1379 = vrot.slane %v1378, 4
    %v1380 = vadd.f32 %v1378, %v1379
    %v1381 = vrot.slane %v1380, 2
    %v1382 = vadd.f32 %v1380, %v1381
    %v1383 = vrot.slane %v1382, 1
    %v1384 = vadd.f32 %v1382, %v1383
    %v1385 = vadd.f32 %v65, %v1384
    %v1386 = vrcp.pop %v1385
    %v1387 = vmul.f32 %v1385, %v1386
    %v1388 = vsub.f32 2.0, %v1387
    %v1389 = vmul.f32 %v1386, %v1388
    %v1391 = vrot.slane %v1389, 2
    %v1393 = vmul.f32 %v1370, %v1391
    %v1394 = vlaneseq
    %v1395 = vshrl.u32 %v1394, 7
    %v1396 = vsub.s32 0, %v1395
    %v1397 = vrot.slane %v1393, %v1396
    %v1398 = vmul.f32 %v1397, %v25
    %v1399 = vmul.f32 %v1397, %v26
    %v1400 = vmul.f32 %v1397, %v27
    %v1401 = vmul.f32 %v1397, %v28
    %v1402 = vsel %vm70, %v1398, 0.0
    %1403 = vadd.xlane.f32.xlu0 %v1402
    %v1404 = vpop.xlane.xlu0 %1403
    %v1405 = vsel %vm70, %v1399, 0.0
    %1406 = vadd.xlane.f32.xlu0 %v1405
    %v1407 = vpop.xlane.xlu0 %1406
    %v1408 = vsel %vm70, %v1400, 0.0
    %1409 = vadd.xlane.f32.xlu0 %v1408
    %v1410 = vpop.xlane.xlu0 %1409
    %v1411 = vsel %vm70, %v1401, 0.0
    %1412 = vadd.xlane.f32.xlu0 %v1411
    %v1413 = vpop.xlane.xlu0 %1412
    %v1414 = vsub.f32 %v1404, %v13
    %v1415 = vsub.f32 %v1407, %v14
    %v1416 = vsub.f32 %v1410, %v15
    %v1417 = vsub.f32 %v1413, %v16
    %v1418 = vmul.f32 %v9, %v1414
    %v1419 = vmul.f32 %v10, %v1415
    %v1420 = vmul.f32 %v11, %v1416
    %v1421 = vmul.f32 %v12, %v1417
    %v1422 = vmul.f32 %v1418, 0.5
    %v1423 = vmul.f32 %v1419, 0.5
    %v1424 = vmul.f32 %v1420, 0.5
    %v1425 = vmul.f32 %v1421, 0.5
    %v1426 = vtanh.pop %v1422
    %v1427 = vtanh.pop %v1423
    %v1428 = vtanh.pop %v1424
    %v1429 = vtanh.pop %v1425
    %v1430 = vmul.f32 %v1426, 0.5
    %v1431 = vmul.f32 %v1427, 0.5
    %v1432 = vmul.f32 %v1428, 0.5
    %v1433 = vmul.f32 %v1429, 0.5
    %v1434 = vadd.f32 %v1430, 0.5
    %v1435 = vadd.f32 %v1431, 0.5
    %v1436 = vadd.f32 %v1432, 0.5
    %v1437 = vadd.f32 %v1433, 0.5
    %v1438 = vmul.f32 %v29, %v1393
    %v1439 = vadd.f32 %v1438, %v1101
    %v1440 = vmul.f32 %v1434, %v17
    %v1441 = vmul.f32 %v1435, %v18
    %v1442 = vmul.f32 %v1436, %v19
    %v1443 = vmul.f32 %v1437, %v20
    %v1444 = vadd.f32 %v1440, %v1441
    %v1445 = vadd.f32 %v1444, %v1442
    %v1446 = vadd.f32 %v1445, %v1443
    %v1447 = vsel %vm70, %v1446, 0.0
    %v1448 = vrot.slane %v1447, 4
    %v1449 = vadd.f32 %v1447, %v1448
    %v1450 = vrot.slane %v1449, 2
    %v1451 = vadd.f32 %v1449, %v1450
    %v1452 = vrot.slane %v1451, 1
    %v1453 = vadd.f32 %v1451, %v1452
    %v1454 = vadd.f32 %v1439, %v1453
    %v1455 = vmul.f32 %v1434, %v21
    %v1456 = vmul.f32 %v1435, %v22
    %v1457 = vmul.f32 %v1436, %v23
    %v1458 = vmul.f32 %v1437, %v24
    %v1459 = vadd.f32 %v1455, %v1456
    %v1460 = vadd.f32 %v1459, %v1457
    %v1461 = vadd.f32 %v1460, %v1458
    %v1462 = vsel %vm70, %v1461, 0.0
    %v1463 = vrot.slane %v1462, 4
    %v1464 = vadd.f32 %v1462, %v1463
    %v1465 = vrot.slane %v1464, 2
    %v1466 = vadd.f32 %v1464, %v1465
    %v1467 = vrot.slane %v1466, 1
    %v1468 = vadd.f32 %v1466, %v1467
    %v1469 = vadd.f32 %v65, %v1468
    %v1470 = vrcp.pop %v1469
    %v1471 = vmul.f32 %v1469, %v1470
    %v1472 = vsub.f32 2.0, %v1471
    %v1473 = vmul.f32 %v1470, %v1472
    %v1475 = vrot.slane %v1473, 2
    %v1477 = vmul.f32 %v1454, %v1475
    %v1478 = vlaneseq
    %v1479 = vshrl.u32 %v1478, 7
    %v1480 = vsub.s32 0, %v1479
    %v1481 = vrot.slane %v1477, %v1480
    %v1482 = vmul.f32 %v1481, %v25
    %v1483 = vmul.f32 %v1481, %v26
    %v1484 = vmul.f32 %v1481, %v27
    %v1485 = vmul.f32 %v1481, %v28
    %v1486 = vsel %vm70, %v1482, 0.0
    %1487 = vadd.xlane.f32.xlu0 %v1486
    %v1488 = vpop.xlane.xlu0 %1487
    %v1489 = vsel %vm70, %v1483, 0.0
    %1490 = vadd.xlane.f32.xlu0 %v1489
    %v1491 = vpop.xlane.xlu0 %1490
    %v1492 = vsel %vm70, %v1484, 0.0
    %1493 = vadd.xlane.f32.xlu0 %v1492
    %v1494 = vpop.xlane.xlu0 %1493
    %v1495 = vsel %vm70, %v1485, 0.0
    %1496 = vadd.xlane.f32.xlu0 %v1495
    %v1497 = vpop.xlane.xlu0 %1496
    %v1498 = vsub.f32 %v1488, %v13
    %v1499 = vsub.f32 %v1491, %v14
    %v1500 = vsub.f32 %v1494, %v15
    %v1501 = vsub.f32 %v1497, %v16
    %v1502 = vmul.f32 %v9, %v1498
    %v1503 = vmul.f32 %v10, %v1499
    %v1504 = vmul.f32 %v11, %v1500
    %v1505 = vmul.f32 %v12, %v1501
    %v1506 = vmul.f32 %v1502, 0.5
    %v1507 = vmul.f32 %v1503, 0.5
    %v1508 = vmul.f32 %v1504, 0.5
    %v1509 = vmul.f32 %v1505, 0.5
    %v1510 = vtanh.pop %v1506
    %v1511 = vtanh.pop %v1507
    %v1512 = vtanh.pop %v1508
    %v1513 = vtanh.pop %v1509
    %v1514 = vmul.f32 %v1510, 0.5
    %v1515 = vmul.f32 %v1511, 0.5
    %v1516 = vmul.f32 %v1512, 0.5
    %v1517 = vmul.f32 %v1513, 0.5
    %v1518 = vadd.f32 %v1514, 0.5
    %v1519 = vadd.f32 %v1515, 0.5
    %v1520 = vadd.f32 %v1516, 0.5
    %v1521 = vadd.f32 %v1517, 0.5
    %v1522 = vmul.f32 %v29, %v1477
    %v1523 = vadd.f32 %v1522, %v1101
    %v1524 = vmul.f32 %v1518, %v17
    %v1525 = vmul.f32 %v1519, %v18
    %v1526 = vmul.f32 %v1520, %v19
    %v1527 = vmul.f32 %v1521, %v20
    %v1528 = vadd.f32 %v1524, %v1525
    %v1529 = vadd.f32 %v1528, %v1526
    %v1530 = vadd.f32 %v1529, %v1527
    %v1531 = vsel %vm70, %v1530, 0.0
    %v1532 = vrot.slane %v1531, 4
    %v1533 = vadd.f32 %v1531, %v1532
    %v1534 = vrot.slane %v1533, 2
    %v1535 = vadd.f32 %v1533, %v1534
    %v1536 = vrot.slane %v1535, 1
    %v1537 = vadd.f32 %v1535, %v1536
    %v1538 = vadd.f32 %v1523, %v1537
    %v1539 = vmul.f32 %v1518, %v21
    %v1540 = vmul.f32 %v1519, %v22
    %v1541 = vmul.f32 %v1520, %v23
    %v1542 = vmul.f32 %v1521, %v24
    %v1543 = vadd.f32 %v1539, %v1540
    %v1544 = vadd.f32 %v1543, %v1541
    %v1545 = vadd.f32 %v1544, %v1542
    %v1546 = vsel %vm70, %v1545, 0.0
    %v1547 = vrot.slane %v1546, 4
    %v1548 = vadd.f32 %v1546, %v1547
    %v1549 = vrot.slane %v1548, 2
    %v1550 = vadd.f32 %v1548, %v1549
    %v1551 = vrot.slane %v1550, 1
    %v1552 = vadd.f32 %v1550, %v1551
    %v1553 = vadd.f32 %v65, %v1552
    %v1554 = vrcp.pop %v1553
    %v1555 = vmul.f32 %v1553, %v1554
    %v1556 = vsub.f32 2.0, %v1555
    %v1557 = vmul.f32 %v1554, %v1556
    %v1559 = vrot.slane %v1557, 2
    %v1561 = vmul.f32 %v1538, %v1559
    %v1562 = vlaneseq
    %v1563 = vshrl.u32 %v1562, 7
    %v1564 = vsub.s32 0, %v1563
    %v1565 = vrot.slane %v1561, %v1564
    %v1566 = vmul.f32 %v1565, %v25
    %v1567 = vmul.f32 %v1565, %v26
    %v1568 = vmul.f32 %v1565, %v27
    %v1569 = vmul.f32 %v1565, %v28
    %v1570 = vsel %vm70, %v1566, 0.0
    %1571 = vadd.xlane.f32.xlu0 %v1570
    %v1572 = vpop.xlane.xlu0 %1571
    %v1573 = vsel %vm70, %v1567, 0.0
    %1574 = vadd.xlane.f32.xlu0 %v1573
    %v1575 = vpop.xlane.xlu0 %1574
    %v1576 = vsel %vm70, %v1568, 0.0
    %1577 = vadd.xlane.f32.xlu0 %v1576
    %v1578 = vpop.xlane.xlu0 %1577
    %v1579 = vsel %vm70, %v1569, 0.0
    %1580 = vadd.xlane.f32.xlu0 %v1579
    %v1581 = vpop.xlane.xlu0 %1580
    %v1582 = vsub.f32 %v1572, %v13
    %v1583 = vsub.f32 %v1575, %v14
    %v1584 = vsub.f32 %v1578, %v15
    %v1585 = vsub.f32 %v1581, %v16
    %v1586 = vmul.f32 %v9, %v1582
    %v1587 = vmul.f32 %v10, %v1583
    %v1588 = vmul.f32 %v11, %v1584
    %v1589 = vmul.f32 %v12, %v1585
    %v1590 = vmul.f32 %v1586, 0.5
    %v1591 = vmul.f32 %v1587, 0.5
    %v1592 = vmul.f32 %v1588, 0.5
    %v1593 = vmul.f32 %v1589, 0.5
    %v1594 = vtanh.pop %v1590
    %v1595 = vtanh.pop %v1591
    %v1596 = vtanh.pop %v1592
    %v1597 = vtanh.pop %v1593
    %v1598 = vmul.f32 %v1594, 0.5
    %v1599 = vmul.f32 %v1595, 0.5
    %v1600 = vmul.f32 %v1596, 0.5
    %v1601 = vmul.f32 %v1597, 0.5
    %v1602 = vadd.f32 %v1598, 0.5
    %v1603 = vadd.f32 %v1599, 0.5
    %v1604 = vadd.f32 %v1600, 0.5
    %v1605 = vadd.f32 %v1601, 0.5
    %v1606 = vmul.f32 %v29, %v1561
    %v1607 = vrot.slane %v55, 3
    %v1609 = vadd.f32 %v1606, %v1607
    %v1610 = vmul.f32 %v1602, %v17
    %v1611 = vmul.f32 %v1603, %v18
    %v1612 = vmul.f32 %v1604, %v19
    %v1613 = vmul.f32 %v1605, %v20
    %v1614 = vadd.f32 %v1610, %v1611
    %v1615 = vadd.f32 %v1614, %v1612
    %v1616 = vadd.f32 %v1615, %v1613
    %v1617 = vsel %vm70, %v1616, 0.0
    %v1618 = vrot.slane %v1617, 4
    %v1619 = vadd.f32 %v1617, %v1618
    %v1620 = vrot.slane %v1619, 2
    %v1621 = vadd.f32 %v1619, %v1620
    %v1622 = vrot.slane %v1621, 1
    %v1623 = vadd.f32 %v1621, %v1622
    %v1624 = vadd.f32 %v1609, %v1623
    %v1625 = vmul.f32 %v1602, %v21
    %v1626 = vmul.f32 %v1603, %v22
    %v1627 = vmul.f32 %v1604, %v23
    %v1628 = vmul.f32 %v1605, %v24
    %v1629 = vadd.f32 %v1625, %v1626
    %v1630 = vadd.f32 %v1629, %v1627
    %v1631 = vadd.f32 %v1630, %v1628
    %v1632 = vsel %vm70, %v1631, 0.0
    %v1633 = vrot.slane %v1632, 4
    %v1634 = vadd.f32 %v1632, %v1633
    %v1635 = vrot.slane %v1634, 2
    %v1636 = vadd.f32 %v1634, %v1635
    %v1637 = vrot.slane %v1636, 1
    %v1638 = vadd.f32 %v1636, %v1637
    %v1639 = vadd.f32 %v65, %v1638
    %v1640 = vrcp.pop %v1639
    %v1641 = vmul.f32 %v1639, %v1640
    %v1642 = vsub.f32 2.0, %v1641
    %v1643 = vmul.f32 %v1640, %v1642
    %v1645 = vrot.slane %v1643, 3
    %v1647 = vmul.f32 %v1624, %v1645
    %v1648 = vlaneseq
    %v1649 = vshrl.u32 %v1648, 7
    %v1650 = vsub.s32 0, %v1649
    %v1651 = vrot.slane %v1647, %v1650
    %v1652 = vmul.f32 %v1651, %v25
    %v1653 = vmul.f32 %v1651, %v26
    %v1654 = vmul.f32 %v1651, %v27
    %v1655 = vmul.f32 %v1651, %v28
    %v1656 = vsel %vm70, %v1652, 0.0
    %1657 = vadd.xlane.f32.xlu0 %v1656
    %v1658 = vpop.xlane.xlu0 %1657
    %v1659 = vsel %vm70, %v1653, 0.0
    %1660 = vadd.xlane.f32.xlu0 %v1659
    %v1661 = vpop.xlane.xlu0 %1660
    %v1662 = vsel %vm70, %v1654, 0.0
    %1663 = vadd.xlane.f32.xlu0 %v1662
    %v1664 = vpop.xlane.xlu0 %1663
    %v1665 = vsel %vm70, %v1655, 0.0
    %1666 = vadd.xlane.f32.xlu0 %v1665
    %v1667 = vpop.xlane.xlu0 %1666
    %v1668 = vsub.f32 %v1658, %v13
    %v1669 = vsub.f32 %v1661, %v14
    %v1670 = vsub.f32 %v1664, %v15
    %v1671 = vsub.f32 %v1667, %v16
    %v1672 = vmul.f32 %v9, %v1668
    %v1673 = vmul.f32 %v10, %v1669
    %v1674 = vmul.f32 %v11, %v1670
    %v1675 = vmul.f32 %v12, %v1671
    %v1676 = vmul.f32 %v1672, 0.5
    %v1677 = vmul.f32 %v1673, 0.5
    %v1678 = vmul.f32 %v1674, 0.5
    %v1679 = vmul.f32 %v1675, 0.5
    %v1680 = vtanh.pop %v1676
    %v1681 = vtanh.pop %v1677
    %v1682 = vtanh.pop %v1678
    %v1683 = vtanh.pop %v1679
    %v1684 = vmul.f32 %v1680, 0.5
    %v1685 = vmul.f32 %v1681, 0.5
    %v1686 = vmul.f32 %v1682, 0.5
    %v1687 = vmul.f32 %v1683, 0.5
    %v1688 = vadd.f32 %v1684, 0.5
    %v1689 = vadd.f32 %v1685, 0.5
    %v1690 = vadd.f32 %v1686, 0.5
    %v1691 = vadd.f32 %v1687, 0.5
    %v1692 = vmul.f32 %v29, %v1647
    %v1693 = vadd.f32 %v1692, %v1607
    %v1694 = vmul.f32 %v1688, %v17
    %v1695 = vmul.f32 %v1689, %v18
    %v1696 = vmul.f32 %v1690, %v19
    %v1697 = vmul.f32 %v1691, %v20
    %v1698 = vadd.f32 %v1694, %v1695
    %v1699 = vadd.f32 %v1698, %v1696
    %v1700 = vadd.f32 %v1699, %v1697
    %v1701 = vsel %vm70, %v1700, 0.0
    %v1702 = vrot.slane %v1701, 4
    %v1703 = vadd.f32 %v1701, %v1702
    %v1704 = vrot.slane %v1703, 2
    %v1705 = vadd.f32 %v1703, %v1704
    %v1706 = vrot.slane %v1705, 1
    %v1707 = vadd.f32 %v1705, %v1706
    %v1708 = vadd.f32 %v1693, %v1707
    %v1709 = vmul.f32 %v1688, %v21
    %v1710 = vmul.f32 %v1689, %v22
    %v1711 = vmul.f32 %v1690, %v23
    %v1712 = vmul.f32 %v1691, %v24
    %v1713 = vadd.f32 %v1709, %v1710
    %v1714 = vadd.f32 %v1713, %v1711
    %v1715 = vadd.f32 %v1714, %v1712
    %v1716 = vsel %vm70, %v1715, 0.0
    %v1717 = vrot.slane %v1716, 4
    %v1718 = vadd.f32 %v1716, %v1717
    %v1719 = vrot.slane %v1718, 2
    %v1720 = vadd.f32 %v1718, %v1719
    %v1721 = vrot.slane %v1720, 1
    %v1722 = vadd.f32 %v1720, %v1721
    %v1723 = vadd.f32 %v65, %v1722
    %v1724 = vrcp.pop %v1723
    %v1725 = vmul.f32 %v1723, %v1724
    %v1726 = vsub.f32 2.0, %v1725
    %v1727 = vmul.f32 %v1724, %v1726
    %v1729 = vrot.slane %v1727, 3
    %v1731 = vmul.f32 %v1708, %v1729
    %v1732 = vlaneseq
    %v1733 = vshrl.u32 %v1732, 7
    %v1734 = vsub.s32 0, %v1733
    %v1735 = vrot.slane %v1731, %v1734
    %v1736 = vmul.f32 %v1735, %v25
    %v1737 = vmul.f32 %v1735, %v26
    %v1738 = vmul.f32 %v1735, %v27
    %v1739 = vmul.f32 %v1735, %v28
    %v1740 = vsel %vm70, %v1736, 0.0
    %1741 = vadd.xlane.f32.xlu0 %v1740
    %v1742 = vpop.xlane.xlu0 %1741
    %v1743 = vsel %vm70, %v1737, 0.0
    %1744 = vadd.xlane.f32.xlu0 %v1743
    %v1745 = vpop.xlane.xlu0 %1744
    %v1746 = vsel %vm70, %v1738, 0.0
    %1747 = vadd.xlane.f32.xlu0 %v1746
    %v1748 = vpop.xlane.xlu0 %1747
    %v1749 = vsel %vm70, %v1739, 0.0
    %1750 = vadd.xlane.f32.xlu0 %v1749
    %v1751 = vpop.xlane.xlu0 %1750
    %v1752 = vsub.f32 %v1742, %v13
    %v1753 = vsub.f32 %v1745, %v14
    %v1754 = vsub.f32 %v1748, %v15
    %v1755 = vsub.f32 %v1751, %v16
    %v1756 = vmul.f32 %v9, %v1752
    %v1757 = vmul.f32 %v10, %v1753
    %v1758 = vmul.f32 %v11, %v1754
    %v1759 = vmul.f32 %v12, %v1755
    %v1760 = vmul.f32 %v1756, 0.5
    %v1761 = vmul.f32 %v1757, 0.5
    %v1762 = vmul.f32 %v1758, 0.5
    %v1763 = vmul.f32 %v1759, 0.5
    %v1764 = vtanh.pop %v1760
    %v1765 = vtanh.pop %v1761
    %v1766 = vtanh.pop %v1762
    %v1767 = vtanh.pop %v1763
    %v1768 = vmul.f32 %v1764, 0.5
    %v1769 = vmul.f32 %v1765, 0.5
    %v1770 = vmul.f32 %v1766, 0.5
    %v1771 = vmul.f32 %v1767, 0.5
    %v1772 = vadd.f32 %v1768, 0.5
    %v1773 = vadd.f32 %v1769, 0.5
    %v1774 = vadd.f32 %v1770, 0.5
    %v1775 = vadd.f32 %v1771, 0.5
    %v1776 = vmul.f32 %v29, %v1731
    %v1777 = vadd.f32 %v1776, %v1607
    %v1778 = vmul.f32 %v1772, %v17
    %v1779 = vmul.f32 %v1773, %v18
    %v1780 = vmul.f32 %v1774, %v19
    %v1781 = vmul.f32 %v1775, %v20
    %v1782 = vadd.f32 %v1778, %v1779
    %v1783 = vadd.f32 %v1782, %v1780
    %v1784 = vadd.f32 %v1783, %v1781
    %v1785 = vsel %vm70, %v1784, 0.0
    %v1786 = vrot.slane %v1785, 4
    %v1787 = vadd.f32 %v1785, %v1786
    %v1788 = vrot.slane %v1787, 2
    %v1789 = vadd.f32 %v1787, %v1788
    %v1790 = vrot.slane %v1789, 1
    %v1791 = vadd.f32 %v1789, %v1790
    %v1792 = vadd.f32 %v1777, %v1791
    %v1793 = vmul.f32 %v1772, %v21
    %v1794 = vmul.f32 %v1773, %v22
    %v1795 = vmul.f32 %v1774, %v23
    %v1796 = vmul.f32 %v1775, %v24
    %v1797 = vadd.f32 %v1793, %v1794
    %v1798 = vadd.f32 %v1797, %v1795
    %v1799 = vadd.f32 %v1798, %v1796
    %v1800 = vsel %vm70, %v1799, 0.0
    %v1801 = vrot.slane %v1800, 4
    %v1802 = vadd.f32 %v1800, %v1801
    %v1803 = vrot.slane %v1802, 2
    %v1804 = vadd.f32 %v1802, %v1803
    %v1805 = vrot.slane %v1804, 1
    %v1806 = vadd.f32 %v1804, %v1805
    %v1807 = vadd.f32 %v65, %v1806
    %v1808 = vrcp.pop %v1807
    %v1809 = vmul.f32 %v1807, %v1808
    %v1810 = vsub.f32 2.0, %v1809
    %v1811 = vmul.f32 %v1808, %v1810
    %v1813 = vrot.slane %v1811, 3
    %v1815 = vmul.f32 %v1792, %v1813
    %v1816 = vlaneseq
    %v1817 = vshrl.u32 %v1816, 7
    %v1818 = vsub.s32 0, %v1817
    %v1819 = vrot.slane %v1815, %v1818
    %v1820 = vmul.f32 %v1819, %v25
    %v1821 = vmul.f32 %v1819, %v26
    %v1822 = vmul.f32 %v1819, %v27
    %v1823 = vmul.f32 %v1819, %v28
    %v1824 = vsel %vm70, %v1820, 0.0
    %1825 = vadd.xlane.f32.xlu0 %v1824
    %v1826 = vpop.xlane.xlu0 %1825
    %v1827 = vsel %vm70, %v1821, 0.0
    %1828 = vadd.xlane.f32.xlu0 %v1827
    %v1829 = vpop.xlane.xlu0 %1828
    %v1830 = vsel %vm70, %v1822, 0.0
    %1831 = vadd.xlane.f32.xlu0 %v1830
    %v1832 = vpop.xlane.xlu0 %1831
    %v1833 = vsel %vm70, %v1823, 0.0
    %1834 = vadd.xlane.f32.xlu0 %v1833
    %v1835 = vpop.xlane.xlu0 %1834
    %v1836 = vsub.f32 %v1826, %v13
    %v1837 = vsub.f32 %v1829, %v14
    %v1838 = vsub.f32 %v1832, %v15
    %v1839 = vsub.f32 %v1835, %v16
    %v1840 = vmul.f32 %v9, %v1836
    %v1841 = vmul.f32 %v10, %v1837
    %v1842 = vmul.f32 %v11, %v1838
    %v1843 = vmul.f32 %v12, %v1839
    %v1844 = vmul.f32 %v1840, 0.5
    %v1845 = vmul.f32 %v1841, 0.5
    %v1846 = vmul.f32 %v1842, 0.5
    %v1847 = vmul.f32 %v1843, 0.5
    %v1848 = vtanh.pop %v1844
    %v1849 = vtanh.pop %v1845
    %v1850 = vtanh.pop %v1846
    %v1851 = vtanh.pop %v1847
    %v1852 = vmul.f32 %v1848, 0.5
    %v1853 = vmul.f32 %v1849, 0.5
    %v1854 = vmul.f32 %v1850, 0.5
    %v1855 = vmul.f32 %v1851, 0.5
    %v1856 = vadd.f32 %v1852, 0.5
    %v1857 = vadd.f32 %v1853, 0.5
    %v1858 = vadd.f32 %v1854, 0.5
    %v1859 = vadd.f32 %v1855, 0.5
    %v1860 = vmul.f32 %v29, %v1815
    %v1861 = vadd.f32 %v1860, %v1607
    %v1862 = vmul.f32 %v1856, %v17
    %v1863 = vmul.f32 %v1857, %v18
    %v1864 = vmul.f32 %v1858, %v19
    %v1865 = vmul.f32 %v1859, %v20
    %v1866 = vadd.f32 %v1862, %v1863
    %v1867 = vadd.f32 %v1866, %v1864
    %v1868 = vadd.f32 %v1867, %v1865
    %v1869 = vsel %vm70, %v1868, 0.0
    %v1870 = vrot.slane %v1869, 4
    %v1871 = vadd.f32 %v1869, %v1870
    %v1872 = vrot.slane %v1871, 2
    %v1873 = vadd.f32 %v1871, %v1872
    %v1874 = vrot.slane %v1873, 1
    %v1875 = vadd.f32 %v1873, %v1874
    %v1876 = vadd.f32 %v1861, %v1875
    %v1877 = vmul.f32 %v1856, %v21
    %v1878 = vmul.f32 %v1857, %v22
    %v1879 = vmul.f32 %v1858, %v23
    %v1880 = vmul.f32 %v1859, %v24
    %v1881 = vadd.f32 %v1877, %v1878
    %v1882 = vadd.f32 %v1881, %v1879
    %v1883 = vadd.f32 %v1882, %v1880
    %v1884 = vsel %vm70, %v1883, 0.0
    %v1885 = vrot.slane %v1884, 4
    %v1886 = vadd.f32 %v1884, %v1885
    %v1887 = vrot.slane %v1886, 2
    %v1888 = vadd.f32 %v1886, %v1887
    %v1889 = vrot.slane %v1888, 1
    %v1890 = vadd.f32 %v1888, %v1889
    %v1891 = vadd.f32 %v65, %v1890
    %v1892 = vrcp.pop %v1891
    %v1893 = vmul.f32 %v1891, %v1892
    %v1894 = vsub.f32 2.0, %v1893
    %v1895 = vmul.f32 %v1892, %v1894
    %v1897 = vrot.slane %v1895, 3
    %v1899 = vmul.f32 %v1876, %v1897
    %v1900 = vlaneseq
    %v1901 = vshrl.u32 %v1900, 7
    %v1902 = vsub.s32 0, %v1901
    %v1903 = vrot.slane %v1899, %v1902
    %v1904 = vmul.f32 %v1903, %v25
    %v1905 = vmul.f32 %v1903, %v26
    %v1906 = vmul.f32 %v1903, %v27
    %v1907 = vmul.f32 %v1903, %v28
    %v1908 = vsel %vm70, %v1904, 0.0
    %1909 = vadd.xlane.f32.xlu0 %v1908
    %v1910 = vpop.xlane.xlu0 %1909
    %v1911 = vsel %vm70, %v1905, 0.0
    %1912 = vadd.xlane.f32.xlu0 %v1911
    %v1913 = vpop.xlane.xlu0 %1912
    %v1914 = vsel %vm70, %v1906, 0.0
    %1915 = vadd.xlane.f32.xlu0 %v1914
    %v1916 = vpop.xlane.xlu0 %1915
    %v1917 = vsel %vm70, %v1907, 0.0
    %1918 = vadd.xlane.f32.xlu0 %v1917
    %v1919 = vpop.xlane.xlu0 %1918
    %v1920 = vsub.f32 %v1910, %v13
    %v1921 = vsub.f32 %v1913, %v14
    %v1922 = vsub.f32 %v1916, %v15
    %v1923 = vsub.f32 %v1919, %v16
    %v1924 = vmul.f32 %v9, %v1920
    %v1925 = vmul.f32 %v10, %v1921
    %v1926 = vmul.f32 %v11, %v1922
    %v1927 = vmul.f32 %v12, %v1923
    %v1928 = vmul.f32 %v1924, 0.5
    %v1929 = vmul.f32 %v1925, 0.5
    %v1930 = vmul.f32 %v1926, 0.5
    %v1931 = vmul.f32 %v1927, 0.5
    %v1932 = vtanh.pop %v1928
    %v1933 = vtanh.pop %v1929
    %v1934 = vtanh.pop %v1930
    %v1935 = vtanh.pop %v1931
    %v1936 = vmul.f32 %v1932, 0.5
    %v1937 = vmul.f32 %v1933, 0.5
    %v1938 = vmul.f32 %v1934, 0.5
    %v1939 = vmul.f32 %v1935, 0.5
    %v1940 = vadd.f32 %v1936, 0.5
    %v1941 = vadd.f32 %v1937, 0.5
    %v1942 = vadd.f32 %v1938, 0.5
    %v1943 = vadd.f32 %v1939, 0.5
    %v1944 = vmul.f32 %v29, %v1899
    %v1945 = vadd.f32 %v1944, %v1607
    %v1946 = vmul.f32 %v1940, %v17
    %v1947 = vmul.f32 %v1941, %v18
    %v1948 = vmul.f32 %v1942, %v19
    %v1949 = vmul.f32 %v1943, %v20
    %v1950 = vadd.f32 %v1946, %v1947
    %v1951 = vadd.f32 %v1950, %v1948
    %v1952 = vadd.f32 %v1951, %v1949
    %v1953 = vsel %vm70, %v1952, 0.0
    %v1954 = vrot.slane %v1953, 4
    %v1955 = vadd.f32 %v1953, %v1954
    %v1956 = vrot.slane %v1955, 2
    %v1957 = vadd.f32 %v1955, %v1956
    %v1958 = vrot.slane %v1957, 1
    %v1959 = vadd.f32 %v1957, %v1958
    %v1960 = vadd.f32 %v1945, %v1959
    %v1961 = vmul.f32 %v1940, %v21
    %v1962 = vmul.f32 %v1941, %v22
    %v1963 = vmul.f32 %v1942, %v23
    %v1964 = vmul.f32 %v1943, %v24
    %v1965 = vadd.f32 %v1961, %v1962
    %v1966 = vadd.f32 %v1965, %v1963
    %v1967 = vadd.f32 %v1966, %v1964
    %v1968 = vsel %vm70, %v1967, 0.0
    %v1969 = vrot.slane %v1968, 4
    %v1970 = vadd.f32 %v1968, %v1969
    %v1971 = vrot.slane %v1970, 2
    %v1972 = vadd.f32 %v1970, %v1971
    %v1973 = vrot.slane %v1972, 1
    %v1974 = vadd.f32 %v1972, %v1973
    %v1975 = vadd.f32 %v65, %v1974
    %v1976 = vrcp.pop %v1975
    %v1977 = vmul.f32 %v1975, %v1976
    %v1978 = vsub.f32 2.0, %v1977
    %v1979 = vmul.f32 %v1976, %v1978
    %v1981 = vrot.slane %v1979, 3
    %v1983 = vmul.f32 %v1960, %v1981
    %v1984 = vlaneseq
    %v1985 = vshrl.u32 %v1984, 7
    %v1986 = vsub.s32 0, %v1985
    %v1987 = vrot.slane %v1983, %v1986
    %v1988 = vmul.f32 %v1987, %v25
    %v1989 = vmul.f32 %v1987, %v26
    %v1990 = vmul.f32 %v1987, %v27
    %v1991 = vmul.f32 %v1987, %v28
    %v1992 = vsel %vm70, %v1988, 0.0
    %1993 = vadd.xlane.f32.xlu0 %v1992
    %v1994 = vpop.xlane.xlu0 %1993
    %v1995 = vsel %vm70, %v1989, 0.0
    %1996 = vadd.xlane.f32.xlu0 %v1995
    %v1997 = vpop.xlane.xlu0 %1996
    %v1998 = vsel %vm70, %v1990, 0.0
    %1999 = vadd.xlane.f32.xlu0 %v1998
    %v2000 = vpop.xlane.xlu0 %1999
    %v2001 = vsel %vm70, %v1991, 0.0
    %2002 = vadd.xlane.f32.xlu0 %v2001
    %v2003 = vpop.xlane.xlu0 %2002
    %v2004 = vsub.f32 %v1994, %v13
    %v2005 = vsub.f32 %v1997, %v14
    %v2006 = vsub.f32 %v2000, %v15
    %v2007 = vsub.f32 %v2003, %v16
    %v2008 = vmul.f32 %v9, %v2004
    %v2009 = vmul.f32 %v10, %v2005
    %v2010 = vmul.f32 %v11, %v2006
    %v2011 = vmul.f32 %v12, %v2007
    %v2012 = vmul.f32 %v2008, 0.5
    %v2013 = vmul.f32 %v2009, 0.5
    %v2014 = vmul.f32 %v2010, 0.5
    %v2015 = vmul.f32 %v2011, 0.5
    %v2016 = vtanh.pop %v2012
    %v2017 = vtanh.pop %v2013
    %v2018 = vtanh.pop %v2014
    %v2019 = vtanh.pop %v2015
    %v2020 = vmul.f32 %v2016, 0.5
    %v2021 = vmul.f32 %v2017, 0.5
    %v2022 = vmul.f32 %v2018, 0.5
    %v2023 = vmul.f32 %v2019, 0.5
    %v2024 = vadd.f32 %v2020, 0.5
    %v2025 = vadd.f32 %v2021, 0.5
    %v2026 = vadd.f32 %v2022, 0.5
    %v2027 = vadd.f32 %v2023, 0.5
    %v2028 = vmul.f32 %v29, %v1983
    %v2029 = vadd.f32 %v2028, %v1607
    %v2030 = vmul.f32 %v2024, %v17
    %v2031 = vmul.f32 %v2025, %v18
    %v2032 = vmul.f32 %v2026, %v19
    %v2033 = vmul.f32 %v2027, %v20
    %v2034 = vadd.f32 %v2030, %v2031
    %v2035 = vadd.f32 %v2034, %v2032
    %v2036 = vadd.f32 %v2035, %v2033
    %v2037 = vsel %vm70, %v2036, 0.0
    %v2038 = vrot.slane %v2037, 4
    %v2039 = vadd.f32 %v2037, %v2038
    %v2040 = vrot.slane %v2039, 2
    %v2041 = vadd.f32 %v2039, %v2040
    %v2042 = vrot.slane %v2041, 1
    %v2043 = vadd.f32 %v2041, %v2042
    %v2044 = vadd.f32 %v2029, %v2043
    %v2045 = vmul.f32 %v2024, %v21
    %v2046 = vmul.f32 %v2025, %v22
    %v2047 = vmul.f32 %v2026, %v23
    %v2048 = vmul.f32 %v2027, %v24
    %v2049 = vadd.f32 %v2045, %v2046
    %v2050 = vadd.f32 %v2049, %v2047
    %v2051 = vadd.f32 %v2050, %v2048
    %v2052 = vsel %vm70, %v2051, 0.0
    %v2053 = vrot.slane %v2052, 4
    %v2054 = vadd.f32 %v2052, %v2053
    %v2055 = vrot.slane %v2054, 2
    %v2056 = vadd.f32 %v2054, %v2055
    %v2057 = vrot.slane %v2056, 1
    %v2058 = vadd.f32 %v2056, %v2057
    %v2059 = vadd.f32 %v65, %v2058
    %v2060 = vrcp.pop %v2059
    %v2061 = vmul.f32 %v2059, %v2060
    %v2062 = vsub.f32 2.0, %v2061
    %v2063 = vmul.f32 %v2060, %v2062
    %v2065 = vrot.slane %v2063, 3
    %v2067 = vmul.f32 %v2044, %v2065
    %v2068 = vlaneseq
    %v2069 = vshrl.u32 %v2068, 7
    %v2070 = vsub.s32 0, %v2069
    %v2071 = vrot.slane %v2067, %v2070
    %v2072 = vmul.f32 %v2071, %v25
    %v2073 = vmul.f32 %v2071, %v26
    %v2074 = vmul.f32 %v2071, %v27
    %v2075 = vmul.f32 %v2071, %v28
    %v2076 = vsel %vm70, %v2072, 0.0
    %2077 = vadd.xlane.f32.xlu0 %v2076
    %v2078 = vpop.xlane.xlu0 %2077
    %v2079 = vsel %vm70, %v2073, 0.0
    %2080 = vadd.xlane.f32.xlu0 %v2079
    %v2081 = vpop.xlane.xlu0 %2080
    %v2082 = vsel %vm70, %v2074, 0.0
    %2083 = vadd.xlane.f32.xlu0 %v2082
    %v2084 = vpop.xlane.xlu0 %2083
    %v2085 = vsel %vm70, %v2075, 0.0
    %2086 = vadd.xlane.f32.xlu0 %v2085
    %v2087 = vpop.xlane.xlu0 %2086
    %v2088 = vsub.f32 %v2078, %v13
    %v2089 = vsub.f32 %v2081, %v14
    %v2090 = vsub.f32 %v2084, %v15
    %v2091 = vsub.f32 %v2087, %v16
    %v2092 = vmul.f32 %v9, %v2088
    %v2093 = vmul.f32 %v10, %v2089
    %v2094 = vmul.f32 %v11, %v2090
    %v2095 = vmul.f32 %v12, %v2091
    %v2096 = vmul.f32 %v2092, 0.5
    %v2097 = vmul.f32 %v2093, 0.5
    %v2098 = vmul.f32 %v2094, 0.5
    %v2099 = vmul.f32 %v2095, 0.5
    %v2100 = vtanh.pop %v2096
    %v2101 = vtanh.pop %v2097
    %v2102 = vtanh.pop %v2098
    %v2103 = vtanh.pop %v2099
    %v2104 = vmul.f32 %v2100, 0.5
    %v2105 = vmul.f32 %v2101, 0.5
    %v2106 = vmul.f32 %v2102, 0.5
    %v2107 = vmul.f32 %v2103, 0.5
    %v2108 = vadd.f32 %v2104, 0.5
    %v2109 = vadd.f32 %v2105, 0.5
    %v2110 = vadd.f32 %v2106, 0.5
    %v2111 = vadd.f32 %v2107, 0.5
    %v2112 = vmul.f32 %v29, %v2067
    %v2113 = vrot.slane %v55, 4
    %v2115 = vadd.f32 %v2112, %v2113
    %v2116 = vmul.f32 %v2108, %v17
    %v2117 = vmul.f32 %v2109, %v18
    %v2118 = vmul.f32 %v2110, %v19
    %v2119 = vmul.f32 %v2111, %v20
    %v2120 = vadd.f32 %v2116, %v2117
    %v2121 = vadd.f32 %v2120, %v2118
    %v2122 = vadd.f32 %v2121, %v2119
    %v2123 = vsel %vm70, %v2122, 0.0
    %v2124 = vrot.slane %v2123, 4
    %v2125 = vadd.f32 %v2123, %v2124
    %v2126 = vrot.slane %v2125, 2
    %v2127 = vadd.f32 %v2125, %v2126
    %v2128 = vrot.slane %v2127, 1
    %v2129 = vadd.f32 %v2127, %v2128
    %v2130 = vadd.f32 %v2115, %v2129
    %v2131 = vmul.f32 %v2108, %v21
    %v2132 = vmul.f32 %v2109, %v22
    %v2133 = vmul.f32 %v2110, %v23
    %v2134 = vmul.f32 %v2111, %v24
    %v2135 = vadd.f32 %v2131, %v2132
    %v2136 = vadd.f32 %v2135, %v2133
    %v2137 = vadd.f32 %v2136, %v2134
    %v2138 = vsel %vm70, %v2137, 0.0
    %v2139 = vrot.slane %v2138, 4
    %v2140 = vadd.f32 %v2138, %v2139
    %v2141 = vrot.slane %v2140, 2
    %v2142 = vadd.f32 %v2140, %v2141
    %v2143 = vrot.slane %v2142, 1
    %v2144 = vadd.f32 %v2142, %v2143
    %v2145 = vadd.f32 %v65, %v2144
    %v2146 = vrcp.pop %v2145
    %v2147 = vmul.f32 %v2145, %v2146
    %v2148 = vsub.f32 2.0, %v2147
    %v2149 = vmul.f32 %v2146, %v2148
    %v2151 = vrot.slane %v2149, 4
    %v2153 = vmul.f32 %v2130, %v2151
    %v2154 = vlaneseq
    %v2155 = vshrl.u32 %v2154, 7
    %v2156 = vsub.s32 0, %v2155
    %v2157 = vrot.slane %v2153, %v2156
    %v2158 = vmul.f32 %v2157, %v25
    %v2159 = vmul.f32 %v2157, %v26
    %v2160 = vmul.f32 %v2157, %v27
    %v2161 = vmul.f32 %v2157, %v28
    %v2162 = vsel %vm70, %v2158, 0.0
    %2163 = vadd.xlane.f32.xlu0 %v2162
    %v2164 = vpop.xlane.xlu0 %2163
    %v2165 = vsel %vm70, %v2159, 0.0
    %2166 = vadd.xlane.f32.xlu0 %v2165
    %v2167 = vpop.xlane.xlu0 %2166
    %v2168 = vsel %vm70, %v2160, 0.0
    %2169 = vadd.xlane.f32.xlu0 %v2168
    %v2170 = vpop.xlane.xlu0 %2169
    %v2171 = vsel %vm70, %v2161, 0.0
    %2172 = vadd.xlane.f32.xlu0 %v2171
    %v2173 = vpop.xlane.xlu0 %2172
    %v2174 = vsub.f32 %v2164, %v13
    %v2175 = vsub.f32 %v2167, %v14
    %v2176 = vsub.f32 %v2170, %v15
    %v2177 = vsub.f32 %v2173, %v16
    %v2178 = vmul.f32 %v9, %v2174
    %v2179 = vmul.f32 %v10, %v2175
    %v2180 = vmul.f32 %v11, %v2176
    %v2181 = vmul.f32 %v12, %v2177
    %v2182 = vmul.f32 %v2178, 0.5
    %v2183 = vmul.f32 %v2179, 0.5
    %v2184 = vmul.f32 %v2180, 0.5
    %v2185 = vmul.f32 %v2181, 0.5
    %v2186 = vtanh.pop %v2182
    %v2187 = vtanh.pop %v2183
    %v2188 = vtanh.pop %v2184
    %v2189 = vtanh.pop %v2185
    %v2190 = vmul.f32 %v2186, 0.5
    %v2191 = vmul.f32 %v2187, 0.5
    %v2192 = vmul.f32 %v2188, 0.5
    %v2193 = vmul.f32 %v2189, 0.5
    %v2194 = vadd.f32 %v2190, 0.5
    %v2195 = vadd.f32 %v2191, 0.5
    %v2196 = vadd.f32 %v2192, 0.5
    %v2197 = vadd.f32 %v2193, 0.5
    %v2198 = vmul.f32 %v29, %v2153
    %v2199 = vadd.f32 %v2198, %v2113
    %v2200 = vmul.f32 %v2194, %v17
    %v2201 = vmul.f32 %v2195, %v18
    %v2202 = vmul.f32 %v2196, %v19
    %v2203 = vmul.f32 %v2197, %v20
    %v2204 = vadd.f32 %v2200, %v2201
    %v2205 = vadd.f32 %v2204, %v2202
    %v2206 = vadd.f32 %v2205, %v2203
    %v2207 = vsel %vm70, %v2206, 0.0
    %v2208 = vrot.slane %v2207, 4
    %v2209 = vadd.f32 %v2207, %v2208
    %v2210 = vrot.slane %v2209, 2
    %v2211 = vadd.f32 %v2209, %v2210
    %v2212 = vrot.slane %v2211, 1
    %v2213 = vadd.f32 %v2211, %v2212
    %v2214 = vadd.f32 %v2199, %v2213
    %v2215 = vmul.f32 %v2194, %v21
    %v2216 = vmul.f32 %v2195, %v22
    %v2217 = vmul.f32 %v2196, %v23
    %v2218 = vmul.f32 %v2197, %v24
    %v2219 = vadd.f32 %v2215, %v2216
    %v2220 = vadd.f32 %v2219, %v2217
    %v2221 = vadd.f32 %v2220, %v2218
    %v2222 = vsel %vm70, %v2221, 0.0
    %v2223 = vrot.slane %v2222, 4
    %v2224 = vadd.f32 %v2222, %v2223
    %v2225 = vrot.slane %v2224, 2
    %v2226 = vadd.f32 %v2224, %v2225
    %v2227 = vrot.slane %v2226, 1
    %v2228 = vadd.f32 %v2226, %v2227
    %v2229 = vadd.f32 %v65, %v2228
    %v2230 = vrcp.pop %v2229
    %v2231 = vmul.f32 %v2229, %v2230
    %v2232 = vsub.f32 2.0, %v2231
    %v2233 = vmul.f32 %v2230, %v2232
    %v2235 = vrot.slane %v2233, 4
    %v2237 = vmul.f32 %v2214, %v2235
    %v2238 = vlaneseq
    %v2239 = vshrl.u32 %v2238, 7
    %v2240 = vsub.s32 0, %v2239
    %v2241 = vrot.slane %v2237, %v2240
    %v2242 = vmul.f32 %v2241, %v25
    %v2243 = vmul.f32 %v2241, %v26
    %v2244 = vmul.f32 %v2241, %v27
    %v2245 = vmul.f32 %v2241, %v28
    %v2246 = vsel %vm70, %v2242, 0.0
    %2247 = vadd.xlane.f32.xlu0 %v2246
    %v2248 = vpop.xlane.xlu0 %2247
    %v2249 = vsel %vm70, %v2243, 0.0
    %2250 = vadd.xlane.f32.xlu0 %v2249
    %v2251 = vpop.xlane.xlu0 %2250
    %v2252 = vsel %vm70, %v2244, 0.0
    %2253 = vadd.xlane.f32.xlu0 %v2252
    %v2254 = vpop.xlane.xlu0 %2253
    %v2255 = vsel %vm70, %v2245, 0.0
    %2256 = vadd.xlane.f32.xlu0 %v2255
    %v2257 = vpop.xlane.xlu0 %2256
    %v2258 = vsub.f32 %v2248, %v13
    %v2259 = vsub.f32 %v2251, %v14
    %v2260 = vsub.f32 %v2254, %v15
    %v2261 = vsub.f32 %v2257, %v16
    %v2262 = vmul.f32 %v9, %v2258
    %v2263 = vmul.f32 %v10, %v2259
    %v2264 = vmul.f32 %v11, %v2260
    %v2265 = vmul.f32 %v12, %v2261
    %v2266 = vmul.f32 %v2262, 0.5
    %v2267 = vmul.f32 %v2263, 0.5
    %v2268 = vmul.f32 %v2264, 0.5
    %v2269 = vmul.f32 %v2265, 0.5
    %v2270 = vtanh.pop %v2266
    %v2271 = vtanh.pop %v2267
    %v2272 = vtanh.pop %v2268
    %v2273 = vtanh.pop %v2269
    %v2274 = vmul.f32 %v2270, 0.5
    %v2275 = vmul.f32 %v2271, 0.5
    %v2276 = vmul.f32 %v2272, 0.5
    %v2277 = vmul.f32 %v2273, 0.5
    %v2278 = vadd.f32 %v2274, 0.5
    %v2279 = vadd.f32 %v2275, 0.5
    %v2280 = vadd.f32 %v2276, 0.5
    %v2281 = vadd.f32 %v2277, 0.5
    %v2282 = vmul.f32 %v29, %v2237
    %v2283 = vadd.f32 %v2282, %v2113
    %v2284 = vmul.f32 %v2278, %v17
    %v2285 = vmul.f32 %v2279, %v18
    %v2286 = vmul.f32 %v2280, %v19
    %v2287 = vmul.f32 %v2281, %v20
    %v2288 = vadd.f32 %v2284, %v2285
    %v2289 = vadd.f32 %v2288, %v2286
    %v2290 = vadd.f32 %v2289, %v2287
    %v2291 = vsel %vm70, %v2290, 0.0
    %v2292 = vrot.slane %v2291, 4
    %v2293 = vadd.f32 %v2291, %v2292
    %v2294 = vrot.slane %v2293, 2
    %v2295 = vadd.f32 %v2293, %v2294
    %v2296 = vrot.slane %v2295, 1
    %v2297 = vadd.f32 %v2295, %v2296
    %v2298 = vadd.f32 %v2283, %v2297
    %v2299 = vmul.f32 %v2278, %v21
    %v2300 = vmul.f32 %v2279, %v22
    %v2301 = vmul.f32 %v2280, %v23
    %v2302 = vmul.f32 %v2281, %v24
    %v2303 = vadd.f32 %v2299, %v2300
    %v2304 = vadd.f32 %v2303, %v2301
    %v2305 = vadd.f32 %v2304, %v2302
    %v2306 = vsel %vm70, %v2305, 0.0
    %v2307 = vrot.slane %v2306, 4
    %v2308 = vadd.f32 %v2306, %v2307
    %v2309 = vrot.slane %v2308, 2
    %v2310 = vadd.f32 %v2308, %v2309
    %v2311 = vrot.slane %v2310, 1
    %v2312 = vadd.f32 %v2310, %v2311
    %v2313 = vadd.f32 %v65, %v2312
    %v2314 = vrcp.pop %v2313
    %v2315 = vmul.f32 %v2313, %v2314
    %v2316 = vsub.f32 2.0, %v2315
    %v2317 = vmul.f32 %v2314, %v2316
    %v2319 = vrot.slane %v2317, 4
    %v2321 = vmul.f32 %v2298, %v2319
    %v2322 = vlaneseq
    %v2323 = vshrl.u32 %v2322, 7
    %v2324 = vsub.s32 0, %v2323
    %v2325 = vrot.slane %v2321, %v2324
    %v2326 = vmul.f32 %v2325, %v25
    %v2327 = vmul.f32 %v2325, %v26
    %v2328 = vmul.f32 %v2325, %v27
    %v2329 = vmul.f32 %v2325, %v28
    %v2330 = vsel %vm70, %v2326, 0.0
    %2331 = vadd.xlane.f32.xlu0 %v2330
    %v2332 = vpop.xlane.xlu0 %2331
    %v2333 = vsel %vm70, %v2327, 0.0
    %2334 = vadd.xlane.f32.xlu0 %v2333
    %v2335 = vpop.xlane.xlu0 %2334
    %v2336 = vsel %vm70, %v2328, 0.0
    %2337 = vadd.xlane.f32.xlu0 %v2336
    %v2338 = vpop.xlane.xlu0 %2337
    %v2339 = vsel %vm70, %v2329, 0.0
    %2340 = vadd.xlane.f32.xlu0 %v2339
    %v2341 = vpop.xlane.xlu0 %2340
    %v2342 = vsub.f32 %v2332, %v13
    %v2343 = vsub.f32 %v2335, %v14
    %v2344 = vsub.f32 %v2338, %v15
    %v2345 = vsub.f32 %v2341, %v16
    %v2346 = vmul.f32 %v9, %v2342
    %v2347 = vmul.f32 %v10, %v2343
    %v2348 = vmul.f32 %v11, %v2344
    %v2349 = vmul.f32 %v12, %v2345
    %v2350 = vmul.f32 %v2346, 0.5
    %v2351 = vmul.f32 %v2347, 0.5
    %v2352 = vmul.f32 %v2348, 0.5
    %v2353 = vmul.f32 %v2349, 0.5
    %v2354 = vtanh.pop %v2350
    %v2355 = vtanh.pop %v2351
    %v2356 = vtanh.pop %v2352
    %v2357 = vtanh.pop %v2353
    %v2358 = vmul.f32 %v2354, 0.5
    %v2359 = vmul.f32 %v2355, 0.5
    %v2360 = vmul.f32 %v2356, 0.5
    %v2361 = vmul.f32 %v2357, 0.5
    %v2362 = vadd.f32 %v2358, 0.5
    %v2363 = vadd.f32 %v2359, 0.5
    %v2364 = vadd.f32 %v2360, 0.5
    %v2365 = vadd.f32 %v2361, 0.5
    %v2366 = vmul.f32 %v29, %v2321
    %v2367 = vadd.f32 %v2366, %v2113
    %v2368 = vmul.f32 %v2362, %v17
    %v2369 = vmul.f32 %v2363, %v18
    %v2370 = vmul.f32 %v2364, %v19
    %v2371 = vmul.f32 %v2365, %v20
    %v2372 = vadd.f32 %v2368, %v2369
    %v2373 = vadd.f32 %v2372, %v2370
    %v2374 = vadd.f32 %v2373, %v2371
    %v2375 = vsel %vm70, %v2374, 0.0
    %v2376 = vrot.slane %v2375, 4
    %v2377 = vadd.f32 %v2375, %v2376
    %v2378 = vrot.slane %v2377, 2
    %v2379 = vadd.f32 %v2377, %v2378
    %v2380 = vrot.slane %v2379, 1
    %v2381 = vadd.f32 %v2379, %v2380
    %v2382 = vadd.f32 %v2367, %v2381
    %v2383 = vmul.f32 %v2362, %v21
    %v2384 = vmul.f32 %v2363, %v22
    %v2385 = vmul.f32 %v2364, %v23
    %v2386 = vmul.f32 %v2365, %v24
    %v2387 = vadd.f32 %v2383, %v2384
    %v2388 = vadd.f32 %v2387, %v2385
    %v2389 = vadd.f32 %v2388, %v2386
    %v2390 = vsel %vm70, %v2389, 0.0
    %v2391 = vrot.slane %v2390, 4
    %v2392 = vadd.f32 %v2390, %v2391
    %v2393 = vrot.slane %v2392, 2
    %v2394 = vadd.f32 %v2392, %v2393
    %v2395 = vrot.slane %v2394, 1
    %v2396 = vadd.f32 %v2394, %v2395
    %v2397 = vadd.f32 %v65, %v2396
    %v2398 = vrcp.pop %v2397
    %v2399 = vmul.f32 %v2397, %v2398
    %v2400 = vsub.f32 2.0, %v2399
    %v2401 = vmul.f32 %v2398, %v2400
    %v2403 = vrot.slane %v2401, 4
    %v2405 = vmul.f32 %v2382, %v2403
    %v2406 = vlaneseq
    %v2407 = vshrl.u32 %v2406, 7
    %v2408 = vsub.s32 0, %v2407
    %v2409 = vrot.slane %v2405, %v2408
    %v2410 = vmul.f32 %v2409, %v25
    %v2411 = vmul.f32 %v2409, %v26
    %v2412 = vmul.f32 %v2409, %v27
    %v2413 = vmul.f32 %v2409, %v28
    %v2414 = vsel %vm70, %v2410, 0.0
    %2415 = vadd.xlane.f32.xlu0 %v2414
    %v2416 = vpop.xlane.xlu0 %2415
    %v2417 = vsel %vm70, %v2411, 0.0
    %2418 = vadd.xlane.f32.xlu0 %v2417
    %v2419 = vpop.xlane.xlu0 %2418
    %v2420 = vsel %vm70, %v2412, 0.0
    %2421 = vadd.xlane.f32.xlu0 %v2420
    %v2422 = vpop.xlane.xlu0 %2421
    %v2423 = vsel %vm70, %v2413, 0.0
    %2424 = vadd.xlane.f32.xlu0 %v2423
    %v2425 = vpop.xlane.xlu0 %2424
    %v2426 = vsub.f32 %v2416, %v13
    %v2427 = vsub.f32 %v2419, %v14
    %v2428 = vsub.f32 %v2422, %v15
    %v2429 = vsub.f32 %v2425, %v16
    %v2430 = vmul.f32 %v9, %v2426
    %v2431 = vmul.f32 %v10, %v2427
    %v2432 = vmul.f32 %v11, %v2428
    %v2433 = vmul.f32 %v12, %v2429
    %v2434 = vmul.f32 %v2430, 0.5
    %v2435 = vmul.f32 %v2431, 0.5
    %v2436 = vmul.f32 %v2432, 0.5
    %v2437 = vmul.f32 %v2433, 0.5
    %v2438 = vtanh.pop %v2434
    %v2439 = vtanh.pop %v2435
    %v2440 = vtanh.pop %v2436
    %v2441 = vtanh.pop %v2437
    %v2442 = vmul.f32 %v2438, 0.5
    %v2443 = vmul.f32 %v2439, 0.5
    %v2444 = vmul.f32 %v2440, 0.5
    %v2445 = vmul.f32 %v2441, 0.5
    %v2446 = vadd.f32 %v2442, 0.5
    %v2447 = vadd.f32 %v2443, 0.5
    %v2448 = vadd.f32 %v2444, 0.5
    %v2449 = vadd.f32 %v2445, 0.5
    %v2450 = vmul.f32 %v29, %v2405
    %v2451 = vadd.f32 %v2450, %v2113
    %v2452 = vmul.f32 %v2446, %v17
    %v2453 = vmul.f32 %v2447, %v18
    %v2454 = vmul.f32 %v2448, %v19
    %v2455 = vmul.f32 %v2449, %v20
    %v2456 = vadd.f32 %v2452, %v2453
    %v2457 = vadd.f32 %v2456, %v2454
    %v2458 = vadd.f32 %v2457, %v2455
    %v2459 = vsel %vm70, %v2458, 0.0
    %v2460 = vrot.slane %v2459, 4
    %v2461 = vadd.f32 %v2459, %v2460
    %v2462 = vrot.slane %v2461, 2
    %v2463 = vadd.f32 %v2461, %v2462
    %v2464 = vrot.slane %v2463, 1
    %v2465 = vadd.f32 %v2463, %v2464
    %v2466 = vadd.f32 %v2451, %v2465
    %v2467 = vmul.f32 %v2446, %v21
    %v2468 = vmul.f32 %v2447, %v22
    %v2469 = vmul.f32 %v2448, %v23
    %v2470 = vmul.f32 %v2449, %v24
    %v2471 = vadd.f32 %v2467, %v2468
    %v2472 = vadd.f32 %v2471, %v2469
    %v2473 = vadd.f32 %v2472, %v2470
    %v2474 = vsel %vm70, %v2473, 0.0
    %v2475 = vrot.slane %v2474, 4
    %v2476 = vadd.f32 %v2474, %v2475
    %v2477 = vrot.slane %v2476, 2
    %v2478 = vadd.f32 %v2476, %v2477
    %v2479 = vrot.slane %v2478, 1
    %v2480 = vadd.f32 %v2478, %v2479
    %v2481 = vadd.f32 %v65, %v2480
    %v2482 = vrcp.pop %v2481
    %v2483 = vmul.f32 %v2481, %v2482
    %v2484 = vsub.f32 2.0, %v2483
    %v2485 = vmul.f32 %v2482, %v2484
    %v2487 = vrot.slane %v2485, 4
    %v2489 = vmul.f32 %v2466, %v2487
    %v2490 = vlaneseq
    %v2491 = vshrl.u32 %v2490, 7
    %v2492 = vsub.s32 0, %v2491
    %v2493 = vrot.slane %v2489, %v2492
    %v2494 = vmul.f32 %v2493, %v25
    %v2495 = vmul.f32 %v2493, %v26
    %v2496 = vmul.f32 %v2493, %v27
    %v2497 = vmul.f32 %v2493, %v28
    %v2498 = vsel %vm70, %v2494, 0.0
    %2499 = vadd.xlane.f32.xlu0 %v2498
    %v2500 = vpop.xlane.xlu0 %2499
    %v2501 = vsel %vm70, %v2495, 0.0
    %2502 = vadd.xlane.f32.xlu0 %v2501
    %v2503 = vpop.xlane.xlu0 %2502
    %v2504 = vsel %vm70, %v2496, 0.0
    %2505 = vadd.xlane.f32.xlu0 %v2504
    %v2506 = vpop.xlane.xlu0 %2505
    %v2507 = vsel %vm70, %v2497, 0.0
    %2508 = vadd.xlane.f32.xlu0 %v2507
    %v2509 = vpop.xlane.xlu0 %2508
    %v2510 = vsub.f32 %v2500, %v13
    %v2511 = vsub.f32 %v2503, %v14
    %v2512 = vsub.f32 %v2506, %v15
    %v2513 = vsub.f32 %v2509, %v16
    %v2514 = vmul.f32 %v9, %v2510
    %v2515 = vmul.f32 %v10, %v2511
    %v2516 = vmul.f32 %v11, %v2512
    %v2517 = vmul.f32 %v12, %v2513
    %v2518 = vmul.f32 %v2514, 0.5
    %v2519 = vmul.f32 %v2515, 0.5
    %v2520 = vmul.f32 %v2516, 0.5
    %v2521 = vmul.f32 %v2517, 0.5
    %v2522 = vtanh.pop %v2518
    %v2523 = vtanh.pop %v2519
    %v2524 = vtanh.pop %v2520
    %v2525 = vtanh.pop %v2521
    %v2526 = vmul.f32 %v2522, 0.5
    %v2527 = vmul.f32 %v2523, 0.5
    %v2528 = vmul.f32 %v2524, 0.5
    %v2529 = vmul.f32 %v2525, 0.5
    %v2530 = vadd.f32 %v2526, 0.5
    %v2531 = vadd.f32 %v2527, 0.5
    %v2532 = vadd.f32 %v2528, 0.5
    %v2533 = vadd.f32 %v2529, 0.5
    %v2534 = vmul.f32 %v29, %v2489
    %v2535 = vadd.f32 %v2534, %v2113
    %v2536 = vmul.f32 %v2530, %v17
    %v2537 = vmul.f32 %v2531, %v18
    %v2538 = vmul.f32 %v2532, %v19
    %v2539 = vmul.f32 %v2533, %v20
    %v2540 = vadd.f32 %v2536, %v2537
    %v2541 = vadd.f32 %v2540, %v2538
    %v2542 = vadd.f32 %v2541, %v2539
    %v2543 = vsel %vm70, %v2542, 0.0
    %v2544 = vrot.slane %v2543, 4
    %v2545 = vadd.f32 %v2543, %v2544
    %v2546 = vrot.slane %v2545, 2
    %v2547 = vadd.f32 %v2545, %v2546
    %v2548 = vrot.slane %v2547, 1
    %v2549 = vadd.f32 %v2547, %v2548
    %v2550 = vadd.f32 %v2535, %v2549
    %v2551 = vmul.f32 %v2530, %v21
    %v2552 = vmul.f32 %v2531, %v22
    %v2553 = vmul.f32 %v2532, %v23
    %v2554 = vmul.f32 %v2533, %v24
    %v2555 = vadd.f32 %v2551, %v2552
    %v2556 = vadd.f32 %v2555, %v2553
    %v2557 = vadd.f32 %v2556, %v2554
    %v2558 = vsel %vm70, %v2557, 0.0
    %v2559 = vrot.slane %v2558, 4
    %v2560 = vadd.f32 %v2558, %v2559
    %v2561 = vrot.slane %v2560, 2
    %v2562 = vadd.f32 %v2560, %v2561
    %v2563 = vrot.slane %v2562, 1
    %v2564 = vadd.f32 %v2562, %v2563
    %v2565 = vadd.f32 %v65, %v2564
    %v2566 = vrcp.pop %v2565
    %v2567 = vmul.f32 %v2565, %v2566
    %v2568 = vsub.f32 2.0, %v2567
    %v2569 = vmul.f32 %v2566, %v2568
    %v2571 = vrot.slane %v2569, 4
    %v2573 = vmul.f32 %v2550, %v2571
    %v2574 = vlaneseq
    %v2575 = vshrl.u32 %v2574, 7
    %v2576 = vsub.s32 0, %v2575
    %v2577 = vrot.slane %v2573, %v2576
    %v2578 = vmul.f32 %v2577, %v25
    %v2579 = vmul.f32 %v2577, %v26
    %v2580 = vmul.f32 %v2577, %v27
    %v2581 = vmul.f32 %v2577, %v28
    %v2582 = vsel %vm70, %v2578, 0.0
    %2583 = vadd.xlane.f32.xlu0 %v2582
    %v2584 = vpop.xlane.xlu0 %2583
    %v2585 = vsel %vm70, %v2579, 0.0
    %2586 = vadd.xlane.f32.xlu0 %v2585
    %v2587 = vpop.xlane.xlu0 %2586
    %v2588 = vsel %vm70, %v2580, 0.0
    %2589 = vadd.xlane.f32.xlu0 %v2588
    %v2590 = vpop.xlane.xlu0 %2589
    %v2591 = vsel %vm70, %v2581, 0.0
    %2592 = vadd.xlane.f32.xlu0 %v2591
    %v2593 = vpop.xlane.xlu0 %2592
    %v2594 = vsub.f32 %v2584, %v13
    %v2595 = vsub.f32 %v2587, %v14
    %v2596 = vsub.f32 %v2590, %v15
    %v2597 = vsub.f32 %v2593, %v16
    %v2598 = vmul.f32 %v9, %v2594
    %v2599 = vmul.f32 %v10, %v2595
    %v2600 = vmul.f32 %v11, %v2596
    %v2601 = vmul.f32 %v12, %v2597
    %v2602 = vmul.f32 %v2598, 0.5
    %v2603 = vmul.f32 %v2599, 0.5
    %v2604 = vmul.f32 %v2600, 0.5
    %v2605 = vmul.f32 %v2601, 0.5
    %v2606 = vtanh.pop %v2602
    %v2607 = vtanh.pop %v2603
    %v2608 = vtanh.pop %v2604
    %v2609 = vtanh.pop %v2605
    %v2610 = vmul.f32 %v2606, 0.5
    %v2611 = vmul.f32 %v2607, 0.5
    %v2612 = vmul.f32 %v2608, 0.5
    %v2613 = vmul.f32 %v2609, 0.5
    %v2614 = vadd.f32 %v2610, 0.5
    %v2615 = vadd.f32 %v2611, 0.5
    %v2616 = vadd.f32 %v2612, 0.5
    %v2617 = vadd.f32 %v2613, 0.5
    %v2618 = vmul.f32 %v29, %v2573
    %v2619 = vrot.slane %v55, 5
    %v2621 = vadd.f32 %v2618, %v2619
    %v2622 = vmul.f32 %v2614, %v17
    %v2623 = vmul.f32 %v2615, %v18
    %v2624 = vmul.f32 %v2616, %v19
    %v2625 = vmul.f32 %v2617, %v20
    %v2626 = vadd.f32 %v2622, %v2623
    %v2627 = vadd.f32 %v2626, %v2624
    %v2628 = vadd.f32 %v2627, %v2625
    %v2629 = vsel %vm70, %v2628, 0.0
    %v2630 = vrot.slane %v2629, 4
    %v2631 = vadd.f32 %v2629, %v2630
    %v2632 = vrot.slane %v2631, 2
    %v2633 = vadd.f32 %v2631, %v2632
    %v2634 = vrot.slane %v2633, 1
    %v2635 = vadd.f32 %v2633, %v2634
    %v2636 = vadd.f32 %v2621, %v2635
    %v2637 = vmul.f32 %v2614, %v21
    %v2638 = vmul.f32 %v2615, %v22
    %v2639 = vmul.f32 %v2616, %v23
    %v2640 = vmul.f32 %v2617, %v24
    %v2641 = vadd.f32 %v2637, %v2638
    %v2642 = vadd.f32 %v2641, %v2639
    %v2643 = vadd.f32 %v2642, %v2640
    %v2644 = vsel %vm70, %v2643, 0.0
    %v2645 = vrot.slane %v2644, 4
    %v2646 = vadd.f32 %v2644, %v2645
    %v2647 = vrot.slane %v2646, 2
    %v2648 = vadd.f32 %v2646, %v2647
    %v2649 = vrot.slane %v2648, 1
    %v2650 = vadd.f32 %v2648, %v2649
    %v2651 = vadd.f32 %v65, %v2650
    %v2652 = vrcp.pop %v2651
    %v2653 = vmul.f32 %v2651, %v2652
    %v2654 = vsub.f32 2.0, %v2653
    %v2655 = vmul.f32 %v2652, %v2654
    %v2657 = vrot.slane %v2655, 5
    %v2659 = vmul.f32 %v2636, %v2657
    %v2660 = vlaneseq
    %v2661 = vshrl.u32 %v2660, 7
    %v2662 = vsub.s32 0, %v2661
    %v2663 = vrot.slane %v2659, %v2662
    %v2664 = vmul.f32 %v2663, %v25
    %v2665 = vmul.f32 %v2663, %v26
    %v2666 = vmul.f32 %v2663, %v27
    %v2667 = vmul.f32 %v2663, %v28
    %v2668 = vsel %vm70, %v2664, 0.0
    %2669 = vadd.xlane.f32.xlu0 %v2668
    %v2670 = vpop.xlane.xlu0 %2669
    %v2671 = vsel %vm70, %v2665, 0.0
    %2672 = vadd.xlane.f32.xlu0 %v2671
    %v2673 = vpop.xlane.xlu0 %2672
    %v2674 = vsel %vm70, %v2666, 0.0
    %2675 = vadd.xlane.f32.xlu0 %v2674
    %v2676 = vpop.xlane.xlu0 %2675
    %v2677 = vsel %vm70, %v2667, 0.0
    %2678 = vadd.xlane.f32.xlu0 %v2677
    %v2679 = vpop.xlane.xlu0 %2678
    %v2680 = vsub.f32 %v2670, %v13
    %v2681 = vsub.f32 %v2673, %v14
    %v2682 = vsub.f32 %v2676, %v15
    %v2683 = vsub.f32 %v2679, %v16
    %v2684 = vmul.f32 %v9, %v2680
    %v2685 = vmul.f32 %v10, %v2681
    %v2686 = vmul.f32 %v11, %v2682
    %v2687 = vmul.f32 %v12, %v2683
    %v2688 = vmul.f32 %v2684, 0.5
    %v2689 = vmul.f32 %v2685, 0.5
    %v2690 = vmul.f32 %v2686, 0.5
    %v2691 = vmul.f32 %v2687, 0.5
    %v2692 = vtanh.pop %v2688
    %v2693 = vtanh.pop %v2689
    %v2694 = vtanh.pop %v2690
    %v2695 = vtanh.pop %v2691
    %v2696 = vmul.f32 %v2692, 0.5
    %v2697 = vmul.f32 %v2693, 0.5
    %v2698 = vmul.f32 %v2694, 0.5
    %v2699 = vmul.f32 %v2695, 0.5
    %v2700 = vadd.f32 %v2696, 0.5
    %v2701 = vadd.f32 %v2697, 0.5
    %v2702 = vadd.f32 %v2698, 0.5
    %v2703 = vadd.f32 %v2699, 0.5
    %v2704 = vmul.f32 %v29, %v2659
    %v2705 = vadd.f32 %v2704, %v2619
    %v2706 = vmul.f32 %v2700, %v17
    %v2707 = vmul.f32 %v2701, %v18
    %v2708 = vmul.f32 %v2702, %v19
    %v2709 = vmul.f32 %v2703, %v20
    %v2710 = vadd.f32 %v2706, %v2707
    %v2711 = vadd.f32 %v2710, %v2708
    %v2712 = vadd.f32 %v2711, %v2709
    %v2713 = vsel %vm70, %v2712, 0.0
    %v2714 = vrot.slane %v2713, 4
    %v2715 = vadd.f32 %v2713, %v2714
    %v2716 = vrot.slane %v2715, 2
    %v2717 = vadd.f32 %v2715, %v2716
    %v2718 = vrot.slane %v2717, 1
    %v2719 = vadd.f32 %v2717, %v2718
    %v2720 = vadd.f32 %v2705, %v2719
    %v2721 = vmul.f32 %v2700, %v21
    %v2722 = vmul.f32 %v2701, %v22
    %v2723 = vmul.f32 %v2702, %v23
    %v2724 = vmul.f32 %v2703, %v24
    %v2725 = vadd.f32 %v2721, %v2722
    %v2726 = vadd.f32 %v2725, %v2723
    %v2727 = vadd.f32 %v2726, %v2724
    %v2728 = vsel %vm70, %v2727, 0.0
    %v2729 = vrot.slane %v2728, 4
    %v2730 = vadd.f32 %v2728, %v2729
    %v2731 = vrot.slane %v2730, 2
    %v2732 = vadd.f32 %v2730, %v2731
    %v2733 = vrot.slane %v2732, 1
    %v2734 = vadd.f32 %v2732, %v2733
    %v2735 = vadd.f32 %v65, %v2734
    %v2736 = vrcp.pop %v2735
    %v2737 = vmul.f32 %v2735, %v2736
    %v2738 = vsub.f32 2.0, %v2737
    %v2739 = vmul.f32 %v2736, %v2738
    %v2741 = vrot.slane %v2739, 5
    %v2743 = vmul.f32 %v2720, %v2741
    %v2744 = vlaneseq
    %v2745 = vshrl.u32 %v2744, 7
    %v2746 = vsub.s32 0, %v2745
    %v2747 = vrot.slane %v2743, %v2746
    %v2748 = vmul.f32 %v2747, %v25
    %v2749 = vmul.f32 %v2747, %v26
    %v2750 = vmul.f32 %v2747, %v27
    %v2751 = vmul.f32 %v2747, %v28
    %v2752 = vsel %vm70, %v2748, 0.0
    %2753 = vadd.xlane.f32.xlu0 %v2752
    %v2754 = vpop.xlane.xlu0 %2753
    %v2755 = vsel %vm70, %v2749, 0.0
    %2756 = vadd.xlane.f32.xlu0 %v2755
    %v2757 = vpop.xlane.xlu0 %2756
    %v2758 = vsel %vm70, %v2750, 0.0
    %2759 = vadd.xlane.f32.xlu0 %v2758
    %v2760 = vpop.xlane.xlu0 %2759
    %v2761 = vsel %vm70, %v2751, 0.0
    %2762 = vadd.xlane.f32.xlu0 %v2761
    %v2763 = vpop.xlane.xlu0 %2762
    %v2764 = vsub.f32 %v2754, %v13
    %v2765 = vsub.f32 %v2757, %v14
    %v2766 = vsub.f32 %v2760, %v15
    %v2767 = vsub.f32 %v2763, %v16
    %v2768 = vmul.f32 %v9, %v2764
    %v2769 = vmul.f32 %v10, %v2765
    %v2770 = vmul.f32 %v11, %v2766
    %v2771 = vmul.f32 %v12, %v2767
    %v2772 = vmul.f32 %v2768, 0.5
    %v2773 = vmul.f32 %v2769, 0.5
    %v2774 = vmul.f32 %v2770, 0.5
    %v2775 = vmul.f32 %v2771, 0.5
    %v2776 = vtanh.pop %v2772
    %v2777 = vtanh.pop %v2773
    %v2778 = vtanh.pop %v2774
    %v2779 = vtanh.pop %v2775
    %v2780 = vmul.f32 %v2776, 0.5
    %v2781 = vmul.f32 %v2777, 0.5
    %v2782 = vmul.f32 %v2778, 0.5
    %v2783 = vmul.f32 %v2779, 0.5
    %v2784 = vadd.f32 %v2780, 0.5
    %v2785 = vadd.f32 %v2781, 0.5
    %v2786 = vadd.f32 %v2782, 0.5
    %v2787 = vadd.f32 %v2783, 0.5
    %v2788 = vmul.f32 %v29, %v2743
    %v2789 = vadd.f32 %v2788, %v2619
    %v2790 = vmul.f32 %v2784, %v17
    %v2791 = vmul.f32 %v2785, %v18
    %v2792 = vmul.f32 %v2786, %v19
    %v2793 = vmul.f32 %v2787, %v20
    %v2794 = vadd.f32 %v2790, %v2791
    %v2795 = vadd.f32 %v2794, %v2792
    %v2796 = vadd.f32 %v2795, %v2793
    %v2797 = vsel %vm70, %v2796, 0.0
    %v2798 = vrot.slane %v2797, 4
    %v2799 = vadd.f32 %v2797, %v2798
    %v2800 = vrot.slane %v2799, 2
    %v2801 = vadd.f32 %v2799, %v2800
    %v2802 = vrot.slane %v2801, 1
    %v2803 = vadd.f32 %v2801, %v2802
    %v2804 = vadd.f32 %v2789, %v2803
    %v2805 = vmul.f32 %v2784, %v21
    %v2806 = vmul.f32 %v2785, %v22
    %v2807 = vmul.f32 %v2786, %v23
    %v2808 = vmul.f32 %v2787, %v24
    %v2809 = vadd.f32 %v2805, %v2806
    %v2810 = vadd.f32 %v2809, %v2807
    %v2811 = vadd.f32 %v2810, %v2808
    %v2812 = vsel %vm70, %v2811, 0.0
    %v2813 = vrot.slane %v2812, 4
    %v2814 = vadd.f32 %v2812, %v2813
    %v2815 = vrot.slane %v2814, 2
    %v2816 = vadd.f32 %v2814, %v2815
    %v2817 = vrot.slane %v2816, 1
    %v2818 = vadd.f32 %v2816, %v2817
    %v2819 = vadd.f32 %v65, %v2818
    %v2820 = vrcp.pop %v2819
    %v2821 = vmul.f32 %v2819, %v2820
    %v2822 = vsub.f32 2.0, %v2821
    %v2823 = vmul.f32 %v2820, %v2822
    %v2825 = vrot.slane %v2823, 5
    %v2827 = vmul.f32 %v2804, %v2825
    %v2828 = vlaneseq
    %v2829 = vshrl.u32 %v2828, 7
    %v2830 = vsub.s32 0, %v2829
    %v2831 = vrot.slane %v2827, %v2830
    %v2832 = vmul.f32 %v2831, %v25
    %v2833 = vmul.f32 %v2831, %v26
    %v2834 = vmul.f32 %v2831, %v27
    %v2835 = vmul.f32 %v2831, %v28
    %v2836 = vsel %vm70, %v2832, 0.0
    %2837 = vadd.xlane.f32.xlu0 %v2836
    %v2838 = vpop.xlane.xlu0 %2837
    %v2839 = vsel %vm70, %v2833, 0.0
    %2840 = vadd.xlane.f32.xlu0 %v2839
    %v2841 = vpop.xlane.xlu0 %2840
    %v2842 = vsel %vm70, %v2834, 0.0
    %2843 = vadd.xlane.f32.xlu0 %v2842
    %v2844 = vpop.xlane.xlu0 %2843
    %v2845 = vsel %vm70, %v2835, 0.0
    %2846 = vadd.xlane.f32.xlu0 %v2845
    %v2847 = vpop.xlane.xlu0 %2846
    %v2848 = vsub.f32 %v2838, %v13
    %v2849 = vsub.f32 %v2841, %v14
    %v2850 = vsub.f32 %v2844, %v15
    %v2851 = vsub.f32 %v2847, %v16
    %v2852 = vmul.f32 %v9, %v2848
    %v2853 = vmul.f32 %v10, %v2849
    %v2854 = vmul.f32 %v11, %v2850
    %v2855 = vmul.f32 %v12, %v2851
    %v2856 = vmul.f32 %v2852, 0.5
    %v2857 = vmul.f32 %v2853, 0.5
    %v2858 = vmul.f32 %v2854, 0.5
    %v2859 = vmul.f32 %v2855, 0.5
    %v2860 = vtanh.pop %v2856
    %v2861 = vtanh.pop %v2857
    %v2862 = vtanh.pop %v2858
    %v2863 = vtanh.pop %v2859
    %v2864 = vmul.f32 %v2860, 0.5
    %v2865 = vmul.f32 %v2861, 0.5
    %v2866 = vmul.f32 %v2862, 0.5
    %v2867 = vmul.f32 %v2863, 0.5
    %v2868 = vadd.f32 %v2864, 0.5
    %v2869 = vadd.f32 %v2865, 0.5
    %v2870 = vadd.f32 %v2866, 0.5
    %v2871 = vadd.f32 %v2867, 0.5
    %v2872 = vmul.f32 %v29, %v2827
    %v2873 = vadd.f32 %v2872, %v2619
    %v2874 = vmul.f32 %v2868, %v17
    %v2875 = vmul.f32 %v2869, %v18
    %v2876 = vmul.f32 %v2870, %v19
    %v2877 = vmul.f32 %v2871, %v20
    %v2878 = vadd.f32 %v2874, %v2875
    %v2879 = vadd.f32 %v2878, %v2876
    %v2880 = vadd.f32 %v2879, %v2877
    %v2881 = vsel %vm70, %v2880, 0.0
    %v2882 = vrot.slane %v2881, 4
    %v2883 = vadd.f32 %v2881, %v2882
    %v2884 = vrot.slane %v2883, 2
    %v2885 = vadd.f32 %v2883, %v2884
    %v2886 = vrot.slane %v2885, 1
    %v2887 = vadd.f32 %v2885, %v2886
    %v2888 = vadd.f32 %v2873, %v2887
    %v2889 = vmul.f32 %v2868, %v21
    %v2890 = vmul.f32 %v2869, %v22
    %v2891 = vmul.f32 %v2870, %v23
    %v2892 = vmul.f32 %v2871, %v24
    %v2893 = vadd.f32 %v2889, %v2890
    %v2894 = vadd.f32 %v2893, %v2891
    %v2895 = vadd.f32 %v2894, %v2892
    %v2896 = vsel %vm70, %v2895, 0.0
    %v2897 = vrot.slane %v2896, 4
    %v2898 = vadd.f32 %v2896, %v2897
    %v2899 = vrot.slane %v2898, 2
    %v2900 = vadd.f32 %v2898, %v2899
    %v2901 = vrot.slane %v2900, 1
    %v2902 = vadd.f32 %v2900, %v2901
    %v2903 = vadd.f32 %v65, %v2902
    %v2904 = vrcp.pop %v2903
    %v2905 = vmul.f32 %v2903, %v2904
    %v2906 = vsub.f32 2.0, %v2905
    %v2907 = vmul.f32 %v2904, %v2906
    %v2909 = vrot.slane %v2907, 5
    %v2911 = vmul.f32 %v2888, %v2909
    %v2912 = vlaneseq
    %v2913 = vshrl.u32 %v2912, 7
    %v2914 = vsub.s32 0, %v2913
    %v2915 = vrot.slane %v2911, %v2914
    %v2916 = vmul.f32 %v2915, %v25
    %v2917 = vmul.f32 %v2915, %v26
    %v2918 = vmul.f32 %v2915, %v27
    %v2919 = vmul.f32 %v2915, %v28
    %v2920 = vsel %vm70, %v2916, 0.0
    %2921 = vadd.xlane.f32.xlu0 %v2920
    %v2922 = vpop.xlane.xlu0 %2921
    %v2923 = vsel %vm70, %v2917, 0.0
    %2924 = vadd.xlane.f32.xlu0 %v2923
    %v2925 = vpop.xlane.xlu0 %2924
    %v2926 = vsel %vm70, %v2918, 0.0
    %2927 = vadd.xlane.f32.xlu0 %v2926
    %v2928 = vpop.xlane.xlu0 %2927
    %v2929 = vsel %vm70, %v2919, 0.0
    %2930 = vadd.xlane.f32.xlu0 %v2929
    %v2931 = vpop.xlane.xlu0 %2930
    %v2932 = vsub.f32 %v2922, %v13
    %v2933 = vsub.f32 %v2925, %v14
    %v2934 = vsub.f32 %v2928, %v15
    %v2935 = vsub.f32 %v2931, %v16
    %v2936 = vmul.f32 %v9, %v2932
    %v2937 = vmul.f32 %v10, %v2933
    %v2938 = vmul.f32 %v11, %v2934
    %v2939 = vmul.f32 %v12, %v2935
    %v2940 = vmul.f32 %v2936, 0.5
    %v2941 = vmul.f32 %v2937, 0.5
    %v2942 = vmul.f32 %v2938, 0.5
    %v2943 = vmul.f32 %v2939, 0.5
    %v2944 = vtanh.pop %v2940
    %v2945 = vtanh.pop %v2941
    %v2946 = vtanh.pop %v2942
    %v2947 = vtanh.pop %v2943
    %v2948 = vmul.f32 %v2944, 0.5
    %v2949 = vmul.f32 %v2945, 0.5
    %v2950 = vmul.f32 %v2946, 0.5
    %v2951 = vmul.f32 %v2947, 0.5
    %v2952 = vadd.f32 %v2948, 0.5
    %v2953 = vadd.f32 %v2949, 0.5
    %v2954 = vadd.f32 %v2950, 0.5
    %v2955 = vadd.f32 %v2951, 0.5
    %v2956 = vmul.f32 %v29, %v2911
    %v2957 = vadd.f32 %v2956, %v2619
    %v2958 = vmul.f32 %v2952, %v17
    %v2959 = vmul.f32 %v2953, %v18
    %v2960 = vmul.f32 %v2954, %v19
    %v2961 = vmul.f32 %v2955, %v20
    %v2962 = vadd.f32 %v2958, %v2959
    %v2963 = vadd.f32 %v2962, %v2960
    %v2964 = vadd.f32 %v2963, %v2961
    %v2965 = vsel %vm70, %v2964, 0.0
    %v2966 = vrot.slane %v2965, 4
    %v2967 = vadd.f32 %v2965, %v2966
    %v2968 = vrot.slane %v2967, 2
    %v2969 = vadd.f32 %v2967, %v2968
    %v2970 = vrot.slane %v2969, 1
    %v2971 = vadd.f32 %v2969, %v2970
    %v2972 = vadd.f32 %v2957, %v2971
    %v2973 = vmul.f32 %v2952, %v21
    %v2974 = vmul.f32 %v2953, %v22
    %v2975 = vmul.f32 %v2954, %v23
    %v2976 = vmul.f32 %v2955, %v24
    %v2977 = vadd.f32 %v2973, %v2974
    %v2978 = vadd.f32 %v2977, %v2975
    %v2979 = vadd.f32 %v2978, %v2976
    %v2980 = vsel %vm70, %v2979, 0.0
    %v2981 = vrot.slane %v2980, 4
    %v2982 = vadd.f32 %v2980, %v2981
    %v2983 = vrot.slane %v2982, 2
    %v2984 = vadd.f32 %v2982, %v2983
    %v2985 = vrot.slane %v2984, 1
    %v2986 = vadd.f32 %v2984, %v2985
    %v2987 = vadd.f32 %v65, %v2986
    %v2988 = vrcp.pop %v2987
    %v2989 = vmul.f32 %v2987, %v2988
    %v2990 = vsub.f32 2.0, %v2989
    %v2991 = vmul.f32 %v2988, %v2990
    %v2993 = vrot.slane %v2991, 5
    %v2995 = vmul.f32 %v2972, %v2993
    %v2996 = vlaneseq
    %v2997 = vshrl.u32 %v2996, 7
    %v2998 = vsub.s32 0, %v2997
    %v2999 = vrot.slane %v2995, %v2998
    %v3000 = vmul.f32 %v2999, %v25
    %v3001 = vmul.f32 %v2999, %v26
    %v3002 = vmul.f32 %v2999, %v27
    %v3003 = vmul.f32 %v2999, %v28
    %v3004 = vsel %vm70, %v3000, 0.0
    %3005 = vadd.xlane.f32.xlu0 %v3004
    %v3006 = vpop.xlane.xlu0 %3005
    %v3007 = vsel %vm70, %v3001, 0.0
    %3008 = vadd.xlane.f32.xlu0 %v3007
    %v3009 = vpop.xlane.xlu0 %3008
    %v3010 = vsel %vm70, %v3002, 0.0
    %3011 = vadd.xlane.f32.xlu0 %v3010
    %v3012 = vpop.xlane.xlu0 %3011
    %v3013 = vsel %vm70, %v3003, 0.0
    %3014 = vadd.xlane.f32.xlu0 %v3013
    %v3015 = vpop.xlane.xlu0 %3014
    %v3016 = vsub.f32 %v3006, %v13
    %v3017 = vsub.f32 %v3009, %v14
    %v3018 = vsub.f32 %v3012, %v15
    %v3019 = vsub.f32 %v3015, %v16
    %v3020 = vmul.f32 %v9, %v3016
    %v3021 = vmul.f32 %v10, %v3017
    %v3022 = vmul.f32 %v11, %v3018
    %v3023 = vmul.f32 %v12, %v3019
    %v3024 = vmul.f32 %v3020, 0.5
    %v3025 = vmul.f32 %v3021, 0.5
    %v3026 = vmul.f32 %v3022, 0.5
    %v3027 = vmul.f32 %v3023, 0.5
    %v3028 = vtanh.pop %v3024
    %v3029 = vtanh.pop %v3025
    %v3030 = vtanh.pop %v3026
    %v3031 = vtanh.pop %v3027
    %v3032 = vmul.f32 %v3028, 0.5
    %v3033 = vmul.f32 %v3029, 0.5
    %v3034 = vmul.f32 %v3030, 0.5
    %v3035 = vmul.f32 %v3031, 0.5
    %v3036 = vadd.f32 %v3032, 0.5
    %v3037 = vadd.f32 %v3033, 0.5
    %v3038 = vadd.f32 %v3034, 0.5
    %v3039 = vadd.f32 %v3035, 0.5
    %v3040 = vmul.f32 %v29, %v2995
    %v3041 = vadd.f32 %v3040, %v2619
    %v3042 = vmul.f32 %v3036, %v17
    %v3043 = vmul.f32 %v3037, %v18
    %v3044 = vmul.f32 %v3038, %v19
    %v3045 = vmul.f32 %v3039, %v20
    %v3046 = vadd.f32 %v3042, %v3043
    %v3047 = vadd.f32 %v3046, %v3044
    %v3048 = vadd.f32 %v3047, %v3045
    %v3049 = vsel %vm70, %v3048, 0.0
    %v3050 = vrot.slane %v3049, 4
    %v3051 = vadd.f32 %v3049, %v3050
    %v3052 = vrot.slane %v3051, 2
    %v3053 = vadd.f32 %v3051, %v3052
    %v3054 = vrot.slane %v3053, 1
    %v3055 = vadd.f32 %v3053, %v3054
    %v3056 = vadd.f32 %v3041, %v3055
    %v3057 = vmul.f32 %v3036, %v21
    %v3058 = vmul.f32 %v3037, %v22
    %v3059 = vmul.f32 %v3038, %v23
    %v3060 = vmul.f32 %v3039, %v24
    %v3061 = vadd.f32 %v3057, %v3058
    %v3062 = vadd.f32 %v3061, %v3059
    %v3063 = vadd.f32 %v3062, %v3060
    %v3064 = vsel %vm70, %v3063, 0.0
    %v3065 = vrot.slane %v3064, 4
    %v3066 = vadd.f32 %v3064, %v3065
    %v3067 = vrot.slane %v3066, 2
    %v3068 = vadd.f32 %v3066, %v3067
    %v3069 = vrot.slane %v3068, 1
    %v3070 = vadd.f32 %v3068, %v3069
    %v3071 = vadd.f32 %v65, %v3070
    %v3072 = vrcp.pop %v3071
    %v3073 = vmul.f32 %v3071, %v3072
    %v3074 = vsub.f32 2.0, %v3073
    %v3075 = vmul.f32 %v3072, %v3074
    %v3077 = vrot.slane %v3075, 5
    %v3079 = vmul.f32 %v3056, %v3077
    %v3080 = vlaneseq
    %v3081 = vshrl.u32 %v3080, 7
    %v3082 = vsub.s32 0, %v3081
    %v3083 = vrot.slane %v3079, %v3082
    %v3084 = vmul.f32 %v3083, %v25
    %v3085 = vmul.f32 %v3083, %v26
    %v3086 = vmul.f32 %v3083, %v27
    %v3087 = vmul.f32 %v3083, %v28
    %v3088 = vsel %vm70, %v3084, 0.0
    %3089 = vadd.xlane.f32.xlu0 %v3088
    %v3090 = vpop.xlane.xlu0 %3089
    %v3091 = vsel %vm70, %v3085, 0.0
    %3092 = vadd.xlane.f32.xlu0 %v3091
    %v3093 = vpop.xlane.xlu0 %3092
    %v3094 = vsel %vm70, %v3086, 0.0
    %3095 = vadd.xlane.f32.xlu0 %v3094
    %v3096 = vpop.xlane.xlu0 %3095
    %v3097 = vsel %vm70, %v3087, 0.0
    %3098 = vadd.xlane.f32.xlu0 %v3097
    %v3099 = vpop.xlane.xlu0 %3098
    %v3100 = vsub.f32 %v3090, %v13
    %v3101 = vsub.f32 %v3093, %v14
    %v3102 = vsub.f32 %v3096, %v15
    %v3103 = vsub.f32 %v3099, %v16
    %v3104 = vmul.f32 %v9, %v3100
    %v3105 = vmul.f32 %v10, %v3101
    %v3106 = vmul.f32 %v11, %v3102
    %v3107 = vmul.f32 %v12, %v3103
    %v3108 = vmul.f32 %v3104, 0.5
    %v3109 = vmul.f32 %v3105, 0.5
    %v3110 = vmul.f32 %v3106, 0.5
    %v3111 = vmul.f32 %v3107, 0.5
    %v3112 = vtanh.pop %v3108
    %v3113 = vtanh.pop %v3109
    %v3114 = vtanh.pop %v3110
    %v3115 = vtanh.pop %v3111
    %v3116 = vmul.f32 %v3112, 0.5
    %v3117 = vmul.f32 %v3113, 0.5
    %v3118 = vmul.f32 %v3114, 0.5
    %v3119 = vmul.f32 %v3115, 0.5
    %v3120 = vadd.f32 %v3116, 0.5
    %v3121 = vadd.f32 %v3117, 0.5
    %v3122 = vadd.f32 %v3118, 0.5
    %v3123 = vadd.f32 %v3119, 0.5
    %v3124 = vmul.f32 %v29, %v3079
    %v3125 = vrot.slane %v55, 6
    %v3127 = vadd.f32 %v3124, %v3125
    %v3128 = vmul.f32 %v3120, %v17
    %v3129 = vmul.f32 %v3121, %v18
    %v3130 = vmul.f32 %v3122, %v19
    %v3131 = vmul.f32 %v3123, %v20
    %v3132 = vadd.f32 %v3128, %v3129
    %v3133 = vadd.f32 %v3132, %v3130
    %v3134 = vadd.f32 %v3133, %v3131
    %v3135 = vsel %vm70, %v3134, 0.0
    %v3136 = vrot.slane %v3135, 4
    %v3137 = vadd.f32 %v3135, %v3136
    %v3138 = vrot.slane %v3137, 2
    %v3139 = vadd.f32 %v3137, %v3138
    %v3140 = vrot.slane %v3139, 1
    %v3141 = vadd.f32 %v3139, %v3140
    %v3142 = vadd.f32 %v3127, %v3141
    %v3143 = vmul.f32 %v3120, %v21
    %v3144 = vmul.f32 %v3121, %v22
    %v3145 = vmul.f32 %v3122, %v23
    %v3146 = vmul.f32 %v3123, %v24
    %v3147 = vadd.f32 %v3143, %v3144
    %v3148 = vadd.f32 %v3147, %v3145
    %v3149 = vadd.f32 %v3148, %v3146
    %v3150 = vsel %vm70, %v3149, 0.0
    %v3151 = vrot.slane %v3150, 4
    %v3152 = vadd.f32 %v3150, %v3151
    %v3153 = vrot.slane %v3152, 2
    %v3154 = vadd.f32 %v3152, %v3153
    %v3155 = vrot.slane %v3154, 1
    %v3156 = vadd.f32 %v3154, %v3155
    %v3157 = vadd.f32 %v65, %v3156
    %v3158 = vrcp.pop %v3157
    %v3159 = vmul.f32 %v3157, %v3158
    %v3160 = vsub.f32 2.0, %v3159
    %v3161 = vmul.f32 %v3158, %v3160
    %v3163 = vrot.slane %v3161, 6
    %v3165 = vmul.f32 %v3142, %v3163
    %v3166 = vlaneseq
    %v3167 = vshrl.u32 %v3166, 7
    %v3168 = vsub.s32 0, %v3167
    %v3169 = vrot.slane %v3165, %v3168
    %v3170 = vmul.f32 %v3169, %v25
    %v3171 = vmul.f32 %v3169, %v26
    %v3172 = vmul.f32 %v3169, %v27
    %v3173 = vmul.f32 %v3169, %v28
    %v3174 = vsel %vm70, %v3170, 0.0
    %3175 = vadd.xlane.f32.xlu0 %v3174
    %v3176 = vpop.xlane.xlu0 %3175
    %v3177 = vsel %vm70, %v3171, 0.0
    %3178 = vadd.xlane.f32.xlu0 %v3177
    %v3179 = vpop.xlane.xlu0 %3178
    %v3180 = vsel %vm70, %v3172, 0.0
    %3181 = vadd.xlane.f32.xlu0 %v3180
    %v3182 = vpop.xlane.xlu0 %3181
    %v3183 = vsel %vm70, %v3173, 0.0
    %3184 = vadd.xlane.f32.xlu0 %v3183
    %v3185 = vpop.xlane.xlu0 %3184
    %v3186 = vsub.f32 %v3176, %v13
    %v3187 = vsub.f32 %v3179, %v14
    %v3188 = vsub.f32 %v3182, %v15
    %v3189 = vsub.f32 %v3185, %v16
    %v3190 = vmul.f32 %v9, %v3186
    %v3191 = vmul.f32 %v10, %v3187
    %v3192 = vmul.f32 %v11, %v3188
    %v3193 = vmul.f32 %v12, %v3189
    %v3194 = vmul.f32 %v3190, 0.5
    %v3195 = vmul.f32 %v3191, 0.5
    %v3196 = vmul.f32 %v3192, 0.5
    %v3197 = vmul.f32 %v3193, 0.5
    %v3198 = vtanh.pop %v3194
    %v3199 = vtanh.pop %v3195
    %v3200 = vtanh.pop %v3196
    %v3201 = vtanh.pop %v3197
    %v3202 = vmul.f32 %v3198, 0.5
    %v3203 = vmul.f32 %v3199, 0.5
    %v3204 = vmul.f32 %v3200, 0.5
    %v3205 = vmul.f32 %v3201, 0.5
    %v3206 = vadd.f32 %v3202, 0.5
    %v3207 = vadd.f32 %v3203, 0.5
    %v3208 = vadd.f32 %v3204, 0.5
    %v3209 = vadd.f32 %v3205, 0.5
    %v3210 = vmul.f32 %v29, %v3165
    %v3211 = vadd.f32 %v3210, %v3125
    %v3212 = vmul.f32 %v3206, %v17
    %v3213 = vmul.f32 %v3207, %v18
    %v3214 = vmul.f32 %v3208, %v19
    %v3215 = vmul.f32 %v3209, %v20
    %v3216 = vadd.f32 %v3212, %v3213
    %v3217 = vadd.f32 %v3216, %v3214
    %v3218 = vadd.f32 %v3217, %v3215
    %v3219 = vsel %vm70, %v3218, 0.0
    %v3220 = vrot.slane %v3219, 4
    %v3221 = vadd.f32 %v3219, %v3220
    %v3222 = vrot.slane %v3221, 2
    %v3223 = vadd.f32 %v3221, %v3222
    %v3224 = vrot.slane %v3223, 1
    %v3225 = vadd.f32 %v3223, %v3224
    %v3226 = vadd.f32 %v3211, %v3225
    %v3227 = vmul.f32 %v3206, %v21
    %v3228 = vmul.f32 %v3207, %v22
    %v3229 = vmul.f32 %v3208, %v23
    %v3230 = vmul.f32 %v3209, %v24
    %v3231 = vadd.f32 %v3227, %v3228
    %v3232 = vadd.f32 %v3231, %v3229
    %v3233 = vadd.f32 %v3232, %v3230
    %v3234 = vsel %vm70, %v3233, 0.0
    %v3235 = vrot.slane %v3234, 4
    %v3236 = vadd.f32 %v3234, %v3235
    %v3237 = vrot.slane %v3236, 2
    %v3238 = vadd.f32 %v3236, %v3237
    %v3239 = vrot.slane %v3238, 1
    %v3240 = vadd.f32 %v3238, %v3239
    %v3241 = vadd.f32 %v65, %v3240
    %v3242 = vrcp.pop %v3241
    %v3243 = vmul.f32 %v3241, %v3242
    %v3244 = vsub.f32 2.0, %v3243
    %v3245 = vmul.f32 %v3242, %v3244
    %v3247 = vrot.slane %v3245, 6
    %v3249 = vmul.f32 %v3226, %v3247
    %v3250 = vlaneseq
    %v3251 = vshrl.u32 %v3250, 7
    %v3252 = vsub.s32 0, %v3251
    %v3253 = vrot.slane %v3249, %v3252
    %v3254 = vmul.f32 %v3253, %v25
    %v3255 = vmul.f32 %v3253, %v26
    %v3256 = vmul.f32 %v3253, %v27
    %v3257 = vmul.f32 %v3253, %v28
    %v3258 = vsel %vm70, %v3254, 0.0
    %3259 = vadd.xlane.f32.xlu0 %v3258
    %v3260 = vpop.xlane.xlu0 %3259
    %v3261 = vsel %vm70, %v3255, 0.0
    %3262 = vadd.xlane.f32.xlu0 %v3261
    %v3263 = vpop.xlane.xlu0 %3262
    %v3264 = vsel %vm70, %v3256, 0.0
    %3265 = vadd.xlane.f32.xlu0 %v3264
    %v3266 = vpop.xlane.xlu0 %3265
    %v3267 = vsel %vm70, %v3257, 0.0
    %3268 = vadd.xlane.f32.xlu0 %v3267
    %v3269 = vpop.xlane.xlu0 %3268
    %v3270 = vsub.f32 %v3260, %v13
    %v3271 = vsub.f32 %v3263, %v14
    %v3272 = vsub.f32 %v3266, %v15
    %v3273 = vsub.f32 %v3269, %v16
    %v3274 = vmul.f32 %v9, %v3270
    %v3275 = vmul.f32 %v10, %v3271
    %v3276 = vmul.f32 %v11, %v3272
    %v3277 = vmul.f32 %v12, %v3273
    %v3278 = vmul.f32 %v3274, 0.5
    %v3279 = vmul.f32 %v3275, 0.5
    %v3280 = vmul.f32 %v3276, 0.5
    %v3281 = vmul.f32 %v3277, 0.5
    %v3282 = vtanh.pop %v3278
    %v3283 = vtanh.pop %v3279
    %v3284 = vtanh.pop %v3280
    %v3285 = vtanh.pop %v3281
    %v3286 = vmul.f32 %v3282, 0.5
    %v3287 = vmul.f32 %v3283, 0.5
    %v3288 = vmul.f32 %v3284, 0.5
    %v3289 = vmul.f32 %v3285, 0.5
    %v3290 = vadd.f32 %v3286, 0.5
    %v3291 = vadd.f32 %v3287, 0.5
    %v3292 = vadd.f32 %v3288, 0.5
    %v3293 = vadd.f32 %v3289, 0.5
    %v3294 = vmul.f32 %v29, %v3249
    %v3295 = vadd.f32 %v3294, %v3125
    %v3296 = vmul.f32 %v3290, %v17
    %v3297 = vmul.f32 %v3291, %v18
    %v3298 = vmul.f32 %v3292, %v19
    %v3299 = vmul.f32 %v3293, %v20
    %v3300 = vadd.f32 %v3296, %v3297
    %v3301 = vadd.f32 %v3300, %v3298
    %v3302 = vadd.f32 %v3301, %v3299
    %v3303 = vsel %vm70, %v3302, 0.0
    %v3304 = vrot.slane %v3303, 4
    %v3305 = vadd.f32 %v3303, %v3304
    %v3306 = vrot.slane %v3305, 2
    %v3307 = vadd.f32 %v3305, %v3306
    %v3308 = vrot.slane %v3307, 1
    %v3309 = vadd.f32 %v3307, %v3308
    %v3310 = vadd.f32 %v3295, %v3309
    %v3311 = vmul.f32 %v3290, %v21
    %v3312 = vmul.f32 %v3291, %v22
    %v3313 = vmul.f32 %v3292, %v23
    %v3314 = vmul.f32 %v3293, %v24
    %v3315 = vadd.f32 %v3311, %v3312
    %v3316 = vadd.f32 %v3315, %v3313
    %v3317 = vadd.f32 %v3316, %v3314
    %v3318 = vsel %vm70, %v3317, 0.0
    %v3319 = vrot.slane %v3318, 4
    %v3320 = vadd.f32 %v3318, %v3319
    %v3321 = vrot.slane %v3320, 2
    %v3322 = vadd.f32 %v3320, %v3321
    %v3323 = vrot.slane %v3322, 1
    %v3324 = vadd.f32 %v3322, %v3323
    %v3325 = vadd.f32 %v65, %v3324
    %v3326 = vrcp.pop %v3325
    %v3327 = vmul.f32 %v3325, %v3326
    %v3328 = vsub.f32 2.0, %v3327
    %v3329 = vmul.f32 %v3326, %v3328
    %v3331 = vrot.slane %v3329, 6
    %v3333 = vmul.f32 %v3310, %v3331
    %v3334 = vlaneseq
    %v3335 = vshrl.u32 %v3334, 7
    %v3336 = vsub.s32 0, %v3335
    %v3337 = vrot.slane %v3333, %v3336
    %v3338 = vmul.f32 %v3337, %v25
    %v3339 = vmul.f32 %v3337, %v26
    %v3340 = vmul.f32 %v3337, %v27
    %v3341 = vmul.f32 %v3337, %v28
    %v3342 = vsel %vm70, %v3338, 0.0
    %3343 = vadd.xlane.f32.xlu0 %v3342
    %v3344 = vpop.xlane.xlu0 %3343
    %v3345 = vsel %vm70, %v3339, 0.0
    %3346 = vadd.xlane.f32.xlu0 %v3345
    %v3347 = vpop.xlane.xlu0 %3346
    %v3348 = vsel %vm70, %v3340, 0.0
    %3349 = vadd.xlane.f32.xlu0 %v3348
    %v3350 = vpop.xlane.xlu0 %3349
    %v3351 = vsel %vm70, %v3341, 0.0
    %3352 = vadd.xlane.f32.xlu0 %v3351
    %v3353 = vpop.xlane.xlu0 %3352
    %v3354 = vsub.f32 %v3344, %v13
    %v3355 = vsub.f32 %v3347, %v14
    %v3356 = vsub.f32 %v3350, %v15
    %v3357 = vsub.f32 %v3353, %v16
    %v3358 = vmul.f32 %v9, %v3354
    %v3359 = vmul.f32 %v10, %v3355
    %v3360 = vmul.f32 %v11, %v3356
    %v3361 = vmul.f32 %v12, %v3357
    %v3362 = vmul.f32 %v3358, 0.5
    %v3363 = vmul.f32 %v3359, 0.5
    %v3364 = vmul.f32 %v3360, 0.5
    %v3365 = vmul.f32 %v3361, 0.5
    %v3366 = vtanh.pop %v3362
    %v3367 = vtanh.pop %v3363
    %v3368 = vtanh.pop %v3364
    %v3369 = vtanh.pop %v3365
    %v3370 = vmul.f32 %v3366, 0.5
    %v3371 = vmul.f32 %v3367, 0.5
    %v3372 = vmul.f32 %v3368, 0.5
    %v3373 = vmul.f32 %v3369, 0.5
    %v3374 = vadd.f32 %v3370, 0.5
    %v3375 = vadd.f32 %v3371, 0.5
    %v3376 = vadd.f32 %v3372, 0.5
    %v3377 = vadd.f32 %v3373, 0.5
    %v3378 = vmul.f32 %v29, %v3333
    %v3379 = vadd.f32 %v3378, %v3125
    %v3380 = vmul.f32 %v3374, %v17
    %v3381 = vmul.f32 %v3375, %v18
    %v3382 = vmul.f32 %v3376, %v19
    %v3383 = vmul.f32 %v3377, %v20
    %v3384 = vadd.f32 %v3380, %v3381
    %v3385 = vadd.f32 %v3384, %v3382
    %v3386 = vadd.f32 %v3385, %v3383
    %v3387 = vsel %vm70, %v3386, 0.0
    %v3388 = vrot.slane %v3387, 4
    %v3389 = vadd.f32 %v3387, %v3388
    %v3390 = vrot.slane %v3389, 2
    %v3391 = vadd.f32 %v3389, %v3390
    %v3392 = vrot.slane %v3391, 1
    %v3393 = vadd.f32 %v3391, %v3392
    %v3394 = vadd.f32 %v3379, %v3393
    %v3395 = vmul.f32 %v3374, %v21
    %v3396 = vmul.f32 %v3375, %v22
    %v3397 = vmul.f32 %v3376, %v23
    %v3398 = vmul.f32 %v3377, %v24
    %v3399 = vadd.f32 %v3395, %v3396
    %v3400 = vadd.f32 %v3399, %v3397
    %v3401 = vadd.f32 %v3400, %v3398
    %v3402 = vsel %vm70, %v3401, 0.0
    %v3403 = vrot.slane %v3402, 4
    %v3404 = vadd.f32 %v3402, %v3403
    %v3405 = vrot.slane %v3404, 2
    %v3406 = vadd.f32 %v3404, %v3405
    %v3407 = vrot.slane %v3406, 1
    %v3408 = vadd.f32 %v3406, %v3407
    %v3409 = vadd.f32 %v65, %v3408
    %v3410 = vrcp.pop %v3409
    %v3411 = vmul.f32 %v3409, %v3410
    %v3412 = vsub.f32 2.0, %v3411
    %v3413 = vmul.f32 %v3410, %v3412
    %v3415 = vrot.slane %v3413, 6
    %v3417 = vmul.f32 %v3394, %v3415
    %v3418 = vlaneseq
    %v3419 = vshrl.u32 %v3418, 7
    %v3420 = vsub.s32 0, %v3419
    %v3421 = vrot.slane %v3417, %v3420
    %v3422 = vmul.f32 %v3421, %v25
    %v3423 = vmul.f32 %v3421, %v26
    %v3424 = vmul.f32 %v3421, %v27
    %v3425 = vmul.f32 %v3421, %v28
    %v3426 = vsel %vm70, %v3422, 0.0
    %3427 = vadd.xlane.f32.xlu0 %v3426
    %v3428 = vpop.xlane.xlu0 %3427
    %v3429 = vsel %vm70, %v3423, 0.0
    %3430 = vadd.xlane.f32.xlu0 %v3429
    %v3431 = vpop.xlane.xlu0 %3430
    %v3432 = vsel %vm70, %v3424, 0.0
    %3433 = vadd.xlane.f32.xlu0 %v3432
    %v3434 = vpop.xlane.xlu0 %3433
    %v3435 = vsel %vm70, %v3425, 0.0
    %3436 = vadd.xlane.f32.xlu0 %v3435
    %v3437 = vpop.xlane.xlu0 %3436
    %v3438 = vsub.f32 %v3428, %v13
    %v3439 = vsub.f32 %v3431, %v14
    %v3440 = vsub.f32 %v3434, %v15
    %v3441 = vsub.f32 %v3437, %v16
    %v3442 = vmul.f32 %v9, %v3438
    %v3443 = vmul.f32 %v10, %v3439
    %v3444 = vmul.f32 %v11, %v3440
    %v3445 = vmul.f32 %v12, %v3441
    %v3446 = vmul.f32 %v3442, 0.5
    %v3447 = vmul.f32 %v3443, 0.5
    %v3448 = vmul.f32 %v3444, 0.5
    %v3449 = vmul.f32 %v3445, 0.5
    %v3450 = vtanh.pop %v3446
    %v3451 = vtanh.pop %v3447
    %v3452 = vtanh.pop %v3448
    %v3453 = vtanh.pop %v3449
    %v3454 = vmul.f32 %v3450, 0.5
    %v3455 = vmul.f32 %v3451, 0.5
    %v3456 = vmul.f32 %v3452, 0.5
    %v3457 = vmul.f32 %v3453, 0.5
    %v3458 = vadd.f32 %v3454, 0.5
    %v3459 = vadd.f32 %v3455, 0.5
    %v3460 = vadd.f32 %v3456, 0.5
    %v3461 = vadd.f32 %v3457, 0.5
    %v3462 = vmul.f32 %v29, %v3417
    %v3463 = vadd.f32 %v3462, %v3125
    %v3464 = vmul.f32 %v3458, %v17
    %v3465 = vmul.f32 %v3459, %v18
    %v3466 = vmul.f32 %v3460, %v19
    %v3467 = vmul.f32 %v3461, %v20
    %v3468 = vadd.f32 %v3464, %v3465
    %v3469 = vadd.f32 %v3468, %v3466
    %v3470 = vadd.f32 %v3469, %v3467
    %v3471 = vsel %vm70, %v3470, 0.0
    %v3472 = vrot.slane %v3471, 4
    %v3473 = vadd.f32 %v3471, %v3472
    %v3474 = vrot.slane %v3473, 2
    %v3475 = vadd.f32 %v3473, %v3474
    %v3476 = vrot.slane %v3475, 1
    %v3477 = vadd.f32 %v3475, %v3476
    %v3478 = vadd.f32 %v3463, %v3477
    %v3479 = vmul.f32 %v3458, %v21
    %v3480 = vmul.f32 %v3459, %v22
    %v3481 = vmul.f32 %v3460, %v23
    %v3482 = vmul.f32 %v3461, %v24
    %v3483 = vadd.f32 %v3479, %v3480
    %v3484 = vadd.f32 %v3483, %v3481
    %v3485 = vadd.f32 %v3484, %v3482
    %v3486 = vsel %vm70, %v3485, 0.0
    %v3487 = vrot.slane %v3486, 4
    %v3488 = vadd.f32 %v3486, %v3487
    %v3489 = vrot.slane %v3488, 2
    %v3490 = vadd.f32 %v3488, %v3489
    %v3491 = vrot.slane %v3490, 1
    %v3492 = vadd.f32 %v3490, %v3491
    %v3493 = vadd.f32 %v65, %v3492
    %v3494 = vrcp.pop %v3493
    %v3495 = vmul.f32 %v3493, %v3494
    %v3496 = vsub.f32 2.0, %v3495
    %v3497 = vmul.f32 %v3494, %v3496
    %v3499 = vrot.slane %v3497, 6
    %v3501 = vmul.f32 %v3478, %v3499
    %v3502 = vlaneseq
    %v3503 = vshrl.u32 %v3502, 7
    %v3504 = vsub.s32 0, %v3503
    %v3505 = vrot.slane %v3501, %v3504
    %v3506 = vmul.f32 %v3505, %v25
    %v3507 = vmul.f32 %v3505, %v26
    %v3508 = vmul.f32 %v3505, %v27
    %v3509 = vmul.f32 %v3505, %v28
    %v3510 = vsel %vm70, %v3506, 0.0
    %3511 = vadd.xlane.f32.xlu0 %v3510
    %v3512 = vpop.xlane.xlu0 %3511
    %v3513 = vsel %vm70, %v3507, 0.0
    %3514 = vadd.xlane.f32.xlu0 %v3513
    %v3515 = vpop.xlane.xlu0 %3514
    %v3516 = vsel %vm70, %v3508, 0.0
    %3517 = vadd.xlane.f32.xlu0 %v3516
    %v3518 = vpop.xlane.xlu0 %3517
    %v3519 = vsel %vm70, %v3509, 0.0
    %3520 = vadd.xlane.f32.xlu0 %v3519
    %v3521 = vpop.xlane.xlu0 %3520
    %v3522 = vsub.f32 %v3512, %v13
    %v3523 = vsub.f32 %v3515, %v14
    %v3524 = vsub.f32 %v3518, %v15
    %v3525 = vsub.f32 %v3521, %v16
    %v3526 = vmul.f32 %v9, %v3522
    %v3527 = vmul.f32 %v10, %v3523
    %v3528 = vmul.f32 %v11, %v3524
    %v3529 = vmul.f32 %v12, %v3525
    %v3530 = vmul.f32 %v3526, 0.5
    %v3531 = vmul.f32 %v3527, 0.5
    %v3532 = vmul.f32 %v3528, 0.5
    %v3533 = vmul.f32 %v3529, 0.5
    %v3534 = vtanh.pop %v3530
    %v3535 = vtanh.pop %v3531
    %v3536 = vtanh.pop %v3532
    %v3537 = vtanh.pop %v3533
    %v3538 = vmul.f32 %v3534, 0.5
    %v3539 = vmul.f32 %v3535, 0.5
    %v3540 = vmul.f32 %v3536, 0.5
    %v3541 = vmul.f32 %v3537, 0.5
    %v3542 = vadd.f32 %v3538, 0.5
    %v3543 = vadd.f32 %v3539, 0.5
    %v3544 = vadd.f32 %v3540, 0.5
    %v3545 = vadd.f32 %v3541, 0.5
    %v3546 = vmul.f32 %v29, %v3501
    %v3547 = vadd.f32 %v3546, %v3125
    %v3548 = vmul.f32 %v3542, %v17
    %v3549 = vmul.f32 %v3543, %v18
    %v3550 = vmul.f32 %v3544, %v19
    %v3551 = vmul.f32 %v3545, %v20
    %v3552 = vadd.f32 %v3548, %v3549
    %v3553 = vadd.f32 %v3552, %v3550
    %v3554 = vadd.f32 %v3553, %v3551
    %v3555 = vsel %vm70, %v3554, 0.0
    %v3556 = vrot.slane %v3555, 4
    %v3557 = vadd.f32 %v3555, %v3556
    %v3558 = vrot.slane %v3557, 2
    %v3559 = vadd.f32 %v3557, %v3558
    %v3560 = vrot.slane %v3559, 1
    %v3561 = vadd.f32 %v3559, %v3560
    %v3562 = vadd.f32 %v3547, %v3561
    %v3563 = vmul.f32 %v3542, %v21
    %v3564 = vmul.f32 %v3543, %v22
    %v3565 = vmul.f32 %v3544, %v23
    %v3566 = vmul.f32 %v3545, %v24
    %v3567 = vadd.f32 %v3563, %v3564
    %v3568 = vadd.f32 %v3567, %v3565
    %v3569 = vadd.f32 %v3568, %v3566
    %v3570 = vsel %vm70, %v3569, 0.0
    %v3571 = vrot.slane %v3570, 4
    %v3572 = vadd.f32 %v3570, %v3571
    %v3573 = vrot.slane %v3572, 2
    %v3574 = vadd.f32 %v3572, %v3573
    %v3575 = vrot.slane %v3574, 1
    %v3576 = vadd.f32 %v3574, %v3575
    %v3577 = vadd.f32 %v65, %v3576
    %v3578 = vrcp.pop %v3577
    %v3579 = vmul.f32 %v3577, %v3578
    %v3580 = vsub.f32 2.0, %v3579
    %v3581 = vmul.f32 %v3578, %v3580
    %v3583 = vrot.slane %v3581, 6
    %v3585 = vmul.f32 %v3562, %v3583
    %v3586 = vlaneseq
    %v3587 = vshrl.u32 %v3586, 7
    %v3588 = vsub.s32 0, %v3587
    %v3589 = vrot.slane %v3585, %v3588
    %v3590 = vmul.f32 %v3589, %v25
    %v3591 = vmul.f32 %v3589, %v26
    %v3592 = vmul.f32 %v3589, %v27
    %v3593 = vmul.f32 %v3589, %v28
    %v3594 = vsel %vm70, %v3590, 0.0
    %3595 = vadd.xlane.f32.xlu0 %v3594
    %v3596 = vpop.xlane.xlu0 %3595
    %v3597 = vsel %vm70, %v3591, 0.0
    %3598 = vadd.xlane.f32.xlu0 %v3597
    %v3599 = vpop.xlane.xlu0 %3598
    %v3600 = vsel %vm70, %v3592, 0.0
    %3601 = vadd.xlane.f32.xlu0 %v3600
    %v3602 = vpop.xlane.xlu0 %3601
    %v3603 = vsel %vm70, %v3593, 0.0
    %3604 = vadd.xlane.f32.xlu0 %v3603
    %v3605 = vpop.xlane.xlu0 %3604
    %v3606 = vsub.f32 %v3596, %v13
    %v3607 = vsub.f32 %v3599, %v14
    %v3608 = vsub.f32 %v3602, %v15
    %v3609 = vsub.f32 %v3605, %v16
    %v3610 = vmul.f32 %v9, %v3606
    %v3611 = vmul.f32 %v10, %v3607
    %v3612 = vmul.f32 %v11, %v3608
    %v3613 = vmul.f32 %v12, %v3609
    %v3614 = vmul.f32 %v3610, 0.5
    %v3615 = vmul.f32 %v3611, 0.5
    %v3616 = vmul.f32 %v3612, 0.5
    %v3617 = vmul.f32 %v3613, 0.5
    %v3618 = vtanh.pop %v3614
    %v3619 = vtanh.pop %v3615
    %v3620 = vtanh.pop %v3616
    %v3621 = vtanh.pop %v3617
    %v3622 = vmul.f32 %v3618, 0.5
    %v3623 = vmul.f32 %v3619, 0.5
    %v3624 = vmul.f32 %v3620, 0.5
    %v3625 = vmul.f32 %v3621, 0.5
    %v3626 = vadd.f32 %v3622, 0.5
    %v3627 = vadd.f32 %v3623, 0.5
    %v3628 = vadd.f32 %v3624, 0.5
    %v3629 = vadd.f32 %v3625, 0.5
    %v3630 = vmul.f32 %v29, %v3585
    %v3631 = vrot.slane %v55, 7
    %v3633 = vadd.f32 %v3630, %v3631
    %v3634 = vmul.f32 %v3626, %v17
    %v3635 = vmul.f32 %v3627, %v18
    %v3636 = vmul.f32 %v3628, %v19
    %v3637 = vmul.f32 %v3629, %v20
    %v3638 = vadd.f32 %v3634, %v3635
    %v3639 = vadd.f32 %v3638, %v3636
    %v3640 = vadd.f32 %v3639, %v3637
    %v3641 = vsel %vm70, %v3640, 0.0
    %v3642 = vrot.slane %v3641, 4
    %v3643 = vadd.f32 %v3641, %v3642
    %v3644 = vrot.slane %v3643, 2
    %v3645 = vadd.f32 %v3643, %v3644
    %v3646 = vrot.slane %v3645, 1
    %v3647 = vadd.f32 %v3645, %v3646
    %v3648 = vadd.f32 %v3633, %v3647
    %v3649 = vmul.f32 %v3626, %v21
    %v3650 = vmul.f32 %v3627, %v22
    %v3651 = vmul.f32 %v3628, %v23
    %v3652 = vmul.f32 %v3629, %v24
    %v3653 = vadd.f32 %v3649, %v3650
    %v3654 = vadd.f32 %v3653, %v3651
    %v3655 = vadd.f32 %v3654, %v3652
    %v3656 = vsel %vm70, %v3655, 0.0
    %v3657 = vrot.slane %v3656, 4
    %v3658 = vadd.f32 %v3656, %v3657
    %v3659 = vrot.slane %v3658, 2
    %v3660 = vadd.f32 %v3658, %v3659
    %v3661 = vrot.slane %v3660, 1
    %v3662 = vadd.f32 %v3660, %v3661
    %v3663 = vadd.f32 %v65, %v3662
    %v3664 = vrcp.pop %v3663
    %v3665 = vmul.f32 %v3663, %v3664
    %v3666 = vsub.f32 2.0, %v3665
    %v3667 = vmul.f32 %v3664, %v3666
    %v3669 = vrot.slane %v3667, 7
    %v3671 = vmul.f32 %v3648, %v3669
    %v3672 = vlaneseq
    %v3673 = vshrl.u32 %v3672, 7
    %v3674 = vsub.s32 0, %v3673
    %v3675 = vrot.slane %v3671, %v3674
    %v3676 = vmul.f32 %v3675, %v25
    %v3677 = vmul.f32 %v3675, %v26
    %v3678 = vmul.f32 %v3675, %v27
    %v3679 = vmul.f32 %v3675, %v28
    %v3680 = vsel %vm70, %v3676, 0.0
    %3681 = vadd.xlane.f32.xlu0 %v3680
    %v3682 = vpop.xlane.xlu0 %3681
    %v3683 = vsel %vm70, %v3677, 0.0
    %3684 = vadd.xlane.f32.xlu0 %v3683
    %v3685 = vpop.xlane.xlu0 %3684
    %v3686 = vsel %vm70, %v3678, 0.0
    %3687 = vadd.xlane.f32.xlu0 %v3686
    %v3688 = vpop.xlane.xlu0 %3687
    %v3689 = vsel %vm70, %v3679, 0.0
    %3690 = vadd.xlane.f32.xlu0 %v3689
    %v3691 = vpop.xlane.xlu0 %3690
    %v3692 = vsub.f32 %v3682, %v13
    %v3693 = vsub.f32 %v3685, %v14
    %v3694 = vsub.f32 %v3688, %v15
    %v3695 = vsub.f32 %v3691, %v16
    %v3696 = vmul.f32 %v9, %v3692
    %v3697 = vmul.f32 %v10, %v3693
    %v3698 = vmul.f32 %v11, %v3694
    %v3699 = vmul.f32 %v12, %v3695
    %v3700 = vmul.f32 %v3696, 0.5
    %v3701 = vmul.f32 %v3697, 0.5
    %v3702 = vmul.f32 %v3698, 0.5
    %v3703 = vmul.f32 %v3699, 0.5
    %v3704 = vtanh.pop %v3700
    %v3705 = vtanh.pop %v3701
    %v3706 = vtanh.pop %v3702
    %v3707 = vtanh.pop %v3703
    %v3708 = vmul.f32 %v3704, 0.5
    %v3709 = vmul.f32 %v3705, 0.5
    %v3710 = vmul.f32 %v3706, 0.5
    %v3711 = vmul.f32 %v3707, 0.5
    %v3712 = vadd.f32 %v3708, 0.5
    %v3713 = vadd.f32 %v3709, 0.5
    %v3714 = vadd.f32 %v3710, 0.5
    %v3715 = vadd.f32 %v3711, 0.5
    %v3716 = vmul.f32 %v29, %v3671
    %v3717 = vadd.f32 %v3716, %v3631
    %v3718 = vmul.f32 %v3712, %v17
    %v3719 = vmul.f32 %v3713, %v18
    %v3720 = vmul.f32 %v3714, %v19
    %v3721 = vmul.f32 %v3715, %v20
    %v3722 = vadd.f32 %v3718, %v3719
    %v3723 = vadd.f32 %v3722, %v3720
    %v3724 = vadd.f32 %v3723, %v3721
    %v3725 = vsel %vm70, %v3724, 0.0
    %v3726 = vrot.slane %v3725, 4
    %v3727 = vadd.f32 %v3725, %v3726
    %v3728 = vrot.slane %v3727, 2
    %v3729 = vadd.f32 %v3727, %v3728
    %v3730 = vrot.slane %v3729, 1
    %v3731 = vadd.f32 %v3729, %v3730
    %v3732 = vadd.f32 %v3717, %v3731
    %v3733 = vmul.f32 %v3712, %v21
    %v3734 = vmul.f32 %v3713, %v22
    %v3735 = vmul.f32 %v3714, %v23
    %v3736 = vmul.f32 %v3715, %v24
    %v3737 = vadd.f32 %v3733, %v3734
    %v3738 = vadd.f32 %v3737, %v3735
    %v3739 = vadd.f32 %v3738, %v3736
    %v3740 = vsel %vm70, %v3739, 0.0
    %v3741 = vrot.slane %v3740, 4
    %v3742 = vadd.f32 %v3740, %v3741
    %v3743 = vrot.slane %v3742, 2
    %v3744 = vadd.f32 %v3742, %v3743
    %v3745 = vrot.slane %v3744, 1
    %v3746 = vadd.f32 %v3744, %v3745
    %v3747 = vadd.f32 %v65, %v3746
    %v3748 = vrcp.pop %v3747
    %v3749 = vmul.f32 %v3747, %v3748
    %v3750 = vsub.f32 2.0, %v3749
    %v3751 = vmul.f32 %v3748, %v3750
    %v3753 = vrot.slane %v3751, 7
    %v3755 = vmul.f32 %v3732, %v3753
    %v3756 = vlaneseq
    %v3757 = vshrl.u32 %v3756, 7
    %v3758 = vsub.s32 0, %v3757
    %v3759 = vrot.slane %v3755, %v3758
    %v3760 = vmul.f32 %v3759, %v25
    %v3761 = vmul.f32 %v3759, %v26
    %v3762 = vmul.f32 %v3759, %v27
    %v3763 = vmul.f32 %v3759, %v28
    %v3764 = vsel %vm70, %v3760, 0.0
    %3765 = vadd.xlane.f32.xlu0 %v3764
    %v3766 = vpop.xlane.xlu0 %3765
    %v3767 = vsel %vm70, %v3761, 0.0
    %3768 = vadd.xlane.f32.xlu0 %v3767
    %v3769 = vpop.xlane.xlu0 %3768
    %v3770 = vsel %vm70, %v3762, 0.0
    %3771 = vadd.xlane.f32.xlu0 %v3770
    %v3772 = vpop.xlane.xlu0 %3771
    %v3773 = vsel %vm70, %v3763, 0.0
    %3774 = vadd.xlane.f32.xlu0 %v3773
    %v3775 = vpop.xlane.xlu0 %3774
    %v3776 = vsub.f32 %v3766, %v13
    %v3777 = vsub.f32 %v3769, %v14
    %v3778 = vsub.f32 %v3772, %v15
    %v3779 = vsub.f32 %v3775, %v16
    %v3780 = vmul.f32 %v9, %v3776
    %v3781 = vmul.f32 %v10, %v3777
    %v3782 = vmul.f32 %v11, %v3778
    %v3783 = vmul.f32 %v12, %v3779
    %v3784 = vmul.f32 %v3780, 0.5
    %v3785 = vmul.f32 %v3781, 0.5
    %v3786 = vmul.f32 %v3782, 0.5
    %v3787 = vmul.f32 %v3783, 0.5
    %v3788 = vtanh.pop %v3784
    %v3789 = vtanh.pop %v3785
    %v3790 = vtanh.pop %v3786
    %v3791 = vtanh.pop %v3787
    %v3792 = vmul.f32 %v3788, 0.5
    %v3793 = vmul.f32 %v3789, 0.5
    %v3794 = vmul.f32 %v3790, 0.5
    %v3795 = vmul.f32 %v3791, 0.5
    %v3796 = vadd.f32 %v3792, 0.5
    %v3797 = vadd.f32 %v3793, 0.5
    %v3798 = vadd.f32 %v3794, 0.5
    %v3799 = vadd.f32 %v3795, 0.5
    %v3800 = vmul.f32 %v29, %v3755
    %v3801 = vadd.f32 %v3800, %v3631
    %v3802 = vmul.f32 %v3796, %v17
    %v3803 = vmul.f32 %v3797, %v18
    %v3804 = vmul.f32 %v3798, %v19
    %v3805 = vmul.f32 %v3799, %v20
    %v3806 = vadd.f32 %v3802, %v3803
    %v3807 = vadd.f32 %v3806, %v3804
    %v3808 = vadd.f32 %v3807, %v3805
    %v3809 = vsel %vm70, %v3808, 0.0
    %v3810 = vrot.slane %v3809, 4
    %v3811 = vadd.f32 %v3809, %v3810
    %v3812 = vrot.slane %v3811, 2
    %v3813 = vadd.f32 %v3811, %v3812
    %v3814 = vrot.slane %v3813, 1
    %v3815 = vadd.f32 %v3813, %v3814
    %v3816 = vadd.f32 %v3801, %v3815
    %v3817 = vmul.f32 %v3796, %v21
    %v3818 = vmul.f32 %v3797, %v22
    %v3819 = vmul.f32 %v3798, %v23
    %v3820 = vmul.f32 %v3799, %v24
    %v3821 = vadd.f32 %v3817, %v3818
    %v3822 = vadd.f32 %v3821, %v3819
    %v3823 = vadd.f32 %v3822, %v3820
    %v3824 = vsel %vm70, %v3823, 0.0
    %v3825 = vrot.slane %v3824, 4
    %v3826 = vadd.f32 %v3824, %v3825
    %v3827 = vrot.slane %v3826, 2
    %v3828 = vadd.f32 %v3826, %v3827
    %v3829 = vrot.slane %v3828, 1
    %v3830 = vadd.f32 %v3828, %v3829
    %v3831 = vadd.f32 %v65, %v3830
    %v3832 = vrcp.pop %v3831
    %v3833 = vmul.f32 %v3831, %v3832
    %v3834 = vsub.f32 2.0, %v3833
    %v3835 = vmul.f32 %v3832, %v3834
    %v3837 = vrot.slane %v3835, 7
    %v3839 = vmul.f32 %v3816, %v3837
    %v3840 = vlaneseq
    %v3841 = vshrl.u32 %v3840, 7
    %v3842 = vsub.s32 0, %v3841
    %v3843 = vrot.slane %v3839, %v3842
    %v3844 = vmul.f32 %v3843, %v25
    %v3845 = vmul.f32 %v3843, %v26
    %v3846 = vmul.f32 %v3843, %v27
    %v3847 = vmul.f32 %v3843, %v28
    %v3848 = vsel %vm70, %v3844, 0.0
    %3849 = vadd.xlane.f32.xlu0 %v3848
    %v3850 = vpop.xlane.xlu0 %3849
    %v3851 = vsel %vm70, %v3845, 0.0
    %3852 = vadd.xlane.f32.xlu0 %v3851
    %v3853 = vpop.xlane.xlu0 %3852
    %v3854 = vsel %vm70, %v3846, 0.0
    %3855 = vadd.xlane.f32.xlu0 %v3854
    %v3856 = vpop.xlane.xlu0 %3855
    %v3857 = vsel %vm70, %v3847, 0.0
    %3858 = vadd.xlane.f32.xlu0 %v3857
    %v3859 = vpop.xlane.xlu0 %3858
    %v3860 = vsub.f32 %v3850, %v13
    %v3861 = vsub.f32 %v3853, %v14
    %v3862 = vsub.f32 %v3856, %v15
    %v3863 = vsub.f32 %v3859, %v16
    %v3864 = vmul.f32 %v9, %v3860
    %v3865 = vmul.f32 %v10, %v3861
    %v3866 = vmul.f32 %v11, %v3862
    %v3867 = vmul.f32 %v12, %v3863
    %v3868 = vmul.f32 %v3864, 0.5
    %v3869 = vmul.f32 %v3865, 0.5
    %v3870 = vmul.f32 %v3866, 0.5
    %v3871 = vmul.f32 %v3867, 0.5
    %v3872 = vtanh.pop %v3868
    %v3873 = vtanh.pop %v3869
    %v3874 = vtanh.pop %v3870
    %v3875 = vtanh.pop %v3871
    %v3876 = vmul.f32 %v3872, 0.5
    %v3877 = vmul.f32 %v3873, 0.5
    %v3878 = vmul.f32 %v3874, 0.5
    %v3879 = vmul.f32 %v3875, 0.5
    %v3880 = vadd.f32 %v3876, 0.5
    %v3881 = vadd.f32 %v3877, 0.5
    %v3882 = vadd.f32 %v3878, 0.5
    %v3883 = vadd.f32 %v3879, 0.5
    %v3884 = vmul.f32 %v29, %v3839
    %v3885 = vadd.f32 %v3884, %v3631
    %v3886 = vmul.f32 %v3880, %v17
    %v3887 = vmul.f32 %v3881, %v18
    %v3888 = vmul.f32 %v3882, %v19
    %v3889 = vmul.f32 %v3883, %v20
    %v3890 = vadd.f32 %v3886, %v3887
    %v3891 = vadd.f32 %v3890, %v3888
    %v3892 = vadd.f32 %v3891, %v3889
    %v3893 = vsel %vm70, %v3892, 0.0
    %v3894 = vrot.slane %v3893, 4
    %v3895 = vadd.f32 %v3893, %v3894
    %v3896 = vrot.slane %v3895, 2
    %v3897 = vadd.f32 %v3895, %v3896
    %v3898 = vrot.slane %v3897, 1
    %v3899 = vadd.f32 %v3897, %v3898
    %v3900 = vadd.f32 %v3885, %v3899
    %v3901 = vmul.f32 %v3880, %v21
    %v3902 = vmul.f32 %v3881, %v22
    %v3903 = vmul.f32 %v3882, %v23
    %v3904 = vmul.f32 %v3883, %v24
    %v3905 = vadd.f32 %v3901, %v3902
    %v3906 = vadd.f32 %v3905, %v3903
    %v3907 = vadd.f32 %v3906, %v3904
    %v3908 = vsel %vm70, %v3907, 0.0
    %v3909 = vrot.slane %v3908, 4
    %v3910 = vadd.f32 %v3908, %v3909
    %v3911 = vrot.slane %v3910, 2
    %v3912 = vadd.f32 %v3910, %v3911
    %v3913 = vrot.slane %v3912, 1
    %v3914 = vadd.f32 %v3912, %v3913
    %v3915 = vadd.f32 %v65, %v3914
    %v3916 = vrcp.pop %v3915
    %v3917 = vmul.f32 %v3915, %v3916
    %v3918 = vsub.f32 2.0, %v3917
    %v3919 = vmul.f32 %v3916, %v3918
    %v3921 = vrot.slane %v3919, 7
    %v3923 = vmul.f32 %v3900, %v3921
    %v3924 = vlaneseq
    %v3925 = vshrl.u32 %v3924, 7
    %v3926 = vsub.s32 0, %v3925
    %v3927 = vrot.slane %v3923, %v3926
    %v3928 = vmul.f32 %v3927, %v25
    %v3929 = vmul.f32 %v3927, %v26
    %v3930 = vmul.f32 %v3927, %v27
    %v3931 = vmul.f32 %v3927, %v28
    %v3932 = vsel %vm70, %v3928, 0.0
    %3933 = vadd.xlane.f32.xlu0 %v3932
    %v3934 = vpop.xlane.xlu0 %3933
    %v3935 = vsel %vm70, %v3929, 0.0
    %3936 = vadd.xlane.f32.xlu0 %v3935
    %v3937 = vpop.xlane.xlu0 %3936
    %v3938 = vsel %vm70, %v3930, 0.0
    %3939 = vadd.xlane.f32.xlu0 %v3938
    %v3940 = vpop.xlane.xlu0 %3939
    %v3941 = vsel %vm70, %v3931, 0.0
    %3942 = vadd.xlane.f32.xlu0 %v3941
    %v3943 = vpop.xlane.xlu0 %3942
    %v3944 = vsub.f32 %v3934, %v13
    %v3945 = vsub.f32 %v3937, %v14
    %v3946 = vsub.f32 %v3940, %v15
    %v3947 = vsub.f32 %v3943, %v16
    %v3948 = vmul.f32 %v9, %v3944
    %v3949 = vmul.f32 %v10, %v3945
    %v3950 = vmul.f32 %v11, %v3946
    %v3951 = vmul.f32 %v12, %v3947
    %v3952 = vmul.f32 %v3948, 0.5
    %v3953 = vmul.f32 %v3949, 0.5
    %v3954 = vmul.f32 %v3950, 0.5
    %v3955 = vmul.f32 %v3951, 0.5
    %v3956 = vtanh.pop %v3952
    %v3957 = vtanh.pop %v3953
    %v3958 = vtanh.pop %v3954
    %v3959 = vtanh.pop %v3955
    %v3960 = vmul.f32 %v3956, 0.5
    %v3961 = vmul.f32 %v3957, 0.5
    %v3962 = vmul.f32 %v3958, 0.5
    %v3963 = vmul.f32 %v3959, 0.5
    %v3964 = vadd.f32 %v3960, 0.5
    %v3965 = vadd.f32 %v3961, 0.5
    %v3966 = vadd.f32 %v3962, 0.5
    %v3967 = vadd.f32 %v3963, 0.5
    %v3968 = vmul.f32 %v29, %v3923
    %v3969 = vadd.f32 %v3968, %v3631
    %v3970 = vmul.f32 %v3964, %v17
    %v3971 = vmul.f32 %v3965, %v18
    %v3972 = vmul.f32 %v3966, %v19
    %v3973 = vmul.f32 %v3967, %v20
    %v3974 = vadd.f32 %v3970, %v3971
    %v3975 = vadd.f32 %v3974, %v3972
    %v3976 = vadd.f32 %v3975, %v3973
    %v3977 = vsel %vm70, %v3976, 0.0
    %v3978 = vrot.slane %v3977, 4
    %v3979 = vadd.f32 %v3977, %v3978
    %v3980 = vrot.slane %v3979, 2
    %v3981 = vadd.f32 %v3979, %v3980
    %v3982 = vrot.slane %v3981, 1
    %v3983 = vadd.f32 %v3981, %v3982
    %v3984 = vadd.f32 %v3969, %v3983
    %v3985 = vmul.f32 %v3964, %v21
    %v3986 = vmul.f32 %v3965, %v22
    %v3987 = vmul.f32 %v3966, %v23
    %v3988 = vmul.f32 %v3967, %v24
    %v3989 = vadd.f32 %v3985, %v3986
    %v3990 = vadd.f32 %v3989, %v3987
    %v3991 = vadd.f32 %v3990, %v3988
    %v3992 = vsel %vm70, %v3991, 0.0
    %v3993 = vrot.slane %v3992, 4
    %v3994 = vadd.f32 %v3992, %v3993
    %v3995 = vrot.slane %v3994, 2
    %v3996 = vadd.f32 %v3994, %v3995
    %v3997 = vrot.slane %v3996, 1
    %v3998 = vadd.f32 %v3996, %v3997
    %v3999 = vadd.f32 %v65, %v3998
    %v4000 = vrcp.pop %v3999
    %v4001 = vmul.f32 %v3999, %v4000
    %v4002 = vsub.f32 2.0, %v4001
    %v4003 = vmul.f32 %v4000, %v4002
    %v4005 = vrot.slane %v4003, 7
    %v4007 = vmul.f32 %v3984, %v4005
    %v4008 = vlaneseq
    %v4009 = vshrl.u32 %v4008, 7
    %v4010 = vsub.s32 0, %v4009
    %v4011 = vrot.slane %v4007, %v4010
    %v4012 = vmul.f32 %v4011, %v25
    %v4013 = vmul.f32 %v4011, %v26
    %v4014 = vmul.f32 %v4011, %v27
    %v4015 = vmul.f32 %v4011, %v28
    %v4016 = vsel %vm70, %v4012, 0.0
    %4017 = vadd.xlane.f32.xlu0 %v4016
    %v4018 = vpop.xlane.xlu0 %4017
    %v4019 = vsel %vm70, %v4013, 0.0
    %4020 = vadd.xlane.f32.xlu0 %v4019
    %v4021 = vpop.xlane.xlu0 %4020
    %v4022 = vsel %vm70, %v4014, 0.0
    %4023 = vadd.xlane.f32.xlu0 %v4022
    %v4024 = vpop.xlane.xlu0 %4023
    %v4025 = vsel %vm70, %v4015, 0.0
    %4026 = vadd.xlane.f32.xlu0 %v4025
    %v4027 = vpop.xlane.xlu0 %4026
    %v4028 = vsub.f32 %v4018, %v13
    %v4029 = vsub.f32 %v4021, %v14
    %v4030 = vsub.f32 %v4024, %v15
    %v4031 = vsub.f32 %v4027, %v16
    %v4032 = vmul.f32 %v9, %v4028
    %v4033 = vmul.f32 %v10, %v4029
    %v4034 = vmul.f32 %v11, %v4030
    %v4035 = vmul.f32 %v12, %v4031
    %v4036 = vmul.f32 %v4032, 0.5
    %v4037 = vmul.f32 %v4033, 0.5
    %v4038 = vmul.f32 %v4034, 0.5
    %v4039 = vmul.f32 %v4035, 0.5
    %v4040 = vtanh.pop %v4036
    %v4041 = vtanh.pop %v4037
    %v4042 = vtanh.pop %v4038
    %v4043 = vtanh.pop %v4039
    %v4044 = vmul.f32 %v4040, 0.5
    %v4045 = vmul.f32 %v4041, 0.5
    %v4046 = vmul.f32 %v4042, 0.5
    %v4047 = vmul.f32 %v4043, 0.5
    %v4048 = vadd.f32 %v4044, 0.5
    %v4049 = vadd.f32 %v4045, 0.5
    %v4050 = vadd.f32 %v4046, 0.5
    %v4051 = vadd.f32 %v4047, 0.5
    %v4052 = vmul.f32 %v29, %v4007
    %v4053 = vadd.f32 %v4052, %v3631
    %v4054 = vmul.f32 %v4048, %v17
    %v4055 = vmul.f32 %v4049, %v18
    %v4056 = vmul.f32 %v4050, %v19
    %v4057 = vmul.f32 %v4051, %v20
    %v4058 = vadd.f32 %v4054, %v4055
    %v4059 = vadd.f32 %v4058, %v4056
    %v4060 = vadd.f32 %v4059, %v4057
    %v4061 = vsel %vm70, %v4060, 0.0
    %v4062 = vrot.slane %v4061, 4
    %v4063 = vadd.f32 %v4061, %v4062
    %v4064 = vrot.slane %v4063, 2
    %v4065 = vadd.f32 %v4063, %v4064
    %v4066 = vrot.slane %v4065, 1
    %v4067 = vadd.f32 %v4065, %v4066
    %v4068 = vadd.f32 %v4053, %v4067
    %v4069 = vmul.f32 %v4048, %v21
    %v4070 = vmul.f32 %v4049, %v22
    %v4071 = vmul.f32 %v4050, %v23
    %v4072 = vmul.f32 %v4051, %v24
    %v4073 = vadd.f32 %v4069, %v4070
    %v4074 = vadd.f32 %v4073, %v4071
    %v4075 = vadd.f32 %v4074, %v4072
    %v4076 = vsel %vm70, %v4075, 0.0
    %v4077 = vrot.slane %v4076, 4
    %v4078 = vadd.f32 %v4076, %v4077
    %v4079 = vrot.slane %v4078, 2
    %v4080 = vadd.f32 %v4078, %v4079
    %v4081 = vrot.slane %v4080, 1
    %v4082 = vadd.f32 %v4080, %v4081
    %v4083 = vadd.f32 %v65, %v4082
    %v4084 = vrcp.pop %v4083
    %v4085 = vmul.f32 %v4083, %v4084
    %v4086 = vsub.f32 2.0, %v4085
    %v4087 = vmul.f32 %v4084, %v4086
    %v4089 = vrot.slane %v4087, 7
    %v4091 = vmul.f32 %v4068, %v4089
    %v4093 = vrot.slane %v29, 7
    %v4095 = vmul.f32 %v4091, %v4093
    %v4096 = vadd.f32 %v4095, %v30
    %vm4097 = vcmask 155648
    %4098 = vst.msk [vmem:[#allocation2] sm:$0x1] %vm4097, %v4096
    // Predicated region
    $region6: #{lnn_encoder_forward.1} parent=1 // pred_check
      _
    $region7: #{lnn_encoder_forward.1} parent=1 // pred_check_branch
      %4100 = sbr.rel (0) target = $region9
    $region8: #{lnn_encoder_forward.1} parent=1 // pred_region
      %s4102 = ssub.s32 16, 16
      %4103 = vsyncadd [#allocation3], %s4102
      %s4105 = sshll.u32 [#allocation2], 4
      %s4106 = int_to_ptr.vmem [resolvable:$true] %s4105
      %4108 = dma.vmem_to_hbm [thread:$0]  %s4106, 16, %s1, [#allocation3]
    $region9: #{lnn_encoder_forward.1} parent=1 // pred_fallthru
      _
    // Predicated region
    $region10: #{lnn_encoder_forward.1} parent=1 // pred_check
      _
    $region11: #{lnn_encoder_forward.1} parent=1 // pred_check_branch
      %4110 = sbr.rel (0) target = $region13
    $region12: #{lnn_encoder_forward.1} parent=1 // pred_region
      %4111 = dma.done [#allocation3], 16
    $region13: #{lnn_encoder_forward.1} parent=1 // pred_fallthru
      _
    %4112 = vsyncpa [#allocation3], 1

</llo_original>
